<compile_context>
chip_gen: v7x
topology: tpu7x:2x2x1
jax: 0.10.0
libtpu: 0.0.40
codegen_flags: <defaults>
</compile_context>

<pallas_src>
import functools

import jax
import jax.numpy as jnp
from jax.experimental import pallas as pl
from jax.experimental.pallas import tpu as pltpu


# --------------------------------------------------------------- parameters
def init_params(key, cfg):
    L = cfg["seq_len"]; dm = cfg["d_model"]; S = cfg["seg_num"]
    dff = cfg["d_ff"]; pred = cfg["pred_len"]; EL = cfg["e_layers"]
    D = dm * S

    def nrm(k, shape, scale=0.1):
        return scale * jax.random.normal(k, shape, dtype=jnp.float32)

    def block_diag(w):
        # [dm, dm] -> [D, D] block-diagonal over the S segments.
        out = jnp.zeros((D, D), jnp.float32)
        for s in range(S):
            out = out.at[s * dm:(s + 1) * dm, s * dm:(s + 1) * dm].set(w)
        return out

    keys = jax.random.split(key, 2 + EL)
    params = {
        "emb_w": nrm(keys[0], (L, D)),
        "emb_b": jnp.zeros((1, D), jnp.float32),
        "norm_g": jnp.ones((1, D), jnp.float32),
        "norm_b": jnp.zeros((1, D), jnp.float32),
        "proj_w": nrm(keys[1], (D, pred)),
        "proj_b": jnp.zeros((1, pred), jnp.float32),
    }

    wqkv_l, bqkv_l, wo_l, bo_l = [], [], [], []
    w1_l, b1_l, w2_l, b2_l = [], [], [], []
    n1g, n1b, n2g, n2b = [], [], [], []

    for li in range(EL):
        ks = jax.random.split(keys[2 + li], 6)
        wq = nrm(ks[0], (dm, dm)); wk = nrm(ks[1], (dm, dm))
        wv = nrm(ks[2], (dm, dm)); wo = nrm(ks[3], (dm, dm))
        bq = jnp.zeros((dm,), jnp.float32); bk = jnp.zeros((dm,), jnp.float32)
        bv = jnp.zeros((dm,), jnp.float32); bo = jnp.zeros((dm,), jnp.float32)

        # One fused block-diagonal [D, 3D] QKV weight per layer; group
        # g = s*H + h lives in columns [g*E, (g+1)*E) of each D-wide third.
        wqkv_l.append(jnp.concatenate(
            [block_diag(wq), block_diag(wk), block_diag(wv)], axis=1))
        bqkv_l.append(jnp.concatenate(
            [jnp.tile(bq, S), jnp.tile(bk, S), jnp.tile(bv, S)])[None, :])

        # Fused block-diagonal [D, D] output projection (+ tiled bias).
        wo_l.append(block_diag(wo))
        bo_l.append(jnp.tile(bo, S)[None, :])

        w1_l.append(nrm(ks[4], (D, dff)))
        b1_l.append(jnp.zeros((1, dff), jnp.float32))
        w2_l.append(nrm(ks[5], (dff, D)))
        b2_l.append(jnp.zeros((1, D), jnp.float32))
        n1g.append(jnp.ones((1, D), jnp.float32))
        n1b.append(jnp.zeros((1, D), jnp.float32))
        n2g.append(jnp.ones((1, D), jnp.float32))
        n2b.append(jnp.zeros((1, D), jnp.float32))

    params.update({
        "wqkv": jnp.stack(wqkv_l), "bqkv": jnp.stack(bqkv_l),   # [EL,D,3D]/[EL,1,3D]
        "wo": jnp.stack(wo_l), "bo": jnp.stack(bo_l),           # [EL,D,D]/[EL,1,D]
        "w1": jnp.stack(w1_l), "b1": jnp.stack(b1_l),
        "w2": jnp.stack(w2_l), "b2": jnp.stack(b2_l),
        "n1_g": jnp.stack(n1g), "n1_b": jnp.stack(n1b),
        "n2_g": jnp.stack(n2g), "n2_b": jnp.stack(n2b),
    })
    return params


def _num_parallel_chunks(batch):
    """Grid steps == number of TensorCores (2 on v7x, else 1)."""
    try:
        kind = jax.devices()[0].device_kind.lower()
        n_tc = 2 if ("v7" in kind or "7x" in kind) else 1
    except Exception:  # pragma: no cover - defensive fallback
        n_tc = 1
    nc = max(1, min(batch, n_tc))
    while batch % nc:
        nc -= 1
    return nc


# ------------------------------------------------------------- forward pass
def forward(params, x_enc, x_mark_enc, x_dec, x_mark_dec, cfg):
    del x_dec, x_mark_dec  # unused by the forecast path (as in the reference)

    B, L, N = x_enc.shape
    dm = cfg["d_model"]; S = cfg["seg_num"]; H = cfg["n_heads"]
    dff = cfg["d_ff"]; pred = cfg["pred_len"]; EL = cfg["e_layers"]
    D = dm * S
    E = dm // H
    G = S * H

    # Input layout plumbing (single XLA op): variates + time-mark covariates
    # become tokens of width L.
    tok = jnp.concatenate(
        [jnp.swapaxes(x_enc, 1, 2), jnp.swapaxes(x_mark_enc, 1, 2)], axis=1
    ).astype(jnp.float32)                                         # [B, T, L]
    T = tok.shape[1]

    NC = _num_parallel_chunks(B)                                   # grid steps
    BC = B // NC                                                   # batches/step

    scale = 1.0 / (float(E) ** 0.5)

    # ------------------------------------------------ fully fused kernel
    def kernel(tok_ref, emb_w_ref, emb_b_ref,
               wqkv_ref, bqkv_ref, wo_ref, bo_ref,
               w1_ref, b1_ref, w2_ref, b2_ref,
               n1g_ref, n1b_ref, n2g_ref, n2b_ref,
               fng_ref, fnb_ref, pw_ref, pb_ref, out_ref):

        def ln(x, g, b):
            m = jnp.mean(x, axis=-1, keepdims=True)
            xc = x - m
            v = jnp.mean(xc * xc, axis=-1, keepdims=True)
            return xc * jax.lax.rsqrt(v + 1e-5) * g + b

        # [T, 1] variate-vs-mark mask (marks pass through unnormalized).
        row = jax.lax.broadcasted_iota(jnp.int32, (T, 1), 0)
        is_var = row < N

        for b in range(BC):
            t = tok_ref[b]                                        # [T, L]

            # use_norm: per-variate standardization over time
            # (biased var + 1e-5, matching torch unbiased=False).
            mu = jnp.mean(t, axis=-1, keepdims=True)              # [T, 1]
            tc = t - mu
            var = jnp.mean(tc * tc, axis=-1, keepdims=True)
            std = jnp.sqrt(var + 1e-5)
            inv = jnp.where(is_var, jax.lax.rsqrt(var + 1e-5), 1.0)
            shift = jnp.where(is_var, mu, 0.0)
            tok_n = (t - shift) * inv                             # [T, L]

            # DataEmbedding_inverted: tokens [T, L] -> [T, D]
            enc = (jnp.dot(tok_n, emb_w_ref[...],
                           preferred_element_type=jnp.float32) + emb_b_ref[...])

            for li in range(EL):
                # Fused block-diagonal QKV projection: one [T,D]x[D,3D] matmul.
                qkv = (jnp.dot(enc, wqkv_ref[li],
                               preferred_element_type=jnp.float32)
                       + bqkv_ref[li])                            # [T, 3D]

                # Per-(segment, head) cross-variate attention (group g = s*H+h
                # occupies columns [g*E, (g+1)*E) of each D-wide third).
                ctxs = []
                for g in range(G):
                    q = qkv[:, g * E:(g + 1) * E]                 # [T, E]
                    k = qkv[:, D + g * E:D + (g + 1) * E]
                    v = qkv[:, 2 * D + g * E:2 * D + (g + 1) * E]
                    s_ = jax.lax.dot_general(
                        q, k, (((1,), (1,)), ((), ())),
                        preferred_element_type=jnp.float32) * scale   # [T, T]
                    m_ = jnp.max(s_, axis=-1, keepdims=True)
                    p = jnp.exp(s_ - m_)
                    p = p * pl.reciprocal(jnp.sum(p, axis=-1, keepdims=True),
                                          approx=True)
                    ctxs.append(jnp.dot(p, v,
                                        preferred_element_type=jnp.float32))
                ctx = jnp.concatenate(ctxs, axis=-1)              # [T, D]

                # Fused block-diagonal output projection (MXU accumulates).
                o_d = (jnp.dot(ctx, wo_ref[li],
                               preferred_element_type=jnp.float32)
                       + bo_ref[li])                              # [T, D]

                # Residual + LayerNorm + FFN (relu) + Residual + LayerNorm.
                x1 = ln(enc + o_d, n1g_ref[li], n1b_ref[li])
                y = (jnp.dot(x1, w1_ref[li],
                             preferred_element_type=jnp.float32) + b1_ref[li])
                y = jnp.maximum(y, 0.0)
                y = (jnp.dot(y, w2_ref[li],
                             preferred_element_type=jnp.float32) + b2_ref[li])
                enc = ln(x1 + y, n2g_ref[li], n2b_ref[li])

            # Encoder final norm + projector + de-normalization (rows >= N are
            # mark tokens; they are sliced away in the wrapper).
            encf = ln(enc, fng_ref[...], fnb_ref[...])
            dec = (jnp.dot(encf, pw_ref[...],
                           preferred_element_type=jnp.float32)
                   + pb_ref[...])                                 # [T, pred]
            out_ref[b] = dec * std + mu

    def rep(shape):
        nd = len(shape)

        def imap(i):
            return (0,) * nd

        return pl.BlockSpec(shape, imap)

    in_specs = [
        pl.BlockSpec((BC, T, L), lambda i: (i, 0, 0)),
        rep((L, D)), rep((1, D)),
        rep((EL, D, 3 * D)), rep((EL, 1, 3 * D)),
        rep((EL, D, D)), rep((EL, 1, D)),
        rep((EL, D, dff)), rep((EL, 1, dff)),
        rep((EL, dff, D)), rep((EL, 1, D)),
        rep((EL, 1, D)), rep((EL, 1, D)), rep((EL, 1, D)), rep((EL, 1, D)),
        rep((1, D)), rep((1, D)),
        rep((D, pred)), rep((1, pred)),
    ]

    dec = pl.pallas_call(
        kernel,
        out_shape=jax.ShapeDtypeStruct((B, T, pred), jnp.float32),
        grid=(NC,),
        in_specs=in_specs,
        out_specs=pl.BlockSpec((BC, T, pred), lambda i: (i, 0, 0)),
        compiler_params=pltpu.CompilerParams(
            dimension_semantics=("parallel",)),
    )(tok, params["emb_w"], params["emb_b"],
      params["wqkv"], params["bqkv"], params["wo"], params["bo"],
      params["w1"], params["b1"], params["w2"], params["b2"],
      params["n1_g"], params["n1_b"], params["n2_g"], params["n2_b"],
      params["norm_g"], params["norm_b"], params["proj_w"], params["proj_b"])

    # Output layout plumbing (single XLA op): [B, T, pred] -> [B, pred, N]
    dec = jnp.swapaxes(dec, 1, 2)[:, :, :N]
    return dec[:, -pred:, :]


# -------------------------------------------------------------------- main
if __name__ == "__main__":
    cfg = dict(seq_len=16, pred_len=8, d_model=16, n_heads=2, d_ff=32,
               e_layers=2, seg_num=2)

    key = jax.random.PRNGKey(0)
    k_p, k_x, k_m, k_d, k_md = jax.random.split(key, 5)

    B, L, N, NM = 2, cfg["seq_len"], 8, 4
    x_enc = jax.random.normal(k_x, (B, L, N), dtype=jnp.float32)
    x_mark_enc = jax.random.normal(k_m, (B, L, NM), dtype=jnp.float32)
    x_dec = jax.random.normal(k_d, (B, cfg["pred_len"], N), dtype=jnp.float32)
    x_mark_dec = jax.random.normal(k_md, (B, cfg["pred_len"], NM),
                                   dtype=jnp.float32)

    params = init_params(k_p, cfg)

    fwd = jax.jit(functools.partial(forward, cfg=cfg))
    out = fwd(params, x_enc, x_mark_enc, x_dec, x_mark_dec)
    out = jax.block_until_ready(out)

    assert out.shape == (B, cfg["pred_len"], N), out.shape
    assert bool(jnp.all(jnp.isfinite(out)))
    print("KERNEL_OK")
</pallas_src>

<mosaic_0001>
module attributes {stable_mosaic.version = 11 : i64} {
  func.func @kernel(%arg0: i32, %arg1: memref<2x12x16xf32, #tpu.memory_space<vmem>>, %arg2: memref<16x32xf32, #tpu.memory_space<vmem>>, %arg3: memref<1x32xf32, #tpu.memory_space<vmem>>, %arg4: memref<2x32x96xf32, #tpu.memory_space<vmem>>, %arg5: memref<2x1x96xf32, #tpu.memory_space<vmem>>, %arg6: memref<2x32x32xf32, #tpu.memory_space<vmem>>, %arg7: memref<2x1x32xf32, #tpu.memory_space<vmem>>, %arg8: memref<2x32x32xf32, #tpu.memory_space<vmem>>, %arg9: memref<2x1x32xf32, #tpu.memory_space<vmem>>, %arg10: memref<2x32x32xf32, #tpu.memory_space<vmem>>, %arg11: memref<2x1x32xf32, #tpu.memory_space<vmem>>, %arg12: memref<2x1x32xf32, #tpu.memory_space<vmem>>, %arg13: memref<2x1x32xf32, #tpu.memory_space<vmem>>, %arg14: memref<2x1x32xf32, #tpu.memory_space<vmem>>, %arg15: memref<2x1x32xf32, #tpu.memory_space<vmem>>, %arg16: memref<1x32xf32, #tpu.memory_space<vmem>>, %arg17: memref<1x32xf32, #tpu.memory_space<vmem>>, %arg18: memref<32x8xf32, #tpu.memory_space<vmem>>, %arg19: memref<1x8xf32, #tpu.memory_space<vmem>>, %arg20: memref<2x12x8xf32, #tpu.memory_space<vmem>>) attributes {dimension_semantics = [#tpu.dimension_semantics<parallel>], iteration_bounds = array<i64: 1>, scalar_prefetch = 0 : i64, scratch_operands = 0 : i64, tpu.core_type = #tpu.core_type<tc>, window_params = [{transform_indices = @transform_0, window_bounds = array<i64: 2, 12, 16>}, {pipeline_mode = #tpu.pipeline_mode<synchronous>, transform_indices = @transform_1, window_bounds = array<i64: 16, 32>}, {pipeline_mode = #tpu.pipeline_mode<synchronous>, transform_indices = @transform_2, window_bounds = array<i64: 1, 32>}, {pipeline_mode = #tpu.pipeline_mode<synchronous>, transform_indices = @transform_3, window_bounds = array<i64: 2, 32, 96>}, {pipeline_mode = #tpu.pipeline_mode<synchronous>, transform_indices = @transform_4, window_bounds = array<i64: 2, 1, 96>}, {pipeline_mode = #tpu.pipeline_mode<synchronous>, transform_indices = @transform_5, window_bounds = array<i64: 2, 32, 32>}, {pipeline_mode = #tpu.pipeline_mode<synchronous>, transform_indices = @transform_6, window_bounds = array<i64: 2, 1, 32>}, {pipeline_mode = #tpu.pipeline_mode<synchronous>, transform_indices = @transform_7, window_bounds = array<i64: 2, 32, 32>}, {pipeline_mode = #tpu.pipeline_mode<synchronous>, transform_indices = @transform_8, window_bounds = array<i64: 2, 1, 32>}, {pipeline_mode = #tpu.pipeline_mode<synchronous>, transform_indices = @transform_9, window_bounds = array<i64: 2, 32, 32>}, {pipeline_mode = #tpu.pipeline_mode<synchronous>, transform_indices = @transform_10, window_bounds = array<i64: 2, 1, 32>}, {pipeline_mode = #tpu.pipeline_mode<synchronous>, transform_indices = @transform_11, window_bounds = array<i64: 2, 1, 32>}, {pipeline_mode = #tpu.pipeline_mode<synchronous>, transform_indices = @transform_12, window_bounds = array<i64: 2, 1, 32>}, {pipeline_mode = #tpu.pipeline_mode<synchronous>, transform_indices = @transform_13, window_bounds = array<i64: 2, 1, 32>}, {pipeline_mode = #tpu.pipeline_mode<synchronous>, transform_indices = @transform_14, window_bounds = array<i64: 2, 1, 32>}, {pipeline_mode = #tpu.pipeline_mode<synchronous>, transform_indices = @transform_15, window_bounds = array<i64: 1, 32>}, {pipeline_mode = #tpu.pipeline_mode<synchronous>, transform_indices = @transform_16, window_bounds = array<i64: 1, 32>}, {pipeline_mode = #tpu.pipeline_mode<synchronous>, transform_indices = @transform_17, window_bounds = array<i64: 32, 8>}, {pipeline_mode = #tpu.pipeline_mode<synchronous>, transform_indices = @transform_18, window_bounds = array<i64: 1, 8>}, {transform_indices = @transform_19, window_bounds = array<i64: 2, 12, 8>}]} {
    %0 = tpu.iota {dimensions = array<i32: 0>} : vector<12x1xi32>
    %c8_i32 = arith.constant 8 : i32
    %1 = vector.broadcast %c8_i32 : i32 to vector<12x1xi32>
    %2 = arith.cmpi slt, %0, %1 : vector<12x1xi32>
    %c0 = arith.constant 0 : index
    %c0_0 = arith.constant 0 : index
    %c0_1 = arith.constant 0 : index
    %3 = vector.load %arg1[%c0, %c0_0, %c0_1] : memref<2x12x16xf32, #tpu.memory_space<vmem>>, vector<1x12x16xf32>
    %4 = vector.shape_cast %3 : vector<1x12x16xf32> to vector<12x16xf32>
    %cst = arith.constant dense<0.000000e+00> : vector<12xf32>
    %5 = vector.multi_reduction <add>, %4, %cst [1] : vector<12x16xf32> to vector<12xf32>
    %6 = vector.shape_cast %5 : vector<12xf32> to vector<12x1xf32>
    %cst_2 = arith.constant 1.600000e+01 : f32
    %7 = vector.broadcast %cst_2 : f32 to vector<12x1xf32>
    %8 = arith.divf %6, %7 : vector<12x1xf32>
    %9 = vector.broadcast %8 : vector<12x1xf32> to vector<12x16xf32>
    %10 = arith.subf %4, %9 : vector<12x16xf32>
    %11 = arith.mulf %10, %10 : vector<12x16xf32>
    %cst_3 = arith.constant dense<0.000000e+00> : vector<12xf32>
    %12 = vector.multi_reduction <add>, %11, %cst_3 [1] : vector<12x16xf32> to vector<12xf32>
    %13 = vector.shape_cast %12 : vector<12xf32> to vector<12x1xf32>
    %cst_4 = arith.constant 1.600000e+01 : f32
    %14 = vector.broadcast %cst_4 : f32 to vector<12x1xf32>
    %15 = arith.divf %13, %14 : vector<12x1xf32>
    %cst_5 = arith.constant 9.99999974E-6 : f32
    %16 = vector.broadcast %cst_5 : f32 to vector<12x1xf32>
    %17 = arith.addf %15, %16 : vector<12x1xf32>
    %18 = math.sqrt %17 : vector<12x1xf32>
    %cst_6 = arith.constant 9.99999974E-6 : f32
    %19 = vector.broadcast %cst_6 : f32 to vector<12x1xf32>
    %20 = arith.addf %15, %19 : vector<12x1xf32>
    %21 = math.rsqrt %20 : vector<12x1xf32>
    %cst_7 = arith.constant 1.000000e+00 : f32
    %22 = vector.broadcast %cst_7 : f32 to vector<12x1xf32>
    %23 = arith.select %2, %21, %22 : vector<12x1xi1>, vector<12x1xf32>
    %cst_8 = arith.constant 0.000000e+00 : f32
    %24 = vector.broadcast %cst_8 : f32 to vector<12x1xf32>
    %25 = arith.select %2, %8, %24 : vector<12x1xi1>, vector<12x1xf32>
    %26 = vector.broadcast %25 : vector<12x1xf32> to vector<12x16xf32>
    %27 = arith.subf %4, %26 : vector<12x16xf32>
    %28 = vector.broadcast %23 : vector<12x1xf32> to vector<12x16xf32>
    %29 = arith.mulf %27, %28 : vector<12x16xf32>
    %c0_9 = arith.constant 0 : index
    %c0_10 = arith.constant 0 : index
    %30 = vector.load %arg2[%c0_9, %c0_10] : memref<16x32xf32, #tpu.memory_space<vmem>>, vector<16x32xf32>
    %cst_11 = arith.constant dense<0.000000e+00> : vector<12x32xf32>
    %31 = tpu.matmul %29, %30, %cst_11 {dimension_numbers = #tpu.dot_dimension_numbers<[1], [0], [0], [1], [0, 0, 1, 1], [], []>} : vector<12x16xf32>, vector<16x32xf32>, vector<12x32xf32> -> vector<12x32xf32>
    %c0_12 = arith.constant 0 : index
    %c0_13 = arith.constant 0 : index
    %32 = vector.load %arg3[%c0_12, %c0_13] : memref<1x32xf32, #tpu.memory_space<vmem>>, vector<1x32xf32>
    %33 = vector.broadcast %32 : vector<1x32xf32> to vector<12x32xf32>
    %34 = arith.addf %31, %33 : vector<12x32xf32>
    %c0_14 = arith.constant 0 : index
    %c0_15 = arith.constant 0 : index
    %c0_16 = arith.constant 0 : index
    %35 = vector.load %arg4[%c0_14, %c0_15, %c0_16] : memref<2x32x96xf32, #tpu.memory_space<vmem>>, vector<1x32x96xf32>
    %36 = vector.shape_cast %35 : vector<1x32x96xf32> to vector<32x96xf32>
    %cst_17 = arith.constant dense<0.000000e+00> : vector<12x96xf32>
    %37 = tpu.matmul %34, %36, %cst_17 {dimension_numbers = #tpu.dot_dimension_numbers<[1], [0], [0], [1], [0, 0, 1, 1], [], []>} : vector<12x32xf32>, vector<32x96xf32>, vector<12x96xf32> -> vector<12x96xf32>
    %c0_18 = arith.constant 0 : index
    %c0_19 = arith.constant 0 : index
    %c0_20 = arith.constant 0 : index
    %38 = vector.load %arg5[%c0_18, %c0_19, %c0_20] : memref<2x1x96xf32, #tpu.memory_space<vmem>>, vector<1x1x96xf32>
    %39 = vector.shape_cast %38 : vector<1x1x96xf32> to vector<1x96xf32>
    %40 = vector.broadcast %39 : vector<1x96xf32> to vector<12x96xf32>
    %41 = arith.addf %37, %40 : vector<12x96xf32>
    %42 = vector.extract_strided_slice %41 {offsets = [0, 0], sizes = [12, 8], strides = [1, 1]} : vector<12x96xf32> to vector<12x8xf32>
    %43 = vector.extract_strided_slice %41 {offsets = [0, 32], sizes = [12, 8], strides = [1, 1]} : vector<12x96xf32> to vector<12x8xf32>
    %44 = vector.extract_strided_slice %41 {offsets = [0, 64], sizes = [12, 8], strides = [1, 1]} : vector<12x96xf32> to vector<12x8xf32>
    %cst_21 = arith.constant dense<0.000000e+00> : vector<12x12xf32>
    %45 = tpu.matmul %42, %43, %cst_21 {dimension_numbers = #tpu.dot_dimension_numbers<[1], [1], [0], [0], [0, 0, 1, 0], [], []>} : vector<12x8xf32>, vector<12x8xf32>, vector<12x12xf32> -> vector<12x12xf32>
    %cst_22 = arith.constant 0.353553385 : f32
    %46 = vector.broadcast %cst_22 : f32 to vector<12x12xf32>
    %47 = arith.mulf %45, %46 : vector<12x12xf32>
    %cst_23 = arith.constant dense<0xFF800000> : vector<12xf32>
    %48 = vector.multi_reduction <maximumf>, %47, %cst_23 [1] : vector<12x12xf32> to vector<12xf32>
    %49 = vector.shape_cast %48 : vector<12xf32> to vector<12x1xf32>
    %50 = vector.broadcast %49 : vector<12x1xf32> to vector<12x12xf32>
    %51 = arith.subf %47, %50 : vector<12x12xf32>
    %52 = math.exp %51 : vector<12x12xf32>
    %cst_24 = arith.constant dense<0.000000e+00> : vector<12xf32>
    %53 = vector.multi_reduction <add>, %52, %cst_24 [1] : vector<12x12xf32> to vector<12xf32>
    %54 = vector.shape_cast %53 : vector<12xf32> to vector<12x1xf32>
    %55 = tpu.reciprocal %54 {approx = true} : vector<12x1xf32> -> vector<12x1xf32>
    %56 = vector.broadcast %55 : vector<12x1xf32> to vector<12x12xf32>
    %57 = arith.mulf %52, %56 : vector<12x12xf32>
    %cst_25 = arith.constant dense<0.000000e+00> : vector<12x8xf32>
    %58 = tpu.matmul %57, %44, %cst_25 {dimension_numbers = #tpu.dot_dimension_numbers<[1], [0], [0], [1], [0, 0, 1, 1], [], []>} : vector<12x12xf32>, vector<12x8xf32>, vector<12x8xf32> -> vector<12x8xf32>
    %59 = vector.extract_strided_slice %41 {offsets = [0, 8], sizes = [12, 8], strides = [1, 1]} : vector<12x96xf32> to vector<12x8xf32>
    %60 = vector.extract_strided_slice %41 {offsets = [0, 40], sizes = [12, 8], strides = [1, 1]} : vector<12x96xf32> to vector<12x8xf32>
    %61 = vector.extract_strided_slice %41 {offsets = [0, 72], sizes = [12, 8], strides = [1, 1]} : vector<12x96xf32> to vector<12x8xf32>
    %cst_26 = arith.constant dense<0.000000e+00> : vector<12x12xf32>
    %62 = tpu.matmul %59, %60, %cst_26 {dimension_numbers = #tpu.dot_dimension_numbers<[1], [1], [0], [0], [0, 0, 1, 0], [], []>} : vector<12x8xf32>, vector<12x8xf32>, vector<12x12xf32> -> vector<12x12xf32>
    %cst_27 = arith.constant 0.353553385 : f32
    %63 = vector.broadcast %cst_27 : f32 to vector<12x12xf32>
    %64 = arith.mulf %62, %63 : vector<12x12xf32>
    %cst_28 = arith.constant dense<0xFF800000> : vector<12xf32>
    %65 = vector.multi_reduction <maximumf>, %64, %cst_28 [1] : vector<12x12xf32> to vector<12xf32>
    %66 = vector.shape_cast %65 : vector<12xf32> to vector<12x1xf32>
    %67 = vector.broadcast %66 : vector<12x1xf32> to vector<12x12xf32>
    %68 = arith.subf %64, %67 : vector<12x12xf32>
    %69 = math.exp %68 : vector<12x12xf32>
    %cst_29 = arith.constant dense<0.000000e+00> : vector<12xf32>
    %70 = vector.multi_reduction <add>, %69, %cst_29 [1] : vector<12x12xf32> to vector<12xf32>
    %71 = vector.shape_cast %70 : vector<12xf32> to vector<12x1xf32>
    %72 = tpu.reciprocal %71 {approx = true} : vector<12x1xf32> -> vector<12x1xf32>
    %73 = vector.broadcast %72 : vector<12x1xf32> to vector<12x12xf32>
    %74 = arith.mulf %69, %73 : vector<12x12xf32>
    %cst_30 = arith.constant dense<0.000000e+00> : vector<12x8xf32>
    %75 = tpu.matmul %74, %61, %cst_30 {dimension_numbers = #tpu.dot_dimension_numbers<[1], [0], [0], [1], [0, 0, 1, 1], [], []>} : vector<12x12xf32>, vector<12x8xf32>, vector<12x8xf32> -> vector<12x8xf32>
    %76 = vector.extract_strided_slice %41 {offsets = [0, 16], sizes = [12, 8], strides = [1, 1]} : vector<12x96xf32> to vector<12x8xf32>
    %77 = vector.extract_strided_slice %41 {offsets = [0, 48], sizes = [12, 8], strides = [1, 1]} : vector<12x96xf32> to vector<12x8xf32>
    %78 = vector.extract_strided_slice %41 {offsets = [0, 80], sizes = [12, 8], strides = [1, 1]} : vector<12x96xf32> to vector<12x8xf32>
    %cst_31 = arith.constant dense<0.000000e+00> : vector<12x12xf32>
    %79 = tpu.matmul %76, %77, %cst_31 {dimension_numbers = #tpu.dot_dimension_numbers<[1], [1], [0], [0], [0, 0, 1, 0], [], []>} : vector<12x8xf32>, vector<12x8xf32>, vector<12x12xf32> -> vector<12x12xf32>
    %cst_32 = arith.constant 0.353553385 : f32
    %80 = vector.broadcast %cst_32 : f32 to vector<12x12xf32>
    %81 = arith.mulf %79, %80 : vector<12x12xf32>
    %cst_33 = arith.constant dense<0xFF800000> : vector<12xf32>
    %82 = vector.multi_reduction <maximumf>, %81, %cst_33 [1] : vector<12x12xf32> to vector<12xf32>
    %83 = vector.shape_cast %82 : vector<12xf32> to vector<12x1xf32>
    %84 = vector.broadcast %83 : vector<12x1xf32> to vector<12x12xf32>
    %85 = arith.subf %81, %84 : vector<12x12xf32>
    %86 = math.exp %85 : vector<12x12xf32>
    %cst_34 = arith.constant dense<0.000000e+00> : vector<12xf32>
    %87 = vector.multi_reduction <add>, %86, %cst_34 [1] : vector<12x12xf32> to vector<12xf32>
    %88 = vector.shape_cast %87 : vector<12xf32> to vector<12x1xf32>
    %89 = tpu.reciprocal %88 {approx = true} : vector<12x1xf32> -> vector<12x1xf32>
    %90 = vector.broadcast %89 : vector<12x1xf32> to vector<12x12xf32>
    %91 = arith.mulf %86, %90 : vector<12x12xf32>
    %cst_35 = arith.constant dense<0.000000e+00> : vector<12x8xf32>
    %92 = tpu.matmul %91, %78, %cst_35 {dimension_numbers = #tpu.dot_dimension_numbers<[1], [0], [0], [1], [0, 0, 1, 1], [], []>} : vector<12x12xf32>, vector<12x8xf32>, vector<12x8xf32> -> vector<12x8xf32>
    %93 = vector.extract_strided_slice %41 {offsets = [0, 24], sizes = [12, 8], strides = [1, 1]} : vector<12x96xf32> to vector<12x8xf32>
    %94 = vector.extract_strided_slice %41 {offsets = [0, 56], sizes = [12, 8], strides = [1, 1]} : vector<12x96xf32> to vector<12x8xf32>
    %95 = vector.extract_strided_slice %41 {offsets = [0, 88], sizes = [12, 8], strides = [1, 1]} : vector<12x96xf32> to vector<12x8xf32>
    %cst_36 = arith.constant dense<0.000000e+00> : vector<12x12xf32>
    %96 = tpu.matmul %93, %94, %cst_36 {dimension_numbers = #tpu.dot_dimension_numbers<[1], [1], [0], [0], [0, 0, 1, 0], [], []>} : vector<12x8xf32>, vector<12x8xf32>, vector<12x12xf32> -> vector<12x12xf32>
    %cst_37 = arith.constant 0.353553385 : f32
    %97 = vector.broadcast %cst_37 : f32 to vector<12x12xf32>
    %98 = arith.mulf %96, %97 : vector<12x12xf32>
    %cst_38 = arith.constant dense<0xFF800000> : vector<12xf32>
    %99 = vector.multi_reduction <maximumf>, %98, %cst_38 [1] : vector<12x12xf32> to vector<12xf32>
    %100 = vector.shape_cast %99 : vector<12xf32> to vector<12x1xf32>
    %101 = vector.broadcast %100 : vector<12x1xf32> to vector<12x12xf32>
    %102 = arith.subf %98, %101 : vector<12x12xf32>
    %103 = math.exp %102 : vector<12x12xf32>
    %cst_39 = arith.constant dense<0.000000e+00> : vector<12xf32>
    %104 = vector.multi_reduction <add>, %103, %cst_39 [1] : vector<12x12xf32> to vector<12xf32>
    %105 = vector.shape_cast %104 : vector<12xf32> to vector<12x1xf32>
    %106 = tpu.reciprocal %105 {approx = true} : vector<12x1xf32> -> vector<12x1xf32>
    %107 = vector.broadcast %106 : vector<12x1xf32> to vector<12x12xf32>
    %108 = arith.mulf %103, %107 : vector<12x12xf32>
    %cst_40 = arith.constant dense<0.000000e+00> : vector<12x8xf32>
    %109 = tpu.matmul %108, %95, %cst_40 {dimension_numbers = #tpu.dot_dimension_numbers<[1], [0], [0], [1], [0, 0, 1, 1], [], []>} : vector<12x12xf32>, vector<12x8xf32>, vector<12x8xf32> -> vector<12x8xf32>
    %110 = tpu.concatenate %58, %75, %92, %109 in 1 : vector<12x8xf32>, vector<12x8xf32>, vector<12x8xf32>, vector<12x8xf32> -> vector<12x32xf32>
    %c0_41 = arith.constant 0 : index
    %c0_42 = arith.constant 0 : index
    %c0_43 = arith.constant 0 : index
    %111 = vector.load %arg6[%c0_41, %c0_42, %c0_43] : memref<2x32x32xf32, #tpu.memory_space<vmem>>, vector<1x32x32xf32>
    %112 = vector.shape_cast %111 : vector<1x32x32xf32> to vector<32x32xf32>
    %cst_44 = arith.constant dense<0.000000e+00> : vector<12x32xf32>
    %113 = tpu.matmul %110, %112, %cst_44 {dimension_numbers = #tpu.dot_dimension_numbers<[1], [0], [0], [1], [0, 0, 1, 1], [], []>} : vector<12x32xf32>, vector<32x32xf32>, vector<12x32xf32> -> vector<12x32xf32>
    %c0_45 = arith.constant 0 : index
    %c0_46 = arith.constant 0 : index
    %c0_47 = arith.constant 0 : index
    %114 = vector.load %arg7[%c0_45, %c0_46, %c0_47] : memref<2x1x32xf32, #tpu.memory_space<vmem>>, vector<1x1x32xf32>
    %115 = vector.shape_cast %114 : vector<1x1x32xf32> to vector<1x32xf32>
    %116 = vector.broadcast %115 : vector<1x32xf32> to vector<12x32xf32>
    %117 = arith.addf %113, %116 : vector<12x32xf32>
    %118 = arith.addf %34, %117 : vector<12x32xf32>
    %c0_48 = arith.constant 0 : index
    %c0_49 = arith.constant 0 : index
    %c0_50 = arith.constant 0 : index
    %119 = vector.load %arg12[%c0_48, %c0_49, %c0_50] : memref<2x1x32xf32, #tpu.memory_space<vmem>>, vector<1x1x32xf32>
    %120 = vector.shape_cast %119 : vector<1x1x32xf32> to vector<1x32xf32>
    %c0_51 = arith.constant 0 : index
    %c0_52 = arith.constant 0 : index
    %c0_53 = arith.constant 0 : index
    %121 = vector.load %arg13[%c0_51, %c0_52, %c0_53] : memref<2x1x32xf32, #tpu.memory_space<vmem>>, vector<1x1x32xf32>
    %122 = vector.shape_cast %121 : vector<1x1x32xf32> to vector<1x32xf32>
    %cst_54 = arith.constant dense<0.000000e+00> : vector<12xf32>
    %123 = vector.multi_reduction <add>, %118, %cst_54 [1] : vector<12x32xf32> to vector<12xf32>
    %124 = vector.shape_cast %123 : vector<12xf32> to vector<12x1xf32>
    %cst_55 = arith.constant 3.200000e+01 : f32
    %125 = vector.broadcast %cst_55 : f32 to vector<12x1xf32>
    %126 = arith.divf %124, %125 : vector<12x1xf32>
    %127 = vector.broadcast %126 : vector<12x1xf32> to vector<12x32xf32>
    %128 = arith.subf %118, %127 : vector<12x32xf32>
    %129 = arith.mulf %128, %128 : vector<12x32xf32>
    %cst_56 = arith.constant dense<0.000000e+00> : vector<12xf32>
    %130 = vector.multi_reduction <add>, %129, %cst_56 [1] : vector<12x32xf32> to vector<12xf32>
    %131 = vector.shape_cast %130 : vector<12xf32> to vector<12x1xf32>
    %cst_57 = arith.constant 3.200000e+01 : f32
    %132 = vector.broadcast %cst_57 : f32 to vector<12x1xf32>
    %133 = arith.divf %131, %132 : vector<12x1xf32>
    %cst_58 = arith.constant 9.99999974E-6 : f32
    %134 = vector.broadcast %cst_58 : f32 to vector<12x1xf32>
    %135 = arith.addf %133, %134 : vector<12x1xf32>
    %136 = math.rsqrt %135 : vector<12x1xf32>
    %137 = vector.broadcast %136 : vector<12x1xf32> to vector<12x32xf32>
    %138 = arith.mulf %128, %137 : vector<12x32xf32>
    %139 = vector.broadcast %120 : vector<1x32xf32> to vector<12x32xf32>
    %140 = arith.mulf %138, %139 : vector<12x32xf32>
    %141 = vector.broadcast %122 : vector<1x32xf32> to vector<12x32xf32>
    %142 = arith.addf %140, %141 : vector<12x32xf32>
    %c0_59 = arith.constant 0 : index
    %c0_60 = arith.constant 0 : index
    %c0_61 = arith.constant 0 : index
    %143 = vector.load %arg8[%c0_59, %c0_60, %c0_61] : memref<2x32x32xf32, #tpu.memory_space<vmem>>, vector<1x32x32xf32>
    %144 = vector.shape_cast %143 : vector<1x32x32xf32> to vector<32x32xf32>
    %cst_62 = arith.constant dense<0.000000e+00> : vector<12x32xf32>
    %145 = tpu.matmul %142, %144, %cst_62 {dimension_numbers = #tpu.dot_dimension_numbers<[1], [0], [0], [1], [0, 0, 1, 1], [], []>} : vector<12x32xf32>, vector<32x32xf32>, vector<12x32xf32> -> vector<12x32xf32>
    %c0_63 = arith.constant 0 : index
    %c0_64 = arith.constant 0 : index
    %c0_65 = arith.constant 0 : index
    %146 = vector.load %arg9[%c0_63, %c0_64, %c0_65] : memref<2x1x32xf32, #tpu.memory_space<vmem>>, vector<1x1x32xf32>
    %147 = vector.shape_cast %146 : vector<1x1x32xf32> to vector<1x32xf32>
    %148 = vector.broadcast %147 : vector<1x32xf32> to vector<12x32xf32>
    %149 = arith.addf %145, %148 : vector<12x32xf32>
    %cst_66 = arith.constant 0.000000e+00 : f32
    %150 = vector.broadcast %cst_66 : f32 to vector<12x32xf32>
    %151 = arith.maximumf %149, %150 : vector<12x32xf32>
    %c0_67 = arith.constant 0 : index
    %c0_68 = arith.constant 0 : index
    %c0_69 = arith.constant 0 : index
    %152 = vector.load %arg10[%c0_67, %c0_68, %c0_69] : memref<2x32x32xf32, #tpu.memory_space<vmem>>, vector<1x32x32xf32>
    %153 = vector.shape_cast %152 : vector<1x32x32xf32> to vector<32x32xf32>
    %cst_70 = arith.constant dense<0.000000e+00> : vector<12x32xf32>
    %154 = tpu.matmul %151, %153, %cst_70 {dimension_numbers = #tpu.dot_dimension_numbers<[1], [0], [0], [1], [0, 0, 1, 1], [], []>} : vector<12x32xf32>, vector<32x32xf32>, vector<12x32xf32> -> vector<12x32xf32>
    %c0_71 = arith.constant 0 : index
    %c0_72 = arith.constant 0 : index
    %c0_73 = arith.constant 0 : index
    %155 = vector.load %arg11[%c0_71, %c0_72, %c0_73] : memref<2x1x32xf32, #tpu.memory_space<vmem>>, vector<1x1x32xf32>
    %156 = vector.shape_cast %155 : vector<1x1x32xf32> to vector<1x32xf32>
    %157 = vector.broadcast %156 : vector<1x32xf32> to vector<12x32xf32>
    %158 = arith.addf %154, %157 : vector<12x32xf32>
    %159 = arith.addf %142, %158 : vector<12x32xf32>
    %c0_74 = arith.constant 0 : index
    %c0_75 = arith.constant 0 : index
    %c0_76 = arith.constant 0 : index
    %160 = vector.load %arg14[%c0_74, %c0_75, %c0_76] : memref<2x1x32xf32, #tpu.memory_space<vmem>>, vector<1x1x32xf32>
    %161 = vector.shape_cast %160 : vector<1x1x32xf32> to vector<1x32xf32>
    %c0_77 = arith.constant 0 : index
    %c0_78 = arith.constant 0 : index
    %c0_79 = arith.constant 0 : index
    %162 = vector.load %arg15[%c0_77, %c0_78, %c0_79] : memref<2x1x32xf32, #tpu.memory_space<vmem>>, vector<1x1x32xf32>
    %163 = vector.shape_cast %162 : vector<1x1x32xf32> to vector<1x32xf32>
    %cst_80 = arith.constant dense<0.000000e+00> : vector<12xf32>
    %164 = vector.multi_reduction <add>, %159, %cst_80 [1] : vector<12x32xf32> to vector<12xf32>
    %165 = vector.shape_cast %164 : vector<12xf32> to vector<12x1xf32>
    %cst_81 = arith.constant 3.200000e+01 : f32
    %166 = vector.broadcast %cst_81 : f32 to vector<12x1xf32>
    %167 = arith.divf %165, %166 : vector<12x1xf32>
    %168 = vector.broadcast %167 : vector<12x1xf32> to vector<12x32xf32>
    %169 = arith.subf %159, %168 : vector<12x32xf32>
    %170 = arith.mulf %169, %169 : vector<12x32xf32>
    %cst_82 = arith.constant dense<0.000000e+00> : vector<12xf32>
    %171 = vector.multi_reduction <add>, %170, %cst_82 [1] : vector<12x32xf32> to vector<12xf32>
    %172 = vector.shape_cast %171 : vector<12xf32> to vector<12x1xf32>
    %cst_83 = arith.constant 3.200000e+01 : f32
    %173 = vector.broadcast %cst_83 : f32 to vector<12x1xf32>
    %174 = arith.divf %172, %173 : vector<12x1xf32>
    %cst_84 = arith.constant 9.99999974E-6 : f32
    %175 = vector.broadcast %cst_84 : f32 to vector<12x1xf32>
    %176 = arith.addf %174, %175 : vector<12x1xf32>
    %177 = math.rsqrt %176 : vector<12x1xf32>
    %178 = vector.broadcast %177 : vector<12x1xf32> to vector<12x32xf32>
    %179 = arith.mulf %169, %178 : vector<12x32xf32>
    %180 = vector.broadcast %161 : vector<1x32xf32> to vector<12x32xf32>
    %181 = arith.mulf %179, %180 : vector<12x32xf32>
    %182 = vector.broadcast %163 : vector<1x32xf32> to vector<12x32xf32>
    %183 = arith.addf %181, %182 : vector<12x32xf32>
    %c1 = arith.constant 1 : index
    %c0_85 = arith.constant 0 : index
    %c0_86 = arith.constant 0 : index
    %184 = vector.load %arg4[%c1, %c0_85, %c0_86] : memref<2x32x96xf32, #tpu.memory_space<vmem>>, vector<1x32x96xf32>
    %185 = vector.shape_cast %184 : vector<1x32x96xf32> to vector<32x96xf32>
    %cst_87 = arith.constant dense<0.000000e+00> : vector<12x96xf32>
    %186 = tpu.matmul %183, %185, %cst_87 {dimension_numbers = #tpu.dot_dimension_numbers<[1], [0], [0], [1], [0, 0, 1, 1], [], []>} : vector<12x32xf32>, vector<32x96xf32>, vector<12x96xf32> -> vector<12x96xf32>
    %c1_88 = arith.constant 1 : index
    %c0_89 = arith.constant 0 : index
    %c0_90 = arith.constant 0 : index
    %187 = vector.load %arg5[%c1_88, %c0_89, %c0_90] : memref<2x1x96xf32, #tpu.memory_space<vmem>>, vector<1x1x96xf32>
    %188 = vector.shape_cast %187 : vector<1x1x96xf32> to vector<1x96xf32>
    %189 = vector.broadcast %188 : vector<1x96xf32> to vector<12x96xf32>
    %190 = arith.addf %186, %189 : vector<12x96xf32>
    %191 = vector.extract_strided_slice %190 {offsets = [0, 0], sizes = [12, 8], strides = [1, 1]} : vector<12x96xf32> to vector<12x8xf32>
    %192 = vector.extract_strided_slice %190 {offsets = [0, 32], sizes = [12, 8], strides = [1, 1]} : vector<12x96xf32> to vector<12x8xf32>
    %193 = vector.extract_strided_slice %190 {offsets = [0, 64], sizes = [12, 8], strides = [1, 1]} : vector<12x96xf32> to vector<12x8xf32>
    %cst_91 = arith.constant dense<0.000000e+00> : vector<12x12xf32>
    %194 = tpu.matmul %191, %192, %cst_91 {dimension_numbers = #tpu.dot_dimension_numbers<[1], [1], [0], [0], [0, 0, 1, 0], [], []>} : vector<12x8xf32>, vector<12x8xf32>, vector<12x12xf32> -> vector<12x12xf32>
    %cst_92 = arith.constant 0.353553385 : f32
    %195 = vector.broadcast %cst_92 : f32 to vector<12x12xf32>
    %196 = arith.mulf %194, %195 : vector<12x12xf32>
    %cst_93 = arith.constant dense<0xFF800000> : vector<12xf32>
    %197 = vector.multi_reduction <maximumf>, %196, %cst_93 [1] : vector<12x12xf32> to vector<12xf32>
    %198 = vector.shape_cast %197 : vector<12xf32> to vector<12x1xf32>
    %199 = vector.broadcast %198 : vector<12x1xf32> to vector<12x12xf32>
    %200 = arith.subf %196, %199 : vector<12x12xf32>
    %201 = math.exp %200 : vector<12x12xf32>
    %cst_94 = arith.constant dense<0.000000e+00> : vector<12xf32>
    %202 = vector.multi_reduction <add>, %201, %cst_94 [1] : vector<12x12xf32> to vector<12xf32>
    %203 = vector.shape_cast %202 : vector<12xf32> to vector<12x1xf32>
    %204 = tpu.reciprocal %203 {approx = true} : vector<12x1xf32> -> vector<12x1xf32>
    %205 = vector.broadcast %204 : vector<12x1xf32> to vector<12x12xf32>
    %206 = arith.mulf %201, %205 : vector<12x12xf32>
    %cst_95 = arith.constant dense<0.000000e+00> : vector<12x8xf32>
    %207 = tpu.matmul %206, %193, %cst_95 {dimension_numbers = #tpu.dot_dimension_numbers<[1], [0], [0], [1], [0, 0, 1, 1], [], []>} : vector<12x12xf32>, vector<12x8xf32>, vector<12x8xf32> -> vector<12x8xf32>
    %208 = vector.extract_strided_slice %190 {offsets = [0, 8], sizes = [12, 8], strides = [1, 1]} : vector<12x96xf32> to vector<12x8xf32>
    %209 = vector.extract_strided_slice %190 {offsets = [0, 40], sizes = [12, 8], strides = [1, 1]} : vector<12x96xf32> to vector<12x8xf32>
    %210 = vector.extract_strided_slice %190 {offsets = [0, 72], sizes = [12, 8], strides = [1, 1]} : vector<12x96xf32> to vector<12x8xf32>
    %cst_96 = arith.constant dense<0.000000e+00> : vector<12x12xf32>
    %211 = tpu.matmul %208, %209, %cst_96 {dimension_numbers = #tpu.dot_dimension_numbers<[1], [1], [0], [0], [0, 0, 1, 0], [], []>} : vector<12x8xf32>, vector<12x8xf32>, vector<12x12xf32> -> vector<12x12xf32>
    %cst_97 = arith.constant 0.353553385 : f32
    %212 = vector.broadcast %cst_97 : f32 to vector<12x12xf32>
    %213 = arith.mulf %211, %212 : vector<12x12xf32>
    %cst_98 = arith.constant dense<0xFF800000> : vector<12xf32>
    %214 = vector.multi_reduction <maximumf>, %213, %cst_98 [1] : vector<12x12xf32> to vector<12xf32>
    %215 = vector.shape_cast %214 : vector<12xf32> to vector<12x1xf32>
    %216 = vector.broadcast %215 : vector<12x1xf32> to vector<12x12xf32>
    %217 = arith.subf %213, %216 : vector<12x12xf32>
    %218 = math.exp %217 : vector<12x12xf32>
    %cst_99 = arith.constant dense<0.000000e+00> : vector<12xf32>
    %219 = vector.multi_reduction <add>, %218, %cst_99 [1] : vector<12x12xf32> to vector<12xf32>
    %220 = vector.shape_cast %219 : vector<12xf32> to vector<12x1xf32>
    %221 = tpu.reciprocal %220 {approx = true} : vector<12x1xf32> -> vector<12x1xf32>
    %222 = vector.broadcast %221 : vector<12x1xf32> to vector<12x12xf32>
    %223 = arith.mulf %218, %222 : vector<12x12xf32>
    %cst_100 = arith.constant dense<0.000000e+00> : vector<12x8xf32>
    %224 = tpu.matmul %223, %210, %cst_100 {dimension_numbers = #tpu.dot_dimension_numbers<[1], [0], [0], [1], [0, 0, 1, 1], [], []>} : vector<12x12xf32>, vector<12x8xf32>, vector<12x8xf32> -> vector<12x8xf32>
    %225 = vector.extract_strided_slice %190 {offsets = [0, 16], sizes = [12, 8], strides = [1, 1]} : vector<12x96xf32> to vector<12x8xf32>
    %226 = vector.extract_strided_slice %190 {offsets = [0, 48], sizes = [12, 8], strides = [1, 1]} : vector<12x96xf32> to vector<12x8xf32>
    %227 = vector.extract_strided_slice %190 {offsets = [0, 80], sizes = [12, 8], strides = [1, 1]} : vector<12x96xf32> to vector<12x8xf32>
    %cst_101 = arith.constant dense<0.000000e+00> : vector<12x12xf32>
    %228 = tpu.matmul %225, %226, %cst_101 {dimension_numbers = #tpu.dot_dimension_numbers<[1], [1], [0], [0], [0, 0, 1, 0], [], []>} : vector<12x8xf32>, vector<12x8xf32>, vector<12x12xf32> -> vector<12x12xf32>
    %cst_102 = arith.constant 0.353553385 : f32
    %229 = vector.broadcast %cst_102 : f32 to vector<12x12xf32>
    %230 = arith.mulf %228, %229 : vector<12x12xf32>
    %cst_103 = arith.constant dense<0xFF800000> : vector<12xf32>
    %231 = vector.multi_reduction <maximumf>, %230, %cst_103 [1] : vector<12x12xf32> to vector<12xf32>
    %232 = vector.shape_cast %231 : vector<12xf32> to vector<12x1xf32>
    %233 = vector.broadcast %232 : vector<12x1xf32> to vector<12x12xf32>
    %234 = arith.subf %230, %233 : vector<12x12xf32>
    %235 = math.exp %234 : vector<12x12xf32>
    %cst_104 = arith.constant dense<0.000000e+00> : vector<12xf32>
    %236 = vector.multi_reduction <add>, %235, %cst_104 [1] : vector<12x12xf32> to vector<12xf32>
    %237 = vector.shape_cast %236 : vector<12xf32> to vector<12x1xf32>
    %238 = tpu.reciprocal %237 {approx = true} : vector<12x1xf32> -> vector<12x1xf32>
    %239 = vector.broadcast %238 : vector<12x1xf32> to vector<12x12xf32>
    %240 = arith.mulf %235, %239 : vector<12x12xf32>
    %cst_105 = arith.constant dense<0.000000e+00> : vector<12x8xf32>
    %241 = tpu.matmul %240, %227, %cst_105 {dimension_numbers = #tpu.dot_dimension_numbers<[1], [0], [0], [1], [0, 0, 1, 1], [], []>} : vector<12x12xf32>, vector<12x8xf32>, vector<12x8xf32> -> vector<12x8xf32>
    %242 = vector.extract_strided_slice %190 {offsets = [0, 24], sizes = [12, 8], strides = [1, 1]} : vector<12x96xf32> to vector<12x8xf32>
    %243 = vector.extract_strided_slice %190 {offsets = [0, 56], sizes = [12, 8], strides = [1, 1]} : vector<12x96xf32> to vector<12x8xf32>
    %244 = vector.extract_strided_slice %190 {offsets = [0, 88], sizes = [12, 8], strides = [1, 1]} : vector<12x96xf32> to vector<12x8xf32>
    %cst_106 = arith.constant dense<0.000000e+00> : vector<12x12xf32>
    %245 = tpu.matmul %242, %243, %cst_106 {dimension_numbers = #tpu.dot_dimension_numbers<[1], [1], [0], [0], [0, 0, 1, 0], [], []>} : vector<12x8xf32>, vector<12x8xf32>, vector<12x12xf32> -> vector<12x12xf32>
    %cst_107 = arith.constant 0.353553385 : f32
    %246 = vector.broadcast %cst_107 : f32 to vector<12x12xf32>
    %247 = arith.mulf %245, %246 : vector<12x12xf32>
    %cst_108 = arith.constant dense<0xFF800000> : vector<12xf32>
    %248 = vector.multi_reduction <maximumf>, %247, %cst_108 [1] : vector<12x12xf32> to vector<12xf32>
    %249 = vector.shape_cast %248 : vector<12xf32> to vector<12x1xf32>
    %250 = vector.broadcast %249 : vector<12x1xf32> to vector<12x12xf32>
    %251 = arith.subf %247, %250 : vector<12x12xf32>
    %252 = math.exp %251 : vector<12x12xf32>
    %cst_109 = arith.constant dense<0.000000e+00> : vector<12xf32>
    %253 = vector.multi_reduction <add>, %252, %cst_109 [1] : vector<12x12xf32> to vector<12xf32>
    %254 = vector.shape_cast %253 : vector<12xf32> to vector<12x1xf32>
    %255 = tpu.reciprocal %254 {approx = true} : vector<12x1xf32> -> vector<12x1xf32>
    %256 = vector.broadcast %255 : vector<12x1xf32> to vector<12x12xf32>
    %257 = arith.mulf %252, %256 : vector<12x12xf32>
    %cst_110 = arith.constant dense<0.000000e+00> : vector<12x8xf32>
    %258 = tpu.matmul %257, %244, %cst_110 {dimension_numbers = #tpu.dot_dimension_numbers<[1], [0], [0], [1], [0, 0, 1, 1], [], []>} : vector<12x12xf32>, vector<12x8xf32>, vector<12x8xf32> -> vector<12x8xf32>
    %259 = tpu.concatenate %207, %224, %241, %258 in 1 : vector<12x8xf32>, vector<12x8xf32>, vector<12x8xf32>, vector<12x8xf32> -> vector<12x32xf32>
    %c1_111 = arith.constant 1 : index
    %c0_112 = arith.constant 0 : index
    %c0_113 = arith.constant 0 : index
    %260 = vector.load %arg6[%c1_111, %c0_112, %c0_113] : memref<2x32x32xf32, #tpu.memory_space<vmem>>, vector<1x32x32xf32>
    %261 = vector.shape_cast %260 : vector<1x32x32xf32> to vector<32x32xf32>
    %cst_114 = arith.constant dense<0.000000e+00> : vector<12x32xf32>
    %262 = tpu.matmul %259, %261, %cst_114 {dimension_numbers = #tpu.dot_dimension_numbers<[1], [0], [0], [1], [0, 0, 1, 1], [], []>} : vector<12x32xf32>, vector<32x32xf32>, vector<12x32xf32> -> vector<12x32xf32>
    %c1_115 = arith.constant 1 : index
    %c0_116 = arith.constant 0 : index
    %c0_117 = arith.constant 0 : index
    %263 = vector.load %arg7[%c1_115, %c0_116, %c0_117] : memref<2x1x32xf32, #tpu.memory_space<vmem>>, vector<1x1x32xf32>
    %264 = vector.shape_cast %263 : vector<1x1x32xf32> to vector<1x32xf32>
    %265 = vector.broadcast %264 : vector<1x32xf32> to vector<12x32xf32>
    %266 = arith.addf %262, %265 : vector<12x32xf32>
    %267 = arith.addf %183, %266 : vector<12x32xf32>
    %c1_118 = arith.constant 1 : index
    %c0_119 = arith.constant 0 : index
    %c0_120 = arith.constant 0 : index
    %268 = vector.load %arg12[%c1_118, %c0_119, %c0_120] : memref<2x1x32xf32, #tpu.memory_space<vmem>>, vector<1x1x32xf32>
    %269 = vector.shape_cast %268 : vector<1x1x32xf32> to vector<1x32xf32>
    %c1_121 = arith.constant 1 : index
    %c0_122 = arith.constant 0 : index
    %c0_123 = arith.constant 0 : index
    %270 = vector.load %arg13[%c1_121, %c0_122, %c0_123] : memref<2x1x32xf32, #tpu.memory_space<vmem>>, vector<1x1x32xf32>
    %271 = vector.shape_cast %270 : vector<1x1x32xf32> to vector<1x32xf32>
    %cst_124 = arith.constant dense<0.000000e+00> : vector<12xf32>
    %272 = vector.multi_reduction <add>, %267, %cst_124 [1] : vector<12x32xf32> to vector<12xf32>
    %273 = vector.shape_cast %272 : vector<12xf32> to vector<12x1xf32>
    %cst_125 = arith.constant 3.200000e+01 : f32
    %274 = vector.broadcast %cst_125 : f32 to vector<12x1xf32>
    %275 = arith.divf %273, %274 : vector<12x1xf32>
    %276 = vector.broadcast %275 : vector<12x1xf32> to vector<12x32xf32>
    %277 = arith.subf %267, %276 : vector<12x32xf32>
    %278 = arith.mulf %277, %277 : vector<12x32xf32>
    %cst_126 = arith.constant dense<0.000000e+00> : vector<12xf32>
    %279 = vector.multi_reduction <add>, %278, %cst_126 [1] : vector<12x32xf32> to vector<12xf32>
    %280 = vector.shape_cast %279 : vector<12xf32> to vector<12x1xf32>
    %cst_127 = arith.constant 3.200000e+01 : f32
    %281 = vector.broadcast %cst_127 : f32 to vector<12x1xf32>
    %282 = arith.divf %280, %281 : vector<12x1xf32>
    %cst_128 = arith.constant 9.99999974E-6 : f32
    %283 = vector.broadcast %cst_128 : f32 to vector<12x1xf32>
    %284 = arith.addf %282, %283 : vector<12x1xf32>
    %285 = math.rsqrt %284 : vector<12x1xf32>
    %286 = vector.broadcast %285 : vector<12x1xf32> to vector<12x32xf32>
    %287 = arith.mulf %277, %286 : vector<12x32xf32>
    %288 = vector.broadcast %269 : vector<1x32xf32> to vector<12x32xf32>
    %289 = arith.mulf %287, %288 : vector<12x32xf32>
    %290 = vector.broadcast %271 : vector<1x32xf32> to vector<12x32xf32>
    %291 = arith.addf %289, %290 : vector<12x32xf32>
    %c1_129 = arith.constant 1 : index
    %c0_130 = arith.constant 0 : index
    %c0_131 = arith.constant 0 : index
    %292 = vector.load %arg8[%c1_129, %c0_130, %c0_131] : memref<2x32x32xf32, #tpu.memory_space<vmem>>, vector<1x32x32xf32>
    %293 = vector.shape_cast %292 : vector<1x32x32xf32> to vector<32x32xf32>
    %cst_132 = arith.constant dense<0.000000e+00> : vector<12x32xf32>
    %294 = tpu.matmul %291, %293, %cst_132 {dimension_numbers = #tpu.dot_dimension_numbers<[1], [0], [0], [1], [0, 0, 1, 1], [], []>} : vector<12x32xf32>, vector<32x32xf32>, vector<12x32xf32> -> vector<12x32xf32>
    %c1_133 = arith.constant 1 : index
    %c0_134 = arith.constant 0 : index
    %c0_135 = arith.constant 0 : index
    %295 = vector.load %arg9[%c1_133, %c0_134, %c0_135] : memref<2x1x32xf32, #tpu.memory_space<vmem>>, vector<1x1x32xf32>
    %296 = vector.shape_cast %295 : vector<1x1x32xf32> to vector<1x32xf32>
    %297 = vector.broadcast %296 : vector<1x32xf32> to vector<12x32xf32>
    %298 = arith.addf %294, %297 : vector<12x32xf32>
    %cst_136 = arith.constant 0.000000e+00 : f32
    %299 = vector.broadcast %cst_136 : f32 to vector<12x32xf32>
    %300 = arith.maximumf %298, %299 : vector<12x32xf32>
    %c1_137 = arith.constant 1 : index
    %c0_138 = arith.constant 0 : index
    %c0_139 = arith.constant 0 : index
    %301 = vector.load %arg10[%c1_137, %c0_138, %c0_139] : memref<2x32x32xf32, #tpu.memory_space<vmem>>, vector<1x32x32xf32>
    %302 = vector.shape_cast %301 : vector<1x32x32xf32> to vector<32x32xf32>
    %cst_140 = arith.constant dense<0.000000e+00> : vector<12x32xf32>
    %303 = tpu.matmul %300, %302, %cst_140 {dimension_numbers = #tpu.dot_dimension_numbers<[1], [0], [0], [1], [0, 0, 1, 1], [], []>} : vector<12x32xf32>, vector<32x32xf32>, vector<12x32xf32> -> vector<12x32xf32>
    %c1_141 = arith.constant 1 : index
    %c0_142 = arith.constant 0 : index
    %c0_143 = arith.constant 0 : index
    %304 = vector.load %arg11[%c1_141, %c0_142, %c0_143] : memref<2x1x32xf32, #tpu.memory_space<vmem>>, vector<1x1x32xf32>
    %305 = vector.shape_cast %304 : vector<1x1x32xf32> to vector<1x32xf32>
    %306 = vector.broadcast %305 : vector<1x32xf32> to vector<12x32xf32>
    %307 = arith.addf %303, %306 : vector<12x32xf32>
    %308 = arith.addf %291, %307 : vector<12x32xf32>
    %c1_144 = arith.constant 1 : index
    %c0_145 = arith.constant 0 : index
    %c0_146 = arith.constant 0 : index
    %309 = vector.load %arg14[%c1_144, %c0_145, %c0_146] : memref<2x1x32xf32, #tpu.memory_space<vmem>>, vector<1x1x32xf32>
    %310 = vector.shape_cast %309 : vector<1x1x32xf32> to vector<1x32xf32>
    %c1_147 = arith.constant 1 : index
    %c0_148 = arith.constant 0 : index
    %c0_149 = arith.constant 0 : index
    %311 = vector.load %arg15[%c1_147, %c0_148, %c0_149] : memref<2x1x32xf32, #tpu.memory_space<vmem>>, vector<1x1x32xf32>
    %312 = vector.shape_cast %311 : vector<1x1x32xf32> to vector<1x32xf32>
    %cst_150 = arith.constant dense<0.000000e+00> : vector<12xf32>
    %313 = vector.multi_reduction <add>, %308, %cst_150 [1] : vector<12x32xf32> to vector<12xf32>
    %314 = vector.shape_cast %313 : vector<12xf32> to vector<12x1xf32>
    %cst_151 = arith.constant 3.200000e+01 : f32
    %315 = vector.broadcast %cst_151 : f32 to vector<12x1xf32>
    %316 = arith.divf %314, %315 : vector<12x1xf32>
    %317 = vector.broadcast %316 : vector<12x1xf32> to vector<12x32xf32>
    %318 = arith.subf %308, %317 : vector<12x32xf32>
    %319 = arith.mulf %318, %318 : vector<12x32xf32>
    %cst_152 = arith.constant dense<0.000000e+00> : vector<12xf32>
    %320 = vector.multi_reduction <add>, %319, %cst_152 [1] : vector<12x32xf32> to vector<12xf32>
    %321 = vector.shape_cast %320 : vector<12xf32> to vector<12x1xf32>
    %cst_153 = arith.constant 3.200000e+01 : f32
    %322 = vector.broadcast %cst_153 : f32 to vector<12x1xf32>
    %323 = arith.divf %321, %322 : vector<12x1xf32>
    %cst_154 = arith.constant 9.99999974E-6 : f32
    %324 = vector.broadcast %cst_154 : f32 to vector<12x1xf32>
    %325 = arith.addf %323, %324 : vector<12x1xf32>
    %326 = math.rsqrt %325 : vector<12x1xf32>
    %327 = vector.broadcast %326 : vector<12x1xf32> to vector<12x32xf32>
    %328 = arith.mulf %318, %327 : vector<12x32xf32>
    %329 = vector.broadcast %310 : vector<1x32xf32> to vector<12x32xf32>
    %330 = arith.mulf %328, %329 : vector<12x32xf32>
    %331 = vector.broadcast %312 : vector<1x32xf32> to vector<12x32xf32>
    %332 = arith.addf %330, %331 : vector<12x32xf32>
    %c0_155 = arith.constant 0 : index
    %c0_156 = arith.constant 0 : index
    %333 = vector.load %arg16[%c0_155, %c0_156] : memref<1x32xf32, #tpu.memory_space<vmem>>, vector<1x32xf32>
    %c0_157 = arith.constant 0 : index
    %c0_158 = arith.constant 0 : index
    %334 = vector.load %arg17[%c0_157, %c0_158] : memref<1x32xf32, #tpu.memory_space<vmem>>, vector<1x32xf32>
    %cst_159 = arith.constant dense<0.000000e+00> : vector<12xf32>
    %335 = vector.multi_reduction <add>, %332, %cst_159 [1] : vector<12x32xf32> to vector<12xf32>
    %336 = vector.shape_cast %335 : vector<12xf32> to vector<12x1xf32>
    %cst_160 = arith.constant 3.200000e+01 : f32
    %337 = vector.broadcast %cst_160 : f32 to vector<12x1xf32>
    %338 = arith.divf %336, %337 : vector<12x1xf32>
    %339 = vector.broadcast %338 : vector<12x1xf32> to vector<12x32xf32>
    %340 = arith.subf %332, %339 : vector<12x32xf32>
    %341 = arith.mulf %340, %340 : vector<12x32xf32>
    %cst_161 = arith.constant dense<0.000000e+00> : vector<12xf32>
    %342 = vector.multi_reduction <add>, %341, %cst_161 [1] : vector<12x32xf32> to vector<12xf32>
    %343 = vector.shape_cast %342 : vector<12xf32> to vector<12x1xf32>
    %cst_162 = arith.constant 3.200000e+01 : f32
    %344 = vector.broadcast %cst_162 : f32 to vector<12x1xf32>
    %345 = arith.divf %343, %344 : vector<12x1xf32>
    %cst_163 = arith.constant 9.99999974E-6 : f32
    %346 = vector.broadcast %cst_163 : f32 to vector<12x1xf32>
    %347 = arith.addf %345, %346 : vector<12x1xf32>
    %348 = math.rsqrt %347 : vector<12x1xf32>
    %349 = vector.broadcast %348 : vector<12x1xf32> to vector<12x32xf32>
    %350 = arith.mulf %340, %349 : vector<12x32xf32>
    %351 = vector.broadcast %333 : vector<1x32xf32> to vector<12x32xf32>
    %352 = arith.mulf %350, %351 : vector<12x32xf32>
    %353 = vector.broadcast %334 : vector<1x32xf32> to vector<12x32xf32>
    %354 = arith.addf %352, %353 : vector<12x32xf32>
    %c0_164 = arith.constant 0 : index
    %c0_165 = arith.constant 0 : index
    %355 = vector.load %arg18[%c0_164, %c0_165] : memref<32x8xf32, #tpu.memory_space<vmem>>, vector<32x8xf32>
    %cst_166 = arith.constant dense<0.000000e+00> : vector<12x8xf32>
    %356 = tpu.matmul %354, %355, %cst_166 {dimension_numbers = #tpu.dot_dimension_numbers<[1], [0], [0], [1], [0, 0, 1, 1], [], []>} : vector<12x32xf32>, vector<32x8xf32>, vector<12x8xf32> -> vector<12x8xf32>
    %c0_167 = arith.constant 0 : index
    %c0_168 = arith.constant 0 : index
    %357 = vector.load %arg19[%c0_167, %c0_168] : memref<1x8xf32, #tpu.memory_space<vmem>>, vector<1x8xf32>
    %358 = vector.broadcast %357 : vector<1x8xf32> to vector<12x8xf32>
    %359 = arith.addf %356, %358 : vector<12x8xf32>
    %360 = vector.broadcast %18 : vector<12x1xf32> to vector<12x8xf32>
    %361 = arith.mulf %359, %360 : vector<12x8xf32>
    %362 = vector.broadcast %8 : vector<12x1xf32> to vector<12x8xf32>
    %363 = arith.addf %361, %362 : vector<12x8xf32>
    %c0_169 = arith.constant 0 : index
    %c0_170 = arith.constant 0 : index
    %c0_171 = arith.constant 0 : index
    %364 = vector.load %arg20[%c0_169, %c0_170, %c0_171] : memref<2x12x8xf32, #tpu.memory_space<vmem>>, vector<1x12x8xf32>
    %365 = vector.shape_cast %364 : vector<1x12x8xf32> to vector<12x8xf32>
    %366 = vector.shape_cast %363 : vector<12x8xf32> to vector<1x12x8xf32>
    tpu.vector_store %arg20[%c0_169, %c0_170, %c0_171], %366 {strides = array<i32>} : memref<2x12x8xf32, #tpu.memory_space<vmem>>, vector<1x12x8xf32>,
    %c1_172 = arith.constant 1 : index
    %c0_173 = arith.constant 0 : index
    %c0_174 = arith.constant 0 : index
    %367 = vector.load %arg1[%c1_172, %c0_173, %c0_174] : memref<2x12x16xf32, #tpu.memory_space<vmem>>, vector<1x12x16xf32>
    %368 = vector.shape_cast %367 : vector<1x12x16xf32> to vector<12x16xf32>
    %cst_175 = arith.constant dense<0.000000e+00> : vector<12xf32>
    %369 = vector.multi_reduction <add>, %368, %cst_175 [1] : vector<12x16xf32> to vector<12xf32>
    %370 = vector.shape_cast %369 : vector<12xf32> to vector<12x1xf32>
    %cst_176 = arith.constant 1.600000e+01 : f32
    %371 = vector.broadcast %cst_176 : f32 to vector<12x1xf32>
    %372 = arith.divf %370, %371 : vector<12x1xf32>
    %373 = vector.broadcast %372 : vector<12x1xf32> to vector<12x16xf32>
    %374 = arith.subf %368, %373 : vector<12x16xf32>
    %375 = arith.mulf %374, %374 : vector<12x16xf32>
    %cst_177 = arith.constant dense<0.000000e+00> : vector<12xf32>
    %376 = vector.multi_reduction <add>, %375, %cst_177 [1] : vector<12x16xf32> to vector<12xf32>
    %377 = vector.shape_cast %376 : vector<12xf32> to vector<12x1xf32>
    %cst_178 = arith.constant 1.600000e+01 : f32
    %378 = vector.broadcast %cst_178 : f32 to vector<12x1xf32>
    %379 = arith.divf %377, %378 : vector<12x1xf32>
    %cst_179 = arith.constant 9.99999974E-6 : f32
    %380 = vector.broadcast %cst_179 : f32 to vector<12x1xf32>
    %381 = arith.addf %379, %380 : vector<12x1xf32>
    %382 = math.sqrt %381 : vector<12x1xf32>
    %cst_180 = arith.constant 9.99999974E-6 : f32
    %383 = vector.broadcast %cst_180 : f32 to vector<12x1xf32>
    %384 = arith.addf %379, %383 : vector<12x1xf32>
    %385 = math.rsqrt %384 : vector<12x1xf32>
    %cst_181 = arith.constant 1.000000e+00 : f32
    %386 = vector.broadcast %cst_181 : f32 to vector<12x1xf32>
    %387 = arith.select %2, %385, %386 : vector<12x1xi1>, vector<12x1xf32>
    %cst_182 = arith.constant 0.000000e+00 : f32
    %388 = vector.broadcast %cst_182 : f32 to vector<12x1xf32>
    %389 = arith.select %2, %372, %388 : vector<12x1xi1>, vector<12x1xf32>
    %390 = vector.broadcast %389 : vector<12x1xf32> to vector<12x16xf32>
    %391 = arith.subf %368, %390 : vector<12x16xf32>
    %392 = vector.broadcast %387 : vector<12x1xf32> to vector<12x16xf32>
    %393 = arith.mulf %391, %392 : vector<12x16xf32>
    %c0_183 = arith.constant 0 : index
    %c0_184 = arith.constant 0 : index
    %394 = vector.load %arg2[%c0_183, %c0_184] : memref<16x32xf32, #tpu.memory_space<vmem>>, vector<16x32xf32>
    %cst_185 = arith.constant dense<0.000000e+00> : vector<12x32xf32>
    %395 = tpu.matmul %393, %394, %cst_185 {dimension_numbers = #tpu.dot_dimension_numbers<[1], [0], [0], [1], [0, 0, 1, 1], [], []>} : vector<12x16xf32>, vector<16x32xf32>, vector<12x32xf32> -> vector<12x32xf32>
    %c0_186 = arith.constant 0 : index
    %c0_187 = arith.constant 0 : index
    %396 = vector.load %arg3[%c0_186, %c0_187] : memref<1x32xf32, #tpu.memory_space<vmem>>, vector<1x32xf32>
    %397 = vector.broadcast %396 : vector<1x32xf32> to vector<12x32xf32>
    %398 = arith.addf %395, %397 : vector<12x32xf32>
    %c0_188 = arith.constant 0 : index
    %c0_189 = arith.constant 0 : index
    %c0_190 = arith.constant 0 : index
    %399 = vector.load %arg4[%c0_188, %c0_189, %c0_190] : memref<2x32x96xf32, #tpu.memory_space<vmem>>, vector<1x32x96xf32>
    %400 = vector.shape_cast %399 : vector<1x32x96xf32> to vector<32x96xf32>
    %cst_191 = arith.constant dense<0.000000e+00> : vector<12x96xf32>
    %401 = tpu.matmul %398, %400, %cst_191 {dimension_numbers = #tpu.dot_dimension_numbers<[1], [0], [0], [1], [0, 0, 1, 1], [], []>} : vector<12x32xf32>, vector<32x96xf32>, vector<12x96xf32> -> vector<12x96xf32>
    %c0_192 = arith.constant 0 : index
    %c0_193 = arith.constant 0 : index
    %c0_194 = arith.constant 0 : index
    %402 = vector.load %arg5[%c0_192, %c0_193, %c0_194] : memref<2x1x96xf32, #tpu.memory_space<vmem>>, vector<1x1x96xf32>
    %403 = vector.shape_cast %402 : vector<1x1x96xf32> to vector<1x96xf32>
    %404 = vector.broadcast %403 : vector<1x96xf32> to vector<12x96xf32>
    %405 = arith.addf %401, %404 : vector<12x96xf32>
    %406 = vector.extract_strided_slice %405 {offsets = [0, 0], sizes = [12, 8], strides = [1, 1]} : vector<12x96xf32> to vector<12x8xf32>
    %407 = vector.extract_strided_slice %405 {offsets = [0, 32], sizes = [12, 8], strides = [1, 1]} : vector<12x96xf32> to vector<12x8xf32>
    %408 = vector.extract_strided_slice %405 {offsets = [0, 64], sizes = [12, 8], strides = [1, 1]} : vector<12x96xf32> to vector<12x8xf32>
    %cst_195 = arith.constant dense<0.000000e+00> : vector<12x12xf32>
    %409 = tpu.matmul %406, %407, %cst_195 {dimension_numbers = #tpu.dot_dimension_numbers<[1], [1], [0], [0], [0, 0, 1, 0], [], []>} : vector<12x8xf32>, vector<12x8xf32>, vector<12x12xf32> -> vector<12x12xf32>
    %cst_196 = arith.constant 0.353553385 : f32
    %410 = vector.broadcast %cst_196 : f32 to vector<12x12xf32>
    %411 = arith.mulf %409, %410 : vector<12x12xf32>
    %cst_197 = arith.constant dense<0xFF800000> : vector<12xf32>
    %412 = vector.multi_reduction <maximumf>, %411, %cst_197 [1] : vector<12x12xf32> to vector<12xf32>
    %413 = vector.shape_cast %412 : vector<12xf32> to vector<12x1xf32>
    %414 = vector.broadcast %413 : vector<12x1xf32> to vector<12x12xf32>
    %415 = arith.subf %411, %414 : vector<12x12xf32>
    %416 = math.exp %415 : vector<12x12xf32>
    %cst_198 = arith.constant dense<0.000000e+00> : vector<12xf32>
    %417 = vector.multi_reduction <add>, %416, %cst_198 [1] : vector<12x12xf32> to vector<12xf32>
    %418 = vector.shape_cast %417 : vector<12xf32> to vector<12x1xf32>
    %419 = tpu.reciprocal %418 {approx = true} : vector<12x1xf32> -> vector<12x1xf32>
    %420 = vector.broadcast %419 : vector<12x1xf32> to vector<12x12xf32>
    %421 = arith.mulf %416, %420 : vector<12x12xf32>
    %cst_199 = arith.constant dense<0.000000e+00> : vector<12x8xf32>
    %422 = tpu.matmul %421, %408, %cst_199 {dimension_numbers = #tpu.dot_dimension_numbers<[1], [0], [0], [1], [0, 0, 1, 1], [], []>} : vector<12x12xf32>, vector<12x8xf32>, vector<12x8xf32> -> vector<12x8xf32>
    %423 = vector.extract_strided_slice %405 {offsets = [0, 8], sizes = [12, 8], strides = [1, 1]} : vector<12x96xf32> to vector<12x8xf32>
    %424 = vector.extract_strided_slice %405 {offsets = [0, 40], sizes = [12, 8], strides = [1, 1]} : vector<12x96xf32> to vector<12x8xf32>
    %425 = vector.extract_strided_slice %405 {offsets = [0, 72], sizes = [12, 8], strides = [1, 1]} : vector<12x96xf32> to vector<12x8xf32>
    %cst_200 = arith.constant dense<0.000000e+00> : vector<12x12xf32>
    %426 = tpu.matmul %423, %424, %cst_200 {dimension_numbers = #tpu.dot_dimension_numbers<[1], [1], [0], [0], [0, 0, 1, 0], [], []>} : vector<12x8xf32>, vector<12x8xf32>, vector<12x12xf32> -> vector<12x12xf32>
    %cst_201 = arith.constant 0.353553385 : f32
    %427 = vector.broadcast %cst_201 : f32 to vector<12x12xf32>
    %428 = arith.mulf %426, %427 : vector<12x12xf32>
    %cst_202 = arith.constant dense<0xFF800000> : vector<12xf32>
    %429 = vector.multi_reduction <maximumf>, %428, %cst_202 [1] : vector<12x12xf32> to vector<12xf32>
    %430 = vector.shape_cast %429 : vector<12xf32> to vector<12x1xf32>
    %431 = vector.broadcast %430 : vector<12x1xf32> to vector<12x12xf32>
    %432 = arith.subf %428, %431 : vector<12x12xf32>
    %433 = math.exp %432 : vector<12x12xf32>
    %cst_203 = arith.constant dense<0.000000e+00> : vector<12xf32>
    %434 = vector.multi_reduction <add>, %433, %cst_203 [1] : vector<12x12xf32> to vector<12xf32>
    %435 = vector.shape_cast %434 : vector<12xf32> to vector<12x1xf32>
    %436 = tpu.reciprocal %435 {approx = true} : vector<12x1xf32> -> vector<12x1xf32>
    %437 = vector.broadcast %436 : vector<12x1xf32> to vector<12x12xf32>
    %438 = arith.mulf %433, %437 : vector<12x12xf32>
    %cst_204 = arith.constant dense<0.000000e+00> : vector<12x8xf32>
    %439 = tpu.matmul %438, %425, %cst_204 {dimension_numbers = #tpu.dot_dimension_numbers<[1], [0], [0], [1], [0, 0, 1, 1], [], []>} : vector<12x12xf32>, vector<12x8xf32>, vector<12x8xf32> -> vector<12x8xf32>
    %440 = vector.extract_strided_slice %405 {offsets = [0, 16], sizes = [12, 8], strides = [1, 1]} : vector<12x96xf32> to vector<12x8xf32>
    %441 = vector.extract_strided_slice %405 {offsets = [0, 48], sizes = [12, 8], strides = [1, 1]} : vector<12x96xf32> to vector<12x8xf32>
    %442 = vector.extract_strided_slice %405 {offsets = [0, 80], sizes = [12, 8], strides = [1, 1]} : vector<12x96xf32> to vector<12x8xf32>
    %cst_205 = arith.constant dense<0.000000e+00> : vector<12x12xf32>
    %443 = tpu.matmul %440, %441, %cst_205 {dimension_numbers = #tpu.dot_dimension_numbers<[1], [1], [0], [0], [0, 0, 1, 0], [], []>} : vector<12x8xf32>, vector<12x8xf32>, vector<12x12xf32> -> vector<12x12xf32>
    %cst_206 = arith.constant 0.353553385 : f32
    %444 = vector.broadcast %cst_206 : f32 to vector<12x12xf32>
    %445 = arith.mulf %443, %444 : vector<12x12xf32>
    %cst_207 = arith.constant dense<0xFF800000> : vector<12xf32>
    %446 = vector.multi_reduction <maximumf>, %445, %cst_207 [1] : vector<12x12xf32> to vector<12xf32>
    %447 = vector.shape_cast %446 : vector<12xf32> to vector<12x1xf32>
    %448 = vector.broadcast %447 : vector<12x1xf32> to vector<12x12xf32>
    %449 = arith.subf %445, %448 : vector<12x12xf32>
    %450 = math.exp %449 : vector<12x12xf32>
    %cst_208 = arith.constant dense<0.000000e+00> : vector<12xf32>
    %451 = vector.multi_reduction <add>, %450, %cst_208 [1] : vector<12x12xf32> to vector<12xf32>
    %452 = vector.shape_cast %451 : vector<12xf32> to vector<12x1xf32>
    %453 = tpu.reciprocal %452 {approx = true} : vector<12x1xf32> -> vector<12x1xf32>
    %454 = vector.broadcast %453 : vector<12x1xf32> to vector<12x12xf32>
    %455 = arith.mulf %450, %454 : vector<12x12xf32>
    %cst_209 = arith.constant dense<0.000000e+00> : vector<12x8xf32>
    %456 = tpu.matmul %455, %442, %cst_209 {dimension_numbers = #tpu.dot_dimension_numbers<[1], [0], [0], [1], [0, 0, 1, 1], [], []>} : vector<12x12xf32>, vector<12x8xf32>, vector<12x8xf32> -> vector<12x8xf32>
    %457 = vector.extract_strided_slice %405 {offsets = [0, 24], sizes = [12, 8], strides = [1, 1]} : vector<12x96xf32> to vector<12x8xf32>
    %458 = vector.extract_strided_slice %405 {offsets = [0, 56], sizes = [12, 8], strides = [1, 1]} : vector<12x96xf32> to vector<12x8xf32>
    %459 = vector.extract_strided_slice %405 {offsets = [0, 88], sizes = [12, 8], strides = [1, 1]} : vector<12x96xf32> to vector<12x8xf32>
    %cst_210 = arith.constant dense<0.000000e+00> : vector<12x12xf32>
    %460 = tpu.matmul %457, %458, %cst_210 {dimension_numbers = #tpu.dot_dimension_numbers<[1], [1], [0], [0], [0, 0, 1, 0], [], []>} : vector<12x8xf32>, vector<12x8xf32>, vector<12x12xf32> -> vector<12x12xf32>
    %cst_211 = arith.constant 0.353553385 : f32
    %461 = vector.broadcast %cst_211 : f32 to vector<12x12xf32>
    %462 = arith.mulf %460, %461 : vector<12x12xf32>
    %cst_212 = arith.constant dense<0xFF800000> : vector<12xf32>
    %463 = vector.multi_reduction <maximumf>, %462, %cst_212 [1] : vector<12x12xf32> to vector<12xf32>
    %464 = vector.shape_cast %463 : vector<12xf32> to vector<12x1xf32>
    %465 = vector.broadcast %464 : vector<12x1xf32> to vector<12x12xf32>
    %466 = arith.subf %462, %465 : vector<12x12xf32>
    %467 = math.exp %466 : vector<12x12xf32>
    %cst_213 = arith.constant dense<0.000000e+00> : vector<12xf32>
    %468 = vector.multi_reduction <add>, %467, %cst_213 [1] : vector<12x12xf32> to vector<12xf32>
    %469 = vector.shape_cast %468 : vector<12xf32> to vector<12x1xf32>
    %470 = tpu.reciprocal %469 {approx = true} : vector<12x1xf32> -> vector<12x1xf32>
    %471 = vector.broadcast %470 : vector<12x1xf32> to vector<12x12xf32>
    %472 = arith.mulf %467, %471 : vector<12x12xf32>
    %cst_214 = arith.constant dense<0.000000e+00> : vector<12x8xf32>
    %473 = tpu.matmul %472, %459, %cst_214 {dimension_numbers = #tpu.dot_dimension_numbers<[1], [0], [0], [1], [0, 0, 1, 1], [], []>} : vector<12x12xf32>, vector<12x8xf32>, vector<12x8xf32> -> vector<12x8xf32>
    %474 = tpu.concatenate %422, %439, %456, %473 in 1 : vector<12x8xf32>, vector<12x8xf32>, vector<12x8xf32>, vector<12x8xf32> -> vector<12x32xf32>
    %c0_215 = arith.constant 0 : index
    %c0_216 = arith.constant 0 : index
    %c0_217 = arith.constant 0 : index
    %475 = vector.load %arg6[%c0_215, %c0_216, %c0_217] : memref<2x32x32xf32, #tpu.memory_space<vmem>>, vector<1x32x32xf32>
    %476 = vector.shape_cast %475 : vector<1x32x32xf32> to vector<32x32xf32>
    %cst_218 = arith.constant dense<0.000000e+00> : vector<12x32xf32>
    %477 = tpu.matmul %474, %476, %cst_218 {dimension_numbers = #tpu.dot_dimension_numbers<[1], [0], [0], [1], [0, 0, 1, 1], [], []>} : vector<12x32xf32>, vector<32x32xf32>, vector<12x32xf32> -> vector<12x32xf32>
    %c0_219 = arith.constant 0 : index
    %c0_220 = arith.constant 0 : index
    %c0_221 = arith.constant 0 : index
    %478 = vector.load %arg7[%c0_219, %c0_220, %c0_221] : memref<2x1x32xf32, #tpu.memory_space<vmem>>, vector<1x1x32xf32>
    %479 = vector.shape_cast %478 : vector<1x1x32xf32> to vector<1x32xf32>
    %480 = vector.broadcast %479 : vector<1x32xf32> to vector<12x32xf32>
    %481 = arith.addf %477, %480 : vector<12x32xf32>
    %482 = arith.addf %398, %481 : vector<12x32xf32>
    %c0_222 = arith.constant 0 : index
    %c0_223 = arith.constant 0 : index
    %c0_224 = arith.constant 0 : index
    %483 = vector.load %arg12[%c0_222, %c0_223, %c0_224] : memref<2x1x32xf32, #tpu.memory_space<vmem>>, vector<1x1x32xf32>
    %484 = vector.shape_cast %483 : vector<1x1x32xf32> to vector<1x32xf32>
    %c0_225 = arith.constant 0 : index
    %c0_226 = arith.constant 0 : index
    %c0_227 = arith.constant 0 : index
    %485 = vector.load %arg13[%c0_225, %c0_226, %c0_227] : memref<2x1x32xf32, #tpu.memory_space<vmem>>, vector<1x1x32xf32>
    %486 = vector.shape_cast %485 : vector<1x1x32xf32> to vector<1x32xf32>
    %cst_228 = arith.constant dense<0.000000e+00> : vector<12xf32>
    %487 = vector.multi_reduction <add>, %482, %cst_228 [1] : vector<12x32xf32> to vector<12xf32>
    %488 = vector.shape_cast %487 : vector<12xf32> to vector<12x1xf32>
    %cst_229 = arith.constant 3.200000e+01 : f32
    %489 = vector.broadcast %cst_229 : f32 to vector<12x1xf32>
    %490 = arith.divf %488, %489 : vector<12x1xf32>
    %491 = vector.broadcast %490 : vector<12x1xf32> to vector<12x32xf32>
    %492 = arith.subf %482, %491 : vector<12x32xf32>
    %493 = arith.mulf %492, %492 : vector<12x32xf32>
    %cst_230 = arith.constant dense<0.000000e+00> : vector<12xf32>
    %494 = vector.multi_reduction <add>, %493, %cst_230 [1] : vector<12x32xf32> to vector<12xf32>
    %495 = vector.shape_cast %494 : vector<12xf32> to vector<12x1xf32>
    %cst_231 = arith.constant 3.200000e+01 : f32
    %496 = vector.broadcast %cst_231 : f32 to vector<12x1xf32>
    %497 = arith.divf %495, %496 : vector<12x1xf32>
    %cst_232 = arith.constant 9.99999974E-6 : f32
    %498 = vector.broadcast %cst_232 : f32 to vector<12x1xf32>
    %499 = arith.addf %497, %498 : vector<12x1xf32>
    %500 = math.rsqrt %499 : vector<12x1xf32>
    %501 = vector.broadcast %500 : vector<12x1xf32> to vector<12x32xf32>
    %502 = arith.mulf %492, %501 : vector<12x32xf32>
    %503 = vector.broadcast %484 : vector<1x32xf32> to vector<12x32xf32>
    %504 = arith.mulf %502, %503 : vector<12x32xf32>
    %505 = vector.broadcast %486 : vector<1x32xf32> to vector<12x32xf32>
    %506 = arith.addf %504, %505 : vector<12x32xf32>
    %c0_233 = arith.constant 0 : index
    %c0_234 = arith.constant 0 : index
    %c0_235 = arith.constant 0 : index
    %507 = vector.load %arg8[%c0_233, %c0_234, %c0_235] : memref<2x32x32xf32, #tpu.memory_space<vmem>>, vector<1x32x32xf32>
    %508 = vector.shape_cast %507 : vector<1x32x32xf32> to vector<32x32xf32>
    %cst_236 = arith.constant dense<0.000000e+00> : vector<12x32xf32>
    %509 = tpu.matmul %506, %508, %cst_236 {dimension_numbers = #tpu.dot_dimension_numbers<[1], [0], [0], [1], [0, 0, 1, 1], [], []>} : vector<12x32xf32>, vector<32x32xf32>, vector<12x32xf32> -> vector<12x32xf32>
    %c0_237 = arith.constant 0 : index
    %c0_238 = arith.constant 0 : index
    %c0_239 = arith.constant 0 : index
    %510 = vector.load %arg9[%c0_237, %c0_238, %c0_239] : memref<2x1x32xf32, #tpu.memory_space<vmem>>, vector<1x1x32xf32>
    %511 = vector.shape_cast %510 : vector<1x1x32xf32> to vector<1x32xf32>
    %512 = vector.broadcast %511 : vector<1x32xf32> to vector<12x32xf32>
    %513 = arith.addf %509, %512 : vector<12x32xf32>
    %cst_240 = arith.constant 0.000000e+00 : f32
    %514 = vector.broadcast %cst_240 : f32 to vector<12x32xf32>
    %515 = arith.maximumf %513, %514 : vector<12x32xf32>
    %c0_241 = arith.constant 0 : index
    %c0_242 = arith.constant 0 : index
    %c0_243 = arith.constant 0 : index
    %516 = vector.load %arg10[%c0_241, %c0_242, %c0_243] : memref<2x32x32xf32, #tpu.memory_space<vmem>>, vector<1x32x32xf32>
    %517 = vector.shape_cast %516 : vector<1x32x32xf32> to vector<32x32xf32>
    %cst_244 = arith.constant dense<0.000000e+00> : vector<12x32xf32>
    %518 = tpu.matmul %515, %517, %cst_244 {dimension_numbers = #tpu.dot_dimension_numbers<[1], [0], [0], [1], [0, 0, 1, 1], [], []>} : vector<12x32xf32>, vector<32x32xf32>, vector<12x32xf32> -> vector<12x32xf32>
    %c0_245 = arith.constant 0 : index
    %c0_246 = arith.constant 0 : index
    %c0_247 = arith.constant 0 : index
    %519 = vector.load %arg11[%c0_245, %c0_246, %c0_247] : memref<2x1x32xf32, #tpu.memory_space<vmem>>, vector<1x1x32xf32>
    %520 = vector.shape_cast %519 : vector<1x1x32xf32> to vector<1x32xf32>
    %521 = vector.broadcast %520 : vector<1x32xf32> to vector<12x32xf32>
    %522 = arith.addf %518, %521 : vector<12x32xf32>
    %523 = arith.addf %506, %522 : vector<12x32xf32>
    %c0_248 = arith.constant 0 : index
    %c0_249 = arith.constant 0 : index
    %c0_250 = arith.constant 0 : index
    %524 = vector.load %arg14[%c0_248, %c0_249, %c0_250] : memref<2x1x32xf32, #tpu.memory_space<vmem>>, vector<1x1x32xf32>
    %525 = vector.shape_cast %524 : vector<1x1x32xf32> to vector<1x32xf32>
    %c0_251 = arith.constant 0 : index
    %c0_252 = arith.constant 0 : index
    %c0_253 = arith.constant 0 : index
    %526 = vector.load %arg15[%c0_251, %c0_252, %c0_253] : memref<2x1x32xf32, #tpu.memory_space<vmem>>, vector<1x1x32xf32>
    %527 = vector.shape_cast %526 : vector<1x1x32xf32> to vector<1x32xf32>
    %cst_254 = arith.constant dense<0.000000e+00> : vector<12xf32>
    %528 = vector.multi_reduction <add>, %523, %cst_254 [1] : vector<12x32xf32> to vector<12xf32>
    %529 = vector.shape_cast %528 : vector<12xf32> to vector<12x1xf32>
    %cst_255 = arith.constant 3.200000e+01 : f32
    %530 = vector.broadcast %cst_255 : f32 to vector<12x1xf32>
    %531 = arith.divf %529, %530 : vector<12x1xf32>
    %532 = vector.broadcast %531 : vector<12x1xf32> to vector<12x32xf32>
    %533 = arith.subf %523, %532 : vector<12x32xf32>
    %534 = arith.mulf %533, %533 : vector<12x32xf32>
    %cst_256 = arith.constant dense<0.000000e+00> : vector<12xf32>
    %535 = vector.multi_reduction <add>, %534, %cst_256 [1] : vector<12x32xf32> to vector<12xf32>
    %536 = vector.shape_cast %535 : vector<12xf32> to vector<12x1xf32>
    %cst_257 = arith.constant 3.200000e+01 : f32
    %537 = vector.broadcast %cst_257 : f32 to vector<12x1xf32>
    %538 = arith.divf %536, %537 : vector<12x1xf32>
    %cst_258 = arith.constant 9.99999974E-6 : f32
    %539 = vector.broadcast %cst_258 : f32 to vector<12x1xf32>
    %540 = arith.addf %538, %539 : vector<12x1xf32>
    %541 = math.rsqrt %540 : vector<12x1xf32>
    %542 = vector.broadcast %541 : vector<12x1xf32> to vector<12x32xf32>
    %543 = arith.mulf %533, %542 : vector<12x32xf32>
    %544 = vector.broadcast %525 : vector<1x32xf32> to vector<12x32xf32>
    %545 = arith.mulf %543, %544 : vector<12x32xf32>
    %546 = vector.broadcast %527 : vector<1x32xf32> to vector<12x32xf32>
    %547 = arith.addf %545, %546 : vector<12x32xf32>
    %c1_259 = arith.constant 1 : index
    %c0_260 = arith.constant 0 : index
    %c0_261 = arith.constant 0 : index
    %548 = vector.load %arg4[%c1_259, %c0_260, %c0_261] : memref<2x32x96xf32, #tpu.memory_space<vmem>>, vector<1x32x96xf32>
    %549 = vector.shape_cast %548 : vector<1x32x96xf32> to vector<32x96xf32>
    %cst_262 = arith.constant dense<0.000000e+00> : vector<12x96xf32>
    %550 = tpu.matmul %547, %549, %cst_262 {dimension_numbers = #tpu.dot_dimension_numbers<[1], [0], [0], [1], [0, 0, 1, 1], [], []>} : vector<12x32xf32>, vector<32x96xf32>, vector<12x96xf32> -> vector<12x96xf32>
    %c1_263 = arith.constant 1 : index
    %c0_264 = arith.constant 0 : index
    %c0_265 = arith.constant 0 : index
    %551 = vector.load %arg5[%c1_263, %c0_264, %c0_265] : memref<2x1x96xf32, #tpu.memory_space<vmem>>, vector<1x1x96xf32>
    %552 = vector.shape_cast %551 : vector<1x1x96xf32> to vector<1x96xf32>
    %553 = vector.broadcast %552 : vector<1x96xf32> to vector<12x96xf32>
    %554 = arith.addf %550, %553 : vector<12x96xf32>
    %555 = vector.extract_strided_slice %554 {offsets = [0, 0], sizes = [12, 8], strides = [1, 1]} : vector<12x96xf32> to vector<12x8xf32>
    %556 = vector.extract_strided_slice %554 {offsets = [0, 32], sizes = [12, 8], strides = [1, 1]} : vector<12x96xf32> to vector<12x8xf32>
    %557 = vector.extract_strided_slice %554 {offsets = [0, 64], sizes = [12, 8], strides = [1, 1]} : vector<12x96xf32> to vector<12x8xf32>
    %cst_266 = arith.constant dense<0.000000e+00> : vector<12x12xf32>
    %558 = tpu.matmul %555, %556, %cst_266 {dimension_numbers = #tpu.dot_dimension_numbers<[1], [1], [0], [0], [0, 0, 1, 0], [], []>} : vector<12x8xf32>, vector<12x8xf32>, vector<12x12xf32> -> vector<12x12xf32>
    %cst_267 = arith.constant 0.353553385 : f32
    %559 = vector.broadcast %cst_267 : f32 to vector<12x12xf32>
    %560 = arith.mulf %558, %559 : vector<12x12xf32>
    %cst_268 = arith.constant dense<0xFF800000> : vector<12xf32>
    %561 = vector.multi_reduction <maximumf>, %560, %cst_268 [1] : vector<12x12xf32> to vector<12xf32>
    %562 = vector.shape_cast %561 : vector<12xf32> to vector<12x1xf32>
    %563 = vector.broadcast %562 : vector<12x1xf32> to vector<12x12xf32>
    %564 = arith.subf %560, %563 : vector<12x12xf32>
    %565 = math.exp %564 : vector<12x12xf32>
    %cst_269 = arith.constant dense<0.000000e+00> : vector<12xf32>
    %566 = vector.multi_reduction <add>, %565, %cst_269 [1] : vector<12x12xf32> to vector<12xf32>
    %567 = vector.shape_cast %566 : vector<12xf32> to vector<12x1xf32>
    %568 = tpu.reciprocal %567 {approx = true} : vector<12x1xf32> -> vector<12x1xf32>
    %569 = vector.broadcast %568 : vector<12x1xf32> to vector<12x12xf32>
    %570 = arith.mulf %565, %569 : vector<12x12xf32>
    %cst_270 = arith.constant dense<0.000000e+00> : vector<12x8xf32>
    %571 = tpu.matmul %570, %557, %cst_270 {dimension_numbers = #tpu.dot_dimension_numbers<[1], [0], [0], [1], [0, 0, 1, 1], [], []>} : vector<12x12xf32>, vector<12x8xf32>, vector<12x8xf32> -> vector<12x8xf32>
    %572 = vector.extract_strided_slice %554 {offsets = [0, 8], sizes = [12, 8], strides = [1, 1]} : vector<12x96xf32> to vector<12x8xf32>
    %573 = vector.extract_strided_slice %554 {offsets = [0, 40], sizes = [12, 8], strides = [1, 1]} : vector<12x96xf32> to vector<12x8xf32>
    %574 = vector.extract_strided_slice %554 {offsets = [0, 72], sizes = [12, 8], strides = [1, 1]} : vector<12x96xf32> to vector<12x8xf32>
    %cst_271 = arith.constant dense<0.000000e+00> : vector<12x12xf32>
    %575 = tpu.matmul %572, %573, %cst_271 {dimension_numbers = #tpu.dot_dimension_numbers<[1], [1], [0], [0], [0, 0, 1, 0], [], []>} : vector<12x8xf32>, vector<12x8xf32>, vector<12x12xf32> -> vector<12x12xf32>
    %cst_272 = arith.constant 0.353553385 : f32
    %576 = vector.broadcast %cst_272 : f32 to vector<12x12xf32>
    %577 = arith.mulf %575, %576 : vector<12x12xf32>
    %cst_273 = arith.constant dense<0xFF800000> : vector<12xf32>
    %578 = vector.multi_reduction <maximumf>, %577, %cst_273 [1] : vector<12x12xf32> to vector<12xf32>
    %579 = vector.shape_cast %578 : vector<12xf32> to vector<12x1xf32>
    %580 = vector.broadcast %579 : vector<12x1xf32> to vector<12x12xf32>
    %581 = arith.subf %577, %580 : vector<12x12xf32>
    %582 = math.exp %581 : vector<12x12xf32>
    %cst_274 = arith.constant dense<0.000000e+00> : vector<12xf32>
    %583 = vector.multi_reduction <add>, %582, %cst_274 [1] : vector<12x12xf32> to vector<12xf32>
    %584 = vector.shape_cast %583 : vector<12xf32> to vector<12x1xf32>
    %585 = tpu.reciprocal %584 {approx = true} : vector<12x1xf32> -> vector<12x1xf32>
    %586 = vector.broadcast %585 : vector<12x1xf32> to vector<12x12xf32>
    %587 = arith.mulf %582, %586 : vector<12x12xf32>
    %cst_275 = arith.constant dense<0.000000e+00> : vector<12x8xf32>
    %588 = tpu.matmul %587, %574, %cst_275 {dimension_numbers = #tpu.dot_dimension_numbers<[1], [0], [0], [1], [0, 0, 1, 1], [], []>} : vector<12x12xf32>, vector<12x8xf32>, vector<12x8xf32> -> vector<12x8xf32>
    %589 = vector.extract_strided_slice %554 {offsets = [0, 16], sizes = [12, 8], strides = [1, 1]} : vector<12x96xf32> to vector<12x8xf32>
    %590 = vector.extract_strided_slice %554 {offsets = [0, 48], sizes = [12, 8], strides = [1, 1]} : vector<12x96xf32> to vector<12x8xf32>
    %591 = vector.extract_strided_slice %554 {offsets = [0, 80], sizes = [12, 8], strides = [1, 1]} : vector<12x96xf32> to vector<12x8xf32>
    %cst_276 = arith.constant dense<0.000000e+00> : vector<12x12xf32>
    %592 = tpu.matmul %589, %590, %cst_276 {dimension_numbers = #tpu.dot_dimension_numbers<[1], [1], [0], [0], [0, 0, 1, 0], [], []>} : vector<12x8xf32>, vector<12x8xf32>, vector<12x12xf32> -> vector<12x12xf32>
    %cst_277 = arith.constant 0.353553385 : f32
    %593 = vector.broadcast %cst_277 : f32 to vector<12x12xf32>
    %594 = arith.mulf %592, %593 : vector<12x12xf32>
    %cst_278 = arith.constant dense<0xFF800000> : vector<12xf32>
    %595 = vector.multi_reduction <maximumf>, %594, %cst_278 [1] : vector<12x12xf32> to vector<12xf32>
    %596 = vector.shape_cast %595 : vector<12xf32> to vector<12x1xf32>
    %597 = vector.broadcast %596 : vector<12x1xf32> to vector<12x12xf32>
    %598 = arith.subf %594, %597 : vector<12x12xf32>
    %599 = math.exp %598 : vector<12x12xf32>
    %cst_279 = arith.constant dense<0.000000e+00> : vector<12xf32>
    %600 = vector.multi_reduction <add>, %599, %cst_279 [1] : vector<12x12xf32> to vector<12xf32>
    %601 = vector.shape_cast %600 : vector<12xf32> to vector<12x1xf32>
    %602 = tpu.reciprocal %601 {approx = true} : vector<12x1xf32> -> vector<12x1xf32>
    %603 = vector.broadcast %602 : vector<12x1xf32> to vector<12x12xf32>
    %604 = arith.mulf %599, %603 : vector<12x12xf32>
    %cst_280 = arith.constant dense<0.000000e+00> : vector<12x8xf32>
    %605 = tpu.matmul %604, %591, %cst_280 {dimension_numbers = #tpu.dot_dimension_numbers<[1], [0], [0], [1], [0, 0, 1, 1], [], []>} : vector<12x12xf32>, vector<12x8xf32>, vector<12x8xf32> -> vector<12x8xf32>
    %606 = vector.extract_strided_slice %554 {offsets = [0, 24], sizes = [12, 8], strides = [1, 1]} : vector<12x96xf32> to vector<12x8xf32>
    %607 = vector.extract_strided_slice %554 {offsets = [0, 56], sizes = [12, 8], strides = [1, 1]} : vector<12x96xf32> to vector<12x8xf32>
    %608 = vector.extract_strided_slice %554 {offsets = [0, 88], sizes = [12, 8], strides = [1, 1]} : vector<12x96xf32> to vector<12x8xf32>
    %cst_281 = arith.constant dense<0.000000e+00> : vector<12x12xf32>
    %609 = tpu.matmul %606, %607, %cst_281 {dimension_numbers = #tpu.dot_dimension_numbers<[1], [1], [0], [0], [0, 0, 1, 0], [], []>} : vector<12x8xf32>, vector<12x8xf32>, vector<12x12xf32> -> vector<12x12xf32>
    %cst_282 = arith.constant 0.353553385 : f32
    %610 = vector.broadcast %cst_282 : f32 to vector<12x12xf32>
    %611 = arith.mulf %609, %610 : vector<12x12xf32>
    %cst_283 = arith.constant dense<0xFF800000> : vector<12xf32>
    %612 = vector.multi_reduction <maximumf>, %611, %cst_283 [1] : vector<12x12xf32> to vector<12xf32>
    %613 = vector.shape_cast %612 : vector<12xf32> to vector<12x1xf32>
    %614 = vector.broadcast %613 : vector<12x1xf32> to vector<12x12xf32>
    %615 = arith.subf %611, %614 : vector<12x12xf32>
    %616 = math.exp %615 : vector<12x12xf32>
    %cst_284 = arith.constant dense<0.000000e+00> : vector<12xf32>
    %617 = vector.multi_reduction <add>, %616, %cst_284 [1] : vector<12x12xf32> to vector<12xf32>
    %618 = vector.shape_cast %617 : vector<12xf32> to vector<12x1xf32>
    %619 = tpu.reciprocal %618 {approx = true} : vector<12x1xf32> -> vector<12x1xf32>
    %620 = vector.broadcast %619 : vector<12x1xf32> to vector<12x12xf32>
    %621 = arith.mulf %616, %620 : vector<12x12xf32>
    %cst_285 = arith.constant dense<0.000000e+00> : vector<12x8xf32>
    %622 = tpu.matmul %621, %608, %cst_285 {dimension_numbers = #tpu.dot_dimension_numbers<[1], [0], [0], [1], [0, 0, 1, 1], [], []>} : vector<12x12xf32>, vector<12x8xf32>, vector<12x8xf32> -> vector<12x8xf32>
    %623 = tpu.concatenate %571, %588, %605, %622 in 1 : vector<12x8xf32>, vector<12x8xf32>, vector<12x8xf32>, vector<12x8xf32> -> vector<12x32xf32>
    %c1_286 = arith.constant 1 : index
    %c0_287 = arith.constant 0 : index
    %c0_288 = arith.constant 0 : index
    %624 = vector.load %arg6[%c1_286, %c0_287, %c0_288] : memref<2x32x32xf32, #tpu.memory_space<vmem>>, vector<1x32x32xf32>
    %625 = vector.shape_cast %624 : vector<1x32x32xf32> to vector<32x32xf32>
    %cst_289 = arith.constant dense<0.000000e+00> : vector<12x32xf32>
    %626 = tpu.matmul %623, %625, %cst_289 {dimension_numbers = #tpu.dot_dimension_numbers<[1], [0], [0], [1], [0, 0, 1, 1], [], []>} : vector<12x32xf32>, vector<32x32xf32>, vector<12x32xf32> -> vector<12x32xf32>
    %c1_290 = arith.constant 1 : index
    %c0_291 = arith.constant 0 : index
    %c0_292 = arith.constant 0 : index
    %627 = vector.load %arg7[%c1_290, %c0_291, %c0_292] : memref<2x1x32xf32, #tpu.memory_space<vmem>>, vector<1x1x32xf32>
    %628 = vector.shape_cast %627 : vector<1x1x32xf32> to vector<1x32xf32>
    %629 = vector.broadcast %628 : vector<1x32xf32> to vector<12x32xf32>
    %630 = arith.addf %626, %629 : vector<12x32xf32>
    %631 = arith.addf %547, %630 : vector<12x32xf32>
    %c1_293 = arith.constant 1 : index
    %c0_294 = arith.constant 0 : index
    %c0_295 = arith.constant 0 : index
    %632 = vector.load %arg12[%c1_293, %c0_294, %c0_295] : memref<2x1x32xf32, #tpu.memory_space<vmem>>, vector<1x1x32xf32>
    %633 = vector.shape_cast %632 : vector<1x1x32xf32> to vector<1x32xf32>
    %c1_296 = arith.constant 1 : index
    %c0_297 = arith.constant 0 : index
    %c0_298 = arith.constant 0 : index
    %634 = vector.load %arg13[%c1_296, %c0_297, %c0_298] : memref<2x1x32xf32, #tpu.memory_space<vmem>>, vector<1x1x32xf32>
    %635 = vector.shape_cast %634 : vector<1x1x32xf32> to vector<1x32xf32>
    %cst_299 = arith.constant dense<0.000000e+00> : vector<12xf32>
    %636 = vector.multi_reduction <add>, %631, %cst_299 [1] : vector<12x32xf32> to vector<12xf32>
    %637 = vector.shape_cast %636 : vector<12xf32> to vector<12x1xf32>
    %cst_300 = arith.constant 3.200000e+01 : f32
    %638 = vector.broadcast %cst_300 : f32 to vector<12x1xf32>
    %639 = arith.divf %637, %638 : vector<12x1xf32>
    %640 = vector.broadcast %639 : vector<12x1xf32> to vector<12x32xf32>
    %641 = arith.subf %631, %640 : vector<12x32xf32>
    %642 = arith.mulf %641, %641 : vector<12x32xf32>
    %cst_301 = arith.constant dense<0.000000e+00> : vector<12xf32>
    %643 = vector.multi_reduction <add>, %642, %cst_301 [1] : vector<12x32xf32> to vector<12xf32>
    %644 = vector.shape_cast %643 : vector<12xf32> to vector<12x1xf32>
    %cst_302 = arith.constant 3.200000e+01 : f32
    %645 = vector.broadcast %cst_302 : f32 to vector<12x1xf32>
    %646 = arith.divf %644, %645 : vector<12x1xf32>
    %cst_303 = arith.constant 9.99999974E-6 : f32
    %647 = vector.broadcast %cst_303 : f32 to vector<12x1xf32>
    %648 = arith.addf %646, %647 : vector<12x1xf32>
    %649 = math.rsqrt %648 : vector<12x1xf32>
    %650 = vector.broadcast %649 : vector<12x1xf32> to vector<12x32xf32>
    %651 = arith.mulf %641, %650 : vector<12x32xf32>
    %652 = vector.broadcast %633 : vector<1x32xf32> to vector<12x32xf32>
    %653 = arith.mulf %651, %652 : vector<12x32xf32>
    %654 = vector.broadcast %635 : vector<1x32xf32> to vector<12x32xf32>
    %655 = arith.addf %653, %654 : vector<12x32xf32>
    %c1_304 = arith.constant 1 : index
    %c0_305 = arith.constant 0 : index
    %c0_306 = arith.constant 0 : index
    %656 = vector.load %arg8[%c1_304, %c0_305, %c0_306] : memref<2x32x32xf32, #tpu.memory_space<vmem>>, vector<1x32x32xf32>
    %657 = vector.shape_cast %656 : vector<1x32x32xf32> to vector<32x32xf32>
    %cst_307 = arith.constant dense<0.000000e+00> : vector<12x32xf32>
    %658 = tpu.matmul %655, %657, %cst_307 {dimension_numbers = #tpu.dot_dimension_numbers<[1], [0], [0], [1], [0, 0, 1, 1], [], []>} : vector<12x32xf32>, vector<32x32xf32>, vector<12x32xf32> -> vector<12x32xf32>
    %c1_308 = arith.constant 1 : index
    %c0_309 = arith.constant 0 : index
    %c0_310 = arith.constant 0 : index
    %659 = vector.load %arg9[%c1_308, %c0_309, %c0_310] : memref<2x1x32xf32, #tpu.memory_space<vmem>>, vector<1x1x32xf32>
    %660 = vector.shape_cast %659 : vector<1x1x32xf32> to vector<1x32xf32>
    %661 = vector.broadcast %660 : vector<1x32xf32> to vector<12x32xf32>
    %662 = arith.addf %658, %661 : vector<12x32xf32>
    %cst_311 = arith.constant 0.000000e+00 : f32
    %663 = vector.broadcast %cst_311 : f32 to vector<12x32xf32>
    %664 = arith.maximumf %662, %663 : vector<12x32xf32>
    %c1_312 = arith.constant 1 : index
    %c0_313 = arith.constant 0 : index
    %c0_314 = arith.constant 0 : index
    %665 = vector.load %arg10[%c1_312, %c0_313, %c0_314] : memref<2x32x32xf32, #tpu.memory_space<vmem>>, vector<1x32x32xf32>
    %666 = vector.shape_cast %665 : vector<1x32x32xf32> to vector<32x32xf32>
    %cst_315 = arith.constant dense<0.000000e+00> : vector<12x32xf32>
    %667 = tpu.matmul %664, %666, %cst_315 {dimension_numbers = #tpu.dot_dimension_numbers<[1], [0], [0], [1], [0, 0, 1, 1], [], []>} : vector<12x32xf32>, vector<32x32xf32>, vector<12x32xf32> -> vector<12x32xf32>
    %c1_316 = arith.constant 1 : index
    %c0_317 = arith.constant 0 : index
    %c0_318 = arith.constant 0 : index
    %668 = vector.load %arg11[%c1_316, %c0_317, %c0_318] : memref<2x1x32xf32, #tpu.memory_space<vmem>>, vector<1x1x32xf32>
    %669 = vector.shape_cast %668 : vector<1x1x32xf32> to vector<1x32xf32>
    %670 = vector.broadcast %669 : vector<1x32xf32> to vector<12x32xf32>
    %671 = arith.addf %667, %670 : vector<12x32xf32>
    %672 = arith.addf %655, %671 : vector<12x32xf32>
    %c1_319 = arith.constant 1 : index
    %c0_320 = arith.constant 0 : index
    %c0_321 = arith.constant 0 : index
    %673 = vector.load %arg14[%c1_319, %c0_320, %c0_321] : memref<2x1x32xf32, #tpu.memory_space<vmem>>, vector<1x1x32xf32>
    %674 = vector.shape_cast %673 : vector<1x1x32xf32> to vector<1x32xf32>
    %c1_322 = arith.constant 1 : index
    %c0_323 = arith.constant 0 : index
    %c0_324 = arith.constant 0 : index
    %675 = vector.load %arg15[%c1_322, %c0_323, %c0_324] : memref<2x1x32xf32, #tpu.memory_space<vmem>>, vector<1x1x32xf32>
    %676 = vector.shape_cast %675 : vector<1x1x32xf32> to vector<1x32xf32>
    %cst_325 = arith.constant dense<0.000000e+00> : vector<12xf32>
    %677 = vector.multi_reduction <add>, %672, %cst_325 [1] : vector<12x32xf32> to vector<12xf32>
    %678 = vector.shape_cast %677 : vector<12xf32> to vector<12x1xf32>
    %cst_326 = arith.constant 3.200000e+01 : f32
    %679 = vector.broadcast %cst_326 : f32 to vector<12x1xf32>
    %680 = arith.divf %678, %679 : vector<12x1xf32>
    %681 = vector.broadcast %680 : vector<12x1xf32> to vector<12x32xf32>
    %682 = arith.subf %672, %681 : vector<12x32xf32>
    %683 = arith.mulf %682, %682 : vector<12x32xf32>
    %cst_327 = arith.constant dense<0.000000e+00> : vector<12xf32>
    %684 = vector.multi_reduction <add>, %683, %cst_327 [1] : vector<12x32xf32> to vector<12xf32>
    %685 = vector.shape_cast %684 : vector<12xf32> to vector<12x1xf32>
    %cst_328 = arith.constant 3.200000e+01 : f32
    %686 = vector.broadcast %cst_328 : f32 to vector<12x1xf32>
    %687 = arith.divf %685, %686 : vector<12x1xf32>
    %cst_329 = arith.constant 9.99999974E-6 : f32
    %688 = vector.broadcast %cst_329 : f32 to vector<12x1xf32>
    %689 = arith.addf %687, %688 : vector<12x1xf32>
    %690 = math.rsqrt %689 : vector<12x1xf32>
    %691 = vector.broadcast %690 : vector<12x1xf32> to vector<12x32xf32>
    %692 = arith.mulf %682, %691 : vector<12x32xf32>
    %693 = vector.broadcast %674 : vector<1x32xf32> to vector<12x32xf32>
    %694 = arith.mulf %692, %693 : vector<12x32xf32>
    %695 = vector.broadcast %676 : vector<1x32xf32> to vector<12x32xf32>
    %696 = arith.addf %694, %695 : vector<12x32xf32>
    %c0_330 = arith.constant 0 : index
    %c0_331 = arith.constant 0 : index
    %697 = vector.load %arg16[%c0_330, %c0_331] : memref<1x32xf32, #tpu.memory_space<vmem>>, vector<1x32xf32>
    %c0_332 = arith.constant 0 : index
    %c0_333 = arith.constant 0 : index
    %698 = vector.load %arg17[%c0_332, %c0_333] : memref<1x32xf32, #tpu.memory_space<vmem>>, vector<1x32xf32>
    %cst_334 = arith.constant dense<0.000000e+00> : vector<12xf32>
    %699 = vector.multi_reduction <add>, %696, %cst_334 [1] : vector<12x32xf32> to vector<12xf32>
    %700 = vector.shape_cast %699 : vector<12xf32> to vector<12x1xf32>
    %cst_335 = arith.constant 3.200000e+01 : f32
    %701 = vector.broadcast %cst_335 : f32 to vector<12x1xf32>
    %702 = arith.divf %700, %701 : vector<12x1xf32>
    %703 = vector.broadcast %702 : vector<12x1xf32> to vector<12x32xf32>
    %704 = arith.subf %696, %703 : vector<12x32xf32>
    %705 = arith.mulf %704, %704 : vector<12x32xf32>
    %cst_336 = arith.constant dense<0.000000e+00> : vector<12xf32>
    %706 = vector.multi_reduction <add>, %705, %cst_336 [1] : vector<12x32xf32> to vector<12xf32>
    %707 = vector.shape_cast %706 : vector<12xf32> to vector<12x1xf32>
    %cst_337 = arith.constant 3.200000e+01 : f32
    %708 = vector.broadcast %cst_337 : f32 to vector<12x1xf32>
    %709 = arith.divf %707, %708 : vector<12x1xf32>
    %cst_338 = arith.constant 9.99999974E-6 : f32
    %710 = vector.broadcast %cst_338 : f32 to vector<12x1xf32>
    %711 = arith.addf %709, %710 : vector<12x1xf32>
    %712 = math.rsqrt %711 : vector<12x1xf32>
    %713 = vector.broadcast %712 : vector<12x1xf32> to vector<12x32xf32>
    %714 = arith.mulf %704, %713 : vector<12x32xf32>
    %715 = vector.broadcast %697 : vector<1x32xf32> to vector<12x32xf32>
    %716 = arith.mulf %714, %715 : vector<12x32xf32>
    %717 = vector.broadcast %698 : vector<1x32xf32> to vector<12x32xf32>
    %718 = arith.addf %716, %717 : vector<12x32xf32>
    %c0_339 = arith.constant 0 : index
    %c0_340 = arith.constant 0 : index
    %719 = vector.load %arg18[%c0_339, %c0_340] : memref<32x8xf32, #tpu.memory_space<vmem>>, vector<32x8xf32>
    %cst_341 = arith.constant dense<0.000000e+00> : vector<12x8xf32>
    %720 = tpu.matmul %718, %719, %cst_341 {dimension_numbers = #tpu.dot_dimension_numbers<[1], [0], [0], [1], [0, 0, 1, 1], [], []>} : vector<12x32xf32>, vector<32x8xf32>, vector<12x8xf32> -> vector<12x8xf32>
    %c0_342 = arith.constant 0 : index
    %c0_343 = arith.constant 0 : index
    %721 = vector.load %arg19[%c0_342, %c0_343] : memref<1x8xf32, #tpu.memory_space<vmem>>, vector<1x8xf32>
    %722 = vector.broadcast %721 : vector<1x8xf32> to vector<12x8xf32>
    %723 = arith.addf %720, %722 : vector<12x8xf32>
    %724 = vector.broadcast %382 : vector<12x1xf32> to vector<12x8xf32>
    %725 = arith.mulf %723, %724 : vector<12x8xf32>
    %726 = vector.broadcast %372 : vector<12x1xf32> to vector<12x8xf32>
    %727 = arith.addf %725, %726 : vector<12x8xf32>
    %c1_344 = arith.constant 1 : index
    %c0_345 = arith.constant 0 : index
    %c0_346 = arith.constant 0 : index
    %728 = vector.load %arg20[%c1_344, %c0_345, %c0_346] : memref<2x12x8xf32, #tpu.memory_space<vmem>>, vector<1x12x8xf32>
    %729 = vector.shape_cast %728 : vector<1x12x8xf32> to vector<12x8xf32>
    %730 = vector.shape_cast %727 : vector<12x8xf32> to vector<1x12x8xf32>
    tpu.vector_store %arg20[%c1_344, %c0_345, %c0_346], %730 {strides = array<i32>} : memref<2x12x8xf32, #tpu.memory_space<vmem>>, vector<1x12x8xf32>,
    return
  }
  func.func @transform_0(%arg0: i32) -> (i32, i32, i32) {
    %c0_i32 = arith.constant 0 : i32
    %c0_i32_0 = arith.constant 0 : i32
    %c0_i32_1 = arith.constant 0 : i32
    return %arg0, %c0_i32, %c0_i32_0 : i32, i32, i32
  }
  func.func @transform_1(%arg0: i32) -> (i32, i32) {
    %c0_i32 = arith.constant 0 : i32
    %c0_i32_0 = arith.constant 0 : i32
    %c0_i32_1 = arith.constant 0 : i32
    return %c0_i32, %c0_i32_0 : i32, i32
  }
  func.func @transform_2(%arg0: i32) -> (i32, i32) {
    %c0_i32 = arith.constant 0 : i32
    %c0_i32_0 = arith.constant 0 : i32
    %c0_i32_1 = arith.constant 0 : i32
    return %c0_i32, %c0_i32_0 : i32, i32
  }
  func.func @transform_3(%arg0: i32) -> (i32, i32, i32) {
    %c0_i32 = arith.constant 0 : i32
    %c0_i32_0 = arith.constant 0 : i32
    %c0_i32_1 = arith.constant 0 : i32
    %c0_i32_2 = arith.constant 0 : i32
    return %c0_i32, %c0_i32_0, %c0_i32_1 : i32, i32, i32
  }
  func.func @transform_4(%arg0: i32) -> (i32, i32, i32) {
    %c0_i32 = arith.constant 0 : i32
    %c0_i32_0 = arith.constant 0 : i32
    %c0_i32_1 = arith.constant 0 : i32
    %c0_i32_2 = arith.constant 0 : i32
    return %c0_i32, %c0_i32_0, %c0_i32_1 : i32, i32, i32
  }
  func.func @transform_5(%arg0: i32) -> (i32, i32, i32) {
    %c0_i32 = arith.constant 0 : i32
    %c0_i32_0 = arith.constant 0 : i32
    %c0_i32_1 = arith.constant 0 : i32
    %c0_i32_2 = arith.constant 0 : i32
    return %c0_i32, %c0_i32_0, %c0_i32_1 : i32, i32, i32
  }
  func.func @transform_6(%arg0: i32) -> (i32, i32, i32) {
    %c0_i32 = arith.constant 0 : i32
    %c0_i32_0 = arith.constant 0 : i32
    %c0_i32_1 = arith.constant 0 : i32
    %c0_i32_2 = arith.constant 0 : i32
    return %c0_i32, %c0_i32_0, %c0_i32_1 : i32, i32, i32
  }
  func.func @transform_7(%arg0: i32) -> (i32, i32, i32) {
    %c0_i32 = arith.constant 0 : i32
    %c0_i32_0 = arith.constant 0 : i32
    %c0_i32_1 = arith.constant 0 : i32
    %c0_i32_2 = arith.constant 0 : i32
    return %c0_i32, %c0_i32_0, %c0_i32_1 : i32, i32, i32
  }
  func.func @transform_8(%arg0: i32) -> (i32, i32, i32) {
    %c0_i32 = arith.constant 0 : i32
    %c0_i32_0 = arith.constant 0 : i32
    %c0_i32_1 = arith.constant 0 : i32
    %c0_i32_2 = arith.constant 0 : i32
    return %c0_i32, %c0_i32_0, %c0_i32_1 : i32, i32, i32
  }
  func.func @transform_9(%arg0: i32) -> (i32, i32, i32) {
    %c0_i32 = arith.constant 0 : i32
    %c0_i32_0 = arith.constant 0 : i32
    %c0_i32_1 = arith.constant 0 : i32
    %c0_i32_2 = arith.constant 0 : i32
    return %c0_i32, %c0_i32_0, %c0_i32_1 : i32, i32, i32
  }
  func.func @transform_10(%arg0: i32) -> (i32, i32, i32) {
    %c0_i32 = arith.constant 0 : i32
    %c0_i32_0 = arith.constant 0 : i32
    %c0_i32_1 = arith.constant 0 : i32
    %c0_i32_2 = arith.constant 0 : i32
    return %c0_i32, %c0_i32_0, %c0_i32_1 : i32, i32, i32
  }
  func.func @transform_11(%arg0: i32) -> (i32, i32, i32) {
    %c0_i32 = arith.constant 0 : i32
    %c0_i32_0 = arith.constant 0 : i32
    %c0_i32_1 = arith.constant 0 : i32
    %c0_i32_2 = arith.constant 0 : i32
    return %c0_i32, %c0_i32_0, %c0_i32_1 : i32, i32, i32
  }
  func.func @transform_12(%arg0: i32) -> (i32, i32, i32) {
    %c0_i32 = arith.constant 0 : i32
    %c0_i32_0 = arith.constant 0 : i32
    %c0_i32_1 = arith.constant 0 : i32
    %c0_i32_2 = arith.constant 0 : i32
    return %c0_i32, %c0_i32_0, %c0_i32_1 : i32, i32, i32
  }
  func.func @transform_13(%arg0: i32) -> (i32, i32, i32) {
    %c0_i32 = arith.constant 0 : i32
    %c0_i32_0 = arith.constant 0 : i32
    %c0_i32_1 = arith.constant 0 : i32
    %c0_i32_2 = arith.constant 0 : i32
    return %c0_i32, %c0_i32_0, %c0_i32_1 : i32, i32, i32
  }
  func.func @transform_14(%arg0: i32) -> (i32, i32, i32) {
    %c0_i32 = arith.constant 0 : i32
    %c0_i32_0 = arith.constant 0 : i32
    %c0_i32_1 = arith.constant 0 : i32
    %c0_i32_2 = arith.constant 0 : i32
    return %c0_i32, %c0_i32_0, %c0_i32_1 : i32, i32, i32
  }
  func.func @transform_15(%arg0: i32) -> (i32, i32) {
    %c0_i32 = arith.constant 0 : i32
    %c0_i32_0 = arith.constant 0 : i32
    %c0_i32_1 = arith.constant 0 : i32
    return %c0_i32, %c0_i32_0 : i32, i32
  }
  func.func @transform_16(%arg0: i32) -> (i32, i32) {
    %c0_i32 = arith.constant 0 : i32
    %c0_i32_0 = arith.constant 0 : i32
    %c0_i32_1 = arith.constant 0 : i32
    return %c0_i32, %c0_i32_0 : i32, i32
  }
  func.func @transform_17(%arg0: i32) -> (i32, i32) {
    %c0_i32 = arith.constant 0 : i32
    %c0_i32_0 = arith.constant 0 : i32
    %c0_i32_1 = arith.constant 0 : i32
    return %c0_i32, %c0_i32_0 : i32, i32
  }
  func.func @transform_18(%arg0: i32) -> (i32, i32) {
    %c0_i32 = arith.constant 0 : i32
    %c0_i32_0 = arith.constant 0 : i32
    %c0_i32_1 = arith.constant 0 : i32
    return %c0_i32, %c0_i32_0 : i32, i32
  }
  func.func @transform_19(%arg0: i32) -> (i32, i32, i32) {
    %c0_i32 = arith.constant 0 : i32
    %c0_i32_0 = arith.constant 0 : i32
    %c0_i32_1 = arith.constant 0 : i32
    return %arg0, %c0_i32, %c0_i32_0 : i32, i32, i32
  }
}

</mosaic_0001>

<llo_original>
// kernel: forward.1
$region0: #{forward.1}
  #allocation0 [shape = 'u32[]', space=smem, size = 0x4, offset = 0x4, fixed_abs, tag = 'smem constant byte address 0x4 - core index']
  #allocation1 [shape = 'u32[144,128]{1,0:T(1,128)}', space=vmem, size = 0x12000, scoped, tag = 'internal scratch']
  %s0 = inlined_call_operand.vmem [shape: f32[2,12,16], index: 0, kind: input, shape index: {}]
  %s1 = inlined_call_operand.hbm [shape: f32[16,32], index: 1, kind: input, shape index: {}]
  %s2 = inlined_call_operand.hbm [shape: f32[1,32], index: 2, kind: input, shape index: {}]
  %s3 = inlined_call_operand.vmem [shape: f32[2,32,96], index: 3, kind: input, shape index: {}]
  %s4 = inlined_call_operand.hbm [shape: f32[2,1,96], index: 4, kind: input, shape index: {}]
  %s5 = inlined_call_operand.vmem [shape: f32[2,32,32], index: 5, kind: input, shape index: {}]
  %s6 = inlined_call_operand.hbm [shape: f32[2,1,32], index: 6, kind: input, shape index: {}]
  %s7 = inlined_call_operand.hbm [shape: f32[2,32,32], index: 7, kind: input, shape index: {}]
  %s8 = inlined_call_operand.hbm [shape: f32[2,1,32], index: 8, kind: input, shape index: {}]
  %s9 = inlined_call_operand.hbm [shape: f32[2,32,32], index: 9, kind: input, shape index: {}]
  %s10 = inlined_call_operand.hbm [shape: f32[2,1,32], index: 10, kind: input, shape index: {}]
  %s11 = inlined_call_operand.hbm [shape: f32[2,1,32], index: 11, kind: input, shape index: {}]
  %s12 = inlined_call_operand.hbm [shape: f32[2,1,32], index: 12, kind: input, shape index: {}]
  %s13 = inlined_call_operand.hbm [shape: f32[2,1,32], index: 13, kind: input, shape index: {}]
  %s14 = inlined_call_operand.hbm [shape: f32[2,1,32], index: 14, kind: input, shape index: {}]
  %s15 = inlined_call_operand.hbm [shape: f32[1,32], index: 15, kind: input, shape index: {}]
  %s16 = inlined_call_operand.hbm [shape: f32[1,32], index: 16, kind: input, shape index: {}]
  %s17 = inlined_call_operand.vmem [shape: f32[32,8], index: 17, kind: input, shape index: {}]
  %s18 = inlined_call_operand.hbm [shape: f32[1,8], index: 18, kind: input, shape index: {}]
  %s19 = inlined_call_operand.vmem [shape: f32[2,12,8], index: 19, kind: output, shape index: {}]
  %s20 = sld [smem:[#allocation0]]
  $region146: #{forward.1} parent=0
    _
  %s22 = ssub.s32 1, %s20
  %s23 = scalar_select 0, %s22, %s20
  $region1: #{forward.1} parent=0
    #allocation2 [shape = 'u8[8192]{0}', space=vmem, size = 0x2000, scoped, tag = 'input window, operand 1, single buffered']
    #allocation3 [shape = 's32[1]{0}', space=sflag, size = 0x4, scoped, tag = 'scoped memory for forward.1']
    #allocation4 [shape = 'u8[512]{0}', space=vmem, size = 0x400, scoped, tag = 'input window, operand 2, single buffered']
    #allocation5 [shape = 's32[1]{0}', space=sflag, size = 0x4, scoped, tag = 'scoped memory for forward.1']
    #allocation6 [shape = 'u8[1024]{0}', space=vmem, size = 0x400, scoped, tag = 'input window, operand 4, single buffered']
    #allocation7 [shape = 'u8[1024]{0}', space=vmem, size = 0x400, scoped, tag = 'input window, operand 6, single buffered']
    #allocation8 [shape = 's32[1]{0}', space=sflag, size = 0x4, scoped, tag = 'scoped memory for forward.1']
    #allocation9 [shape = 'u8[32768]{0}', space=vmem, size = 0x8000, scoped, tag = 'input window, operand 7, single buffered']
    #allocation10 [shape = 'u8[1024]{0}', space=vmem, size = 0x400, scoped, tag = 'input window, operand 8, single buffered']
    #allocation11 [shape = 's32[1]{0}', space=sflag, size = 0x4, scoped, tag = 'scoped memory for forward.1']
    #allocation12 [shape = 'u8[32768]{0}', space=vmem, size = 0x8000, scoped, tag = 'input window, operand 9, single buffered']
    #allocation13 [shape = 'u8[1024]{0}', space=vmem, size = 0x400, scoped, tag = 'input window, operand 10, single buffered']
    #allocation14 [shape = 's32[1]{0}', space=sflag, size = 0x4, scoped, tag = 'scoped memory for forward.1']
    #allocation15 [shape = 'u8[1024]{0}', space=vmem, size = 0x400, scoped, tag = 'input window, operand 11, single buffered']
    #allocation16 [shape = 'u8[1024]{0}', space=vmem, size = 0x400, scoped, tag = 'input window, operand 12, single buffered']
    #allocation17 [shape = 's32[1]{0}', space=sflag, size = 0x4, scoped, tag = 'scoped memory for forward.1']
    #allocation18 [shape = 'u8[1024]{0}', space=vmem, size = 0x400, scoped, tag = 'input window, operand 13, single buffered']
    #allocation19 [shape = 'u8[1024]{0}', space=vmem, size = 0x400, scoped, tag = 'input window, operand 14, single buffered']
    #allocation20 [shape = 's32[1]{0}', space=sflag, size = 0x4, scoped, tag = 'scoped memory for forward.1']
    #allocation21 [shape = 'u8[512]{0}', space=vmem, size = 0x400, scoped, tag = 'input window, operand 15, single buffered']
    #allocation22 [shape = 'u8[512]{0}', space=vmem, size = 0x400, scoped, tag = 'input window, operand 16, single buffered']
    #allocation23 [shape = 's32[1]{0}', space=sflag, size = 0x4, scoped, tag = 'scoped memory for forward.1']
    #allocation24 [shape = 'u8[512]{0}', space=vmem, size = 0x400, scoped, tag = 'input window, operand 18, single buffered']
    %24 = vsyncpa [#allocation3], 0
    %25 = vsyncpa [#allocation5], 0
    %26 = vsyncpa [#allocation8], 0
    %27 = vsyncpa [#allocation11], 0
    %28 = vsyncpa [#allocation14], 0
    %29 = vsyncpa [#allocation17], 0
    %30 = vsyncpa [#allocation20], 0
    %31 = vsyncpa [#allocation23], 0
    // Predicated region
    $region2: #{forward.1} parent=1 // pred_check
      _
    $region3: #{forward.1} parent=1 // pred_check_branch
      %33 = sbr.rel (0) target = $region5
    $region4: #{forward.1} parent=1 // pred_region
      _
    $region5: #{forward.1} parent=1 // pred_fallthru
      _
    // Predicated region
    $region6: #{forward.1} parent=1 // pred_check
      _
    $region7: #{forward.1} parent=1 // pred_check_branch
      %35 = sbr.rel (0) target = $region9
    $region8: #{forward.1} parent=1 // pred_region
      %s37 = ssub.s32 256, 256
      %38 = vsyncadd [#allocation3], %s37
      %s39 = sshll.u32 [#allocation2], 4
      %s40 = int_to_ptr.vmem [resolvable:$true] %s39
      %45 = dma.hbm_to_vmem [thread:$0]  %s1, 256, %s40, [#allocation3], 128, 128, 8
    $region9: #{forward.1} parent=1 // pred_fallthru
      _
    // Predicated region
    $region10: #{forward.1} parent=1 // pred_check
      _
    $region11: #{forward.1} parent=1 // pred_check_branch
      %47 = sbr.rel (0) target = $region13
    $region12: #{forward.1} parent=1 // pred_region
      %s49 = ssub.s32 16, 16
      %50 = vsyncadd [#allocation5], %s49
      %s52 = sshll.u32 [#allocation4], 4
      %s53 = int_to_ptr.vmem [resolvable:$true] %s52
      %55 = dma.hbm_to_vmem [thread:$0]  %s2, 16, %s53, [#allocation5]
    $region13: #{forward.1} parent=1 // pred_fallthru
      _
    // Predicated region
    $region14: #{forward.1} parent=1 // pred_check
      _
    $region15: #{forward.1} parent=1 // pred_check_branch
      %57 = sbr.rel (0) target = $region17
    $region16: #{forward.1} parent=1 // pred_region
      _
    $region17: #{forward.1} parent=1 // pred_fallthru
      _
    // Predicated region
    $region18: #{forward.1} parent=1 // pred_check
      _
    $region19: #{forward.1} parent=1 // pred_check_branch
      %59 = sbr.rel (0) target = $region21
    $region20: #{forward.1} parent=1 // pred_region
      %s61 = ssub.s32 32, 32
      %62 = vsyncadd [#allocation5], %s61
      %s63 = sshll.u32 [#allocation6], 4
      %s64 = int_to_ptr.vmem [resolvable:$true] %s63
      %69 = dma.hbm_to_vmem [thread:$0]  %s4, 32, %s64, [#allocation5], 16, 16, 1
    $region21: #{forward.1} parent=1 // pred_fallthru
      _
    // Predicated region
    $region22: #{forward.1} parent=1 // pred_check
      _
    $region23: #{forward.1} parent=1 // pred_check_branch
      %71 = sbr.rel (0) target = $region25
    $region24: #{forward.1} parent=1 // pred_region
      _
    $region25: #{forward.1} parent=1 // pred_fallthru
      _
    // Predicated region
    $region26: #{forward.1} parent=1 // pred_check
      _
    $region27: #{forward.1} parent=1 // pred_check_branch
      %73 = sbr.rel (0) target = $region29
    $region28: #{forward.1} parent=1 // pred_region
      %s75 = ssub.s32 32, 32
      %76 = vsyncadd [#allocation8], %s75
      %s77 = sshll.u32 [#allocation7], 4
      %s78 = int_to_ptr.vmem [resolvable:$true] %s77
      %83 = dma.hbm_to_vmem [thread:$0]  %s6, 32, %s78, [#allocation8], 16, 16, 1
    $region29: #{forward.1} parent=1 // pred_fallthru
      _
    // Predicated region
    $region30: #{forward.1} parent=1 // pred_check
      _
    $region31: #{forward.1} parent=1 // pred_check_branch
      %85 = sbr.rel (0) target = $region33
    $region32: #{forward.1} parent=1 // pred_region
      %s87 = ssub.s32 1024, 1024
      %88 = vsyncadd [#allocation8], %s87
      %s89 = sshll.u32 [#allocation9], 4
      %s90 = int_to_ptr.vmem [resolvable:$true] %s89
      %95 = dma.hbm_to_vmem [thread:$0]  %s7, 1024, %s90, [#allocation8], 128, 128, 8
    $region33: #{forward.1} parent=1 // pred_fallthru
      _
    // Predicated region
    $region34: #{forward.1} parent=1 // pred_check
      _
    $region35: #{forward.1} parent=1 // pred_check_branch
      %97 = sbr.rel (0) target = $region37
    $region36: #{forward.1} parent=1 // pred_region
      %s99 = ssub.s32 32, 32
      %100 = vsyncadd [#allocation11], %s99
      %s101 = sshll.u32 [#allocation10], 4
      %s102 = int_to_ptr.vmem [resolvable:$true] %s101
      %107 = dma.hbm_to_vmem [thread:$0]  %s8, 32, %s102, [#allocation11], 16, 16, 1
    $region37: #{forward.1} parent=1 // pred_fallthru
      _
    // Predicated region
    $region38: #{forward.1} parent=1 // pred_check
      _
    $region39: #{forward.1} parent=1 // pred_check_branch
      %109 = sbr.rel (0) target = $region41
    $region40: #{forward.1} parent=1 // pred_region
      %s111 = ssub.s32 1024, 1024
      %112 = vsyncadd [#allocation11], %s111
      %s113 = sshll.u32 [#allocation12], 4
      %s114 = int_to_ptr.vmem [resolvable:$true] %s113
      %119 = dma.hbm_to_vmem [thread:$0]  %s9, 1024, %s114, [#allocation11], 128, 128, 8
    $region41: #{forward.1} parent=1 // pred_fallthru
      _
    // Predicated region
    $region42: #{forward.1} parent=1 // pred_check
      _
    $region43: #{forward.1} parent=1 // pred_check_branch
      %121 = sbr.rel (0) target = $region45
    $region44: #{forward.1} parent=1 // pred_region
      %s123 = ssub.s32 32, 32
      %124 = vsyncadd [#allocation14], %s123
      %s125 = sshll.u32 [#allocation13], 4
      %s126 = int_to_ptr.vmem [resolvable:$true] %s125
      %131 = dma.hbm_to_vmem [thread:$0]  %s10, 32, %s126, [#allocation14], 16, 16, 1
    $region45: #{forward.1} parent=1 // pred_fallthru
      _
    // Predicated region
    $region46: #{forward.1} parent=1 // pred_check
      _
    $region47: #{forward.1} parent=1 // pred_check_branch
      %133 = sbr.rel (0) target = $region49
    $region48: #{forward.1} parent=1 // pred_region
      %s135 = ssub.s32 32, 32
      %136 = vsyncadd [#allocation14], %s135
      %s137 = sshll.u32 [#allocation15], 4
      %s138 = int_to_ptr.vmem [resolvable:$true] %s137
      %143 = dma.hbm_to_vmem [thread:$0]  %s11, 32, %s138, [#allocation14], 16, 16, 1
    $region49: #{forward.1} parent=1 // pred_fallthru
      _
    // Predicated region
    $region50: #{forward.1} parent=1 // pred_check
      _
    $region51: #{forward.1} parent=1 // pred_check_branch
      %145 = sbr.rel (0) target = $region53
    $region52: #{forward.1} parent=1 // pred_region
      %s147 = ssub.s32 32, 32
      %148 = vsyncadd [#allocation17], %s147
      %s149 = sshll.u32 [#allocation16], 4
      %s150 = int_to_ptr.vmem [resolvable:$true] %s149
      %155 = dma.hbm_to_vmem [thread:$0]  %s12, 32, %s150, [#allocation17], 16, 16, 1
    $region53: #{forward.1} parent=1 // pred_fallthru
      _
    // Predicated region
    $region54: #{forward.1} parent=1 // pred_check
      _
    $region55: #{forward.1} parent=1 // pred_check_branch
      %157 = sbr.rel (0) target = $region57
    $region56: #{forward.1} parent=1 // pred_region
      %s159 = ssub.s32 32, 32
      %160 = vsyncadd [#allocation17], %s159
      %s161 = sshll.u32 [#allocation18], 4
      %s162 = int_to_ptr.vmem [resolvable:$true] %s161
      %167 = dma.hbm_to_vmem [thread:$0]  %s13, 32, %s162, [#allocation17], 16, 16, 1
    $region57: #{forward.1} parent=1 // pred_fallthru
      _
    // Predicated region
    $region58: #{forward.1} parent=1 // pred_check
      _
    $region59: #{forward.1} parent=1 // pred_check_branch
      %169 = sbr.rel (0) target = $region61
    $region60: #{forward.1} parent=1 // pred_region
      %s171 = ssub.s32 32, 32
      %172 = vsyncadd [#allocation20], %s171
      %s173 = sshll.u32 [#allocation19], 4
      %s174 = int_to_ptr.vmem [resolvable:$true] %s173
      %179 = dma.hbm_to_vmem [thread:$0]  %s14, 32, %s174, [#allocation20], 16, 16, 1
    $region61: #{forward.1} parent=1 // pred_fallthru
      _
    // Predicated region
    $region62: #{forward.1} parent=1 // pred_check
      _
    $region63: #{forward.1} parent=1 // pred_check_branch
      %181 = sbr.rel (0) target = $region65
    $region64: #{forward.1} parent=1 // pred_region
      %s183 = ssub.s32 16, 16
      %184 = vsyncadd [#allocation20], %s183
      %s186 = sshll.u32 [#allocation21], 4
      %s187 = int_to_ptr.vmem [resolvable:$true] %s186
      %189 = dma.hbm_to_vmem [thread:$0]  %s15, 16, %s187, [#allocation20]
    $region65: #{forward.1} parent=1 // pred_fallthru
      _
    // Predicated region
    $region66: #{forward.1} parent=1 // pred_check
      _
    $region67: #{forward.1} parent=1 // pred_check_branch
      %191 = sbr.rel (0) target = $region69
    $region68: #{forward.1} parent=1 // pred_region
      %s193 = ssub.s32 16, 16
      %194 = vsyncadd [#allocation23], %s193
      %s196 = sshll.u32 [#allocation22], 4
      %s197 = int_to_ptr.vmem [resolvable:$true] %s196
      %199 = dma.hbm_to_vmem [thread:$0]  %s16, 16, %s197, [#allocation23]
    $region69: #{forward.1} parent=1 // pred_fallthru
      _
    // Predicated region
    $region70: #{forward.1} parent=1 // pred_check
      _
    $region71: #{forward.1} parent=1 // pred_check_branch
      %201 = sbr.rel (0) target = $region73
    $region72: #{forward.1} parent=1 // pred_region
      _
    $region73: #{forward.1} parent=1 // pred_fallthru
      _
    // Predicated region
    $region74: #{forward.1} parent=1 // pred_check
      _
    $region75: #{forward.1} parent=1 // pred_check_branch
      %203 = sbr.rel (0) target = $region77
    $region76: #{forward.1} parent=1 // pred_region
      %s205 = ssub.s32 16, 16
      %206 = vsyncadd [#allocation23], %s205
      %s208 = sshll.u32 [#allocation24], 4
      %s209 = int_to_ptr.vmem [resolvable:$true] %s208
      %211 = dma.hbm_to_vmem [thread:$0]  %s18, 16, %s209, [#allocation23]
    $region77: #{forward.1} parent=1 // pred_fallthru
      _
    // Predicated region
    $region78: #{forward.1} parent=1 // pred_check
      _
    $region79: #{forward.1} parent=1 // pred_check_branch
      %213 = sbr.rel (0) target = $region81
    $region80: #{forward.1} parent=1 // pred_region
      %214 = dma.done [#allocation3], 256
    $region81: #{forward.1} parent=1 // pred_fallthru
      _
    // Predicated region
    $region82: #{forward.1} parent=1 // pred_check
      _
    $region83: #{forward.1} parent=1 // pred_check_branch
      %216 = sbr.rel (0) target = $region85
    $region84: #{forward.1} parent=1 // pred_region
      %217 = dma.done [#allocation5], 16
    $region85: #{forward.1} parent=1 // pred_fallthru
      _
    // Predicated region
    $region86: #{forward.1} parent=1 // pred_check
      _
    $region87: #{forward.1} parent=1 // pred_check_branch
      %219 = sbr.rel (0) target = $region89
    $region88: #{forward.1} parent=1 // pred_region
      %220 = dma.done [#allocation5], 32
    $region89: #{forward.1} parent=1 // pred_fallthru
      _
    // Predicated region
    $region90: #{forward.1} parent=1 // pred_check
      _
    $region91: #{forward.1} parent=1 // pred_check_branch
      %222 = sbr.rel (0) target = $region93
    $region92: #{forward.1} parent=1 // pred_region
      %223 = dma.done [#allocation8], 32
    $region93: #{forward.1} parent=1 // pred_fallthru
      _
    // Predicated region
    $region94: #{forward.1} parent=1 // pred_check
      _
    $region95: #{forward.1} parent=1 // pred_check_branch
      %225 = sbr.rel (0) target = $region97
    $region96: #{forward.1} parent=1 // pred_region
      %226 = dma.done [#allocation8], 1024
    $region97: #{forward.1} parent=1 // pred_fallthru
      _
    // Predicated region
    $region98: #{forward.1} parent=1 // pred_check
      _
    $region99: #{forward.1} parent=1 // pred_check_branch
      %228 = sbr.rel (0) target = $region101
    $region100: #{forward.1} parent=1 // pred_region
      %229 = dma.done [#allocation11], 32
    $region101: #{forward.1} parent=1 // pred_fallthru
      _
    // Predicated region
    $region102: #{forward.1} parent=1 // pred_check
      _
    $region103: #{forward.1} parent=1 // pred_check_branch
      %231 = sbr.rel (0) target = $region105
    $region104: #{forward.1} parent=1 // pred_region
      %232 = dma.done [#allocation11], 1024
    $region105: #{forward.1} parent=1 // pred_fallthru
      _
    // Predicated region
    $region106: #{forward.1} parent=1 // pred_check
      _
    $region107: #{forward.1} parent=1 // pred_check_branch
      %234 = sbr.rel (0) target = $region109
    $region108: #{forward.1} parent=1 // pred_region
      %235 = dma.done [#allocation14], 32
    $region109: #{forward.1} parent=1 // pred_fallthru
      _
    // Predicated region
    $region110: #{forward.1} parent=1 // pred_check
      _
    $region111: #{forward.1} parent=1 // pred_check_branch
      %237 = sbr.rel (0) target = $region113
    $region112: #{forward.1} parent=1 // pred_region
      %238 = dma.done [#allocation14], 32
    $region113: #{forward.1} parent=1 // pred_fallthru
      _
    // Predicated region
    $region114: #{forward.1} parent=1 // pred_check
      _
    $region115: #{forward.1} parent=1 // pred_check_branch
      %240 = sbr.rel (0) target = $region117
    $region116: #{forward.1} parent=1 // pred_region
      %241 = dma.done [#allocation17], 32
    $region117: #{forward.1} parent=1 // pred_fallthru
      _
    // Predicated region
    $region118: #{forward.1} parent=1 // pred_check
      _
    $region119: #{forward.1} parent=1 // pred_check_branch
      %243 = sbr.rel (0) target = $region121
    $region120: #{forward.1} parent=1 // pred_region
      %244 = dma.done [#allocation17], 32
    $region121: #{forward.1} parent=1 // pred_fallthru
      _
    // Predicated region
    $region122: #{forward.1} parent=1 // pred_check
      _
    $region123: #{forward.1} parent=1 // pred_check_branch
      %246 = sbr.rel (0) target = $region125
    $region124: #{forward.1} parent=1 // pred_region
      %247 = dma.done [#allocation20], 32
    $region125: #{forward.1} parent=1 // pred_fallthru
      _
    // Predicated region
    $region126: #{forward.1} parent=1 // pred_check
      _
    $region127: #{forward.1} parent=1 // pred_check_branch
      %249 = sbr.rel (0) target = $region129
    $region128: #{forward.1} parent=1 // pred_region
      %250 = dma.done [#allocation20], 16
    $region129: #{forward.1} parent=1 // pred_fallthru
      _
    // Predicated region
    $region130: #{forward.1} parent=1 // pred_check
      _
    $region131: #{forward.1} parent=1 // pred_check_branch
      %252 = sbr.rel (0) target = $region133
    $region132: #{forward.1} parent=1 // pred_region
      %253 = dma.done [#allocation23], 16
    $region133: #{forward.1} parent=1 // pred_fallthru
      _
    // Predicated region
    $region134: #{forward.1} parent=1 // pred_check
      _
    $region135: #{forward.1} parent=1 // pred_check_branch
      %255 = sbr.rel (0) target = $region137
    $region136: #{forward.1} parent=1 // pred_region
      %256 = dma.done [#allocation23], 16
    $region137: #{forward.1} parent=1 // pred_fallthru
      _
    %v257 = vlaneseq
    %v258 = vshrl.u32 %v257, 7
    %v259 = vadd.s32 %v258, 8
    %vm260 = vcmp.lt.s32.totalorder %v258, 8
    %vm261 = vcmp.lt.s32.totalorder %v259, 8
    %v262 = vld [vmem:[%s0] sm:$0xff]
    %v263 = vld [vmem:[%s0 + $0x8] sm:$0xf]
    %vm264 = vcmask 130048
    %v265 = vsel %vm264, %v262, 0.0
    %266 = vadd.xlane.f32.xlu0 %v265
    %v267 = vpop.xlane.xlu0 %266
    %vm268 = vcmask 125952
    %v269 = vsel %vm268, %v263, 0.0
    %270 = vadd.xlane.f32.xlu0 %v269
    %v271 = vpop.xlane.xlu0 %270
    %v272 = vrcp.pop 16.0
    %v273 = vmul.f32 %v267, %v272
    %v274 = vmul.f32 %v271, %v272
    %v275 = vsub.f32 %v262, %v273
    %v276 = vsub.f32 %v263, %v274
    %v277 = vmul.f32 %v275, %v275
    %v278 = vmul.f32 %v276, %v276
    %v279 = vsel %vm264, %v277, 0.0
    %280 = vadd.xlane.f32.xlu0 %v279
    %v281 = vpop.xlane.xlu0 %280
    %v282 = vsel %vm268, %v278, 0.0
    %283 = vadd.xlane.f32.xlu0 %v282
    %v284 = vpop.xlane.xlu0 %283
    %v285 = vmul.f32 %v281, %v272
    %v286 = vmul.f32 %v284, %v272
    %v287 = vadd.f32 %v285, 1e-05
    %v288 = vadd.f32 %v286, 1e-05
    %v289 = vrsqrt.pop %v287
    %v290 = vmul.f32 %v287, %v289
    %vm291 = vcmp.eq.f32.partialorder %v287, inf
    %v292 = vsel %vm291, %v287, %v290
    %vm293 = vcmp.eq.f32.partialorder %v287, 0.0
    %v294 = vand.u32 %v287, 2147483648
    %v295 = vsel %vm293, %v294, %v292
    %v296 = vrsqrt.pop %v288
    %v297 = vmul.f32 %v288, %v296
    %vm298 = vcmp.eq.f32.partialorder %v288, inf
    %v299 = vsel %vm298, %v288, %v297
    %vm300 = vcmp.eq.f32.partialorder %v288, 0.0
    %v301 = vand.u32 %v288, 2147483648
    %v302 = vsel %vm300, %v301, %v299
    %v303 = vrsqrt.pop %v287
    %v304 = vrsqrt.pop %v288
    %v305 = vsel %vm260, %v303, 1.0
    %v306 = vsel %vm261, %v304, 1.0
    %v307 = vsel %vm260, %v273, 0.0
    %v308 = vsel %vm261, %v274, 0.0
    %v309 = vsub.f32 %v262, %v307
    %v310 = vsub.f32 %v263, %v308
    %v311 = vmul.f32 %v309, %v305
    %v312 = vmul.f32 %v310, %v306
    %v313 = vld [vmem:[#allocation2] sm:$0xff]
    %v314 = vld [vmem:[#allocation2 + $0x8] sm:$0xff]
    %v315 = vld [vmem:[#allocation4] sm:$0x1]
    %v317 = vlaneseq
    %v318 = vshrl.u32 %v317, 7
    %v319 = vsub.s32 0, %v318
    %v320 = vrot.slane %v315, %v319
    %v323 = vsel %vm264, %v311, 0
    %v326 = vsel %vm264, %v312, 0
    %328 = vmatprep.subr.mxu0 0.0
    %329 = vmatpush1.msra.mxu0 %v313
    %330 = vmatprep.subr.mxu0 0.0
    %331 = vmatpush1.msra.mxu0 %v314
    %332 = vmatprep.subr.mxu0 0.0
    %333 = vmatpush1.msra.mxu0 0.0
    %334 = vmatprep.subr.mxu0 0.0
    %335 = vmatpush1.msra.mxu0 0.0
    %336 = vmatprep.subr.mxu0 0.0
    %337 = vmatpush1.msra.mxu0 0.0
    %338 = vmatprep.subr.mxu0 0.0
    %339 = vmatpush1.msra.mxu0 0.0
    %340 = vmatprep.subr.mxu0 0.0
    %341 = vmatpush1.msra.mxu0 0.0
    %342 = vmatprep.subr.mxu0 0.0
    %343 = vmatpush1.msra.mxu0 0.0
    %344 = vmatprep.subr.mxu0 0.0
    %345 = vmatpush1.msra.mxu0 0.0
    %346 = vmatprep.subr.mxu0 0.0
    %347 = vmatpush1.msra.mxu0 0.0
    %348 = vmatprep.subr.mxu0 0.0
    %349 = vmatpush1.msra.mxu0 0.0
    %350 = vmatprep.subr.mxu0 0.0
    %351 = vmatpush1.msra.mxu0 0.0
    %352 = vmatprep.subr.mxu0 0.0
    %353 = vmatpush1.msra.mxu0 0.0
    %354 = vmatprep.subr.mxu0 0.0
    %355 = vmatpush1.msra.mxu0 0.0
    %356 = vmatprep.subr.mxu0 0.0
    %357 = vmatpush1.msra.mxu0 0.0
    %358 = vmatprep.subr.mxu0 0.0
    %359 = vmatpush1.msra.mxu0 0.0
    %360 = vmatprep.subr.mxu0 0.0
    %361 = vmatpush1.msra.mxu0 0.0
    %362 = vmatprep.subr.mxu0 0.0
    %363 = vmatpush1.msra.mxu0 0.0
    %364 = vmatprep.subr.mxu0 0.0
    %365 = vmatpush1.msra.mxu0 0.0
    %366 = vmatprep.subr.mxu0 0.0
    %367 = vmatpush1.msra.mxu0 0.0
    %368 = vmatprep.subr.mxu0 0.0
    %369 = vmatpush1.msra.mxu0 0.0
    %370 = vmatprep.subr.mxu0 0.0
    %371 = vmatpush1.msra.mxu0 0.0
    %372 = vmatprep.subr.mxu0 0.0
    %373 = vmatpush1.msra.mxu0 0.0
    %374 = vmatprep.subr.mxu0 0.0
    %375 = vmatpush1.msra.mxu0 0.0
    %376 = vmatprep.subr.mxu0 0.0
    %377 = vmatpush1.msra.mxu0 0.0
    %378 = vmatprep.subr.mxu0 0.0
    %379 = vmatpush1.msra.mxu0 0.0
    %380 = vmatprep.subr.mxu0 0.0
    %381 = vmatpush1.msra.mxu0 0.0
    %382 = vmatprep.subr.mxu0 0.0
    %383 = vmatpush1.msra.mxu0 0.0
    %384 = vmatprep.subr.mxu0 0.0
    %385 = vmatpush1.msra.mxu0 0.0
    %386 = vmatprep.subr.mxu0 0.0
    %387 = vmatpush1.msra.mxu0 0.0
    %388 = vmatprep.subr.mxu0 0.0
    %389 = vmatpush1.msra.mxu0 0.0
    %390 = vmatprep.subr.mxu0 0.0
    %391 = vmatpush1.msra.mxu0 0.0
    %392 = vmatprep.mubr.f32.mxu0 0.0
    %393 = vmatmul.mubr.f32.gmra.mrb[0].mxu0 %v323
    %v394 = vpop.f32.mrb[0].mxu0
    %v395 = vadd.f32 %v320, %v394
    %v396 = vpop.f32.mrb[0].mxu0
    %397 = vmatprep.mubr.f32.mxu0 0.0
    %398 = vmatmul.mubr.f32.gmra.mrb[0].mxu0 %v326
    %v399 = vpop.f32.mrb[0].mxu0
    %v400 = vadd.f32 %v320, %v399
    %v401 = vpop.f32.mrb[0].mxu0
    %402 = vdwg.mxu0
    %v403 = vld [vmem:[%s3] sm:$0xff]
    %v404 = vld [vmem:[%s3 + $0x8] sm:$0xff]
    %v405 = vld [vmem:[%s3 + $0x10] sm:$0xff]
    %v406 = vld [vmem:[%s3 + $0x18] sm:$0xff]
    %v407 = vld [vmem:[#allocation6] sm:$0x1]
    %v409 = vlaneseq
    %v410 = vshrl.u32 %v409, 7
    %v411 = vsub.s32 0, %v410
    %v412 = vrot.slane %v407, %v411
    %vm414 = vcmask 261120
    %v416 = vsel %vm414, %v395, 0
    %v419 = vsel %vm414, %v400, 0
    %421 = vmatprep.subr.mxu0 0.0
    %422 = vmatpush1.msra.mxu0 %v403
    %423 = vmatprep.subr.mxu0 0.0
    %424 = vmatpush1.msra.mxu0 %v404
    %425 = vmatprep.subr.mxu0 0.0
    %426 = vmatpush1.msra.mxu0 %v405
    %427 = vmatprep.subr.mxu0 0.0
    %428 = vmatpush1.msra.mxu0 %v406
    %429 = vmatprep.subr.mxu0 0.0
    %430 = vmatpush1.msra.mxu0 0.0
    %431 = vmatprep.subr.mxu0 0.0
    %432 = vmatpush1.msra.mxu0 0.0
    %433 = vmatprep.subr.mxu0 0.0
    %434 = vmatpush1.msra.mxu0 0.0
    %435 = vmatprep.subr.mxu0 0.0
    %436 = vmatpush1.msra.mxu0 0.0
    %437 = vmatprep.subr.mxu0 0.0
    %438 = vmatpush1.msra.mxu0 0.0
    %439 = vmatprep.subr.mxu0 0.0
    %440 = vmatpush1.msra.mxu0 0.0
    %441 = vmatprep.subr.mxu0 0.0
    %442 = vmatpush1.msra.mxu0 0.0
    %443 = vmatprep.subr.mxu0 0.0
    %444 = vmatpush1.msra.mxu0 0.0
    %445 = vmatprep.subr.mxu0 0.0
    %446 = vmatpush1.msra.mxu0 0.0
    %447 = vmatprep.subr.mxu0 0.0
    %448 = vmatpush1.msra.mxu0 0.0
    %449 = vmatprep.subr.mxu0 0.0
    %450 = vmatpush1.msra.mxu0 0.0
    %451 = vmatprep.subr.mxu0 0.0
    %452 = vmatpush1.msra.mxu0 0.0
    %453 = vmatprep.subr.mxu0 0.0
    %454 = vmatpush1.msra.mxu0 0.0
    %455 = vmatprep.subr.mxu0 0.0
    %456 = vmatpush1.msra.mxu0 0.0
    %457 = vmatprep.subr.mxu0 0.0
    %458 = vmatpush1.msra.mxu0 0.0
    %459 = vmatprep.subr.mxu0 0.0
    %460 = vmatpush1.msra.mxu0 0.0
    %461 = vmatprep.subr.mxu0 0.0
    %462 = vmatpush1.msra.mxu0 0.0
    %463 = vmatprep.subr.mxu0 0.0
    %464 = vmatpush1.msra.mxu0 0.0
    %465 = vmatprep.subr.mxu0 0.0
    %466 = vmatpush1.msra.mxu0 0.0
    %467 = vmatprep.subr.mxu0 0.0
    %468 = vmatpush1.msra.mxu0 0.0
    %469 = vmatprep.subr.mxu0 0.0
    %470 = vmatpush1.msra.mxu0 0.0
    %471 = vmatprep.subr.mxu0 0.0
    %472 = vmatpush1.msra.mxu0 0.0
    %473 = vmatprep.subr.mxu0 0.0
    %474 = vmatpush1.msra.mxu0 0.0
    %475 = vmatprep.subr.mxu0 0.0
    %476 = vmatpush1.msra.mxu0 0.0
    %477 = vmatprep.subr.mxu0 0.0
    %478 = vmatpush1.msra.mxu0 0.0
    %479 = vmatprep.subr.mxu0 0.0
    %480 = vmatpush1.msra.mxu0 0.0
    %481 = vmatprep.subr.mxu0 0.0
    %482 = vmatpush1.msra.mxu0 0.0
    %483 = vmatprep.subr.mxu0 0.0
    %484 = vmatpush1.msra.mxu0 0.0
    %485 = vmatprep.mubr.f32.mxu0 0.0
    %486 = vmatmul.mubr.f32.gmra.mrb[0].mxu0 %v416
    %v487 = vpop.f32.mrb[0].mxu0
    %v488 = vadd.f32 %v412, %v487
    %v489 = vpop.f32.mrb[0].mxu0
    %490 = vmatprep.mubr.f32.mxu0 0.0
    %491 = vmatmul.mubr.f32.gmra.mrb[0].mxu0 %v419
    %v492 = vpop.f32.mrb[0].mxu0
    %v493 = vadd.f32 %v412, %v492
    %v494 = vpop.f32.mrb[0].mxu0
    %495 = vdwg.mxu0
    %498 = vrot.lane.b32.xlu0 %v488, 96
    %v499 = vpop.permute.xlu0 %498
    %500 = vrot.lane.b32.xlu0 %v493, 96
    %v501 = vpop.permute.xlu0 %500
    %vm502 = vcmask 64512
    %v503 = vsel %vm502, %v488, 0
    %v505 = vsel %vm502, %v493, 0
    %v507 = vsel %vm502, %v499, 0
    %v509 = vsel %vm502, %v501, 0
    %511 = vmatprep.subr.mxu0 0.0
    %512 = vmatpush1.xpose.msra.mxu0 %v507
    %513 = vmatprep.subr.mxu0 0.0
    %514 = vmatpush1.xpose.msra.mxu0 %v509
    %515 = vmatprep.subr.mxu0 0.0
    %516 = vmatpush1.xpose.msra.mxu0 0.0
    %517 = vmatprep.subr.mxu0 0.0
    %518 = vmatpush1.xpose.msra.mxu0 0.0
    %519 = vmatprep.subr.mxu0 0.0
    %520 = vmatpush1.xpose.msra.mxu0 0.0
    %521 = vmatprep.subr.mxu0 0.0
    %522 = vmatpush1.xpose.msra.mxu0 0.0
    %523 = vmatprep.subr.mxu0 0.0
    %524 = vmatpush1.xpose.msra.mxu0 0.0
    %525 = vmatprep.subr.mxu0 0.0
    %526 = vmatpush1.xpose.msra.mxu0 0.0
    %527 = vmatprep.subr.mxu0 0.0
    %528 = vmatpush1.xpose.msra.mxu0 0.0
    %529 = vmatprep.subr.mxu0 0.0
    %530 = vmatpush1.xpose.msra.mxu0 0.0
    %531 = vmatprep.subr.mxu0 0.0
    %532 = vmatpush1.xpose.msra.mxu0 0.0
    %533 = vmatprep.subr.mxu0 0.0
    %534 = vmatpush1.xpose.msra.mxu0 0.0
    %535 = vmatprep.subr.mxu0 0.0
    %536 = vmatpush1.xpose.msra.mxu0 0.0
    %537 = vmatprep.subr.mxu0 0.0
    %538 = vmatpush1.xpose.msra.mxu0 0.0
    %539 = vmatprep.subr.mxu0 0.0
    %540 = vmatpush1.xpose.msra.mxu0 0.0
    %541 = vmatprep.subr.mxu0 0.0
    %542 = vmatpush1.xpose.msra.mxu0 0.0
    %543 = vmatprep.subr.mxu0 0.0
    %544 = vmatpush1.xpose.msra.mxu0 0.0
    %545 = vmatprep.subr.mxu0 0.0
    %546 = vmatpush1.xpose.msra.mxu0 0.0
    %547 = vmatprep.subr.mxu0 0.0
    %548 = vmatpush1.xpose.msra.mxu0 0.0
    %549 = vmatprep.subr.mxu0 0.0
    %550 = vmatpush1.xpose.msra.mxu0 0.0
    %551 = vmatprep.subr.mxu0 0.0
    %552 = vmatpush1.xpose.msra.mxu0 0.0
    %553 = vmatprep.subr.mxu0 0.0
    %554 = vmatpush1.xpose.msra.mxu0 0.0
    %555 = vmatprep.subr.mxu0 0.0
    %556 = vmatpush1.xpose.msra.mxu0 0.0
    %557 = vmatprep.subr.mxu0 0.0
    %558 = vmatpush1.xpose.msra.mxu0 0.0
    %559 = vmatprep.subr.mxu0 0.0
    %560 = vmatpush1.xpose.msra.mxu0 0.0
    %561 = vmatprep.subr.mxu0 0.0
    %562 = vmatpush1.xpose.msra.mxu0 0.0
    %563 = vmatprep.subr.mxu0 0.0
    %564 = vmatpush1.xpose.msra.mxu0 0.0
    %565 = vmatprep.subr.mxu0 0.0
    %566 = vmatpush1.xpose.msra.mxu0 0.0
    %567 = vmatprep.subr.mxu0 0.0
    %568 = vmatpush1.xpose.msra.mxu0 0.0
    %569 = vmatprep.subr.mxu0 0.0
    %570 = vmatpush1.xpose.msra.mxu0 0.0
    %571 = vmatprep.subr.mxu0 0.0
    %572 = vmatpush1.xpose.msra.mxu0 0.0
    %573 = vmatprep.subr.mxu0 0.0
    %574 = vmatpush1.xpose.msra.mxu0 0.0
    %575 = vmatprep.mubr.f32.mxu0 0.0
    %576 = vmatmul.mubr.f32.gmra.mrb[0].mxu0 %v503
    %v577 = vpop.f32.mrb[0].mxu0
    %v578 = vadd.f32 0.0, %v577
    %v579 = vpop.f32.mrb[0].mxu0
    %580 = vmatprep.mubr.f32.mxu0 0.0
    %581 = vmatmul.mubr.f32.gmra.mrb[0].mxu0 %v505
    %v582 = vpop.f32.mrb[0].mxu0
    %v583 = vadd.f32 0.0, %v582
    %v584 = vpop.f32.mrb[0].mxu0
    %585 = vdwg.mxu0
    %v586 = vmul.f32 %v578, 0.35355338
    %v587 = vmul.f32 %v583, 0.35355338
    %vm588 = vcmask 97280
    %v589 = vsel %vm588, %v586, -inf
    %590 = vmax.xlane.f32.xlu0 %v589
    %v591 = vpop.xlane.xlu0 %590
    %vm592 = vcmask 93184
    %v593 = vsel %vm592, %v587, -inf
    %594 = vmax.xlane.f32.xlu0 %v593
    %v595 = vpop.xlane.xlu0 %594
    %v596 = vsub.f32 %v586, %v591
    %v597 = vsub.f32 %v587, %v595
    %v598 = vmul.f32 %v596, 1.442695
    %v599 = vpow.pop %v598
    %v600 = vmul.f32 %v597, 1.442695
    %v601 = vpow.pop %v600
    %v602 = vsel %vm588, %v599, 0.0
    %603 = vadd.xlane.f32.xlu0 %v602
    %v604 = vpop.xlane.xlu0 %603
    %v605 = vsel %vm592, %v601, 0.0
    %606 = vadd.xlane.f32.xlu0 %v605
    %v607 = vpop.xlane.xlu0 %606
    %v608 = vrcp.pop %v604
    %v609 = vrcp.pop %v607
    %v610 = vmul.f32 %v599, %v608
    %v611 = vmul.f32 %v601, %v609
    %612 = vrot.lane.b32.xlu0 %v488, 64
    %v613 = vpop.permute.xlu0 %612
    %614 = vrot.lane.b32.xlu0 %v493, 64
    %v615 = vpop.permute.xlu0 %614
    %v618 = vsel %vm588, %v610, 0
    %v621 = vsel %vm588, %v611, 0
    %vm623 = vcmask 1043456
    %v624 = vsel %vm623, %v615, 0
    %626 = vmatprep.subr.mxu0 0.0
    %627 = vmatpush1.msra.mxu0 %v613
    %628 = vmatprep.subr.mxu0 0.0
    %629 = vmatpush1.msra.mxu0 %v624
    %630 = vmatprep.subr.mxu0 0.0
    %631 = vmatpush1.msra.mxu0 0.0
    %632 = vmatprep.subr.mxu0 0.0
    %633 = vmatpush1.msra.mxu0 0.0
    %634 = vmatprep.subr.mxu0 0.0
    %635 = vmatpush1.msra.mxu0 0.0
    %636 = vmatprep.subr.mxu0 0.0
    %637 = vmatpush1.msra.mxu0 0.0
    %638 = vmatprep.subr.mxu0 0.0
    %639 = vmatpush1.msra.mxu0 0.0
    %640 = vmatprep.subr.mxu0 0.0
    %641 = vmatpush1.msra.mxu0 0.0
    %642 = vmatprep.subr.mxu0 0.0
    %643 = vmatpush1.msra.mxu0 0.0
    %644 = vmatprep.subr.mxu0 0.0
    %645 = vmatpush1.msra.mxu0 0.0
    %646 = vmatprep.subr.mxu0 0.0
    %647 = vmatpush1.msra.mxu0 0.0
    %648 = vmatprep.subr.mxu0 0.0
    %649 = vmatpush1.msra.mxu0 0.0
    %650 = vmatprep.subr.mxu0 0.0
    %651 = vmatpush1.msra.mxu0 0.0
    %652 = vmatprep.subr.mxu0 0.0
    %653 = vmatpush1.msra.mxu0 0.0
    %654 = vmatprep.subr.mxu0 0.0
    %655 = vmatpush1.msra.mxu0 0.0
    %656 = vmatprep.subr.mxu0 0.0
    %657 = vmatpush1.msra.mxu0 0.0
    %658 = vmatprep.subr.mxu0 0.0
    %659 = vmatpush1.msra.mxu0 0.0
    %660 = vmatprep.subr.mxu0 0.0
    %661 = vmatpush1.msra.mxu0 0.0
    %662 = vmatprep.subr.mxu0 0.0
    %663 = vmatpush1.msra.mxu0 0.0
    %664 = vmatprep.subr.mxu0 0.0
    %665 = vmatpush1.msra.mxu0 0.0
    %666 = vmatprep.subr.mxu0 0.0
    %667 = vmatpush1.msra.mxu0 0.0
    %668 = vmatprep.subr.mxu0 0.0
    %669 = vmatpush1.msra.mxu0 0.0
    %670 = vmatprep.subr.mxu0 0.0
    %671 = vmatpush1.msra.mxu0 0.0
    %672 = vmatprep.subr.mxu0 0.0
    %673 = vmatpush1.msra.mxu0 0.0
    %674 = vmatprep.subr.mxu0 0.0
    %675 = vmatpush1.msra.mxu0 0.0
    %676 = vmatprep.subr.mxu0 0.0
    %677 = vmatpush1.msra.mxu0 0.0
    %678 = vmatprep.subr.mxu0 0.0
    %679 = vmatpush1.msra.mxu0 0.0
    %680 = vmatprep.subr.mxu0 0.0
    %681 = vmatpush1.msra.mxu0 0.0
    %682 = vmatprep.subr.mxu0 0.0
    %683 = vmatpush1.msra.mxu0 0.0
    %684 = vmatprep.subr.mxu0 0.0
    %685 = vmatpush1.msra.mxu0 0.0
    %686 = vmatprep.subr.mxu0 0.0
    %687 = vmatpush1.msra.mxu0 0.0
    %688 = vmatprep.subr.mxu0 0.0
    %689 = vmatpush1.msra.mxu0 0.0
    %690 = vmatprep.mubr.f32.mxu0 0.0
    %691 = vmatmul.mubr.f32.gmra.mrb[0].mxu0 %v618
    %v692 = vpop.f32.mrb[0].mxu0
    %v693 = vadd.f32 0.0, %v692
    %v694 = vpop.f32.mrb[0].mxu0
    %695 = vmatprep.mubr.f32.mxu0 0.0
    %696 = vmatmul.mubr.f32.gmra.mrb[0].mxu0 %v621
    %v697 = vpop.f32.mrb[0].mxu0
    %v698 = vadd.f32 0.0, %v697
    %v699 = vpop.f32.mrb[0].mxu0
    %700 = vdwg.mxu0
    %701 = vrot.lane.b32.xlu0 %v488, 120
    %v702 = vpop.permute.xlu0 %701
    %703 = vrot.lane.b32.xlu0 %v493, 120
    %v704 = vpop.permute.xlu0 %703
    %705 = vrot.lane.b32.xlu0 %v488, 88
    %v706 = vpop.permute.xlu0 %705
    %707 = vrot.lane.b32.xlu0 %v493, 88
    %v708 = vpop.permute.xlu0 %707
    %v709 = vsel %vm502, %v702, 0
    %v711 = vsel %vm502, %v704, 0
    %v713 = vsel %vm502, %v706, 0
    %v715 = vsel %vm502, %v708, 0
    %717 = vmatprep.subr.mxu0 0.0
    %718 = vmatpush1.xpose.msra.mxu0 %v713
    %719 = vmatprep.subr.mxu0 0.0
    %720 = vmatpush1.xpose.msra.mxu0 %v715
    %721 = vmatprep.subr.mxu0 0.0
    %722 = vmatpush1.xpose.msra.mxu0 0.0
    %723 = vmatprep.subr.mxu0 0.0
    %724 = vmatpush1.xpose.msra.mxu0 0.0
    %725 = vmatprep.subr.mxu0 0.0
    %726 = vmatpush1.xpose.msra.mxu0 0.0
    %727 = vmatprep.subr.mxu0 0.0
    %728 = vmatpush1.xpose.msra.mxu0 0.0
    %729 = vmatprep.subr.mxu0 0.0
    %730 = vmatpush1.xpose.msra.mxu0 0.0
    %731 = vmatprep.subr.mxu0 0.0
    %732 = vmatpush1.xpose.msra.mxu0 0.0
    %733 = vmatprep.subr.mxu0 0.0
    %734 = vmatpush1.xpose.msra.mxu0 0.0
    %735 = vmatprep.subr.mxu0 0.0
    %736 = vmatpush1.xpose.msra.mxu0 0.0
    %737 = vmatprep.subr.mxu0 0.0
    %738 = vmatpush1.xpose.msra.mxu0 0.0
    %739 = vmatprep.subr.mxu0 0.0
    %740 = vmatpush1.xpose.msra.mxu0 0.0
    %741 = vmatprep.subr.mxu0 0.0
    %742 = vmatpush1.xpose.msra.mxu0 0.0
    %743 = vmatprep.subr.mxu0 0.0
    %744 = vmatpush1.xpose.msra.mxu0 0.0
    %745 = vmatprep.subr.mxu0 0.0
    %746 = vmatpush1.xpose.msra.mxu0 0.0
    %747 = vmatprep.subr.mxu0 0.0
    %748 = vmatpush1.xpose.msra.mxu0 0.0
    %749 = vmatprep.subr.mxu0 0.0
    %750 = vmatpush1.xpose.msra.mxu0 0.0
    %751 = vmatprep.subr.mxu0 0.0
    %752 = vmatpush1.xpose.msra.mxu0 0.0
    %753 = vmatprep.subr.mxu0 0.0
    %754 = vmatpush1.xpose.msra.mxu0 0.0
    %755 = vmatprep.subr.mxu0 0.0
    %756 = vmatpush1.xpose.msra.mxu0 0.0
    %757 = vmatprep.subr.mxu0 0.0
    %758 = vmatpush1.xpose.msra.mxu0 0.0
    %759 = vmatprep.subr.mxu0 0.0
    %760 = vmatpush1.xpose.msra.mxu0 0.0
    %761 = vmatprep.subr.mxu0 0.0
    %762 = vmatpush1.xpose.msra.mxu0 0.0
    %763 = vmatprep.subr.mxu0 0.0
    %764 = vmatpush1.xpose.msra.mxu0 0.0
    %765 = vmatprep.subr.mxu0 0.0
    %766 = vmatpush1.xpose.msra.mxu0 0.0
    %767 = vmatprep.subr.mxu0 0.0
    %768 = vmatpush1.xpose.msra.mxu0 0.0
    %769 = vmatprep.subr.mxu0 0.0
    %770 = vmatpush1.xpose.msra.mxu0 0.0
    %771 = vmatprep.subr.mxu0 0.0
    %772 = vmatpush1.xpose.msra.mxu0 0.0
    %773 = vmatprep.subr.mxu0 0.0
    %774 = vmatpush1.xpose.msra.mxu0 0.0
    %775 = vmatprep.subr.mxu0 0.0
    %776 = vmatpush1.xpose.msra.mxu0 0.0
    %777 = vmatprep.subr.mxu0 0.0
    %778 = vmatpush1.xpose.msra.mxu0 0.0
    %779 = vmatprep.subr.mxu0 0.0
    %780 = vmatpush1.xpose.msra.mxu0 0.0
    %781 = vmatprep.mubr.f32.mxu0 0.0
    %782 = vmatmul.mubr.f32.gmra.mrb[0].mxu0 %v709
    %v783 = vpop.f32.mrb[0].mxu0
    %v784 = vadd.f32 0.0, %v783
    %v785 = vpop.f32.mrb[0].mxu0
    %786 = vmatprep.mubr.f32.mxu0 0.0
    %787 = vmatmul.mubr.f32.gmra.mrb[0].mxu0 %v711
    %v788 = vpop.f32.mrb[0].mxu0
    %v789 = vadd.f32 0.0, %v788
    %v790 = vpop.f32.mrb[0].mxu0
    %791 = vdwg.mxu0
    %v792 = vmul.f32 %v784, 0.35355338
    %v793 = vmul.f32 %v789, 0.35355338
    %v794 = vsel %vm588, %v792, -inf
    %795 = vmax.xlane.f32.xlu0 %v794
    %v796 = vpop.xlane.xlu0 %795
    %v797 = vsel %vm592, %v793, -inf
    %798 = vmax.xlane.f32.xlu0 %v797
    %v799 = vpop.xlane.xlu0 %798
    %v800 = vsub.f32 %v792, %v796
    %v801 = vsub.f32 %v793, %v799
    %v802 = vmul.f32 %v800, 1.442695
    %v803 = vpow.pop %v802
    %v804 = vmul.f32 %v801, 1.442695
    %v805 = vpow.pop %v804
    %v806 = vsel %vm588, %v803, 0.0
    %807 = vadd.xlane.f32.xlu0 %v806
    %v808 = vpop.xlane.xlu0 %807
    %v809 = vsel %vm592, %v805, 0.0
    %810 = vadd.xlane.f32.xlu0 %v809
    %v811 = vpop.xlane.xlu0 %810
    %v812 = vrcp.pop %v808
    %v813 = vrcp.pop %v811
    %v814 = vmul.f32 %v803, %v812
    %v815 = vmul.f32 %v805, %v813
    %816 = vrot.lane.b32.xlu0 %v488, 56
    %v817 = vpop.permute.xlu0 %816
    %818 = vrot.lane.b32.xlu0 %v493, 56
    %v819 = vpop.permute.xlu0 %818
    %v822 = vsel %vm588, %v814, 0
    %v825 = vsel %vm588, %v815, 0
    %v827 = vsel %vm623, %v819, 0
    %829 = vmatprep.subr.mxu0 0.0
    %830 = vmatpush1.msra.mxu0 %v817
    %831 = vmatprep.subr.mxu0 0.0
    %832 = vmatpush1.msra.mxu0 %v827
    %833 = vmatprep.subr.mxu0 0.0
    %834 = vmatpush1.msra.mxu0 0.0
    %835 = vmatprep.subr.mxu0 0.0
    %836 = vmatpush1.msra.mxu0 0.0
    %837 = vmatprep.subr.mxu0 0.0
    %838 = vmatpush1.msra.mxu0 0.0
    %839 = vmatprep.subr.mxu0 0.0
    %840 = vmatpush1.msra.mxu0 0.0
    %841 = vmatprep.subr.mxu0 0.0
    %842 = vmatpush1.msra.mxu0 0.0
    %843 = vmatprep.subr.mxu0 0.0
    %844 = vmatpush1.msra.mxu0 0.0
    %845 = vmatprep.subr.mxu0 0.0
    %846 = vmatpush1.msra.mxu0 0.0
    %847 = vmatprep.subr.mxu0 0.0
    %848 = vmatpush1.msra.mxu0 0.0
    %849 = vmatprep.subr.mxu0 0.0
    %850 = vmatpush1.msra.mxu0 0.0
    %851 = vmatprep.subr.mxu0 0.0
    %852 = vmatpush1.msra.mxu0 0.0
    %853 = vmatprep.subr.mxu0 0.0
    %854 = vmatpush1.msra.mxu0 0.0
    %855 = vmatprep.subr.mxu0 0.0
    %856 = vmatpush1.msra.mxu0 0.0
    %857 = vmatprep.subr.mxu0 0.0
    %858 = vmatpush1.msra.mxu0 0.0
    %859 = vmatprep.subr.mxu0 0.0
    %860 = vmatpush1.msra.mxu0 0.0
    %861 = vmatprep.subr.mxu0 0.0
    %862 = vmatpush1.msra.mxu0 0.0
    %863 = vmatprep.subr.mxu0 0.0
    %864 = vmatpush1.msra.mxu0 0.0
    %865 = vmatprep.subr.mxu0 0.0
    %866 = vmatpush1.msra.mxu0 0.0
    %867 = vmatprep.subr.mxu0 0.0
    %868 = vmatpush1.msra.mxu0 0.0
    %869 = vmatprep.subr.mxu0 0.0
    %870 = vmatpush1.msra.mxu0 0.0
    %871 = vmatprep.subr.mxu0 0.0
    %872 = vmatpush1.msra.mxu0 0.0
    %873 = vmatprep.subr.mxu0 0.0
    %874 = vmatpush1.msra.mxu0 0.0
    %875 = vmatprep.subr.mxu0 0.0
    %876 = vmatpush1.msra.mxu0 0.0
    %877 = vmatprep.subr.mxu0 0.0
    %878 = vmatpush1.msra.mxu0 0.0
    %879 = vmatprep.subr.mxu0 0.0
    %880 = vmatpush1.msra.mxu0 0.0
    %881 = vmatprep.subr.mxu0 0.0
    %882 = vmatpush1.msra.mxu0 0.0
    %883 = vmatprep.subr.mxu0 0.0
    %884 = vmatpush1.msra.mxu0 0.0
    %885 = vmatprep.subr.mxu0 0.0
    %886 = vmatpush1.msra.mxu0 0.0
    %887 = vmatprep.subr.mxu0 0.0
    %888 = vmatpush1.msra.mxu0 0.0
    %889 = vmatprep.subr.mxu0 0.0
    %890 = vmatpush1.msra.mxu0 0.0
    %891 = vmatprep.subr.mxu0 0.0
    %892 = vmatpush1.msra.mxu0 0.0
    %893 = vmatprep.mubr.f32.mxu0 0.0
    %894 = vmatmul.mubr.f32.gmra.mrb[0].mxu0 %v822
    %v895 = vpop.f32.mrb[0].mxu0
    %v896 = vadd.f32 0.0, %v895
    %v897 = vpop.f32.mrb[0].mxu0
    %898 = vmatprep.mubr.f32.mxu0 0.0
    %899 = vmatmul.mubr.f32.gmra.mrb[0].mxu0 %v825
    %v900 = vpop.f32.mrb[0].mxu0
    %v901 = vadd.f32 0.0, %v900
    %v902 = vpop.f32.mrb[0].mxu0
    %903 = vdwg.mxu0
    %904 = vrot.lane.b32.xlu0 %v488, 112
    %v905 = vpop.permute.xlu0 %904
    %906 = vrot.lane.b32.xlu0 %v493, 112
    %v907 = vpop.permute.xlu0 %906
    %908 = vrot.lane.b32.xlu0 %v488, 80
    %v909 = vpop.permute.xlu0 %908
    %910 = vrot.lane.b32.xlu0 %v493, 80
    %v911 = vpop.permute.xlu0 %910
    %v912 = vsel %vm502, %v905, 0
    %v914 = vsel %vm502, %v907, 0
    %v916 = vsel %vm502, %v909, 0
    %v918 = vsel %vm502, %v911, 0
    %920 = vmatprep.subr.mxu0 0.0
    %921 = vmatpush1.xpose.msra.mxu0 %v916
    %922 = vmatprep.subr.mxu0 0.0
    %923 = vmatpush1.xpose.msra.mxu0 %v918
    %924 = vmatprep.subr.mxu0 0.0
    %925 = vmatpush1.xpose.msra.mxu0 0.0
    %926 = vmatprep.subr.mxu0 0.0
    %927 = vmatpush1.xpose.msra.mxu0 0.0
    %928 = vmatprep.subr.mxu0 0.0
    %929 = vmatpush1.xpose.msra.mxu0 0.0
    %930 = vmatprep.subr.mxu0 0.0
    %931 = vmatpush1.xpose.msra.mxu0 0.0
    %932 = vmatprep.subr.mxu0 0.0
    %933 = vmatpush1.xpose.msra.mxu0 0.0
    %934 = vmatprep.subr.mxu0 0.0
    %935 = vmatpush1.xpose.msra.mxu0 0.0
    %936 = vmatprep.subr.mxu0 0.0
    %937 = vmatpush1.xpose.msra.mxu0 0.0
    %938 = vmatprep.subr.mxu0 0.0
    %939 = vmatpush1.xpose.msra.mxu0 0.0
    %940 = vmatprep.subr.mxu0 0.0
    %941 = vmatpush1.xpose.msra.mxu0 0.0
    %942 = vmatprep.subr.mxu0 0.0
    %943 = vmatpush1.xpose.msra.mxu0 0.0
    %944 = vmatprep.subr.mxu0 0.0
    %945 = vmatpush1.xpose.msra.mxu0 0.0
    %946 = vmatprep.subr.mxu0 0.0
    %947 = vmatpush1.xpose.msra.mxu0 0.0
    %948 = vmatprep.subr.mxu0 0.0
    %949 = vmatpush1.xpose.msra.mxu0 0.0
    %950 = vmatprep.subr.mxu0 0.0
    %951 = vmatpush1.xpose.msra.mxu0 0.0
    %952 = vmatprep.subr.mxu0 0.0
    %953 = vmatpush1.xpose.msra.mxu0 0.0
    %954 = vmatprep.subr.mxu0 0.0
    %955 = vmatpush1.xpose.msra.mxu0 0.0
    %956 = vmatprep.subr.mxu0 0.0
    %957 = vmatpush1.xpose.msra.mxu0 0.0
    %958 = vmatprep.subr.mxu0 0.0
    %959 = vmatpush1.xpose.msra.mxu0 0.0
    %960 = vmatprep.subr.mxu0 0.0
    %961 = vmatpush1.xpose.msra.mxu0 0.0
    %962 = vmatprep.subr.mxu0 0.0
    %963 = vmatpush1.xpose.msra.mxu0 0.0
    %964 = vmatprep.subr.mxu0 0.0
    %965 = vmatpush1.xpose.msra.mxu0 0.0
    %966 = vmatprep.subr.mxu0 0.0
    %967 = vmatpush1.xpose.msra.mxu0 0.0
    %968 = vmatprep.subr.mxu0 0.0
    %969 = vmatpush1.xpose.msra.mxu0 0.0
    %970 = vmatprep.subr.mxu0 0.0
    %971 = vmatpush1.xpose.msra.mxu0 0.0
    %972 = vmatprep.subr.mxu0 0.0
    %973 = vmatpush1.xpose.msra.mxu0 0.0
    %974 = vmatprep.subr.mxu0 0.0
    %975 = vmatpush1.xpose.msra.mxu0 0.0
    %976 = vmatprep.subr.mxu0 0.0
    %977 = vmatpush1.xpose.msra.mxu0 0.0
    %978 = vmatprep.subr.mxu0 0.0
    %979 = vmatpush1.xpose.msra.mxu0 0.0
    %980 = vmatprep.subr.mxu0 0.0
    %981 = vmatpush1.xpose.msra.mxu0 0.0
    %982 = vmatprep.subr.mxu0 0.0
    %983 = vmatpush1.xpose.msra.mxu0 0.0
    %984 = vmatprep.mubr.f32.mxu0 0.0
    %985 = vmatmul.mubr.f32.gmra.mrb[0].mxu0 %v912
    %v986 = vpop.f32.mrb[0].mxu0
    %v987 = vadd.f32 0.0, %v986
    %v988 = vpop.f32.mrb[0].mxu0
    %989 = vmatprep.mubr.f32.mxu0 0.0
    %990 = vmatmul.mubr.f32.gmra.mrb[0].mxu0 %v914
    %v991 = vpop.f32.mrb[0].mxu0
    %v992 = vadd.f32 0.0, %v991
    %v993 = vpop.f32.mrb[0].mxu0
    %994 = vdwg.mxu0
    %v995 = vmul.f32 %v987, 0.35355338
    %v996 = vmul.f32 %v992, 0.35355338
    %v997 = vsel %vm588, %v995, -inf
    %998 = vmax.xlane.f32.xlu0 %v997
    %v999 = vpop.xlane.xlu0 %998
    %v1000 = vsel %vm592, %v996, -inf
    %1001 = vmax.xlane.f32.xlu0 %v1000
    %v1002 = vpop.xlane.xlu0 %1001
    %v1003 = vsub.f32 %v995, %v999
    %v1004 = vsub.f32 %v996, %v1002
    %v1005 = vmul.f32 %v1003, 1.442695
    %v1006 = vpow.pop %v1005
    %v1007 = vmul.f32 %v1004, 1.442695
    %v1008 = vpow.pop %v1007
    %v1009 = vsel %vm588, %v1006, 0.0
    %1010 = vadd.xlane.f32.xlu0 %v1009
    %v1011 = vpop.xlane.xlu0 %1010
    %v1012 = vsel %vm592, %v1008, 0.0
    %1013 = vadd.xlane.f32.xlu0 %v1012
    %v1014 = vpop.xlane.xlu0 %1013
    %v1015 = vrcp.pop %v1011
    %v1016 = vrcp.pop %v1014
    %v1017 = vmul.f32 %v1006, %v1015
    %v1018 = vmul.f32 %v1008, %v1016
    %1019 = vrot.lane.b32.xlu0 %v488, 48
    %v1020 = vpop.permute.xlu0 %1019
    %1021 = vrot.lane.b32.xlu0 %v493, 48
    %v1022 = vpop.permute.xlu0 %1021
    %v1025 = vsel %vm588, %v1017, 0
    %v1028 = vsel %vm588, %v1018, 0
    %v1030 = vsel %vm623, %v1022, 0
    %1032 = vmatprep.subr.mxu0 0.0
    %1033 = vmatpush1.msra.mxu0 %v1020
    %1034 = vmatprep.subr.mxu0 0.0
    %1035 = vmatpush1.msra.mxu0 %v1030
    %1036 = vmatprep.subr.mxu0 0.0
    %1037 = vmatpush1.msra.mxu0 0.0
    %1038 = vmatprep.subr.mxu0 0.0
    %1039 = vmatpush1.msra.mxu0 0.0
    %1040 = vmatprep.subr.mxu0 0.0
    %1041 = vmatpush1.msra.mxu0 0.0
    %1042 = vmatprep.subr.mxu0 0.0
    %1043 = vmatpush1.msra.mxu0 0.0
    %1044 = vmatprep.subr.mxu0 0.0
    %1045 = vmatpush1.msra.mxu0 0.0
    %1046 = vmatprep.subr.mxu0 0.0
    %1047 = vmatpush1.msra.mxu0 0.0
    %1048 = vmatprep.subr.mxu0 0.0
    %1049 = vmatpush1.msra.mxu0 0.0
    %1050 = vmatprep.subr.mxu0 0.0
    %1051 = vmatpush1.msra.mxu0 0.0
    %1052 = vmatprep.subr.mxu0 0.0
    %1053 = vmatpush1.msra.mxu0 0.0
    %1054 = vmatprep.subr.mxu0 0.0
    %1055 = vmatpush1.msra.mxu0 0.0
    %1056 = vmatprep.subr.mxu0 0.0
    %1057 = vmatpush1.msra.mxu0 0.0
    %1058 = vmatprep.subr.mxu0 0.0
    %1059 = vmatpush1.msra.mxu0 0.0
    %1060 = vmatprep.subr.mxu0 0.0
    %1061 = vmatpush1.msra.mxu0 0.0
    %1062 = vmatprep.subr.mxu0 0.0
    %1063 = vmatpush1.msra.mxu0 0.0
    %1064 = vmatprep.subr.mxu0 0.0
    %1065 = vmatpush1.msra.mxu0 0.0
    %1066 = vmatprep.subr.mxu0 0.0
    %1067 = vmatpush1.msra.mxu0 0.0
    %1068 = vmatprep.subr.mxu0 0.0
    %1069 = vmatpush1.msra.mxu0 0.0
    %1070 = vmatprep.subr.mxu0 0.0
    %1071 = vmatpush1.msra.mxu0 0.0
    %1072 = vmatprep.subr.mxu0 0.0
    %1073 = vmatpush1.msra.mxu0 0.0
    %1074 = vmatprep.subr.mxu0 0.0
    %1075 = vmatpush1.msra.mxu0 0.0
    %1076 = vmatprep.subr.mxu0 0.0
    %1077 = vmatpush1.msra.mxu0 0.0
    %1078 = vmatprep.subr.mxu0 0.0
    %1079 = vmatpush1.msra.mxu0 0.0
    %1080 = vmatprep.subr.mxu0 0.0
    %1081 = vmatpush1.msra.mxu0 0.0
    %1082 = vmatprep.subr.mxu0 0.0
    %1083 = vmatpush1.msra.mxu0 0.0
    %1084 = vmatprep.subr.mxu0 0.0
    %1085 = vmatpush1.msra.mxu0 0.0
    %1086 = vmatprep.subr.mxu0 0.0
    %1087 = vmatpush1.msra.mxu0 0.0
    %1088 = vmatprep.subr.mxu0 0.0
    %1089 = vmatpush1.msra.mxu0 0.0
    %1090 = vmatprep.subr.mxu0 0.0
    %1091 = vmatpush1.msra.mxu0 0.0
    %1092 = vmatprep.subr.mxu0 0.0
    %1093 = vmatpush1.msra.mxu0 0.0
    %1094 = vmatprep.subr.mxu0 0.0
    %1095 = vmatpush1.msra.mxu0 0.0
    %1096 = vmatprep.mubr.f32.mxu0 0.0
    %1097 = vmatmul.mubr.f32.gmra.mrb[0].mxu0 %v1025
    %v1098 = vpop.f32.mrb[0].mxu0
    %v1099 = vadd.f32 0.0, %v1098
    %v1100 = vpop.f32.mrb[0].mxu0
    %1101 = vmatprep.mubr.f32.mxu0 0.0
    %1102 = vmatmul.mubr.f32.gmra.mrb[0].mxu0 %v1028
    %v1103 = vpop.f32.mrb[0].mxu0
    %v1104 = vadd.f32 0.0, %v1103
    %v1105 = vpop.f32.mrb[0].mxu0
    %1106 = vdwg.mxu0
    %1107 = vrot.lane.b32.xlu0 %v488, 104
    %v1108 = vpop.permute.xlu0 %1107
    %1109 = vrot.lane.b32.xlu0 %v493, 104
    %v1110 = vpop.permute.xlu0 %1109
    %1111 = vrot.lane.b32.xlu0 %v488, 72
    %v1112 = vpop.permute.xlu0 %1111
    %1113 = vrot.lane.b32.xlu0 %v493, 72
    %v1114 = vpop.permute.xlu0 %1113
    %v1115 = vsel %vm502, %v1108, 0
    %v1117 = vsel %vm502, %v1110, 0
    %v1119 = vsel %vm502, %v1112, 0
    %v1121 = vsel %vm502, %v1114, 0
    %1123 = vmatprep.subr.mxu0 0.0
    %1124 = vmatpush1.xpose.msra.mxu0 %v1119
    %1125 = vmatprep.subr.mxu0 0.0
    %1126 = vmatpush1.xpose.msra.mxu0 %v1121
    %1127 = vmatprep.subr.mxu0 0.0
    %1128 = vmatpush1.xpose.msra.mxu0 0.0
    %1129 = vmatprep.subr.mxu0 0.0
    %1130 = vmatpush1.xpose.msra.mxu0 0.0
    %1131 = vmatprep.subr.mxu0 0.0
    %1132 = vmatpush1.xpose.msra.mxu0 0.0
    %1133 = vmatprep.subr.mxu0 0.0
    %1134 = vmatpush1.xpose.msra.mxu0 0.0
    %1135 = vmatprep.subr.mxu0 0.0
    %1136 = vmatpush1.xpose.msra.mxu0 0.0
    %1137 = vmatprep.subr.mxu0 0.0
    %1138 = vmatpush1.xpose.msra.mxu0 0.0
    %1139 = vmatprep.subr.mxu0 0.0
    %1140 = vmatpush1.xpose.msra.mxu0 0.0
    %1141 = vmatprep.subr.mxu0 0.0
    %1142 = vmatpush1.xpose.msra.mxu0 0.0
    %1143 = vmatprep.subr.mxu0 0.0
    %1144 = vmatpush1.xpose.msra.mxu0 0.0
    %1145 = vmatprep.subr.mxu0 0.0
    %1146 = vmatpush1.xpose.msra.mxu0 0.0
    %1147 = vmatprep.subr.mxu0 0.0
    %1148 = vmatpush1.xpose.msra.mxu0 0.0
    %1149 = vmatprep.subr.mxu0 0.0
    %1150 = vmatpush1.xpose.msra.mxu0 0.0
    %1151 = vmatprep.subr.mxu0 0.0
    %1152 = vmatpush1.xpose.msra.mxu0 0.0
    %1153 = vmatprep.subr.mxu0 0.0
    %1154 = vmatpush1.xpose.msra.mxu0 0.0
    %1155 = vmatprep.subr.mxu0 0.0
    %1156 = vmatpush1.xpose.msra.mxu0 0.0
    %1157 = vmatprep.subr.mxu0 0.0
    %1158 = vmatpush1.xpose.msra.mxu0 0.0
    %1159 = vmatprep.subr.mxu0 0.0
    %1160 = vmatpush1.xpose.msra.mxu0 0.0
    %1161 = vmatprep.subr.mxu0 0.0
    %1162 = vmatpush1.xpose.msra.mxu0 0.0
    %1163 = vmatprep.subr.mxu0 0.0
    %1164 = vmatpush1.xpose.msra.mxu0 0.0
    %1165 = vmatprep.subr.mxu0 0.0
    %1166 = vmatpush1.xpose.msra.mxu0 0.0
    %1167 = vmatprep.subr.mxu0 0.0
    %1168 = vmatpush1.xpose.msra.mxu0 0.0
    %1169 = vmatprep.subr.mxu0 0.0
    %1170 = vmatpush1.xpose.msra.mxu0 0.0
    %1171 = vmatprep.subr.mxu0 0.0
    %1172 = vmatpush1.xpose.msra.mxu0 0.0
    %1173 = vmatprep.subr.mxu0 0.0
    %1174 = vmatpush1.xpose.msra.mxu0 0.0
    %1175 = vmatprep.subr.mxu0 0.0
    %1176 = vmatpush1.xpose.msra.mxu0 0.0
    %1177 = vmatprep.subr.mxu0 0.0
    %1178 = vmatpush1.xpose.msra.mxu0 0.0
    %1179 = vmatprep.subr.mxu0 0.0
    %1180 = vmatpush1.xpose.msra.mxu0 0.0
    %1181 = vmatprep.subr.mxu0 0.0
    %1182 = vmatpush1.xpose.msra.mxu0 0.0
    %1183 = vmatprep.subr.mxu0 0.0
    %1184 = vmatpush1.xpose.msra.mxu0 0.0
    %1185 = vmatprep.subr.mxu0 0.0
    %1186 = vmatpush1.xpose.msra.mxu0 0.0
    %1187 = vmatprep.mubr.f32.mxu0 0.0
    %1188 = vmatmul.mubr.f32.gmra.mrb[0].mxu0 %v1115
    %v1189 = vpop.f32.mrb[0].mxu0
    %v1190 = vadd.f32 0.0, %v1189
    %v1191 = vpop.f32.mrb[0].mxu0
    %1192 = vmatprep.mubr.f32.mxu0 0.0
    %1193 = vmatmul.mubr.f32.gmra.mrb[0].mxu0 %v1117
    %v1194 = vpop.f32.mrb[0].mxu0
    %v1195 = vadd.f32 0.0, %v1194
    %v1196 = vpop.f32.mrb[0].mxu0
    %1197 = vdwg.mxu0
    %v1198 = vmul.f32 %v1190, 0.35355338
    %v1199 = vmul.f32 %v1195, 0.35355338
    %v1200 = vsel %vm588, %v1198, -inf
    %1201 = vmax.xlane.f32.xlu0 %v1200
    %v1202 = vpop.xlane.xlu0 %1201
    %v1203 = vsel %vm592, %v1199, -inf
    %1204 = vmax.xlane.f32.xlu0 %v1203
    %v1205 = vpop.xlane.xlu0 %1204
    %v1206 = vsub.f32 %v1198, %v1202
    %v1207 = vsub.f32 %v1199, %v1205
    %v1208 = vmul.f32 %v1206, 1.442695
    %v1209 = vpow.pop %v1208
    %v1210 = vmul.f32 %v1207, 1.442695
    %v1211 = vpow.pop %v1210
    %v1212 = vsel %vm588, %v1209, 0.0
    %1213 = vadd.xlane.f32.xlu0 %v1212
    %v1214 = vpop.xlane.xlu0 %1213
    %v1215 = vsel %vm592, %v1211, 0.0
    %1216 = vadd.xlane.f32.xlu0 %v1215
    %v1217 = vpop.xlane.xlu0 %1216
    %v1218 = vrcp.pop %v1214
    %v1219 = vrcp.pop %v1217
    %v1220 = vmul.f32 %v1209, %v1218
    %v1221 = vmul.f32 %v1211, %v1219
    %1222 = vrot.lane.b32.xlu0 %v488, 40
    %v1223 = vpop.permute.xlu0 %1222
    %1224 = vrot.lane.b32.xlu0 %v493, 40
    %v1225 = vpop.permute.xlu0 %1224
    %v1228 = vsel %vm588, %v1220, 0
    %v1231 = vsel %vm588, %v1221, 0
    %v1233 = vsel %vm623, %v1225, 0
    %1235 = vmatprep.subr.mxu0 0.0
    %1236 = vmatpush1.msra.mxu0 %v1223
    %1237 = vmatprep.subr.mxu0 0.0
    %1238 = vmatpush1.msra.mxu0 %v1233
    %1239 = vmatprep.subr.mxu0 0.0
    %1240 = vmatpush1.msra.mxu0 0.0
    %1241 = vmatprep.subr.mxu0 0.0
    %1242 = vmatpush1.msra.mxu0 0.0
    %1243 = vmatprep.subr.mxu0 0.0
    %1244 = vmatpush1.msra.mxu0 0.0
    %1245 = vmatprep.subr.mxu0 0.0
    %1246 = vmatpush1.msra.mxu0 0.0
    %1247 = vmatprep.subr.mxu0 0.0
    %1248 = vmatpush1.msra.mxu0 0.0
    %1249 = vmatprep.subr.mxu0 0.0
    %1250 = vmatpush1.msra.mxu0 0.0
    %1251 = vmatprep.subr.mxu0 0.0
    %1252 = vmatpush1.msra.mxu0 0.0
    %1253 = vmatprep.subr.mxu0 0.0
    %1254 = vmatpush1.msra.mxu0 0.0
    %1255 = vmatprep.subr.mxu0 0.0
    %1256 = vmatpush1.msra.mxu0 0.0
    %1257 = vmatprep.subr.mxu0 0.0
    %1258 = vmatpush1.msra.mxu0 0.0
    %1259 = vmatprep.subr.mxu0 0.0
    %1260 = vmatpush1.msra.mxu0 0.0
    %1261 = vmatprep.subr.mxu0 0.0
    %1262 = vmatpush1.msra.mxu0 0.0
    %1263 = vmatprep.subr.mxu0 0.0
    %1264 = vmatpush1.msra.mxu0 0.0
    %1265 = vmatprep.subr.mxu0 0.0
    %1266 = vmatpush1.msra.mxu0 0.0
    %1267 = vmatprep.subr.mxu0 0.0
    %1268 = vmatpush1.msra.mxu0 0.0
    %1269 = vmatprep.subr.mxu0 0.0
    %1270 = vmatpush1.msra.mxu0 0.0
    %1271 = vmatprep.subr.mxu0 0.0
    %1272 = vmatpush1.msra.mxu0 0.0
    %1273 = vmatprep.subr.mxu0 0.0
    %1274 = vmatpush1.msra.mxu0 0.0
    %1275 = vmatprep.subr.mxu0 0.0
    %1276 = vmatpush1.msra.mxu0 0.0
    %1277 = vmatprep.subr.mxu0 0.0
    %1278 = vmatpush1.msra.mxu0 0.0
    %1279 = vmatprep.subr.mxu0 0.0
    %1280 = vmatpush1.msra.mxu0 0.0
    %1281 = vmatprep.subr.mxu0 0.0
    %1282 = vmatpush1.msra.mxu0 0.0
    %1283 = vmatprep.subr.mxu0 0.0
    %1284 = vmatpush1.msra.mxu0 0.0
    %1285 = vmatprep.subr.mxu0 0.0
    %1286 = vmatpush1.msra.mxu0 0.0
    %1287 = vmatprep.subr.mxu0 0.0
    %1288 = vmatpush1.msra.mxu0 0.0
    %1289 = vmatprep.subr.mxu0 0.0
    %1290 = vmatpush1.msra.mxu0 0.0
    %1291 = vmatprep.subr.mxu0 0.0
    %1292 = vmatpush1.msra.mxu0 0.0
    %1293 = vmatprep.subr.mxu0 0.0
    %1294 = vmatpush1.msra.mxu0 0.0
    %1295 = vmatprep.subr.mxu0 0.0
    %1296 = vmatpush1.msra.mxu0 0.0
    %1297 = vmatprep.subr.mxu0 0.0
    %1298 = vmatpush1.msra.mxu0 0.0
    %1299 = vmatprep.mubr.f32.mxu0 0.0
    %1300 = vmatmul.mubr.f32.gmra.mrb[0].mxu0 %v1228
    %v1301 = vpop.f32.mrb[0].mxu0
    %v1302 = vadd.f32 0.0, %v1301
    %v1303 = vpop.f32.mrb[0].mxu0
    %1304 = vmatprep.mubr.f32.mxu0 0.0
    %1305 = vmatmul.mubr.f32.gmra.mrb[0].mxu0 %v1231
    %v1306 = vpop.f32.mrb[0].mxu0
    %v1307 = vadd.f32 0.0, %v1306
    %v1308 = vpop.f32.mrb[0].mxu0
    %1309 = vdwg.mxu0
    %1312 = vrot.lane.b32.xlu0 %v896, 8
    %v1313 = vpop.permute.xlu0 %1312
    %1314 = vrot.lane.b32.xlu0 %v901, 8
    %v1315 = vpop.permute.xlu0 %1314
    %1320 = vrot.lane.b32.xlu0 %v1099, 16
    %v1321 = vpop.permute.xlu0 %1320
    %1322 = vrot.lane.b32.xlu0 %v1104, 16
    %v1323 = vpop.permute.xlu0 %1322
    %1328 = vrot.lane.b32.xlu0 %v1302, 24
    %v1329 = vpop.permute.xlu0 %1328
    %1330 = vrot.lane.b32.xlu0 %v1307, 24
    %v1331 = vpop.permute.xlu0 %1330
    %v1334 = vsel %vm502, %v693, %v1313
    %v1335 = vsel %vm502, %v698, %v1315
    %v1336 = vsel %vm264, %v1334, %v1321
    %v1337 = vsel %vm264, %v1335, %v1323
    %vm1338 = vcmask 195584
    %v1339 = vsel %vm1338, %v1336, %v1329
    %v1340 = vsel %vm1338, %v1337, %v1331
    %v1341 = vld [vmem:[%s5] sm:$0xff]
    %v1342 = vld [vmem:[%s5 + $0x8] sm:$0xff]
    %v1343 = vld [vmem:[%s5 + $0x10] sm:$0xff]
    %v1344 = vld [vmem:[%s5 + $0x18] sm:$0xff]
    %v1345 = vld [vmem:[#allocation7] sm:$0x1]
    %v1347 = vlaneseq
    %v1348 = vshrl.u32 %v1347, 7
    %v1349 = vsub.s32 0, %v1348
    %v1350 = vrot.slane %v1345, %v1349
    %v1353 = vsel %vm414, %v1339, 0
    %v1356 = vsel %vm414, %v1340, 0
    %1358 = vmatprep.subr.mxu0 0.0
    %1359 = vmatpush1.msra.mxu0 %v1341
    %1360 = vmatprep.subr.mxu0 0.0
    %1361 = vmatpush1.msra.mxu0 %v1342
    %1362 = vmatprep.subr.mxu0 0.0
    %1363 = vmatpush1.msra.mxu0 %v1343
    %1364 = vmatprep.subr.mxu0 0.0
    %1365 = vmatpush1.msra.mxu0 %v1344
    %1366 = vmatprep.subr.mxu0 0.0
    %1367 = vmatpush1.msra.mxu0 0.0
    %1368 = vmatprep.subr.mxu0 0.0
    %1369 = vmatpush1.msra.mxu0 0.0
    %1370 = vmatprep.subr.mxu0 0.0
    %1371 = vmatpush1.msra.mxu0 0.0
    %1372 = vmatprep.subr.mxu0 0.0
    %1373 = vmatpush1.msra.mxu0 0.0
    %1374 = vmatprep.subr.mxu0 0.0
    %1375 = vmatpush1.msra.mxu0 0.0
    %1376 = vmatprep.subr.mxu0 0.0
    %1377 = vmatpush1.msra.mxu0 0.0
    %1378 = vmatprep.subr.mxu0 0.0
    %1379 = vmatpush1.msra.mxu0 0.0
    %1380 = vmatprep.subr.mxu0 0.0
    %1381 = vmatpush1.msra.mxu0 0.0
    %1382 = vmatprep.subr.mxu0 0.0
    %1383 = vmatpush1.msra.mxu0 0.0
    %1384 = vmatprep.subr.mxu0 0.0
    %1385 = vmatpush1.msra.mxu0 0.0
    %1386 = vmatprep.subr.mxu0 0.0
    %1387 = vmatpush1.msra.mxu0 0.0
    %1388 = vmatprep.subr.mxu0 0.0
    %1389 = vmatpush1.msra.mxu0 0.0
    %1390 = vmatprep.subr.mxu0 0.0
    %1391 = vmatpush1.msra.mxu0 0.0
    %1392 = vmatprep.subr.mxu0 0.0
    %1393 = vmatpush1.msra.mxu0 0.0
    %1394 = vmatprep.subr.mxu0 0.0
    %1395 = vmatpush1.msra.mxu0 0.0
    %1396 = vmatprep.subr.mxu0 0.0
    %1397 = vmatpush1.msra.mxu0 0.0
    %1398 = vmatprep.subr.mxu0 0.0
    %1399 = vmatpush1.msra.mxu0 0.0
    %1400 = vmatprep.subr.mxu0 0.0
    %1401 = vmatpush1.msra.mxu0 0.0
    %1402 = vmatprep.subr.mxu0 0.0
    %1403 = vmatpush1.msra.mxu0 0.0
    %1404 = vmatprep.subr.mxu0 0.0
    %1405 = vmatpush1.msra.mxu0 0.0
    %1406 = vmatprep.subr.mxu0 0.0
    %1407 = vmatpush1.msra.mxu0 0.0
    %1408 = vmatprep.subr.mxu0 0.0
    %1409 = vmatpush1.msra.mxu0 0.0
    %1410 = vmatprep.subr.mxu0 0.0
    %1411 = vmatpush1.msra.mxu0 0.0
    %1412 = vmatprep.subr.mxu0 0.0
    %1413 = vmatpush1.msra.mxu0 0.0
    %1414 = vmatprep.subr.mxu0 0.0
    %1415 = vmatpush1.msra.mxu0 0.0
    %1416 = vmatprep.subr.mxu0 0.0
    %1417 = vmatpush1.msra.mxu0 0.0
    %1418 = vmatprep.subr.mxu0 0.0
    %1419 = vmatpush1.msra.mxu0 0.0
    %1420 = vmatprep.subr.mxu0 0.0
    %1421 = vmatpush1.msra.mxu0 0.0
    %1422 = vmatprep.mubr.f32.mxu0 0.0
    %1423 = vmatmul.mubr.f32.gmra.mrb[0].mxu0 %v1353
    %v1424 = vpop.f32.mrb[0].mxu0
    %v1425 = vadd.f32 %v1350, %v1424
    %v1426 = vpop.f32.mrb[0].mxu0
    %1427 = vmatprep.mubr.f32.mxu0 0.0
    %1428 = vmatmul.mubr.f32.gmra.mrb[0].mxu0 %v1356
    %v1429 = vpop.f32.mrb[0].mxu0
    %v1430 = vadd.f32 %v1350, %v1429
    %v1431 = vpop.f32.mrb[0].mxu0
    %1432 = vdwg.mxu0
    %v1433 = vadd.f32 %v395, %v1425
    %v1434 = vadd.f32 %v400, %v1430
    %v1435 = vld [vmem:[#allocation15] sm:$0x1]
    %v1436 = vld [vmem:[#allocation16] sm:$0x1]
    %v1437 = vsel %vm414, %v1433, 0.0
    %1438 = vadd.xlane.f32.xlu0 %v1437
    %v1439 = vpop.xlane.xlu0 %1438
    %vm1440 = vcmask 257024
    %v1441 = vsel %vm1440, %v1434, 0.0
    %1442 = vadd.xlane.f32.xlu0 %v1441
    %v1443 = vpop.xlane.xlu0 %1442
    %v1444 = vrcp.pop 32.0
    %v1445 = vmul.f32 %v1439, %v1444
    %v1446 = vmul.f32 %v1443, %v1444
    %v1447 = vsub.f32 %v1433, %v1445
    %v1448 = vsub.f32 %v1434, %v1446
    %v1449 = vmul.f32 %v1447, %v1447
    %v1450 = vmul.f32 %v1448, %v1448
    %v1451 = vsel %vm414, %v1449, 0.0
    %1452 = vadd.xlane.f32.xlu0 %v1451
    %v1453 = vpop.xlane.xlu0 %1452
    %v1454 = vsel %vm1440, %v1450, 0.0
    %1455 = vadd.xlane.f32.xlu0 %v1454
    %v1456 = vpop.xlane.xlu0 %1455
    %v1457 = vmul.f32 %v1453, %v1444
    %v1458 = vmul.f32 %v1456, %v1444
    %v1459 = vadd.f32 %v1457, 1e-05
    %v1460 = vadd.f32 %v1458, 1e-05
    %v1461 = vrsqrt.pop %v1459
    %v1462 = vrsqrt.pop %v1460
    %v1463 = vmul.f32 %v1447, %v1461
    %v1464 = vmul.f32 %v1448, %v1462
    %v1466 = vlaneseq
    %v1467 = vshrl.u32 %v1466, 7
    %v1468 = vsub.s32 0, %v1467
    %v1469 = vrot.slane %v1435, %v1468
    %v1471 = vmul.f32 %v1463, %v1469
    %v1472 = vmul.f32 %v1464, %v1469
    %v1474 = vlaneseq
    %v1475 = vshrl.u32 %v1474, 7
    %v1476 = vsub.s32 0, %v1475
    %v1477 = vrot.slane %v1436, %v1476
    %v1479 = vadd.f32 %v1471, %v1477
    %v1480 = vadd.f32 %v1472, %v1477
    %v1481 = vld [vmem:[#allocation9] sm:$0xff]
    %v1482 = vld [vmem:[#allocation9 + $0x8] sm:$0xff]
    %v1483 = vld [vmem:[#allocation9 + $0x10] sm:$0xff]
    %v1484 = vld [vmem:[#allocation9 + $0x18] sm:$0xff]
    %v1485 = vld [vmem:[#allocation10] sm:$0x1]
    %v1487 = vlaneseq
    %v1488 = vshrl.u32 %v1487, 7
    %v1489 = vsub.s32 0, %v1488
    %v1490 = vrot.slane %v1485, %v1489
    %v1493 = vsel %vm414, %v1479, 0
    %v1496 = vsel %vm414, %v1480, 0
    %1498 = vmatprep.subr.mxu0 0.0
    %1499 = vmatpush1.msra.mxu0 %v1481
    %1500 = vmatprep.subr.mxu0 0.0
    %1501 = vmatpush1.msra.mxu0 %v1482
    %1502 = vmatprep.subr.mxu0 0.0
    %1503 = vmatpush1.msra.mxu0 %v1483
    %1504 = vmatprep.subr.mxu0 0.0
    %1505 = vmatpush1.msra.mxu0 %v1484
    %1506 = vmatprep.subr.mxu0 0.0
    %1507 = vmatpush1.msra.mxu0 0.0
    %1508 = vmatprep.subr.mxu0 0.0
    %1509 = vmatpush1.msra.mxu0 0.0
    %1510 = vmatprep.subr.mxu0 0.0
    %1511 = vmatpush1.msra.mxu0 0.0
    %1512 = vmatprep.subr.mxu0 0.0
    %1513 = vmatpush1.msra.mxu0 0.0
    %1514 = vmatprep.subr.mxu0 0.0
    %1515 = vmatpush1.msra.mxu0 0.0
    %1516 = vmatprep.subr.mxu0 0.0
    %1517 = vmatpush1.msra.mxu0 0.0
    %1518 = vmatprep.subr.mxu0 0.0
    %1519 = vmatpush1.msra.mxu0 0.0
    %1520 = vmatprep.subr.mxu0 0.0
    %1521 = vmatpush1.msra.mxu0 0.0
    %1522 = vmatprep.subr.mxu0 0.0
    %1523 = vmatpush1.msra.mxu0 0.0
    %1524 = vmatprep.subr.mxu0 0.0
    %1525 = vmatpush1.msra.mxu0 0.0
    %1526 = vmatprep.subr.mxu0 0.0
    %1527 = vmatpush1.msra.mxu0 0.0
    %1528 = vmatprep.subr.mxu0 0.0
    %1529 = vmatpush1.msra.mxu0 0.0
    %1530 = vmatprep.subr.mxu0 0.0
    %1531 = vmatpush1.msra.mxu0 0.0
    %1532 = vmatprep.subr.mxu0 0.0
    %1533 = vmatpush1.msra.mxu0 0.0
    %1534 = vmatprep.subr.mxu0 0.0
    %1535 = vmatpush1.msra.mxu0 0.0
    %1536 = vmatprep.subr.mxu0 0.0
    %1537 = vmatpush1.msra.mxu0 0.0
    %1538 = vmatprep.subr.mxu0 0.0
    %1539 = vmatpush1.msra.mxu0 0.0
    %1540 = vmatprep.subr.mxu0 0.0
    %1541 = vmatpush1.msra.mxu0 0.0
    %1542 = vmatprep.subr.mxu0 0.0
    %1543 = vmatpush1.msra.mxu0 0.0
    %1544 = vmatprep.subr.mxu0 0.0
    %1545 = vmatpush1.msra.mxu0 0.0
    %1546 = vmatprep.subr.mxu0 0.0
    %1547 = vmatpush1.msra.mxu0 0.0
    %1548 = vmatprep.subr.mxu0 0.0
    %1549 = vmatpush1.msra.mxu0 0.0
    %1550 = vmatprep.subr.mxu0 0.0
    %1551 = vmatpush1.msra.mxu0 0.0
    %1552 = vmatprep.subr.mxu0 0.0
    %1553 = vmatpush1.msra.mxu0 0.0
    %1554 = vmatprep.subr.mxu0 0.0
    %1555 = vmatpush1.msra.mxu0 0.0
    %1556 = vmatprep.subr.mxu0 0.0
    %1557 = vmatpush1.msra.mxu0 0.0
    %1558 = vmatprep.subr.mxu0 0.0
    %1559 = vmatpush1.msra.mxu0 0.0
    %1560 = vmatprep.subr.mxu0 0.0
    %1561 = vmatpush1.msra.mxu0 0.0
    %1562 = vmatprep.mubr.f32.mxu0 0.0
    %1563 = vmatmul.mubr.f32.gmra.mrb[0].mxu0 %v1493
    %v1564 = vpop.f32.mrb[0].mxu0
    %v1565 = vadd.f32 %v1490, %v1564
    %v1566 = vpop.f32.mrb[0].mxu0
    %1567 = vmatprep.mubr.f32.mxu0 0.0
    %1568 = vmatmul.mubr.f32.gmra.mrb[0].mxu0 %v1496
    %v1569 = vpop.f32.mrb[0].mxu0
    %v1570 = vadd.f32 %v1490, %v1569
    %v1571 = vpop.f32.mrb[0].mxu0
    %1572 = vdwg.mxu0
    %v1573 = vmax.f32 %v1565, 0.0
    %v1574 = vmax.f32 %v1570, 0.0
    %v1575 = vld [vmem:[#allocation12] sm:$0xff]
    %v1576 = vld [vmem:[#allocation12 + $0x8] sm:$0xff]
    %v1577 = vld [vmem:[#allocation12 + $0x10] sm:$0xff]
    %v1578 = vld [vmem:[#allocation12 + $0x18] sm:$0xff]
    %v1579 = vld [vmem:[#allocation13] sm:$0x1]
    %v1581 = vlaneseq
    %v1582 = vshrl.u32 %v1581, 7
    %v1583 = vsub.s32 0, %v1582
    %v1584 = vrot.slane %v1579, %v1583
    %v1587 = vsel %vm414, %v1573, 0
    %v1590 = vsel %vm414, %v1574, 0
    %1592 = vmatprep.subr.mxu0 0.0
    %1593 = vmatpush1.msra.mxu0 %v1575
    %1594 = vmatprep.subr.mxu0 0.0
    %1595 = vmatpush1.msra.mxu0 %v1576
    %1596 = vmatprep.subr.mxu0 0.0
    %1597 = vmatpush1.msra.mxu0 %v1577
    %1598 = vmatprep.subr.mxu0 0.0
    %1599 = vmatpush1.msra.mxu0 %v1578
    %1600 = vmatprep.subr.mxu0 0.0
    %1601 = vmatpush1.msra.mxu0 0.0
    %1602 = vmatprep.subr.mxu0 0.0
    %1603 = vmatpush1.msra.mxu0 0.0
    %1604 = vmatprep.subr.mxu0 0.0
    %1605 = vmatpush1.msra.mxu0 0.0
    %1606 = vmatprep.subr.mxu0 0.0
    %1607 = vmatpush1.msra.mxu0 0.0
    %1608 = vmatprep.subr.mxu0 0.0
    %1609 = vmatpush1.msra.mxu0 0.0
    %1610 = vmatprep.subr.mxu0 0.0
    %1611 = vmatpush1.msra.mxu0 0.0
    %1612 = vmatprep.subr.mxu0 0.0
    %1613 = vmatpush1.msra.mxu0 0.0
    %1614 = vmatprep.subr.mxu0 0.0
    %1615 = vmatpush1.msra.mxu0 0.0
    %1616 = vmatprep.subr.mxu0 0.0
    %1617 = vmatpush1.msra.mxu0 0.0
    %1618 = vmatprep.subr.mxu0 0.0
    %1619 = vmatpush1.msra.mxu0 0.0
    %1620 = vmatprep.subr.mxu0 0.0
    %1621 = vmatpush1.msra.mxu0 0.0
    %1622 = vmatprep.subr.mxu0 0.0
    %1623 = vmatpush1.msra.mxu0 0.0
    %1624 = vmatprep.subr.mxu0 0.0
    %1625 = vmatpush1.msra.mxu0 0.0
    %1626 = vmatprep.subr.mxu0 0.0
    %1627 = vmatpush1.msra.mxu0 0.0
    %1628 = vmatprep.subr.mxu0 0.0
    %1629 = vmatpush1.msra.mxu0 0.0
    %1630 = vmatprep.subr.mxu0 0.0
    %1631 = vmatpush1.msra.mxu0 0.0
    %1632 = vmatprep.subr.mxu0 0.0
    %1633 = vmatpush1.msra.mxu0 0.0
    %1634 = vmatprep.subr.mxu0 0.0
    %1635 = vmatpush1.msra.mxu0 0.0
    %1636 = vmatprep.subr.mxu0 0.0
    %1637 = vmatpush1.msra.mxu0 0.0
    %1638 = vmatprep.subr.mxu0 0.0
    %1639 = vmatpush1.msra.mxu0 0.0
    %1640 = vmatprep.subr.mxu0 0.0
    %1641 = vmatpush1.msra.mxu0 0.0
    %1642 = vmatprep.subr.mxu0 0.0
    %1643 = vmatpush1.msra.mxu0 0.0
    %1644 = vmatprep.subr.mxu0 0.0
    %1645 = vmatpush1.msra.mxu0 0.0
    %1646 = vmatprep.subr.mxu0 0.0
    %1647 = vmatpush1.msra.mxu0 0.0
    %1648 = vmatprep.subr.mxu0 0.0
    %1649 = vmatpush1.msra.mxu0 0.0
    %1650 = vmatprep.subr.mxu0 0.0
    %1651 = vmatpush1.msra.mxu0 0.0
    %1652 = vmatprep.subr.mxu0 0.0
    %1653 = vmatpush1.msra.mxu0 0.0
    %1654 = vmatprep.subr.mxu0 0.0
    %1655 = vmatpush1.msra.mxu0 0.0
    %1656 = vmatprep.mubr.f32.mxu0 0.0
    %1657 = vmatmul.mubr.f32.gmra.mrb[0].mxu0 %v1587
    %v1658 = vpop.f32.mrb[0].mxu0
    %v1659 = vadd.f32 %v1584, %v1658
    %v1660 = vpop.f32.mrb[0].mxu0
    %1661 = vmatprep.mubr.f32.mxu0 0.0
    %1662 = vmatmul.mubr.f32.gmra.mrb[0].mxu0 %v1590
    %v1663 = vpop.f32.mrb[0].mxu0
    %v1664 = vadd.f32 %v1584, %v1663
    %v1665 = vpop.f32.mrb[0].mxu0
    %1666 = vdwg.mxu0
    %v1667 = vadd.f32 %v1479, %v1659
    %v1668 = vadd.f32 %v1480, %v1664
    %v1669 = vld [vmem:[#allocation18] sm:$0x1]
    %v1670 = vld [vmem:[#allocation19] sm:$0x1]
    %v1671 = vsel %vm414, %v1667, 0.0
    %1672 = vadd.xlane.f32.xlu0 %v1671
    %v1673 = vpop.xlane.xlu0 %1672
    %v1674 = vsel %vm1440, %v1668, 0.0
    %1675 = vadd.xlane.f32.xlu0 %v1674
    %v1676 = vpop.xlane.xlu0 %1675
    %v1677 = vmul.f32 %v1673, %v1444
    %v1678 = vmul.f32 %v1676, %v1444
    %v1679 = vsub.f32 %v1667, %v1677
    %v1680 = vsub.f32 %v1668, %v1678
    %v1681 = vmul.f32 %v1679, %v1679
    %v1682 = vmul.f32 %v1680, %v1680
    %v1683 = vsel %vm414, %v1681, 0.0
    %1684 = vadd.xlane.f32.xlu0 %v1683
    %v1685 = vpop.xlane.xlu0 %1684
    %v1686 = vsel %vm1440, %v1682, 0.0
    %1687 = vadd.xlane.f32.xlu0 %v1686
    %v1688 = vpop.xlane.xlu0 %1687
    %v1689 = vmul.f32 %v1685, %v1444
    %v1690 = vmul.f32 %v1688, %v1444
    %v1691 = vadd.f32 %v1689, 1e-05
    %v1692 = vadd.f32 %v1690, 1e-05
    %v1693 = vrsqrt.pop %v1691
    %v1694 = vrsqrt.pop %v1692
    %v1695 = vmul.f32 %v1679, %v1693
    %v1696 = vmul.f32 %v1680, %v1694
    %v1698 = vlaneseq
    %v1699 = vshrl.u32 %v1698, 7
    %v1700 = vsub.s32 0, %v1699
    %v1701 = vrot.slane %v1669, %v1700
    %v1703 = vmul.f32 %v1695, %v1701
    %v1704 = vmul.f32 %v1696, %v1701
    %v1706 = vlaneseq
    %v1707 = vshrl.u32 %v1706, 7
    %v1708 = vsub.s32 0, %v1707
    %v1709 = vrot.slane %v1670, %v1708
    %v1711 = vadd.f32 %v1703, %v1709
    %v1712 = vadd.f32 %v1704, %v1709
    %s1713 = scalar_lea.vmem %s3, 32
    %v1714 = vld [vmem:[%s1713] sm:$0xff]
    %v1715 = vld [vmem:[%s1713 + $0x8] sm:$0xff]
    %v1716 = vld [vmem:[%s1713 + $0x10] sm:$0xff]
    %v1717 = vld [vmem:[%s1713 + $0x18] sm:$0xff]
    %s1718 = scalar_lea.vmem [#allocation6], 1
    %v1719 = vld [vmem:[%s1718] sm:$0x1]
    %v1721 = vlaneseq
    %v1722 = vshrl.u32 %v1721, 7
    %v1723 = vsub.s32 0, %v1722
    %v1724 = vrot.slane %v1719, %v1723
    %v1727 = vsel %vm414, %v1711, 0
    %v1730 = vsel %vm414, %v1712, 0
    %1732 = vmatprep.subr.mxu0 0.0
    %1733 = vmatpush1.msra.mxu0 %v1714
    %1734 = vmatprep.subr.mxu0 0.0
    %1735 = vmatpush1.msra.mxu0 %v1715
    %1736 = vmatprep.subr.mxu0 0.0
    %1737 = vmatpush1.msra.mxu0 %v1716
    %1738 = vmatprep.subr.mxu0 0.0
    %1739 = vmatpush1.msra.mxu0 %v1717
    %1740 = vmatprep.subr.mxu0 0.0
    %1741 = vmatpush1.msra.mxu0 0.0
    %1742 = vmatprep.subr.mxu0 0.0
    %1743 = vmatpush1.msra.mxu0 0.0
    %1744 = vmatprep.subr.mxu0 0.0
    %1745 = vmatpush1.msra.mxu0 0.0
    %1746 = vmatprep.subr.mxu0 0.0
    %1747 = vmatpush1.msra.mxu0 0.0
    %1748 = vmatprep.subr.mxu0 0.0
    %1749 = vmatpush1.msra.mxu0 0.0
    %1750 = vmatprep.subr.mxu0 0.0
    %1751 = vmatpush1.msra.mxu0 0.0
    %1752 = vmatprep.subr.mxu0 0.0
    %1753 = vmatpush1.msra.mxu0 0.0
    %1754 = vmatprep.subr.mxu0 0.0
    %1755 = vmatpush1.msra.mxu0 0.0
    %1756 = vmatprep.subr.mxu0 0.0
    %1757 = vmatpush1.msra.mxu0 0.0
    %1758 = vmatprep.subr.mxu0 0.0
    %1759 = vmatpush1.msra.mxu0 0.0
    %1760 = vmatprep.subr.mxu0 0.0
    %1761 = vmatpush1.msra.mxu0 0.0
    %1762 = vmatprep.subr.mxu0 0.0
    %1763 = vmatpush1.msra.mxu0 0.0
    %1764 = vmatprep.subr.mxu0 0.0
    %1765 = vmatpush1.msra.mxu0 0.0
    %1766 = vmatprep.subr.mxu0 0.0
    %1767 = vmatpush1.msra.mxu0 0.0
    %1768 = vmatprep.subr.mxu0 0.0
    %1769 = vmatpush1.msra.mxu0 0.0
    %1770 = vmatprep.subr.mxu0 0.0
    %1771 = vmatpush1.msra.mxu0 0.0
    %1772 = vmatprep.subr.mxu0 0.0
    %1773 = vmatpush1.msra.mxu0 0.0
    %1774 = vmatprep.subr.mxu0 0.0
    %1775 = vmatpush1.msra.mxu0 0.0
    %1776 = vmatprep.subr.mxu0 0.0
    %1777 = vmatpush1.msra.mxu0 0.0
    %1778 = vmatprep.subr.mxu0 0.0
    %1779 = vmatpush1.msra.mxu0 0.0
    %1780 = vmatprep.subr.mxu0 0.0
    %1781 = vmatpush1.msra.mxu0 0.0
    %1782 = vmatprep.subr.mxu0 0.0
    %1783 = vmatpush1.msra.mxu0 0.0
    %1784 = vmatprep.subr.mxu0 0.0
    %1785 = vmatpush1.msra.mxu0 0.0
    %1786 = vmatprep.subr.mxu0 0.0
    %1787 = vmatpush1.msra.mxu0 0.0
    %1788 = vmatprep.subr.mxu0 0.0
    %1789 = vmatpush1.msra.mxu0 0.0
    %1790 = vmatprep.subr.mxu0 0.0
    %1791 = vmatpush1.msra.mxu0 0.0
    %1792 = vmatprep.subr.mxu0 0.0
    %1793 = vmatpush1.msra.mxu0 0.0
    %1794 = vmatprep.subr.mxu0 0.0
    %1795 = vmatpush1.msra.mxu0 0.0
    %1796 = vmatprep.mubr.f32.mxu0 0.0
    %1797 = vmatmul.mubr.f32.gmra.mrb[0].mxu0 %v1727
    %v1798 = vpop.f32.mrb[0].mxu0
    %v1799 = vadd.f32 %v1724, %v1798
    %v1800 = vpop.f32.mrb[0].mxu0
    %1801 = vmatprep.mubr.f32.mxu0 0.0
    %1802 = vmatmul.mubr.f32.gmra.mrb[0].mxu0 %v1730
    %v1803 = vpop.f32.mrb[0].mxu0
    %v1804 = vadd.f32 %v1724, %v1803
    %v1805 = vpop.f32.mrb[0].mxu0
    %1806 = vdwg.mxu0
    %1809 = vrot.lane.b32.xlu0 %v1799, 96
    %v1810 = vpop.permute.xlu0 %1809
    %1811 = vrot.lane.b32.xlu0 %v1804, 96
    %v1812 = vpop.permute.xlu0 %1811
    %v1813 = vsel %vm502, %v1799, 0
    %v1815 = vsel %vm502, %v1804, 0
    %v1817 = vsel %vm502, %v1810, 0
    %v1819 = vsel %vm502, %v1812, 0
    %1821 = vmatprep.subr.mxu0 0.0
    %1822 = vmatpush1.xpose.msra.mxu0 %v1817
    %1823 = vmatprep.subr.mxu0 0.0
    %1824 = vmatpush1.xpose.msra.mxu0 %v1819
    %1825 = vmatprep.subr.mxu0 0.0
    %1826 = vmatpush1.xpose.msra.mxu0 0.0
    %1827 = vmatprep.subr.mxu0 0.0
    %1828 = vmatpush1.xpose.msra.mxu0 0.0
    %1829 = vmatprep.subr.mxu0 0.0
    %1830 = vmatpush1.xpose.msra.mxu0 0.0
    %1831 = vmatprep.subr.mxu0 0.0
    %1832 = vmatpush1.xpose.msra.mxu0 0.0
    %1833 = vmatprep.subr.mxu0 0.0
    %1834 = vmatpush1.xpose.msra.mxu0 0.0
    %1835 = vmatprep.subr.mxu0 0.0
    %1836 = vmatpush1.xpose.msra.mxu0 0.0
    %1837 = vmatprep.subr.mxu0 0.0
    %1838 = vmatpush1.xpose.msra.mxu0 0.0
    %1839 = vmatprep.subr.mxu0 0.0
    %1840 = vmatpush1.xpose.msra.mxu0 0.0
    %1841 = vmatprep.subr.mxu0 0.0
    %1842 = vmatpush1.xpose.msra.mxu0 0.0
    %1843 = vmatprep.subr.mxu0 0.0
    %1844 = vmatpush1.xpose.msra.mxu0 0.0
    %1845 = vmatprep.subr.mxu0 0.0
    %1846 = vmatpush1.xpose.msra.mxu0 0.0
    %1847 = vmatprep.subr.mxu0 0.0
    %1848 = vmatpush1.xpose.msra.mxu0 0.0
    %1849 = vmatprep.subr.mxu0 0.0
    %1850 = vmatpush1.xpose.msra.mxu0 0.0
    %1851 = vmatprep.subr.mxu0 0.0
    %1852 = vmatpush1.xpose.msra.mxu0 0.0
    %1853 = vmatprep.subr.mxu0 0.0
    %1854 = vmatpush1.xpose.msra.mxu0 0.0
    %1855 = vmatprep.subr.mxu0 0.0
    %1856 = vmatpush1.xpose.msra.mxu0 0.0
    %1857 = vmatprep.subr.mxu0 0.0
    %1858 = vmatpush1.xpose.msra.mxu0 0.0
    %1859 = vmatprep.subr.mxu0 0.0
    %1860 = vmatpush1.xpose.msra.mxu0 0.0
    %1861 = vmatprep.subr.mxu0 0.0
    %1862 = vmatpush1.xpose.msra.mxu0 0.0
    %1863 = vmatprep.subr.mxu0 0.0
    %1864 = vmatpush1.xpose.msra.mxu0 0.0
    %1865 = vmatprep.subr.mxu0 0.0
    %1866 = vmatpush1.xpose.msra.mxu0 0.0
    %1867 = vmatprep.subr.mxu0 0.0
    %1868 = vmatpush1.xpose.msra.mxu0 0.0
    %1869 = vmatprep.subr.mxu0 0.0
    %1870 = vmatpush1.xpose.msra.mxu0 0.0
    %1871 = vmatprep.subr.mxu0 0.0
    %1872 = vmatpush1.xpose.msra.mxu0 0.0
    %1873 = vmatprep.subr.mxu0 0.0
    %1874 = vmatpush1.xpose.msra.mxu0 0.0
    %1875 = vmatprep.subr.mxu0 0.0
    %1876 = vmatpush1.xpose.msra.mxu0 0.0
    %1877 = vmatprep.subr.mxu0 0.0
    %1878 = vmatpush1.xpose.msra.mxu0 0.0
    %1879 = vmatprep.subr.mxu0 0.0
    %1880 = vmatpush1.xpose.msra.mxu0 0.0
    %1881 = vmatprep.subr.mxu0 0.0
    %1882 = vmatpush1.xpose.msra.mxu0 0.0
    %1883 = vmatprep.subr.mxu0 0.0
    %1884 = vmatpush1.xpose.msra.mxu0 0.0
    %1885 = vmatprep.mubr.f32.mxu0 0.0
    %1886 = vmatmul.mubr.f32.gmra.mrb[0].mxu0 %v1813
    %v1887 = vpop.f32.mrb[0].mxu0
    %v1888 = vadd.f32 0.0, %v1887
    %v1889 = vpop.f32.mrb[0].mxu0
    %1890 = vmatprep.mubr.f32.mxu0 0.0
    %1891 = vmatmul.mubr.f32.gmra.mrb[0].mxu0 %v1815
    %v1892 = vpop.f32.mrb[0].mxu0
    %v1893 = vadd.f32 0.0, %v1892
    %v1894 = vpop.f32.mrb[0].mxu0
    %1895 = vdwg.mxu0
    %v1896 = vmul.f32 %v1888, 0.35355338
    %v1897 = vmul.f32 %v1893, 0.35355338
    %v1898 = vsel %vm588, %v1896, -inf
    %1899 = vmax.xlane.f32.xlu0 %v1898
    %v1900 = vpop.xlane.xlu0 %1899
    %v1901 = vsel %vm592, %v1897, -inf
    %1902 = vmax.xlane.f32.xlu0 %v1901
    %v1903 = vpop.xlane.xlu0 %1902
    %v1904 = vsub.f32 %v1896, %v1900
    %v1905 = vsub.f32 %v1897, %v1903
    %v1906 = vmul.f32 %v1904, 1.442695
    %v1907 = vpow.pop %v1906
    %v1908 = vmul.f32 %v1905, 1.442695
    %v1909 = vpow.pop %v1908
    %v1910 = vsel %vm588, %v1907, 0.0
    %1911 = vadd.xlane.f32.xlu0 %v1910
    %v1912 = vpop.xlane.xlu0 %1911
    %v1913 = vsel %vm592, %v1909, 0.0
    %1914 = vadd.xlane.f32.xlu0 %v1913
    %v1915 = vpop.xlane.xlu0 %1914
    %v1916 = vrcp.pop %v1912
    %v1917 = vrcp.pop %v1915
    %v1918 = vmul.f32 %v1907, %v1916
    %v1919 = vmul.f32 %v1909, %v1917
    %1920 = vrot.lane.b32.xlu0 %v1799, 64
    %v1921 = vpop.permute.xlu0 %1920
    %1922 = vrot.lane.b32.xlu0 %v1804, 64
    %v1923 = vpop.permute.xlu0 %1922
    %v1926 = vsel %vm588, %v1918, 0
    %v1929 = vsel %vm588, %v1919, 0
    %v1931 = vsel %vm623, %v1923, 0
    %1933 = vmatprep.subr.mxu0 0.0
    %1934 = vmatpush1.msra.mxu0 %v1921
    %1935 = vmatprep.subr.mxu0 0.0
    %1936 = vmatpush1.msra.mxu0 %v1931
    %1937 = vmatprep.subr.mxu0 0.0
    %1938 = vmatpush1.msra.mxu0 0.0
    %1939 = vmatprep.subr.mxu0 0.0
    %1940 = vmatpush1.msra.mxu0 0.0
    %1941 = vmatprep.subr.mxu0 0.0
    %1942 = vmatpush1.msra.mxu0 0.0
    %1943 = vmatprep.subr.mxu0 0.0
    %1944 = vmatpush1.msra.mxu0 0.0
    %1945 = vmatprep.subr.mxu0 0.0
    %1946 = vmatpush1.msra.mxu0 0.0
    %1947 = vmatprep.subr.mxu0 0.0
    %1948 = vmatpush1.msra.mxu0 0.0
    %1949 = vmatprep.subr.mxu0 0.0
    %1950 = vmatpush1.msra.mxu0 0.0
    %1951 = vmatprep.subr.mxu0 0.0
    %1952 = vmatpush1.msra.mxu0 0.0
    %1953 = vmatprep.subr.mxu0 0.0
    %1954 = vmatpush1.msra.mxu0 0.0
    %1955 = vmatprep.subr.mxu0 0.0
    %1956 = vmatpush1.msra.mxu0 0.0
    %1957 = vmatprep.subr.mxu0 0.0
    %1958 = vmatpush1.msra.mxu0 0.0
    %1959 = vmatprep.subr.mxu0 0.0
    %1960 = vmatpush1.msra.mxu0 0.0
    %1961 = vmatprep.subr.mxu0 0.0
    %1962 = vmatpush1.msra.mxu0 0.0
    %1963 = vmatprep.subr.mxu0 0.0
    %1964 = vmatpush1.msra.mxu0 0.0
    %1965 = vmatprep.subr.mxu0 0.0
    %1966 = vmatpush1.msra.mxu0 0.0
    %1967 = vmatprep.subr.mxu0 0.0
    %1968 = vmatpush1.msra.mxu0 0.0
    %1969 = vmatprep.subr.mxu0 0.0
    %1970 = vmatpush1.msra.mxu0 0.0
    %1971 = vmatprep.subr.mxu0 0.0
    %1972 = vmatpush1.msra.mxu0 0.0
    %1973 = vmatprep.subr.mxu0 0.0
    %1974 = vmatpush1.msra.mxu0 0.0
    %1975 = vmatprep.subr.mxu0 0.0
    %1976 = vmatpush1.msra.mxu0 0.0
    %1977 = vmatprep.subr.mxu0 0.0
    %1978 = vmatpush1.msra.mxu0 0.0
    %1979 = vmatprep.subr.mxu0 0.0
    %1980 = vmatpush1.msra.mxu0 0.0
    %1981 = vmatprep.subr.mxu0 0.0
    %1982 = vmatpush1.msra.mxu0 0.0
    %1983 = vmatprep.subr.mxu0 0.0
    %1984 = vmatpush1.msra.mxu0 0.0
    %1985 = vmatprep.subr.mxu0 0.0
    %1986 = vmatpush1.msra.mxu0 0.0
    %1987 = vmatprep.subr.mxu0 0.0
    %1988 = vmatpush1.msra.mxu0 0.0
    %1989 = vmatprep.subr.mxu0 0.0
    %1990 = vmatpush1.msra.mxu0 0.0
    %1991 = vmatprep.subr.mxu0 0.0
    %1992 = vmatpush1.msra.mxu0 0.0
    %1993 = vmatprep.subr.mxu0 0.0
    %1994 = vmatpush1.msra.mxu0 0.0
    %1995 = vmatprep.subr.mxu0 0.0
    %1996 = vmatpush1.msra.mxu0 0.0
    %1997 = vmatprep.mubr.f32.mxu0 0.0
    %1998 = vmatmul.mubr.f32.gmra.mrb[0].mxu0 %v1926
    %v1999 = vpop.f32.mrb[0].mxu0
    %v2000 = vadd.f32 0.0, %v1999
    %v2001 = vpop.f32.mrb[0].mxu0
    %2002 = vmatprep.mubr.f32.mxu0 0.0
    %2003 = vmatmul.mubr.f32.gmra.mrb[0].mxu0 %v1929
    %v2004 = vpop.f32.mrb[0].mxu0
    %v2005 = vadd.f32 0.0, %v2004
    %v2006 = vpop.f32.mrb[0].mxu0
    %2007 = vdwg.mxu0
    %2008 = vrot.lane.b32.xlu0 %v1799, 120
    %v2009 = vpop.permute.xlu0 %2008
    %2010 = vrot.lane.b32.xlu0 %v1804, 120
    %v2011 = vpop.permute.xlu0 %2010
    %2012 = vrot.lane.b32.xlu0 %v1799, 88
    %v2013 = vpop.permute.xlu0 %2012
    %2014 = vrot.lane.b32.xlu0 %v1804, 88
    %v2015 = vpop.permute.xlu0 %2014
    %v2016 = vsel %vm502, %v2009, 0
    %v2018 = vsel %vm502, %v2011, 0
    %v2020 = vsel %vm502, %v2013, 0
    %v2022 = vsel %vm502, %v2015, 0
    %2024 = vmatprep.subr.mxu0 0.0
    %2025 = vmatpush1.xpose.msra.mxu0 %v2020
    %2026 = vmatprep.subr.mxu0 0.0
    %2027 = vmatpush1.xpose.msra.mxu0 %v2022
    %2028 = vmatprep.subr.mxu0 0.0
    %2029 = vmatpush1.xpose.msra.mxu0 0.0
    %2030 = vmatprep.subr.mxu0 0.0
    %2031 = vmatpush1.xpose.msra.mxu0 0.0
    %2032 = vmatprep.subr.mxu0 0.0
    %2033 = vmatpush1.xpose.msra.mxu0 0.0
    %2034 = vmatprep.subr.mxu0 0.0
    %2035 = vmatpush1.xpose.msra.mxu0 0.0
    %2036 = vmatprep.subr.mxu0 0.0
    %2037 = vmatpush1.xpose.msra.mxu0 0.0
    %2038 = vmatprep.subr.mxu0 0.0
    %2039 = vmatpush1.xpose.msra.mxu0 0.0
    %2040 = vmatprep.subr.mxu0 0.0
    %2041 = vmatpush1.xpose.msra.mxu0 0.0
    %2042 = vmatprep.subr.mxu0 0.0
    %2043 = vmatpush1.xpose.msra.mxu0 0.0
    %2044 = vmatprep.subr.mxu0 0.0
    %2045 = vmatpush1.xpose.msra.mxu0 0.0
    %2046 = vmatprep.subr.mxu0 0.0
    %2047 = vmatpush1.xpose.msra.mxu0 0.0
    %2048 = vmatprep.subr.mxu0 0.0
    %2049 = vmatpush1.xpose.msra.mxu0 0.0
    %2050 = vmatprep.subr.mxu0 0.0
    %2051 = vmatpush1.xpose.msra.mxu0 0.0
    %2052 = vmatprep.subr.mxu0 0.0
    %2053 = vmatpush1.xpose.msra.mxu0 0.0
    %2054 = vmatprep.subr.mxu0 0.0
    %2055 = vmatpush1.xpose.msra.mxu0 0.0
    %2056 = vmatprep.subr.mxu0 0.0
    %2057 = vmatpush1.xpose.msra.mxu0 0.0
    %2058 = vmatprep.subr.mxu0 0.0
    %2059 = vmatpush1.xpose.msra.mxu0 0.0
    %2060 = vmatprep.subr.mxu0 0.0
    %2061 = vmatpush1.xpose.msra.mxu0 0.0
    %2062 = vmatprep.subr.mxu0 0.0
    %2063 = vmatpush1.xpose.msra.mxu0 0.0
    %2064 = vmatprep.subr.mxu0 0.0
    %2065 = vmatpush1.xpose.msra.mxu0 0.0
    %2066 = vmatprep.subr.mxu0 0.0
    %2067 = vmatpush1.xpose.msra.mxu0 0.0
    %2068 = vmatprep.subr.mxu0 0.0
    %2069 = vmatpush1.xpose.msra.mxu0 0.0
    %2070 = vmatprep.subr.mxu0 0.0
    %2071 = vmatpush1.xpose.msra.mxu0 0.0
    %2072 = vmatprep.subr.mxu0 0.0
    %2073 = vmatpush1.xpose.msra.mxu0 0.0
    %2074 = vmatprep.subr.mxu0 0.0
    %2075 = vmatpush1.xpose.msra.mxu0 0.0
    %2076 = vmatprep.subr.mxu0 0.0
    %2077 = vmatpush1.xpose.msra.mxu0 0.0
    %2078 = vmatprep.subr.mxu0 0.0
    %2079 = vmatpush1.xpose.msra.mxu0 0.0
    %2080 = vmatprep.subr.mxu0 0.0
    %2081 = vmatpush1.xpose.msra.mxu0 0.0
    %2082 = vmatprep.subr.mxu0 0.0
    %2083 = vmatpush1.xpose.msra.mxu0 0.0
    %2084 = vmatprep.subr.mxu0 0.0
    %2085 = vmatpush1.xpose.msra.mxu0 0.0
    %2086 = vmatprep.subr.mxu0 0.0
    %2087 = vmatpush1.xpose.msra.mxu0 0.0
    %2088 = vmatprep.mubr.f32.mxu0 0.0
    %2089 = vmatmul.mubr.f32.gmra.mrb[0].mxu0 %v2016
    %v2090 = vpop.f32.mrb[0].mxu0
    %v2091 = vadd.f32 0.0, %v2090
    %v2092 = vpop.f32.mrb[0].mxu0
    %2093 = vmatprep.mubr.f32.mxu0 0.0
    %2094 = vmatmul.mubr.f32.gmra.mrb[0].mxu0 %v2018
    %v2095 = vpop.f32.mrb[0].mxu0
    %v2096 = vadd.f32 0.0, %v2095
    %v2097 = vpop.f32.mrb[0].mxu0
    %2098 = vdwg.mxu0
    %v2099 = vmul.f32 %v2091, 0.35355338
    %v2100 = vmul.f32 %v2096, 0.35355338
    %v2101 = vsel %vm588, %v2099, -inf
    %2102 = vmax.xlane.f32.xlu0 %v2101
    %v2103 = vpop.xlane.xlu0 %2102
    %v2104 = vsel %vm592, %v2100, -inf
    %2105 = vmax.xlane.f32.xlu0 %v2104
    %v2106 = vpop.xlane.xlu0 %2105
    %v2107 = vsub.f32 %v2099, %v2103
    %v2108 = vsub.f32 %v2100, %v2106
    %v2109 = vmul.f32 %v2107, 1.442695
    %v2110 = vpow.pop %v2109
    %v2111 = vmul.f32 %v2108, 1.442695
    %v2112 = vpow.pop %v2111
    %v2113 = vsel %vm588, %v2110, 0.0
    %2114 = vadd.xlane.f32.xlu0 %v2113
    %v2115 = vpop.xlane.xlu0 %2114
    %v2116 = vsel %vm592, %v2112, 0.0
    %2117 = vadd.xlane.f32.xlu0 %v2116
    %v2118 = vpop.xlane.xlu0 %2117
    %v2119 = vrcp.pop %v2115
    %v2120 = vrcp.pop %v2118
    %v2121 = vmul.f32 %v2110, %v2119
    %v2122 = vmul.f32 %v2112, %v2120
    %2123 = vrot.lane.b32.xlu0 %v1799, 56
    %v2124 = vpop.permute.xlu0 %2123
    %2125 = vrot.lane.b32.xlu0 %v1804, 56
    %v2126 = vpop.permute.xlu0 %2125
    %v2129 = vsel %vm588, %v2121, 0
    %v2132 = vsel %vm588, %v2122, 0
    %v2134 = vsel %vm623, %v2126, 0
    %2136 = vmatprep.subr.mxu0 0.0
    %2137 = vmatpush1.msra.mxu0 %v2124
    %2138 = vmatprep.subr.mxu0 0.0
    %2139 = vmatpush1.msra.mxu0 %v2134
    %2140 = vmatprep.subr.mxu0 0.0
    %2141 = vmatpush1.msra.mxu0 0.0
    %2142 = vmatprep.subr.mxu0 0.0
    %2143 = vmatpush1.msra.mxu0 0.0
    %2144 = vmatprep.subr.mxu0 0.0
    %2145 = vmatpush1.msra.mxu0 0.0
    %2146 = vmatprep.subr.mxu0 0.0
    %2147 = vmatpush1.msra.mxu0 0.0
    %2148 = vmatprep.subr.mxu0 0.0
    %2149 = vmatpush1.msra.mxu0 0.0
    %2150 = vmatprep.subr.mxu0 0.0
    %2151 = vmatpush1.msra.mxu0 0.0
    %2152 = vmatprep.subr.mxu0 0.0
    %2153 = vmatpush1.msra.mxu0 0.0
    %2154 = vmatprep.subr.mxu0 0.0
    %2155 = vmatpush1.msra.mxu0 0.0
    %2156 = vmatprep.subr.mxu0 0.0
    %2157 = vmatpush1.msra.mxu0 0.0
    %2158 = vmatprep.subr.mxu0 0.0
    %2159 = vmatpush1.msra.mxu0 0.0
    %2160 = vmatprep.subr.mxu0 0.0
    %2161 = vmatpush1.msra.mxu0 0.0
    %2162 = vmatprep.subr.mxu0 0.0
    %2163 = vmatpush1.msra.mxu0 0.0
    %2164 = vmatprep.subr.mxu0 0.0
    %2165 = vmatpush1.msra.mxu0 0.0
    %2166 = vmatprep.subr.mxu0 0.0
    %2167 = vmatpush1.msra.mxu0 0.0
    %2168 = vmatprep.subr.mxu0 0.0
    %2169 = vmatpush1.msra.mxu0 0.0
    %2170 = vmatprep.subr.mxu0 0.0
    %2171 = vmatpush1.msra.mxu0 0.0
    %2172 = vmatprep.subr.mxu0 0.0
    %2173 = vmatpush1.msra.mxu0 0.0
    %2174 = vmatprep.subr.mxu0 0.0
    %2175 = vmatpush1.msra.mxu0 0.0
    %2176 = vmatprep.subr.mxu0 0.0
    %2177 = vmatpush1.msra.mxu0 0.0
    %2178 = vmatprep.subr.mxu0 0.0
    %2179 = vmatpush1.msra.mxu0 0.0
    %2180 = vmatprep.subr.mxu0 0.0
    %2181 = vmatpush1.msra.mxu0 0.0
    %2182 = vmatprep.subr.mxu0 0.0
    %2183 = vmatpush1.msra.mxu0 0.0
    %2184 = vmatprep.subr.mxu0 0.0
    %2185 = vmatpush1.msra.mxu0 0.0
    %2186 = vmatprep.subr.mxu0 0.0
    %2187 = vmatpush1.msra.mxu0 0.0
    %2188 = vmatprep.subr.mxu0 0.0
    %2189 = vmatpush1.msra.mxu0 0.0
    %2190 = vmatprep.subr.mxu0 0.0
    %2191 = vmatpush1.msra.mxu0 0.0
    %2192 = vmatprep.subr.mxu0 0.0
    %2193 = vmatpush1.msra.mxu0 0.0
    %2194 = vmatprep.subr.mxu0 0.0
    %2195 = vmatpush1.msra.mxu0 0.0
    %2196 = vmatprep.subr.mxu0 0.0
    %2197 = vmatpush1.msra.mxu0 0.0
    %2198 = vmatprep.subr.mxu0 0.0
    %2199 = vmatpush1.msra.mxu0 0.0
    %2200 = vmatprep.mubr.f32.mxu0 0.0
    %2201 = vmatmul.mubr.f32.gmra.mrb[0].mxu0 %v2129
    %v2202 = vpop.f32.mrb[0].mxu0
    %v2203 = vadd.f32 0.0, %v2202
    %v2204 = vpop.f32.mrb[0].mxu0
    %2205 = vmatprep.mubr.f32.mxu0 0.0
    %2206 = vmatmul.mubr.f32.gmra.mrb[0].mxu0 %v2132
    %v2207 = vpop.f32.mrb[0].mxu0
    %v2208 = vadd.f32 0.0, %v2207
    %v2209 = vpop.f32.mrb[0].mxu0
    %2210 = vdwg.mxu0
    %2211 = vrot.lane.b32.xlu0 %v1799, 112
    %v2212 = vpop.permute.xlu0 %2211
    %2213 = vrot.lane.b32.xlu0 %v1804, 112
    %v2214 = vpop.permute.xlu0 %2213
    %2215 = vrot.lane.b32.xlu0 %v1799, 80
    %v2216 = vpop.permute.xlu0 %2215
    %2217 = vrot.lane.b32.xlu0 %v1804, 80
    %v2218 = vpop.permute.xlu0 %2217
    %v2219 = vsel %vm502, %v2212, 0
    %v2221 = vsel %vm502, %v2214, 0
    %v2223 = vsel %vm502, %v2216, 0
    %v2225 = vsel %vm502, %v2218, 0
    %2227 = vmatprep.subr.mxu0 0.0
    %2228 = vmatpush1.xpose.msra.mxu0 %v2223
    %2229 = vmatprep.subr.mxu0 0.0
    %2230 = vmatpush1.xpose.msra.mxu0 %v2225
    %2231 = vmatprep.subr.mxu0 0.0
    %2232 = vmatpush1.xpose.msra.mxu0 0.0
    %2233 = vmatprep.subr.mxu0 0.0
    %2234 = vmatpush1.xpose.msra.mxu0 0.0
    %2235 = vmatprep.subr.mxu0 0.0
    %2236 = vmatpush1.xpose.msra.mxu0 0.0
    %2237 = vmatprep.subr.mxu0 0.0
    %2238 = vmatpush1.xpose.msra.mxu0 0.0
    %2239 = vmatprep.subr.mxu0 0.0
    %2240 = vmatpush1.xpose.msra.mxu0 0.0
    %2241 = vmatprep.subr.mxu0 0.0
    %2242 = vmatpush1.xpose.msra.mxu0 0.0
    %2243 = vmatprep.subr.mxu0 0.0
    %2244 = vmatpush1.xpose.msra.mxu0 0.0
    %2245 = vmatprep.subr.mxu0 0.0
    %2246 = vmatpush1.xpose.msra.mxu0 0.0
    %2247 = vmatprep.subr.mxu0 0.0
    %2248 = vmatpush1.xpose.msra.mxu0 0.0
    %2249 = vmatprep.subr.mxu0 0.0
    %2250 = vmatpush1.xpose.msra.mxu0 0.0
    %2251 = vmatprep.subr.mxu0 0.0
    %2252 = vmatpush1.xpose.msra.mxu0 0.0
    %2253 = vmatprep.subr.mxu0 0.0
    %2254 = vmatpush1.xpose.msra.mxu0 0.0
    %2255 = vmatprep.subr.mxu0 0.0
    %2256 = vmatpush1.xpose.msra.mxu0 0.0
    %2257 = vmatprep.subr.mxu0 0.0
    %2258 = vmatpush1.xpose.msra.mxu0 0.0
    %2259 = vmatprep.subr.mxu0 0.0
    %2260 = vmatpush1.xpose.msra.mxu0 0.0
    %2261 = vmatprep.subr.mxu0 0.0
    %2262 = vmatpush1.xpose.msra.mxu0 0.0
    %2263 = vmatprep.subr.mxu0 0.0
    %2264 = vmatpush1.xpose.msra.mxu0 0.0
    %2265 = vmatprep.subr.mxu0 0.0
    %2266 = vmatpush1.xpose.msra.mxu0 0.0
    %2267 = vmatprep.subr.mxu0 0.0
    %2268 = vmatpush1.xpose.msra.mxu0 0.0
    %2269 = vmatprep.subr.mxu0 0.0
    %2270 = vmatpush1.xpose.msra.mxu0 0.0
    %2271 = vmatprep.subr.mxu0 0.0
    %2272 = vmatpush1.xpose.msra.mxu0 0.0
    %2273 = vmatprep.subr.mxu0 0.0
    %2274 = vmatpush1.xpose.msra.mxu0 0.0
    %2275 = vmatprep.subr.mxu0 0.0
    %2276 = vmatpush1.xpose.msra.mxu0 0.0
    %2277 = vmatprep.subr.mxu0 0.0
    %2278 = vmatpush1.xpose.msra.mxu0 0.0
    %2279 = vmatprep.subr.mxu0 0.0
    %2280 = vmatpush1.xpose.msra.mxu0 0.0
    %2281 = vmatprep.subr.mxu0 0.0
    %2282 = vmatpush1.xpose.msra.mxu0 0.0
    %2283 = vmatprep.subr.mxu0 0.0
    %2284 = vmatpush1.xpose.msra.mxu0 0.0
    %2285 = vmatprep.subr.mxu0 0.0
    %2286 = vmatpush1.xpose.msra.mxu0 0.0
    %2287 = vmatprep.subr.mxu0 0.0
    %2288 = vmatpush1.xpose.msra.mxu0 0.0
    %2289 = vmatprep.subr.mxu0 0.0
    %2290 = vmatpush1.xpose.msra.mxu0 0.0
    %2291 = vmatprep.mubr.f32.mxu0 0.0
    %2292 = vmatmul.mubr.f32.gmra.mrb[0].mxu0 %v2219
    %v2293 = vpop.f32.mrb[0].mxu0
    %v2294 = vadd.f32 0.0, %v2293
    %v2295 = vpop.f32.mrb[0].mxu0
    %2296 = vmatprep.mubr.f32.mxu0 0.0
    %2297 = vmatmul.mubr.f32.gmra.mrb[0].mxu0 %v2221
    %v2298 = vpop.f32.mrb[0].mxu0
    %v2299 = vadd.f32 0.0, %v2298
    %v2300 = vpop.f32.mrb[0].mxu0
    %2301 = vdwg.mxu0
    %v2302 = vmul.f32 %v2294, 0.35355338
    %v2303 = vmul.f32 %v2299, 0.35355338
    %v2304 = vsel %vm588, %v2302, -inf
    %2305 = vmax.xlane.f32.xlu0 %v2304
    %v2306 = vpop.xlane.xlu0 %2305
    %v2307 = vsel %vm592, %v2303, -inf
    %2308 = vmax.xlane.f32.xlu0 %v2307
    %v2309 = vpop.xlane.xlu0 %2308
    %v2310 = vsub.f32 %v2302, %v2306
    %v2311 = vsub.f32 %v2303, %v2309
    %v2312 = vmul.f32 %v2310, 1.442695
    %v2313 = vpow.pop %v2312
    %v2314 = vmul.f32 %v2311, 1.442695
    %v2315 = vpow.pop %v2314
    %v2316 = vsel %vm588, %v2313, 0.0
    %2317 = vadd.xlane.f32.xlu0 %v2316
    %v2318 = vpop.xlane.xlu0 %2317
    %v2319 = vsel %vm592, %v2315, 0.0
    %2320 = vadd.xlane.f32.xlu0 %v2319
    %v2321 = vpop.xlane.xlu0 %2320
    %v2322 = vrcp.pop %v2318
    %v2323 = vrcp.pop %v2321
    %v2324 = vmul.f32 %v2313, %v2322
    %v2325 = vmul.f32 %v2315, %v2323
    %2326 = vrot.lane.b32.xlu0 %v1799, 48
    %v2327 = vpop.permute.xlu0 %2326
    %2328 = vrot.lane.b32.xlu0 %v1804, 48
    %v2329 = vpop.permute.xlu0 %2328
    %v2332 = vsel %vm588, %v2324, 0
    %v2335 = vsel %vm588, %v2325, 0
    %v2337 = vsel %vm623, %v2329, 0
    %2339 = vmatprep.subr.mxu0 0.0
    %2340 = vmatpush1.msra.mxu0 %v2327
    %2341 = vmatprep.subr.mxu0 0.0
    %2342 = vmatpush1.msra.mxu0 %v2337
    %2343 = vmatprep.subr.mxu0 0.0
    %2344 = vmatpush1.msra.mxu0 0.0
    %2345 = vmatprep.subr.mxu0 0.0
    %2346 = vmatpush1.msra.mxu0 0.0
    %2347 = vmatprep.subr.mxu0 0.0
    %2348 = vmatpush1.msra.mxu0 0.0
    %2349 = vmatprep.subr.mxu0 0.0
    %2350 = vmatpush1.msra.mxu0 0.0
    %2351 = vmatprep.subr.mxu0 0.0
    %2352 = vmatpush1.msra.mxu0 0.0
    %2353 = vmatprep.subr.mxu0 0.0
    %2354 = vmatpush1.msra.mxu0 0.0
    %2355 = vmatprep.subr.mxu0 0.0
    %2356 = vmatpush1.msra.mxu0 0.0
    %2357 = vmatprep.subr.mxu0 0.0
    %2358 = vmatpush1.msra.mxu0 0.0
    %2359 = vmatprep.subr.mxu0 0.0
    %2360 = vmatpush1.msra.mxu0 0.0
    %2361 = vmatprep.subr.mxu0 0.0
    %2362 = vmatpush1.msra.mxu0 0.0
    %2363 = vmatprep.subr.mxu0 0.0
    %2364 = vmatpush1.msra.mxu0 0.0
    %2365 = vmatprep.subr.mxu0 0.0
    %2366 = vmatpush1.msra.mxu0 0.0
    %2367 = vmatprep.subr.mxu0 0.0
    %2368 = vmatpush1.msra.mxu0 0.0
    %2369 = vmatprep.subr.mxu0 0.0
    %2370 = vmatpush1.msra.mxu0 0.0
    %2371 = vmatprep.subr.mxu0 0.0
    %2372 = vmatpush1.msra.mxu0 0.0
    %2373 = vmatprep.subr.mxu0 0.0
    %2374 = vmatpush1.msra.mxu0 0.0
    %2375 = vmatprep.subr.mxu0 0.0
    %2376 = vmatpush1.msra.mxu0 0.0
    %2377 = vmatprep.subr.mxu0 0.0
    %2378 = vmatpush1.msra.mxu0 0.0
    %2379 = vmatprep.subr.mxu0 0.0
    %2380 = vmatpush1.msra.mxu0 0.0
    %2381 = vmatprep.subr.mxu0 0.0
    %2382 = vmatpush1.msra.mxu0 0.0
    %2383 = vmatprep.subr.mxu0 0.0
    %2384 = vmatpush1.msra.mxu0 0.0
    %2385 = vmatprep.subr.mxu0 0.0
    %2386 = vmatpush1.msra.mxu0 0.0
    %2387 = vmatprep.subr.mxu0 0.0
    %2388 = vmatpush1.msra.mxu0 0.0
    %2389 = vmatprep.subr.mxu0 0.0
    %2390 = vmatpush1.msra.mxu0 0.0
    %2391 = vmatprep.subr.mxu0 0.0
    %2392 = vmatpush1.msra.mxu0 0.0
    %2393 = vmatprep.subr.mxu0 0.0
    %2394 = vmatpush1.msra.mxu0 0.0
    %2395 = vmatprep.subr.mxu0 0.0
    %2396 = vmatpush1.msra.mxu0 0.0
    %2397 = vmatprep.subr.mxu0 0.0
    %2398 = vmatpush1.msra.mxu0 0.0
    %2399 = vmatprep.subr.mxu0 0.0
    %2400 = vmatpush1.msra.mxu0 0.0
    %2401 = vmatprep.subr.mxu0 0.0
    %2402 = vmatpush1.msra.mxu0 0.0
    %2403 = vmatprep.mubr.f32.mxu0 0.0
    %2404 = vmatmul.mubr.f32.gmra.mrb[0].mxu0 %v2332
    %v2405 = vpop.f32.mrb[0].mxu0
    %v2406 = vadd.f32 0.0, %v2405
    %v2407 = vpop.f32.mrb[0].mxu0
    %2408 = vmatprep.mubr.f32.mxu0 0.0
    %2409 = vmatmul.mubr.f32.gmra.mrb[0].mxu0 %v2335
    %v2410 = vpop.f32.mrb[0].mxu0
    %v2411 = vadd.f32 0.0, %v2410
    %v2412 = vpop.f32.mrb[0].mxu0
    %2413 = vdwg.mxu0
    %2414 = vrot.lane.b32.xlu0 %v1799, 104
    %v2415 = vpop.permute.xlu0 %2414
    %2416 = vrot.lane.b32.xlu0 %v1804, 104
    %v2417 = vpop.permute.xlu0 %2416
    %2418 = vrot.lane.b32.xlu0 %v1799, 72
    %v2419 = vpop.permute.xlu0 %2418
    %2420 = vrot.lane.b32.xlu0 %v1804, 72
    %v2421 = vpop.permute.xlu0 %2420
    %v2422 = vsel %vm502, %v2415, 0
    %v2424 = vsel %vm502, %v2417, 0
    %v2426 = vsel %vm502, %v2419, 0
    %v2428 = vsel %vm502, %v2421, 0
    %2430 = vmatprep.subr.mxu0 0.0
    %2431 = vmatpush1.xpose.msra.mxu0 %v2426
    %2432 = vmatprep.subr.mxu0 0.0
    %2433 = vmatpush1.xpose.msra.mxu0 %v2428
    %2434 = vmatprep.subr.mxu0 0.0
    %2435 = vmatpush1.xpose.msra.mxu0 0.0
    %2436 = vmatprep.subr.mxu0 0.0
    %2437 = vmatpush1.xpose.msra.mxu0 0.0
    %2438 = vmatprep.subr.mxu0 0.0
    %2439 = vmatpush1.xpose.msra.mxu0 0.0
    %2440 = vmatprep.subr.mxu0 0.0
    %2441 = vmatpush1.xpose.msra.mxu0 0.0
    %2442 = vmatprep.subr.mxu0 0.0
    %2443 = vmatpush1.xpose.msra.mxu0 0.0
    %2444 = vmatprep.subr.mxu0 0.0
    %2445 = vmatpush1.xpose.msra.mxu0 0.0
    %2446 = vmatprep.subr.mxu0 0.0
    %2447 = vmatpush1.xpose.msra.mxu0 0.0
    %2448 = vmatprep.subr.mxu0 0.0
    %2449 = vmatpush1.xpose.msra.mxu0 0.0
    %2450 = vmatprep.subr.mxu0 0.0
    %2451 = vmatpush1.xpose.msra.mxu0 0.0
    %2452 = vmatprep.subr.mxu0 0.0
    %2453 = vmatpush1.xpose.msra.mxu0 0.0
    %2454 = vmatprep.subr.mxu0 0.0
    %2455 = vmatpush1.xpose.msra.mxu0 0.0
    %2456 = vmatprep.subr.mxu0 0.0
    %2457 = vmatpush1.xpose.msra.mxu0 0.0
    %2458 = vmatprep.subr.mxu0 0.0
    %2459 = vmatpush1.xpose.msra.mxu0 0.0
    %2460 = vmatprep.subr.mxu0 0.0
    %2461 = vmatpush1.xpose.msra.mxu0 0.0
    %2462 = vmatprep.subr.mxu0 0.0
    %2463 = vmatpush1.xpose.msra.mxu0 0.0
    %2464 = vmatprep.subr.mxu0 0.0
    %2465 = vmatpush1.xpose.msra.mxu0 0.0
    %2466 = vmatprep.subr.mxu0 0.0
    %2467 = vmatpush1.xpose.msra.mxu0 0.0
    %2468 = vmatprep.subr.mxu0 0.0
    %2469 = vmatpush1.xpose.msra.mxu0 0.0
    %2470 = vmatprep.subr.mxu0 0.0
    %2471 = vmatpush1.xpose.msra.mxu0 0.0
    %2472 = vmatprep.subr.mxu0 0.0
    %2473 = vmatpush1.xpose.msra.mxu0 0.0
    %2474 = vmatprep.subr.mxu0 0.0
    %2475 = vmatpush1.xpose.msra.mxu0 0.0
    %2476 = vmatprep.subr.mxu0 0.0
    %2477 = vmatpush1.xpose.msra.mxu0 0.0
    %2478 = vmatprep.subr.mxu0 0.0
    %2479 = vmatpush1.xpose.msra.mxu0 0.0
    %2480 = vmatprep.subr.mxu0 0.0
    %2481 = vmatpush1.xpose.msra.mxu0 0.0
    %2482 = vmatprep.subr.mxu0 0.0
    %2483 = vmatpush1.xpose.msra.mxu0 0.0
    %2484 = vmatprep.subr.mxu0 0.0
    %2485 = vmatpush1.xpose.msra.mxu0 0.0
    %2486 = vmatprep.subr.mxu0 0.0
    %2487 = vmatpush1.xpose.msra.mxu0 0.0
    %2488 = vmatprep.subr.mxu0 0.0
    %2489 = vmatpush1.xpose.msra.mxu0 0.0
    %2490 = vmatprep.subr.mxu0 0.0
    %2491 = vmatpush1.xpose.msra.mxu0 0.0
    %2492 = vmatprep.subr.mxu0 0.0
    %2493 = vmatpush1.xpose.msra.mxu0 0.0
    %2494 = vmatprep.mubr.f32.mxu0 0.0
    %2495 = vmatmul.mubr.f32.gmra.mrb[0].mxu0 %v2422
    %v2496 = vpop.f32.mrb[0].mxu0
    %v2497 = vadd.f32 0.0, %v2496
    %v2498 = vpop.f32.mrb[0].mxu0
    %2499 = vmatprep.mubr.f32.mxu0 0.0
    %2500 = vmatmul.mubr.f32.gmra.mrb[0].mxu0 %v2424
    %v2501 = vpop.f32.mrb[0].mxu0
    %v2502 = vadd.f32 0.0, %v2501
    %v2503 = vpop.f32.mrb[0].mxu0
    %2504 = vdwg.mxu0
    %v2505 = vmul.f32 %v2497, 0.35355338
    %v2506 = vmul.f32 %v2502, 0.35355338
    %v2507 = vsel %vm588, %v2505, -inf
    %2508 = vmax.xlane.f32.xlu0 %v2507
    %v2509 = vpop.xlane.xlu0 %2508
    %v2510 = vsel %vm592, %v2506, -inf
    %2511 = vmax.xlane.f32.xlu0 %v2510
    %v2512 = vpop.xlane.xlu0 %2511
    %v2513 = vsub.f32 %v2505, %v2509
    %v2514 = vsub.f32 %v2506, %v2512
    %v2515 = vmul.f32 %v2513, 1.442695
    %v2516 = vpow.pop %v2515
    %v2517 = vmul.f32 %v2514, 1.442695
    %v2518 = vpow.pop %v2517
    %v2519 = vsel %vm588, %v2516, 0.0
    %2520 = vadd.xlane.f32.xlu0 %v2519
    %v2521 = vpop.xlane.xlu0 %2520
    %v2522 = vsel %vm592, %v2518, 0.0
    %2523 = vadd.xlane.f32.xlu0 %v2522
    %v2524 = vpop.xlane.xlu0 %2523
    %v2525 = vrcp.pop %v2521
    %v2526 = vrcp.pop %v2524
    %v2527 = vmul.f32 %v2516, %v2525
    %v2528 = vmul.f32 %v2518, %v2526
    %2529 = vrot.lane.b32.xlu0 %v1799, 40
    %v2530 = vpop.permute.xlu0 %2529
    %2531 = vrot.lane.b32.xlu0 %v1804, 40
    %v2532 = vpop.permute.xlu0 %2531
    %v2535 = vsel %vm588, %v2527, 0
    %v2538 = vsel %vm588, %v2528, 0
    %v2540 = vsel %vm623, %v2532, 0
    %2542 = vmatprep.subr.mxu0 0.0
    %2543 = vmatpush1.msra.mxu0 %v2530
    %2544 = vmatprep.subr.mxu0 0.0
    %2545 = vmatpush1.msra.mxu0 %v2540
    %2546 = vmatprep.subr.mxu0 0.0
    %2547 = vmatpush1.msra.mxu0 0.0
    %2548 = vmatprep.subr.mxu0 0.0
    %2549 = vmatpush1.msra.mxu0 0.0
    %2550 = vmatprep.subr.mxu0 0.0
    %2551 = vmatpush1.msra.mxu0 0.0
    %2552 = vmatprep.subr.mxu0 0.0
    %2553 = vmatpush1.msra.mxu0 0.0
    %2554 = vmatprep.subr.mxu0 0.0
    %2555 = vmatpush1.msra.mxu0 0.0
    %2556 = vmatprep.subr.mxu0 0.0
    %2557 = vmatpush1.msra.mxu0 0.0
    %2558 = vmatprep.subr.mxu0 0.0
    %2559 = vmatpush1.msra.mxu0 0.0
    %2560 = vmatprep.subr.mxu0 0.0
    %2561 = vmatpush1.msra.mxu0 0.0
    %2562 = vmatprep.subr.mxu0 0.0
    %2563 = vmatpush1.msra.mxu0 0.0
    %2564 = vmatprep.subr.mxu0 0.0
    %2565 = vmatpush1.msra.mxu0 0.0
    %2566 = vmatprep.subr.mxu0 0.0
    %2567 = vmatpush1.msra.mxu0 0.0
    %2568 = vmatprep.subr.mxu0 0.0
    %2569 = vmatpush1.msra.mxu0 0.0
    %2570 = vmatprep.subr.mxu0 0.0
    %2571 = vmatpush1.msra.mxu0 0.0
    %2572 = vmatprep.subr.mxu0 0.0
    %2573 = vmatpush1.msra.mxu0 0.0
    %2574 = vmatprep.subr.mxu0 0.0
    %2575 = vmatpush1.msra.mxu0 0.0
    %2576 = vmatprep.subr.mxu0 0.0
    %2577 = vmatpush1.msra.mxu0 0.0
    %2578 = vmatprep.subr.mxu0 0.0
    %2579 = vmatpush1.msra.mxu0 0.0
    %2580 = vmatprep.subr.mxu0 0.0
    %2581 = vmatpush1.msra.mxu0 0.0
    %2582 = vmatprep.subr.mxu0 0.0
    %2583 = vmatpush1.msra.mxu0 0.0
    %2584 = vmatprep.subr.mxu0 0.0
    %2585 = vmatpush1.msra.mxu0 0.0
    %2586 = vmatprep.subr.mxu0 0.0
    %2587 = vmatpush1.msra.mxu0 0.0
    %2588 = vmatprep.subr.mxu0 0.0
    %2589 = vmatpush1.msra.mxu0 0.0
    %2590 = vmatprep.subr.mxu0 0.0
    %2591 = vmatpush1.msra.mxu0 0.0
    %2592 = vmatprep.subr.mxu0 0.0
    %2593 = vmatpush1.msra.mxu0 0.0
    %2594 = vmatprep.subr.mxu0 0.0
    %2595 = vmatpush1.msra.mxu0 0.0
    %2596 = vmatprep.subr.mxu0 0.0
    %2597 = vmatpush1.msra.mxu0 0.0
    %2598 = vmatprep.subr.mxu0 0.0
    %2599 = vmatpush1.msra.mxu0 0.0
    %2600 = vmatprep.subr.mxu0 0.0
    %2601 = vmatpush1.msra.mxu0 0.0
    %2602 = vmatprep.subr.mxu0 0.0
    %2603 = vmatpush1.msra.mxu0 0.0
    %2604 = vmatprep.subr.mxu0 0.0
    %2605 = vmatpush1.msra.mxu0 0.0
    %2606 = vmatprep.mubr.f32.mxu0 0.0
    %2607 = vmatmul.mubr.f32.gmra.mrb[0].mxu0 %v2535
    %v2608 = vpop.f32.mrb[0].mxu0
    %v2609 = vadd.f32 0.0, %v2608
    %v2610 = vpop.f32.mrb[0].mxu0
    %2611 = vmatprep.mubr.f32.mxu0 0.0
    %2612 = vmatmul.mubr.f32.gmra.mrb[0].mxu0 %v2538
    %v2613 = vpop.f32.mrb[0].mxu0
    %v2614 = vadd.f32 0.0, %v2613
    %v2615 = vpop.f32.mrb[0].mxu0
    %2616 = vdwg.mxu0
    %2619 = vrot.lane.b32.xlu0 %v2203, 8
    %v2620 = vpop.permute.xlu0 %2619
    %2621 = vrot.lane.b32.xlu0 %v2208, 8
    %v2622 = vpop.permute.xlu0 %2621
    %2627 = vrot.lane.b32.xlu0 %v2406, 16
    %v2628 = vpop.permute.xlu0 %2627
    %2629 = vrot.lane.b32.xlu0 %v2411, 16
    %v2630 = vpop.permute.xlu0 %2629
    %2635 = vrot.lane.b32.xlu0 %v2609, 24
    %v2636 = vpop.permute.xlu0 %2635
    %2637 = vrot.lane.b32.xlu0 %v2614, 24
    %v2638 = vpop.permute.xlu0 %2637
    %v2641 = vsel %vm502, %v2000, %v2620
    %v2642 = vsel %vm502, %v2005, %v2622
    %v2643 = vsel %vm264, %v2641, %v2628
    %v2644 = vsel %vm264, %v2642, %v2630
    %v2645 = vsel %vm1338, %v2643, %v2636
    %v2646 = vsel %vm1338, %v2644, %v2638
    %s2647 = scalar_lea.vmem %s5, 32
    %v2648 = vld [vmem:[%s2647] sm:$0xff]
    %v2649 = vld [vmem:[%s2647 + $0x8] sm:$0xff]
    %v2650 = vld [vmem:[%s2647 + $0x10] sm:$0xff]
    %v2651 = vld [vmem:[%s2647 + $0x18] sm:$0xff]
    %s2652 = scalar_lea.vmem [#allocation7], 1
    %v2653 = vld [vmem:[%s2652] sm:$0x1]
    %v2655 = vlaneseq
    %v2656 = vshrl.u32 %v2655, 7
    %v2657 = vsub.s32 0, %v2656
    %v2658 = vrot.slane %v2653, %v2657
    %v2661 = vsel %vm414, %v2645, 0
    %v2664 = vsel %vm414, %v2646, 0
    %2666 = vmatprep.subr.mxu0 0.0
    %2667 = vmatpush1.msra.mxu0 %v2648
    %2668 = vmatprep.subr.mxu0 0.0
    %2669 = vmatpush1.msra.mxu0 %v2649
    %2670 = vmatprep.subr.mxu0 0.0
    %2671 = vmatpush1.msra.mxu0 %v2650
    %2672 = vmatprep.subr.mxu0 0.0
    %2673 = vmatpush1.msra.mxu0 %v2651
    %2674 = vmatprep.subr.mxu0 0.0
    %2675 = vmatpush1.msra.mxu0 0.0
    %2676 = vmatprep.subr.mxu0 0.0
    %2677 = vmatpush1.msra.mxu0 0.0
    %2678 = vmatprep.subr.mxu0 0.0
    %2679 = vmatpush1.msra.mxu0 0.0
    %2680 = vmatprep.subr.mxu0 0.0
    %2681 = vmatpush1.msra.mxu0 0.0
    %2682 = vmatprep.subr.mxu0 0.0
    %2683 = vmatpush1.msra.mxu0 0.0
    %2684 = vmatprep.subr.mxu0 0.0
    %2685 = vmatpush1.msra.mxu0 0.0
    %2686 = vmatprep.subr.mxu0 0.0
    %2687 = vmatpush1.msra.mxu0 0.0
    %2688 = vmatprep.subr.mxu0 0.0
    %2689 = vmatpush1.msra.mxu0 0.0
    %2690 = vmatprep.subr.mxu0 0.0
    %2691 = vmatpush1.msra.mxu0 0.0
    %2692 = vmatprep.subr.mxu0 0.0
    %2693 = vmatpush1.msra.mxu0 0.0
    %2694 = vmatprep.subr.mxu0 0.0
    %2695 = vmatpush1.msra.mxu0 0.0
    %2696 = vmatprep.subr.mxu0 0.0
    %2697 = vmatpush1.msra.mxu0 0.0
    %2698 = vmatprep.subr.mxu0 0.0
    %2699 = vmatpush1.msra.mxu0 0.0
    %2700 = vmatprep.subr.mxu0 0.0
    %2701 = vmatpush1.msra.mxu0 0.0
    %2702 = vmatprep.subr.mxu0 0.0
    %2703 = vmatpush1.msra.mxu0 0.0
    %2704 = vmatprep.subr.mxu0 0.0
    %2705 = vmatpush1.msra.mxu0 0.0
    %2706 = vmatprep.subr.mxu0 0.0
    %2707 = vmatpush1.msra.mxu0 0.0
    %2708 = vmatprep.subr.mxu0 0.0
    %2709 = vmatpush1.msra.mxu0 0.0
    %2710 = vmatprep.subr.mxu0 0.0
    %2711 = vmatpush1.msra.mxu0 0.0
    %2712 = vmatprep.subr.mxu0 0.0
    %2713 = vmatpush1.msra.mxu0 0.0
    %2714 = vmatprep.subr.mxu0 0.0
    %2715 = vmatpush1.msra.mxu0 0.0
    %2716 = vmatprep.subr.mxu0 0.0
    %2717 = vmatpush1.msra.mxu0 0.0
    %2718 = vmatprep.subr.mxu0 0.0
    %2719 = vmatpush1.msra.mxu0 0.0
    %2720 = vmatprep.subr.mxu0 0.0
    %2721 = vmatpush1.msra.mxu0 0.0
    %2722 = vmatprep.subr.mxu0 0.0
    %2723 = vmatpush1.msra.mxu0 0.0
    %2724 = vmatprep.subr.mxu0 0.0
    %2725 = vmatpush1.msra.mxu0 0.0
    %2726 = vmatprep.subr.mxu0 0.0
    %2727 = vmatpush1.msra.mxu0 0.0
    %2728 = vmatprep.subr.mxu0 0.0
    %2729 = vmatpush1.msra.mxu0 0.0
    %2730 = vmatprep.mubr.f32.mxu0 0.0
    %2731 = vmatmul.mubr.f32.gmra.mrb[0].mxu0 %v2661
    %v2732 = vpop.f32.mrb[0].mxu0
    %v2733 = vadd.f32 %v2658, %v2732
    %v2734 = vpop.f32.mrb[0].mxu0
    %2735 = vmatprep.mubr.f32.mxu0 0.0
    %2736 = vmatmul.mubr.f32.gmra.mrb[0].mxu0 %v2664
    %v2737 = vpop.f32.mrb[0].mxu0
    %v2738 = vadd.f32 %v2658, %v2737
    %v2739 = vpop.f32.mrb[0].mxu0
    %2740 = vdwg.mxu0
    %v2741 = vadd.f32 %v1711, %v2733
    %v2742 = vadd.f32 %v1712, %v2738
    %s2743 = scalar_lea.vmem [#allocation15], 1
    %v2744 = vld [vmem:[%s2743] sm:$0x1]
    %s2745 = scalar_lea.vmem [#allocation16], 1
    %v2746 = vld [vmem:[%s2745] sm:$0x1]
    %v2747 = vsel %vm414, %v2741, 0.0
    %2748 = vadd.xlane.f32.xlu0 %v2747
    %v2749 = vpop.xlane.xlu0 %2748
    %v2750 = vsel %vm1440, %v2742, 0.0
    %2751 = vadd.xlane.f32.xlu0 %v2750
    %v2752 = vpop.xlane.xlu0 %2751
    %v2753 = vmul.f32 %v2749, %v1444
    %v2754 = vmul.f32 %v2752, %v1444
    %v2755 = vsub.f32 %v2741, %v2753
    %v2756 = vsub.f32 %v2742, %v2754
    %v2757 = vmul.f32 %v2755, %v2755
    %v2758 = vmul.f32 %v2756, %v2756
    %v2759 = vsel %vm414, %v2757, 0.0
    %2760 = vadd.xlane.f32.xlu0 %v2759
    %v2761 = vpop.xlane.xlu0 %2760
    %v2762 = vsel %vm1440, %v2758, 0.0
    %2763 = vadd.xlane.f32.xlu0 %v2762
    %v2764 = vpop.xlane.xlu0 %2763
    %v2765 = vmul.f32 %v2761, %v1444
    %v2766 = vmul.f32 %v2764, %v1444
    %v2767 = vadd.f32 %v2765, 1e-05
    %v2768 = vadd.f32 %v2766, 1e-05
    %v2769 = vrsqrt.pop %v2767
    %v2770 = vrsqrt.pop %v2768
    %v2771 = vmul.f32 %v2755, %v2769
    %v2772 = vmul.f32 %v2756, %v2770
    %v2774 = vlaneseq
    %v2775 = vshrl.u32 %v2774, 7
    %v2776 = vsub.s32 0, %v2775
    %v2777 = vrot.slane %v2744, %v2776
    %v2779 = vmul.f32 %v2771, %v2777
    %v2780 = vmul.f32 %v2772, %v2777
    %v2782 = vlaneseq
    %v2783 = vshrl.u32 %v2782, 7
    %v2784 = vsub.s32 0, %v2783
    %v2785 = vrot.slane %v2746, %v2784
    %v2787 = vadd.f32 %v2779, %v2785
    %v2788 = vadd.f32 %v2780, %v2785
    %s2789 = scalar_lea.vmem [#allocation9], 32
    %v2790 = vld [vmem:[%s2789] sm:$0xff]
    %v2791 = vld [vmem:[%s2789 + $0x8] sm:$0xff]
    %v2792 = vld [vmem:[%s2789 + $0x10] sm:$0xff]
    %v2793 = vld [vmem:[%s2789 + $0x18] sm:$0xff]
    %s2794 = scalar_lea.vmem [#allocation10], 1
    %v2795 = vld [vmem:[%s2794] sm:$0x1]
    %v2797 = vlaneseq
    %v2798 = vshrl.u32 %v2797, 7
    %v2799 = vsub.s32 0, %v2798
    %v2800 = vrot.slane %v2795, %v2799
    %v2803 = vsel %vm414, %v2787, 0
    %v2806 = vsel %vm414, %v2788, 0
    %2808 = vmatprep.subr.mxu0 0.0
    %2809 = vmatpush1.msra.mxu0 %v2790
    %2810 = vmatprep.subr.mxu0 0.0
    %2811 = vmatpush1.msra.mxu0 %v2791
    %2812 = vmatprep.subr.mxu0 0.0
    %2813 = vmatpush1.msra.mxu0 %v2792
    %2814 = vmatprep.subr.mxu0 0.0
    %2815 = vmatpush1.msra.mxu0 %v2793
    %2816 = vmatprep.subr.mxu0 0.0
    %2817 = vmatpush1.msra.mxu0 0.0
    %2818 = vmatprep.subr.mxu0 0.0
    %2819 = vmatpush1.msra.mxu0 0.0
    %2820 = vmatprep.subr.mxu0 0.0
    %2821 = vmatpush1.msra.mxu0 0.0
    %2822 = vmatprep.subr.mxu0 0.0
    %2823 = vmatpush1.msra.mxu0 0.0
    %2824 = vmatprep.subr.mxu0 0.0
    %2825 = vmatpush1.msra.mxu0 0.0
    %2826 = vmatprep.subr.mxu0 0.0
    %2827 = vmatpush1.msra.mxu0 0.0
    %2828 = vmatprep.subr.mxu0 0.0
    %2829 = vmatpush1.msra.mxu0 0.0
    %2830 = vmatprep.subr.mxu0 0.0
    %2831 = vmatpush1.msra.mxu0 0.0
    %2832 = vmatprep.subr.mxu0 0.0
    %2833 = vmatpush1.msra.mxu0 0.0
    %2834 = vmatprep.subr.mxu0 0.0
    %2835 = vmatpush1.msra.mxu0 0.0
    %2836 = vmatprep.subr.mxu0 0.0
    %2837 = vmatpush1.msra.mxu0 0.0
    %2838 = vmatprep.subr.mxu0 0.0
    %2839 = vmatpush1.msra.mxu0 0.0
    %2840 = vmatprep.subr.mxu0 0.0
    %2841 = vmatpush1.msra.mxu0 0.0
    %2842 = vmatprep.subr.mxu0 0.0
    %2843 = vmatpush1.msra.mxu0 0.0
    %2844 = vmatprep.subr.mxu0 0.0
    %2845 = vmatpush1.msra.mxu0 0.0
    %2846 = vmatprep.subr.mxu0 0.0
    %2847 = vmatpush1.msra.mxu0 0.0
    %2848 = vmatprep.subr.mxu0 0.0
    %2849 = vmatpush1.msra.mxu0 0.0
    %2850 = vmatprep.subr.mxu0 0.0
    %2851 = vmatpush1.msra.mxu0 0.0
    %2852 = vmatprep.subr.mxu0 0.0
    %2853 = vmatpush1.msra.mxu0 0.0
    %2854 = vmatprep.subr.mxu0 0.0
    %2855 = vmatpush1.msra.mxu0 0.0
    %2856 = vmatprep.subr.mxu0 0.0
    %2857 = vmatpush1.msra.mxu0 0.0
    %2858 = vmatprep.subr.mxu0 0.0
    %2859 = vmatpush1.msra.mxu0 0.0
    %2860 = vmatprep.subr.mxu0 0.0
    %2861 = vmatpush1.msra.mxu0 0.0
    %2862 = vmatprep.subr.mxu0 0.0
    %2863 = vmatpush1.msra.mxu0 0.0
    %2864 = vmatprep.subr.mxu0 0.0
    %2865 = vmatpush1.msra.mxu0 0.0
    %2866 = vmatprep.subr.mxu0 0.0
    %2867 = vmatpush1.msra.mxu0 0.0
    %2868 = vmatprep.subr.mxu0 0.0
    %2869 = vmatpush1.msra.mxu0 0.0
    %2870 = vmatprep.subr.mxu0 0.0
    %2871 = vmatpush1.msra.mxu0 0.0
    %2872 = vmatprep.mubr.f32.mxu0 0.0
    %2873 = vmatmul.mubr.f32.gmra.mrb[0].mxu0 %v2803
    %v2874 = vpop.f32.mrb[0].mxu0
    %v2875 = vadd.f32 %v2800, %v2874
    %v2876 = vpop.f32.mrb[0].mxu0
    %2877 = vmatprep.mubr.f32.mxu0 0.0
    %2878 = vmatmul.mubr.f32.gmra.mrb[0].mxu0 %v2806
    %v2879 = vpop.f32.mrb[0].mxu0
    %v2880 = vadd.f32 %v2800, %v2879
    %v2881 = vpop.f32.mrb[0].mxu0
    %2882 = vdwg.mxu0
    %v2883 = vmax.f32 %v2875, 0.0
    %v2884 = vmax.f32 %v2880, 0.0
    %s2885 = scalar_lea.vmem [#allocation12], 32
    %v2886 = vld [vmem:[%s2885] sm:$0xff]
    %v2887 = vld [vmem:[%s2885 + $0x8] sm:$0xff]
    %v2888 = vld [vmem:[%s2885 + $0x10] sm:$0xff]
    %v2889 = vld [vmem:[%s2885 + $0x18] sm:$0xff]
    %s2890 = scalar_lea.vmem [#allocation13], 1
    %v2891 = vld [vmem:[%s2890] sm:$0x1]
    %v2893 = vlaneseq
    %v2894 = vshrl.u32 %v2893, 7
    %v2895 = vsub.s32 0, %v2894
    %v2896 = vrot.slane %v2891, %v2895
    %v2899 = vsel %vm414, %v2883, 0
    %v2902 = vsel %vm414, %v2884, 0
    %2904 = vmatprep.subr.mxu0 0.0
    %2905 = vmatpush1.msra.mxu0 %v2886
    %2906 = vmatprep.subr.mxu0 0.0
    %2907 = vmatpush1.msra.mxu0 %v2887
    %2908 = vmatprep.subr.mxu0 0.0
    %2909 = vmatpush1.msra.mxu0 %v2888
    %2910 = vmatprep.subr.mxu0 0.0
    %2911 = vmatpush1.msra.mxu0 %v2889
    %2912 = vmatprep.subr.mxu0 0.0
    %2913 = vmatpush1.msra.mxu0 0.0
    %2914 = vmatprep.subr.mxu0 0.0
    %2915 = vmatpush1.msra.mxu0 0.0
    %2916 = vmatprep.subr.mxu0 0.0
    %2917 = vmatpush1.msra.mxu0 0.0
    %2918 = vmatprep.subr.mxu0 0.0
    %2919 = vmatpush1.msra.mxu0 0.0
    %2920 = vmatprep.subr.mxu0 0.0
    %2921 = vmatpush1.msra.mxu0 0.0
    %2922 = vmatprep.subr.mxu0 0.0
    %2923 = vmatpush1.msra.mxu0 0.0
    %2924 = vmatprep.subr.mxu0 0.0
    %2925 = vmatpush1.msra.mxu0 0.0
    %2926 = vmatprep.subr.mxu0 0.0
    %2927 = vmatpush1.msra.mxu0 0.0
    %2928 = vmatprep.subr.mxu0 0.0
    %2929 = vmatpush1.msra.mxu0 0.0
    %2930 = vmatprep.subr.mxu0 0.0
    %2931 = vmatpush1.msra.mxu0 0.0
    %2932 = vmatprep.subr.mxu0 0.0
    %2933 = vmatpush1.msra.mxu0 0.0
    %2934 = vmatprep.subr.mxu0 0.0
    %2935 = vmatpush1.msra.mxu0 0.0
    %2936 = vmatprep.subr.mxu0 0.0
    %2937 = vmatpush1.msra.mxu0 0.0
    %2938 = vmatprep.subr.mxu0 0.0
    %2939 = vmatpush1.msra.mxu0 0.0
    %2940 = vmatprep.subr.mxu0 0.0
    %2941 = vmatpush1.msra.mxu0 0.0
    %2942 = vmatprep.subr.mxu0 0.0
    %2943 = vmatpush1.msra.mxu0 0.0
    %2944 = vmatprep.subr.mxu0 0.0
    %2945 = vmatpush1.msra.mxu0 0.0
    %2946 = vmatprep.subr.mxu0 0.0
    %2947 = vmatpush1.msra.mxu0 0.0
    %2948 = vmatprep.subr.mxu0 0.0
    %2949 = vmatpush1.msra.mxu0 0.0
    %2950 = vmatprep.subr.mxu0 0.0
    %2951 = vmatpush1.msra.mxu0 0.0
    %2952 = vmatprep.subr.mxu0 0.0
    %2953 = vmatpush1.msra.mxu0 0.0
    %2954 = vmatprep.subr.mxu0 0.0
    %2955 = vmatpush1.msra.mxu0 0.0
    %2956 = vmatprep.subr.mxu0 0.0
    %2957 = vmatpush1.msra.mxu0 0.0
    %2958 = vmatprep.subr.mxu0 0.0
    %2959 = vmatpush1.msra.mxu0 0.0
    %2960 = vmatprep.subr.mxu0 0.0
    %2961 = vmatpush1.msra.mxu0 0.0
    %2962 = vmatprep.subr.mxu0 0.0
    %2963 = vmatpush1.msra.mxu0 0.0
    %2964 = vmatprep.subr.mxu0 0.0
    %2965 = vmatpush1.msra.mxu0 0.0
    %2966 = vmatprep.subr.mxu0 0.0
    %2967 = vmatpush1.msra.mxu0 0.0
    %2968 = vmatprep.mubr.f32.mxu0 0.0
    %2969 = vmatmul.mubr.f32.gmra.mrb[0].mxu0 %v2899
    %v2970 = vpop.f32.mrb[0].mxu0
    %v2971 = vadd.f32 %v2896, %v2970
    %v2972 = vpop.f32.mrb[0].mxu0
    %2973 = vmatprep.mubr.f32.mxu0 0.0
    %2974 = vmatmul.mubr.f32.gmra.mrb[0].mxu0 %v2902
    %v2975 = vpop.f32.mrb[0].mxu0
    %v2976 = vadd.f32 %v2896, %v2975
    %v2977 = vpop.f32.mrb[0].mxu0
    %2978 = vdwg.mxu0
    %v2979 = vadd.f32 %v2787, %v2971
    %v2980 = vadd.f32 %v2788, %v2976
    %s2981 = scalar_lea.vmem [#allocation18], 1
    %v2982 = vld [vmem:[%s2981] sm:$0x1]
    %s2983 = scalar_lea.vmem [#allocation19], 1
    %v2984 = vld [vmem:[%s2983] sm:$0x1]
    %v2985 = vsel %vm414, %v2979, 0.0
    %2986 = vadd.xlane.f32.xlu0 %v2985
    %v2987 = vpop.xlane.xlu0 %2986
    %v2988 = vsel %vm1440, %v2980, 0.0
    %2989 = vadd.xlane.f32.xlu0 %v2988
    %v2990 = vpop.xlane.xlu0 %2989
    %v2991 = vmul.f32 %v2987, %v1444
    %v2992 = vmul.f32 %v2990, %v1444
    %v2993 = vsub.f32 %v2979, %v2991
    %v2994 = vsub.f32 %v2980, %v2992
    %v2995 = vmul.f32 %v2993, %v2993
    %v2996 = vmul.f32 %v2994, %v2994
    %v2997 = vsel %vm414, %v2995, 0.0
    %2998 = vadd.xlane.f32.xlu0 %v2997
    %v2999 = vpop.xlane.xlu0 %2998
    %v3000 = vsel %vm1440, %v2996, 0.0
    %3001 = vadd.xlane.f32.xlu0 %v3000
    %v3002 = vpop.xlane.xlu0 %3001
    %v3003 = vmul.f32 %v2999, %v1444
    %v3004 = vmul.f32 %v3002, %v1444
    %v3005 = vadd.f32 %v3003, 1e-05
    %v3006 = vadd.f32 %v3004, 1e-05
    %v3007 = vrsqrt.pop %v3005
    %v3008 = vrsqrt.pop %v3006
    %v3009 = vmul.f32 %v2993, %v3007
    %v3010 = vmul.f32 %v2994, %v3008
    %v3012 = vlaneseq
    %v3013 = vshrl.u32 %v3012, 7
    %v3014 = vsub.s32 0, %v3013
    %v3015 = vrot.slane %v2982, %v3014
    %v3017 = vmul.f32 %v3009, %v3015
    %v3018 = vmul.f32 %v3010, %v3015
    %v3020 = vlaneseq
    %v3021 = vshrl.u32 %v3020, 7
    %v3022 = vsub.s32 0, %v3021
    %v3023 = vrot.slane %v2984, %v3022
    %v3025 = vadd.f32 %v3017, %v3023
    %v3026 = vadd.f32 %v3018, %v3023
    %v3027 = vld [vmem:[#allocation21] sm:$0x1]
    %v3028 = vld [vmem:[#allocation22] sm:$0x1]
    %v3029 = vsel %vm414, %v3025, 0.0
    %3030 = vadd.xlane.f32.xlu0 %v3029
    %v3031 = vpop.xlane.xlu0 %3030
    %v3032 = vsel %vm1440, %v3026, 0.0
    %3033 = vadd.xlane.f32.xlu0 %v3032
    %v3034 = vpop.xlane.xlu0 %3033
    %v3035 = vmul.f32 %v3031, %v1444
    %v3036 = vmul.f32 %v3034, %v1444
    %v3037 = vsub.f32 %v3025, %v3035
    %v3038 = vsub.f32 %v3026, %v3036
    %v3039 = vmul.f32 %v3037, %v3037
    %v3040 = vmul.f32 %v3038, %v3038
    %v3041 = vsel %vm414, %v3039, 0.0
    %3042 = vadd.xlane.f32.xlu0 %v3041
    %v3043 = vpop.xlane.xlu0 %3042
    %v3044 = vsel %vm1440, %v3040, 0.0
    %3045 = vadd.xlane.f32.xlu0 %v3044
    %v3046 = vpop.xlane.xlu0 %3045
    %v3047 = vmul.f32 %v3043, %v1444
    %v3048 = vmul.f32 %v3046, %v1444
    %v3049 = vadd.f32 %v3047, 1e-05
    %v3050 = vadd.f32 %v3048, 1e-05
    %v3051 = vrsqrt.pop %v3049
    %v3052 = vrsqrt.pop %v3050
    %v3053 = vmul.f32 %v3037, %v3051
    %v3054 = vmul.f32 %v3038, %v3052
    %v3056 = vlaneseq
    %v3057 = vshrl.u32 %v3056, 7
    %v3058 = vsub.s32 0, %v3057
    %v3059 = vrot.slane %v3027, %v3058
    %v3061 = vmul.f32 %v3053, %v3059
    %v3062 = vmul.f32 %v3054, %v3059
    %v3064 = vlaneseq
    %v3065 = vshrl.u32 %v3064, 7
    %v3066 = vsub.s32 0, %v3065
    %v3067 = vrot.slane %v3028, %v3066
    %v3069 = vadd.f32 %v3061, %v3067
    %v3070 = vadd.f32 %v3062, %v3067
    %v3071 = vld [vmem:[%s17] sm:$0xff]
    %v3072 = vld [vmem:[%s17 + $0x8] sm:$0xff]
    %v3073 = vld [vmem:[%s17 + $0x10] sm:$0xff]
    %v3074 = vld [vmem:[%s17 + $0x18] sm:$0xff]
    %v3075 = vld [vmem:[#allocation24] sm:$0x1]
    %v3077 = vlaneseq
    %v3078 = vshrl.u32 %v3077, 7
    %v3079 = vsub.s32 0, %v3078
    %v3080 = vrot.slane %v3075, %v3079
    %v3083 = vsel %vm414, %v3069, 0
    %v3086 = vsel %vm414, %v3070, 0
    %3088 = vmatprep.subr.mxu0 0.0
    %3089 = vmatpush1.msra.mxu0 %v3071
    %3090 = vmatprep.subr.mxu0 0.0
    %3091 = vmatpush1.msra.mxu0 %v3072
    %3092 = vmatprep.subr.mxu0 0.0
    %3093 = vmatpush1.msra.mxu0 %v3073
    %3094 = vmatprep.subr.mxu0 0.0
    %3095 = vmatpush1.msra.mxu0 %v3074
    %3096 = vmatprep.subr.mxu0 0.0
    %3097 = vmatpush1.msra.mxu0 0.0
    %3098 = vmatprep.subr.mxu0 0.0
    %3099 = vmatpush1.msra.mxu0 0.0
    %3100 = vmatprep.subr.mxu0 0.0
    %3101 = vmatpush1.msra.mxu0 0.0
    %3102 = vmatprep.subr.mxu0 0.0
    %3103 = vmatpush1.msra.mxu0 0.0
    %3104 = vmatprep.subr.mxu0 0.0
    %3105 = vmatpush1.msra.mxu0 0.0
    %3106 = vmatprep.subr.mxu0 0.0
    %3107 = vmatpush1.msra.mxu0 0.0
    %3108 = vmatprep.subr.mxu0 0.0
    %3109 = vmatpush1.msra.mxu0 0.0
    %3110 = vmatprep.subr.mxu0 0.0
    %3111 = vmatpush1.msra.mxu0 0.0
    %3112 = vmatprep.subr.mxu0 0.0
    %3113 = vmatpush1.msra.mxu0 0.0
    %3114 = vmatprep.subr.mxu0 0.0
    %3115 = vmatpush1.msra.mxu0 0.0
    %3116 = vmatprep.subr.mxu0 0.0
    %3117 = vmatpush1.msra.mxu0 0.0
    %3118 = vmatprep.subr.mxu0 0.0
    %3119 = vmatpush1.msra.mxu0 0.0
    %3120 = vmatprep.subr.mxu0 0.0
    %3121 = vmatpush1.msra.mxu0 0.0
    %3122 = vmatprep.subr.mxu0 0.0
    %3123 = vmatpush1.msra.mxu0 0.0
    %3124 = vmatprep.subr.mxu0 0.0
    %3125 = vmatpush1.msra.mxu0 0.0
    %3126 = vmatprep.subr.mxu0 0.0
    %3127 = vmatpush1.msra.mxu0 0.0
    %3128 = vmatprep.subr.mxu0 0.0
    %3129 = vmatpush1.msra.mxu0 0.0
    %3130 = vmatprep.subr.mxu0 0.0
    %3131 = vmatpush1.msra.mxu0 0.0
    %3132 = vmatprep.subr.mxu0 0.0
    %3133 = vmatpush1.msra.mxu0 0.0
    %3134 = vmatprep.subr.mxu0 0.0
    %3135 = vmatpush1.msra.mxu0 0.0
    %3136 = vmatprep.subr.mxu0 0.0
    %3137 = vmatpush1.msra.mxu0 0.0
    %3138 = vmatprep.subr.mxu0 0.0
    %3139 = vmatpush1.msra.mxu0 0.0
    %3140 = vmatprep.subr.mxu0 0.0
    %3141 = vmatpush1.msra.mxu0 0.0
    %3142 = vmatprep.subr.mxu0 0.0
    %3143 = vmatpush1.msra.mxu0 0.0
    %3144 = vmatprep.subr.mxu0 0.0
    %3145 = vmatpush1.msra.mxu0 0.0
    %3146 = vmatprep.subr.mxu0 0.0
    %3147 = vmatpush1.msra.mxu0 0.0
    %3148 = vmatprep.subr.mxu0 0.0
    %3149 = vmatpush1.msra.mxu0 0.0
    %3150 = vmatprep.subr.mxu0 0.0
    %3151 = vmatpush1.msra.mxu0 0.0
    %3152 = vmatprep.mubr.f32.mxu0 0.0
    %3153 = vmatmul.mubr.f32.gmra.mrb[0].mxu0 %v3083
    %v3154 = vpop.f32.mrb[0].mxu0
    %v3155 = vadd.f32 %v3080, %v3154
    %v3156 = vpop.f32.mrb[0].mxu0
    %3157 = vmatprep.mubr.f32.mxu0 0.0
    %3158 = vmatmul.mubr.f32.gmra.mrb[0].mxu0 %v3086
    %v3159 = vpop.f32.mrb[0].mxu0
    %v3160 = vadd.f32 %v3080, %v3159
    %v3161 = vpop.f32.mrb[0].mxu0
    %3162 = vdwg.mxu0
    %v3163 = vmul.f32 %v3155, %v295
    %v3164 = vmul.f32 %v3160, %v302
    %v3165 = vadd.f32 %v3163, %v273
    %v3166 = vadd.f32 %v3164, %v274
    %3167 = vst.msk [vmem:[%s19] sm:$0xff] %vm502, %v3165
    %vm3168 = vcmask 60416
    %3169 = vst.msk [vmem:[%s19 + $0x8] sm:$0xf] %vm3168, %v3166
    %s3170 = scalar_lea.vmem %s0, 16
    %v3171 = vld [vmem:[%s3170] sm:$0xff]
    %v3172 = vld [vmem:[%s3170 + $0x8] sm:$0xf]
    %v3173 = vsel %vm264, %v3171, 0.0
    %3174 = vadd.xlane.f32.xlu0 %v3173
    %v3175 = vpop.xlane.xlu0 %3174
    %v3176 = vsel %vm268, %v3172, 0.0
    %3177 = vadd.xlane.f32.xlu0 %v3176
    %v3178 = vpop.xlane.xlu0 %3177
    %v3179 = vmul.f32 %v3175, %v272
    %v3180 = vmul.f32 %v3178, %v272
    %v3181 = vsub.f32 %v3171, %v3179
    %v3182 = vsub.f32 %v3172, %v3180
    %v3183 = vmul.f32 %v3181, %v3181
    %v3184 = vmul.f32 %v3182, %v3182
    %v3185 = vsel %vm264, %v3183, 0.0
    %3186 = vadd.xlane.f32.xlu0 %v3185
    %v3187 = vpop.xlane.xlu0 %3186
    %v3188 = vsel %vm268, %v3184, 0.0
    %3189 = vadd.xlane.f32.xlu0 %v3188
    %v3190 = vpop.xlane.xlu0 %3189
    %v3191 = vmul.f32 %v3187, %v272
    %v3192 = vmul.f32 %v3190, %v272
    %v3193 = vadd.f32 %v3191, 1e-05
    %v3194 = vadd.f32 %v3192, 1e-05
    %v3195 = vrsqrt.pop %v3193
    %v3196 = vmul.f32 %v3193, %v3195
    %vm3197 = vcmp.eq.f32.partialorder %v3193, inf
    %v3198 = vsel %vm3197, %v3193, %v3196
    %vm3199 = vcmp.eq.f32.partialorder %v3193, 0.0
    %v3200 = vand.u32 %v3193, 2147483648
    %v3201 = vsel %vm3199, %v3200, %v3198
    %v3202 = vrsqrt.pop %v3194
    %v3203 = vmul.f32 %v3194, %v3202
    %vm3204 = vcmp.eq.f32.partialorder %v3194, inf
    %v3205 = vsel %vm3204, %v3194, %v3203
    %vm3206 = vcmp.eq.f32.partialorder %v3194, 0.0
    %v3207 = vand.u32 %v3194, 2147483648
    %v3208 = vsel %vm3206, %v3207, %v3205
    %v3209 = vrsqrt.pop %v3193
    %v3210 = vrsqrt.pop %v3194
    %v3211 = vsel %vm260, %v3209, 1.0
    %v3212 = vsel %vm261, %v3210, 1.0
    %v3213 = vsel %vm260, %v3179, 0.0
    %v3214 = vsel %vm261, %v3180, 0.0
    %v3215 = vsub.f32 %v3171, %v3213
    %v3216 = vsub.f32 %v3172, %v3214
    %v3217 = vmul.f32 %v3215, %v3211
    %v3218 = vmul.f32 %v3216, %v3212
    %v3219 = vld [vmem:[#allocation2] sm:$0xff]
    %v3220 = vld [vmem:[#allocation2 + $0x8] sm:$0xff]
    %v3221 = vld [vmem:[#allocation4] sm:$0x1]
    %v3223 = vlaneseq
    %v3224 = vshrl.u32 %v3223, 7
    %v3225 = vsub.s32 0, %v3224
    %v3226 = vrot.slane %v3221, %v3225
    %v3229 = vsel %vm264, %v3217, 0
    %v3232 = vsel %vm264, %v3218, 0
    %3234 = vmatprep.subr.mxu0 0.0
    %3235 = vmatpush1.msra.mxu0 %v3219
    %3236 = vmatprep.subr.mxu0 0.0
    %3237 = vmatpush1.msra.mxu0 %v3220
    %3238 = vmatprep.subr.mxu0 0.0
    %3239 = vmatpush1.msra.mxu0 0.0
    %3240 = vmatprep.subr.mxu0 0.0
    %3241 = vmatpush1.msra.mxu0 0.0
    %3242 = vmatprep.subr.mxu0 0.0
    %3243 = vmatpush1.msra.mxu0 0.0
    %3244 = vmatprep.subr.mxu0 0.0
    %3245 = vmatpush1.msra.mxu0 0.0
    %3246 = vmatprep.subr.mxu0 0.0
    %3247 = vmatpush1.msra.mxu0 0.0
    %3248 = vmatprep.subr.mxu0 0.0
    %3249 = vmatpush1.msra.mxu0 0.0
    %3250 = vmatprep.subr.mxu0 0.0
    %3251 = vmatpush1.msra.mxu0 0.0
    %3252 = vmatprep.subr.mxu0 0.0
    %3253 = vmatpush1.msra.mxu0 0.0
    %3254 = vmatprep.subr.mxu0 0.0
    %3255 = vmatpush1.msra.mxu0 0.0
    %3256 = vmatprep.subr.mxu0 0.0
    %3257 = vmatpush1.msra.mxu0 0.0
    %3258 = vmatprep.subr.mxu0 0.0
    %3259 = vmatpush1.msra.mxu0 0.0
    %3260 = vmatprep.subr.mxu0 0.0
    %3261 = vmatpush1.msra.mxu0 0.0
    %3262 = vmatprep.subr.mxu0 0.0
    %3263 = vmatpush1.msra.mxu0 0.0
    %3264 = vmatprep.subr.mxu0 0.0
    %3265 = vmatpush1.msra.mxu0 0.0
    %3266 = vmatprep.subr.mxu0 0.0
    %3267 = vmatpush1.msra.mxu0 0.0
    %3268 = vmatprep.subr.mxu0 0.0
    %3269 = vmatpush1.msra.mxu0 0.0
    %3270 = vmatprep.subr.mxu0 0.0
    %3271 = vmatpush1.msra.mxu0 0.0
    %3272 = vmatprep.subr.mxu0 0.0
    %3273 = vmatpush1.msra.mxu0 0.0
    %3274 = vmatprep.subr.mxu0 0.0
    %3275 = vmatpush1.msra.mxu0 0.0
    %3276 = vmatprep.subr.mxu0 0.0
    %3277 = vmatpush1.msra.mxu0 0.0
    %3278 = vmatprep.subr.mxu0 0.0
    %3279 = vmatpush1.msra.mxu0 0.0
    %3280 = vmatprep.subr.mxu0 0.0
    %3281 = vmatpush1.msra.mxu0 0.0
    %3282 = vmatprep.subr.mxu0 0.0
    %3283 = vmatpush1.msra.mxu0 0.0
    %3284 = vmatprep.subr.mxu0 0.0
    %3285 = vmatpush1.msra.mxu0 0.0
    %3286 = vmatprep.subr.mxu0 0.0
    %3287 = vmatpush1.msra.mxu0 0.0
    %3288 = vmatprep.subr.mxu0 0.0
    %3289 = vmatpush1.msra.mxu0 0.0
    %3290 = vmatprep.subr.mxu0 0.0
    %3291 = vmatpush1.msra.mxu0 0.0
    %3292 = vmatprep.subr.mxu0 0.0
    %3293 = vmatpush1.msra.mxu0 0.0
    %3294 = vmatprep.subr.mxu0 0.0
    %3295 = vmatpush1.msra.mxu0 0.0
    %3296 = vmatprep.subr.mxu0 0.0
    %3297 = vmatpush1.msra.mxu0 0.0
    %3298 = vmatprep.mubr.f32.mxu0 0.0
    %3299 = vmatmul.mubr.f32.gmra.mrb[0].mxu0 %v3229
    %v3300 = vpop.f32.mrb[0].mxu0
    %v3301 = vadd.f32 %v3226, %v3300
    %v3302 = vpop.f32.mrb[0].mxu0
    %3303 = vmatprep.mubr.f32.mxu0 0.0
    %3304 = vmatmul.mubr.f32.gmra.mrb[0].mxu0 %v3232
    %v3305 = vpop.f32.mrb[0].mxu0
    %v3306 = vadd.f32 %v3226, %v3305
    %v3307 = vpop.f32.mrb[0].mxu0
    %3308 = vdwg.mxu0
    %v3309 = vld [vmem:[%s3] sm:$0xff]
    %v3310 = vld [vmem:[%s3 + $0x8] sm:$0xff]
    %v3311 = vld [vmem:[%s3 + $0x10] sm:$0xff]
    %v3312 = vld [vmem:[%s3 + $0x18] sm:$0xff]
    %v3313 = vld [vmem:[#allocation6] sm:$0x1]
    %v3315 = vlaneseq
    %v3316 = vshrl.u32 %v3315, 7
    %v3317 = vsub.s32 0, %v3316
    %v3318 = vrot.slane %v3313, %v3317
    %v3321 = vsel %vm414, %v3301, 0
    %v3324 = vsel %vm414, %v3306, 0
    %3326 = vmatprep.subr.mxu0 0.0
    %3327 = vmatpush1.msra.mxu0 %v3309
    %3328 = vmatprep.subr.mxu0 0.0
    %3329 = vmatpush1.msra.mxu0 %v3310
    %3330 = vmatprep.subr.mxu0 0.0
    %3331 = vmatpush1.msra.mxu0 %v3311
    %3332 = vmatprep.subr.mxu0 0.0
    %3333 = vmatpush1.msra.mxu0 %v3312
    %3334 = vmatprep.subr.mxu0 0.0
    %3335 = vmatpush1.msra.mxu0 0.0
    %3336 = vmatprep.subr.mxu0 0.0
    %3337 = vmatpush1.msra.mxu0 0.0
    %3338 = vmatprep.subr.mxu0 0.0
    %3339 = vmatpush1.msra.mxu0 0.0
    %3340 = vmatprep.subr.mxu0 0.0
    %3341 = vmatpush1.msra.mxu0 0.0
    %3342 = vmatprep.subr.mxu0 0.0
    %3343 = vmatpush1.msra.mxu0 0.0
    %3344 = vmatprep.subr.mxu0 0.0
    %3345 = vmatpush1.msra.mxu0 0.0
    %3346 = vmatprep.subr.mxu0 0.0
    %3347 = vmatpush1.msra.mxu0 0.0
    %3348 = vmatprep.subr.mxu0 0.0
    %3349 = vmatpush1.msra.mxu0 0.0
    %3350 = vmatprep.subr.mxu0 0.0
    %3351 = vmatpush1.msra.mxu0 0.0
    %3352 = vmatprep.subr.mxu0 0.0
    %3353 = vmatpush1.msra.mxu0 0.0
    %3354 = vmatprep.subr.mxu0 0.0
    %3355 = vmatpush1.msra.mxu0 0.0
    %3356 = vmatprep.subr.mxu0 0.0
    %3357 = vmatpush1.msra.mxu0 0.0
    %3358 = vmatprep.subr.mxu0 0.0
    %3359 = vmatpush1.msra.mxu0 0.0
    %3360 = vmatprep.subr.mxu0 0.0
    %3361 = vmatpush1.msra.mxu0 0.0
    %3362 = vmatprep.subr.mxu0 0.0
    %3363 = vmatpush1.msra.mxu0 0.0
    %3364 = vmatprep.subr.mxu0 0.0
    %3365 = vmatpush1.msra.mxu0 0.0
    %3366 = vmatprep.subr.mxu0 0.0
    %3367 = vmatpush1.msra.mxu0 0.0
    %3368 = vmatprep.subr.mxu0 0.0
    %3369 = vmatpush1.msra.mxu0 0.0
    %3370 = vmatprep.subr.mxu0 0.0
    %3371 = vmatpush1.msra.mxu0 0.0
    %3372 = vmatprep.subr.mxu0 0.0
    %3373 = vmatpush1.msra.mxu0 0.0
    %3374 = vmatprep.subr.mxu0 0.0
    %3375 = vmatpush1.msra.mxu0 0.0
    %3376 = vmatprep.subr.mxu0 0.0
    %3377 = vmatpush1.msra.mxu0 0.0
    %3378 = vmatprep.subr.mxu0 0.0
    %3379 = vmatpush1.msra.mxu0 0.0
    %3380 = vmatprep.subr.mxu0 0.0
    %3381 = vmatpush1.msra.mxu0 0.0
    %3382 = vmatprep.subr.mxu0 0.0
    %3383 = vmatpush1.msra.mxu0 0.0
    %3384 = vmatprep.subr.mxu0 0.0
    %3385 = vmatpush1.msra.mxu0 0.0
    %3386 = vmatprep.subr.mxu0 0.0
    %3387 = vmatpush1.msra.mxu0 0.0
    %3388 = vmatprep.subr.mxu0 0.0
    %3389 = vmatpush1.msra.mxu0 0.0
    %3390 = vmatprep.mubr.f32.mxu0 0.0
    %3391 = vmatmul.mubr.f32.gmra.mrb[0].mxu0 %v3321
    %v3392 = vpop.f32.mrb[0].mxu0
    %v3393 = vadd.f32 %v3318, %v3392
    %v3394 = vpop.f32.mrb[0].mxu0
    %3395 = vmatprep.mubr.f32.mxu0 0.0
    %3396 = vmatmul.mubr.f32.gmra.mrb[0].mxu0 %v3324
    %v3397 = vpop.f32.mrb[0].mxu0
    %v3398 = vadd.f32 %v3318, %v3397
    %v3399 = vpop.f32.mrb[0].mxu0
    %3400 = vdwg.mxu0
    %3403 = vrot.lane.b32.xlu0 %v3393, 96
    %v3404 = vpop.permute.xlu0 %3403
    %3405 = vrot.lane.b32.xlu0 %v3398, 96
    %v3406 = vpop.permute.xlu0 %3405
    %v3407 = vsel %vm502, %v3393, 0
    %v3409 = vsel %vm502, %v3398, 0
    %v3411 = vsel %vm502, %v3404, 0
    %v3413 = vsel %vm502, %v3406, 0
    %3415 = vmatprep.subr.mxu0 0.0
    %3416 = vmatpush1.xpose.msra.mxu0 %v3411
    %3417 = vmatprep.subr.mxu0 0.0
    %3418 = vmatpush1.xpose.msra.mxu0 %v3413
    %3419 = vmatprep.subr.mxu0 0.0
    %3420 = vmatpush1.xpose.msra.mxu0 0.0
    %3421 = vmatprep.subr.mxu0 0.0
    %3422 = vmatpush1.xpose.msra.mxu0 0.0
    %3423 = vmatprep.subr.mxu0 0.0
    %3424 = vmatpush1.xpose.msra.mxu0 0.0
    %3425 = vmatprep.subr.mxu0 0.0
    %3426 = vmatpush1.xpose.msra.mxu0 0.0
    %3427 = vmatprep.subr.mxu0 0.0
    %3428 = vmatpush1.xpose.msra.mxu0 0.0
    %3429 = vmatprep.subr.mxu0 0.0
    %3430 = vmatpush1.xpose.msra.mxu0 0.0
    %3431 = vmatprep.subr.mxu0 0.0
    %3432 = vmatpush1.xpose.msra.mxu0 0.0
    %3433 = vmatprep.subr.mxu0 0.0
    %3434 = vmatpush1.xpose.msra.mxu0 0.0
    %3435 = vmatprep.subr.mxu0 0.0
    %3436 = vmatpush1.xpose.msra.mxu0 0.0
    %3437 = vmatprep.subr.mxu0 0.0
    %3438 = vmatpush1.xpose.msra.mxu0 0.0
    %3439 = vmatprep.subr.mxu0 0.0
    %3440 = vmatpush1.xpose.msra.mxu0 0.0
    %3441 = vmatprep.subr.mxu0 0.0
    %3442 = vmatpush1.xpose.msra.mxu0 0.0
    %3443 = vmatprep.subr.mxu0 0.0
    %3444 = vmatpush1.xpose.msra.mxu0 0.0
    %3445 = vmatprep.subr.mxu0 0.0
    %3446 = vmatpush1.xpose.msra.mxu0 0.0
    %3447 = vmatprep.subr.mxu0 0.0
    %3448 = vmatpush1.xpose.msra.mxu0 0.0
    %3449 = vmatprep.subr.mxu0 0.0
    %3450 = vmatpush1.xpose.msra.mxu0 0.0
    %3451 = vmatprep.subr.mxu0 0.0
    %3452 = vmatpush1.xpose.msra.mxu0 0.0
    %3453 = vmatprep.subr.mxu0 0.0
    %3454 = vmatpush1.xpose.msra.mxu0 0.0
    %3455 = vmatprep.subr.mxu0 0.0
    %3456 = vmatpush1.xpose.msra.mxu0 0.0
    %3457 = vmatprep.subr.mxu0 0.0
    %3458 = vmatpush1.xpose.msra.mxu0 0.0
    %3459 = vmatprep.subr.mxu0 0.0
    %3460 = vmatpush1.xpose.msra.mxu0 0.0
    %3461 = vmatprep.subr.mxu0 0.0
    %3462 = vmatpush1.xpose.msra.mxu0 0.0
    %3463 = vmatprep.subr.mxu0 0.0
    %3464 = vmatpush1.xpose.msra.mxu0 0.0
    %3465 = vmatprep.subr.mxu0 0.0
    %3466 = vmatpush1.xpose.msra.mxu0 0.0
    %3467 = vmatprep.subr.mxu0 0.0
    %3468 = vmatpush1.xpose.msra.mxu0 0.0
    %3469 = vmatprep.subr.mxu0 0.0
    %3470 = vmatpush1.xpose.msra.mxu0 0.0
    %3471 = vmatprep.subr.mxu0 0.0
    %3472 = vmatpush1.xpose.msra.mxu0 0.0
    %3473 = vmatprep.subr.mxu0 0.0
    %3474 = vmatpush1.xpose.msra.mxu0 0.0
    %3475 = vmatprep.subr.mxu0 0.0
    %3476 = vmatpush1.xpose.msra.mxu0 0.0
    %3477 = vmatprep.subr.mxu0 0.0
    %3478 = vmatpush1.xpose.msra.mxu0 0.0
    %3479 = vmatprep.mubr.f32.mxu0 0.0
    %3480 = vmatmul.mubr.f32.gmra.mrb[0].mxu0 %v3407
    %v3481 = vpop.f32.mrb[0].mxu0
    %v3482 = vadd.f32 0.0, %v3481
    %v3483 = vpop.f32.mrb[0].mxu0
    %3484 = vmatprep.mubr.f32.mxu0 0.0
    %3485 = vmatmul.mubr.f32.gmra.mrb[0].mxu0 %v3409
    %v3486 = vpop.f32.mrb[0].mxu0
    %v3487 = vadd.f32 0.0, %v3486
    %v3488 = vpop.f32.mrb[0].mxu0
    %3489 = vdwg.mxu0
    %v3490 = vmul.f32 %v3482, 0.35355338
    %v3491 = vmul.f32 %v3487, 0.35355338
    %v3492 = vsel %vm588, %v3490, -inf
    %3493 = vmax.xlane.f32.xlu0 %v3492
    %v3494 = vpop.xlane.xlu0 %3493
    %v3495 = vsel %vm592, %v3491, -inf
    %3496 = vmax.xlane.f32.xlu0 %v3495
    %v3497 = vpop.xlane.xlu0 %3496
    %v3498 = vsub.f32 %v3490, %v3494
    %v3499 = vsub.f32 %v3491, %v3497
    %v3500 = vmul.f32 %v3498, 1.442695
    %v3501 = vpow.pop %v3500
    %v3502 = vmul.f32 %v3499, 1.442695
    %v3503 = vpow.pop %v3502
    %v3504 = vsel %vm588, %v3501, 0.0
    %3505 = vadd.xlane.f32.xlu0 %v3504
    %v3506 = vpop.xlane.xlu0 %3505
    %v3507 = vsel %vm592, %v3503, 0.0
    %3508 = vadd.xlane.f32.xlu0 %v3507
    %v3509 = vpop.xlane.xlu0 %3508
    %v3510 = vrcp.pop %v3506
    %v3511 = vrcp.pop %v3509
    %v3512 = vmul.f32 %v3501, %v3510
    %v3513 = vmul.f32 %v3503, %v3511
    %3514 = vrot.lane.b32.xlu0 %v3393, 64
    %v3515 = vpop.permute.xlu0 %3514
    %3516 = vrot.lane.b32.xlu0 %v3398, 64
    %v3517 = vpop.permute.xlu0 %3516
    %v3520 = vsel %vm588, %v3512, 0
    %v3523 = vsel %vm588, %v3513, 0
    %v3525 = vsel %vm623, %v3517, 0
    %3527 = vmatprep.subr.mxu0 0.0
    %3528 = vmatpush1.msra.mxu0 %v3515
    %3529 = vmatprep.subr.mxu0 0.0
    %3530 = vmatpush1.msra.mxu0 %v3525
    %3531 = vmatprep.subr.mxu0 0.0
    %3532 = vmatpush1.msra.mxu0 0.0
    %3533 = vmatprep.subr.mxu0 0.0
    %3534 = vmatpush1.msra.mxu0 0.0
    %3535 = vmatprep.subr.mxu0 0.0
    %3536 = vmatpush1.msra.mxu0 0.0
    %3537 = vmatprep.subr.mxu0 0.0
    %3538 = vmatpush1.msra.mxu0 0.0
    %3539 = vmatprep.subr.mxu0 0.0
    %3540 = vmatpush1.msra.mxu0 0.0
    %3541 = vmatprep.subr.mxu0 0.0
    %3542 = vmatpush1.msra.mxu0 0.0
    %3543 = vmatprep.subr.mxu0 0.0
    %3544 = vmatpush1.msra.mxu0 0.0
    %3545 = vmatprep.subr.mxu0 0.0
    %3546 = vmatpush1.msra.mxu0 0.0
    %3547 = vmatprep.subr.mxu0 0.0
    %3548 = vmatpush1.msra.mxu0 0.0
    %3549 = vmatprep.subr.mxu0 0.0
    %3550 = vmatpush1.msra.mxu0 0.0
    %3551 = vmatprep.subr.mxu0 0.0
    %3552 = vmatpush1.msra.mxu0 0.0
    %3553 = vmatprep.subr.mxu0 0.0
    %3554 = vmatpush1.msra.mxu0 0.0
    %3555 = vmatprep.subr.mxu0 0.0
    %3556 = vmatpush1.msra.mxu0 0.0
    %3557 = vmatprep.subr.mxu0 0.0
    %3558 = vmatpush1.msra.mxu0 0.0
    %3559 = vmatprep.subr.mxu0 0.0
    %3560 = vmatpush1.msra.mxu0 0.0
    %3561 = vmatprep.subr.mxu0 0.0
    %3562 = vmatpush1.msra.mxu0 0.0
    %3563 = vmatprep.subr.mxu0 0.0
    %3564 = vmatpush1.msra.mxu0 0.0
    %3565 = vmatprep.subr.mxu0 0.0
    %3566 = vmatpush1.msra.mxu0 0.0
    %3567 = vmatprep.subr.mxu0 0.0
    %3568 = vmatpush1.msra.mxu0 0.0
    %3569 = vmatprep.subr.mxu0 0.0
    %3570 = vmatpush1.msra.mxu0 0.0
    %3571 = vmatprep.subr.mxu0 0.0
    %3572 = vmatpush1.msra.mxu0 0.0
    %3573 = vmatprep.subr.mxu0 0.0
    %3574 = vmatpush1.msra.mxu0 0.0
    %3575 = vmatprep.subr.mxu0 0.0
    %3576 = vmatpush1.msra.mxu0 0.0
    %3577 = vmatprep.subr.mxu0 0.0
    %3578 = vmatpush1.msra.mxu0 0.0
    %3579 = vmatprep.subr.mxu0 0.0
    %3580 = vmatpush1.msra.mxu0 0.0
    %3581 = vmatprep.subr.mxu0 0.0
    %3582 = vmatpush1.msra.mxu0 0.0
    %3583 = vmatprep.subr.mxu0 0.0
    %3584 = vmatpush1.msra.mxu0 0.0
    %3585 = vmatprep.subr.mxu0 0.0
    %3586 = vmatpush1.msra.mxu0 0.0
    %3587 = vmatprep.subr.mxu0 0.0
    %3588 = vmatpush1.msra.mxu0 0.0
    %3589 = vmatprep.subr.mxu0 0.0
    %3590 = vmatpush1.msra.mxu0 0.0
    %3591 = vmatprep.mubr.f32.mxu0 0.0
    %3592 = vmatmul.mubr.f32.gmra.mrb[0].mxu0 %v3520
    %v3593 = vpop.f32.mrb[0].mxu0
    %v3594 = vadd.f32 0.0, %v3593
    %v3595 = vpop.f32.mrb[0].mxu0
    %3596 = vmatprep.mubr.f32.mxu0 0.0
    %3597 = vmatmul.mubr.f32.gmra.mrb[0].mxu0 %v3523
    %v3598 = vpop.f32.mrb[0].mxu0
    %v3599 = vadd.f32 0.0, %v3598
    %v3600 = vpop.f32.mrb[0].mxu0
    %3601 = vdwg.mxu0
    %3602 = vrot.lane.b32.xlu0 %v3393, 120
    %v3603 = vpop.permute.xlu0 %3602
    %3604 = vrot.lane.b32.xlu0 %v3398, 120
    %v3605 = vpop.permute.xlu0 %3604
    %3606 = vrot.lane.b32.xlu0 %v3393, 88
    %v3607 = vpop.permute.xlu0 %3606
    %3608 = vrot.lane.b32.xlu0 %v3398, 88
    %v3609 = vpop.permute.xlu0 %3608
    %v3610 = vsel %vm502, %v3603, 0
    %v3612 = vsel %vm502, %v3605, 0
    %v3614 = vsel %vm502, %v3607, 0
    %v3616 = vsel %vm502, %v3609, 0
    %3618 = vmatprep.subr.mxu0 0.0
    %3619 = vmatpush1.xpose.msra.mxu0 %v3614
    %3620 = vmatprep.subr.mxu0 0.0
    %3621 = vmatpush1.xpose.msra.mxu0 %v3616
    %3622 = vmatprep.subr.mxu0 0.0
    %3623 = vmatpush1.xpose.msra.mxu0 0.0
    %3624 = vmatprep.subr.mxu0 0.0
    %3625 = vmatpush1.xpose.msra.mxu0 0.0
    %3626 = vmatprep.subr.mxu0 0.0
    %3627 = vmatpush1.xpose.msra.mxu0 0.0
    %3628 = vmatprep.subr.mxu0 0.0
    %3629 = vmatpush1.xpose.msra.mxu0 0.0
    %3630 = vmatprep.subr.mxu0 0.0
    %3631 = vmatpush1.xpose.msra.mxu0 0.0
    %3632 = vmatprep.subr.mxu0 0.0
    %3633 = vmatpush1.xpose.msra.mxu0 0.0
    %3634 = vmatprep.subr.mxu0 0.0
    %3635 = vmatpush1.xpose.msra.mxu0 0.0
    %3636 = vmatprep.subr.mxu0 0.0
    %3637 = vmatpush1.xpose.msra.mxu0 0.0
    %3638 = vmatprep.subr.mxu0 0.0
    %3639 = vmatpush1.xpose.msra.mxu0 0.0
    %3640 = vmatprep.subr.mxu0 0.0
    %3641 = vmatpush1.xpose.msra.mxu0 0.0
    %3642 = vmatprep.subr.mxu0 0.0
    %3643 = vmatpush1.xpose.msra.mxu0 0.0
    %3644 = vmatprep.subr.mxu0 0.0
    %3645 = vmatpush1.xpose.msra.mxu0 0.0
    %3646 = vmatprep.subr.mxu0 0.0
    %3647 = vmatpush1.xpose.msra.mxu0 0.0
    %3648 = vmatprep.subr.mxu0 0.0
    %3649 = vmatpush1.xpose.msra.mxu0 0.0
    %3650 = vmatprep.subr.mxu0 0.0
    %3651 = vmatpush1.xpose.msra.mxu0 0.0
    %3652 = vmatprep.subr.mxu0 0.0
    %3653 = vmatpush1.xpose.msra.mxu0 0.0
    %3654 = vmatprep.subr.mxu0 0.0
    %3655 = vmatpush1.xpose.msra.mxu0 0.0
    %3656 = vmatprep.subr.mxu0 0.0
    %3657 = vmatpush1.xpose.msra.mxu0 0.0
    %3658 = vmatprep.subr.mxu0 0.0
    %3659 = vmatpush1.xpose.msra.mxu0 0.0
    %3660 = vmatprep.subr.mxu0 0.0
    %3661 = vmatpush1.xpose.msra.mxu0 0.0
    %3662 = vmatprep.subr.mxu0 0.0
    %3663 = vmatpush1.xpose.msra.mxu0 0.0
    %3664 = vmatprep.subr.mxu0 0.0
    %3665 = vmatpush1.xpose.msra.mxu0 0.0
    %3666 = vmatprep.subr.mxu0 0.0
    %3667 = vmatpush1.xpose.msra.mxu0 0.0
    %3668 = vmatprep.subr.mxu0 0.0
    %3669 = vmatpush1.xpose.msra.mxu0 0.0
    %3670 = vmatprep.subr.mxu0 0.0
    %3671 = vmatpush1.xpose.msra.mxu0 0.0
    %3672 = vmatprep.subr.mxu0 0.0
    %3673 = vmatpush1.xpose.msra.mxu0 0.0
    %3674 = vmatprep.subr.mxu0 0.0
    %3675 = vmatpush1.xpose.msra.mxu0 0.0
    %3676 = vmatprep.subr.mxu0 0.0
    %3677 = vmatpush1.xpose.msra.mxu0 0.0
    %3678 = vmatprep.subr.mxu0 0.0
    %3679 = vmatpush1.xpose.msra.mxu0 0.0
    %3680 = vmatprep.subr.mxu0 0.0
    %3681 = vmatpush1.xpose.msra.mxu0 0.0
    %3682 = vmatprep.mubr.f32.mxu0 0.0
    %3683 = vmatmul.mubr.f32.gmra.mrb[0].mxu0 %v3610
    %v3684 = vpop.f32.mrb[0].mxu0
    %v3685 = vadd.f32 0.0, %v3684
    %v3686 = vpop.f32.mrb[0].mxu0
    %3687 = vmatprep.mubr.f32.mxu0 0.0
    %3688 = vmatmul.mubr.f32.gmra.mrb[0].mxu0 %v3612
    %v3689 = vpop.f32.mrb[0].mxu0
    %v3690 = vadd.f32 0.0, %v3689
    %v3691 = vpop.f32.mrb[0].mxu0
    %3692 = vdwg.mxu0
    %v3693 = vmul.f32 %v3685, 0.35355338
    %v3694 = vmul.f32 %v3690, 0.35355338
    %v3695 = vsel %vm588, %v3693, -inf
    %3696 = vmax.xlane.f32.xlu0 %v3695
    %v3697 = vpop.xlane.xlu0 %3696
    %v3698 = vsel %vm592, %v3694, -inf
    %3699 = vmax.xlane.f32.xlu0 %v3698
    %v3700 = vpop.xlane.xlu0 %3699
    %v3701 = vsub.f32 %v3693, %v3697
    %v3702 = vsub.f32 %v3694, %v3700
    %v3703 = vmul.f32 %v3701, 1.442695
    %v3704 = vpow.pop %v3703
    %v3705 = vmul.f32 %v3702, 1.442695
    %v3706 = vpow.pop %v3705
    %v3707 = vsel %vm588, %v3704, 0.0
    %3708 = vadd.xlane.f32.xlu0 %v3707
    %v3709 = vpop.xlane.xlu0 %3708
    %v3710 = vsel %vm592, %v3706, 0.0
    %3711 = vadd.xlane.f32.xlu0 %v3710
    %v3712 = vpop.xlane.xlu0 %3711
    %v3713 = vrcp.pop %v3709
    %v3714 = vrcp.pop %v3712
    %v3715 = vmul.f32 %v3704, %v3713
    %v3716 = vmul.f32 %v3706, %v3714
    %3717 = vrot.lane.b32.xlu0 %v3393, 56
    %v3718 = vpop.permute.xlu0 %3717
    %3719 = vrot.lane.b32.xlu0 %v3398, 56
    %v3720 = vpop.permute.xlu0 %3719
    %v3723 = vsel %vm588, %v3715, 0
    %v3726 = vsel %vm588, %v3716, 0
    %v3728 = vsel %vm623, %v3720, 0
    %3730 = vmatprep.subr.mxu0 0.0
    %3731 = vmatpush1.msra.mxu0 %v3718
    %3732 = vmatprep.subr.mxu0 0.0
    %3733 = vmatpush1.msra.mxu0 %v3728
    %3734 = vmatprep.subr.mxu0 0.0
    %3735 = vmatpush1.msra.mxu0 0.0
    %3736 = vmatprep.subr.mxu0 0.0
    %3737 = vmatpush1.msra.mxu0 0.0
    %3738 = vmatprep.subr.mxu0 0.0
    %3739 = vmatpush1.msra.mxu0 0.0
    %3740 = vmatprep.subr.mxu0 0.0
    %3741 = vmatpush1.msra.mxu0 0.0
    %3742 = vmatprep.subr.mxu0 0.0
    %3743 = vmatpush1.msra.mxu0 0.0
    %3744 = vmatprep.subr.mxu0 0.0
    %3745 = vmatpush1.msra.mxu0 0.0
    %3746 = vmatprep.subr.mxu0 0.0
    %3747 = vmatpush1.msra.mxu0 0.0
    %3748 = vmatprep.subr.mxu0 0.0
    %3749 = vmatpush1.msra.mxu0 0.0
    %3750 = vmatprep.subr.mxu0 0.0
    %3751 = vmatpush1.msra.mxu0 0.0
    %3752 = vmatprep.subr.mxu0 0.0
    %3753 = vmatpush1.msra.mxu0 0.0
    %3754 = vmatprep.subr.mxu0 0.0
    %3755 = vmatpush1.msra.mxu0 0.0
    %3756 = vmatprep.subr.mxu0 0.0
    %3757 = vmatpush1.msra.mxu0 0.0
    %3758 = vmatprep.subr.mxu0 0.0
    %3759 = vmatpush1.msra.mxu0 0.0
    %3760 = vmatprep.subr.mxu0 0.0
    %3761 = vmatpush1.msra.mxu0 0.0
    %3762 = vmatprep.subr.mxu0 0.0
    %3763 = vmatpush1.msra.mxu0 0.0
    %3764 = vmatprep.subr.mxu0 0.0
    %3765 = vmatpush1.msra.mxu0 0.0
    %3766 = vmatprep.subr.mxu0 0.0
    %3767 = vmatpush1.msra.mxu0 0.0
    %3768 = vmatprep.subr.mxu0 0.0
    %3769 = vmatpush1.msra.mxu0 0.0
    %3770 = vmatprep.subr.mxu0 0.0
    %3771 = vmatpush1.msra.mxu0 0.0
    %3772 = vmatprep.subr.mxu0 0.0
    %3773 = vmatpush1.msra.mxu0 0.0
    %3774 = vmatprep.subr.mxu0 0.0
    %3775 = vmatpush1.msra.mxu0 0.0
    %3776 = vmatprep.subr.mxu0 0.0
    %3777 = vmatpush1.msra.mxu0 0.0
    %3778 = vmatprep.subr.mxu0 0.0
    %3779 = vmatpush1.msra.mxu0 0.0
    %3780 = vmatprep.subr.mxu0 0.0
    %3781 = vmatpush1.msra.mxu0 0.0
    %3782 = vmatprep.subr.mxu0 0.0
    %3783 = vmatpush1.msra.mxu0 0.0
    %3784 = vmatprep.subr.mxu0 0.0
    %3785 = vmatpush1.msra.mxu0 0.0
    %3786 = vmatprep.subr.mxu0 0.0
    %3787 = vmatpush1.msra.mxu0 0.0
    %3788 = vmatprep.subr.mxu0 0.0
    %3789 = vmatpush1.msra.mxu0 0.0
    %3790 = vmatprep.subr.mxu0 0.0
    %3791 = vmatpush1.msra.mxu0 0.0
    %3792 = vmatprep.subr.mxu0 0.0
    %3793 = vmatpush1.msra.mxu0 0.0
    %3794 = vmatprep.mubr.f32.mxu0 0.0
    %3795 = vmatmul.mubr.f32.gmra.mrb[0].mxu0 %v3723
    %v3796 = vpop.f32.mrb[0].mxu0
    %v3797 = vadd.f32 0.0, %v3796
    %v3798 = vpop.f32.mrb[0].mxu0
    %3799 = vmatprep.mubr.f32.mxu0 0.0
    %3800 = vmatmul.mubr.f32.gmra.mrb[0].mxu0 %v3726
    %v3801 = vpop.f32.mrb[0].mxu0
    %v3802 = vadd.f32 0.0, %v3801
    %v3803 = vpop.f32.mrb[0].mxu0
    %3804 = vdwg.mxu0
    %3805 = vrot.lane.b32.xlu0 %v3393, 112
    %v3806 = vpop.permute.xlu0 %3805
    %3807 = vrot.lane.b32.xlu0 %v3398, 112
    %v3808 = vpop.permute.xlu0 %3807
    %3809 = vrot.lane.b32.xlu0 %v3393, 80
    %v3810 = vpop.permute.xlu0 %3809
    %3811 = vrot.lane.b32.xlu0 %v3398, 80
    %v3812 = vpop.permute.xlu0 %3811
    %v3813 = vsel %vm502, %v3806, 0
    %v3815 = vsel %vm502, %v3808, 0
    %v3817 = vsel %vm502, %v3810, 0
    %v3819 = vsel %vm502, %v3812, 0
    %3821 = vmatprep.subr.mxu0 0.0
    %3822 = vmatpush1.xpose.msra.mxu0 %v3817
    %3823 = vmatprep.subr.mxu0 0.0
    %3824 = vmatpush1.xpose.msra.mxu0 %v3819
    %3825 = vmatprep.subr.mxu0 0.0
    %3826 = vmatpush1.xpose.msra.mxu0 0.0
    %3827 = vmatprep.subr.mxu0 0.0
    %3828 = vmatpush1.xpose.msra.mxu0 0.0
    %3829 = vmatprep.subr.mxu0 0.0
    %3830 = vmatpush1.xpose.msra.mxu0 0.0
    %3831 = vmatprep.subr.mxu0 0.0
    %3832 = vmatpush1.xpose.msra.mxu0 0.0
    %3833 = vmatprep.subr.mxu0 0.0
    %3834 = vmatpush1.xpose.msra.mxu0 0.0
    %3835 = vmatprep.subr.mxu0 0.0
    %3836 = vmatpush1.xpose.msra.mxu0 0.0
    %3837 = vmatprep.subr.mxu0 0.0
    %3838 = vmatpush1.xpose.msra.mxu0 0.0
    %3839 = vmatprep.subr.mxu0 0.0
    %3840 = vmatpush1.xpose.msra.mxu0 0.0
    %3841 = vmatprep.subr.mxu0 0.0
    %3842 = vmatpush1.xpose.msra.mxu0 0.0
    %3843 = vmatprep.subr.mxu0 0.0
    %3844 = vmatpush1.xpose.msra.mxu0 0.0
    %3845 = vmatprep.subr.mxu0 0.0
    %3846 = vmatpush1.xpose.msra.mxu0 0.0
    %3847 = vmatprep.subr.mxu0 0.0
    %3848 = vmatpush1.xpose.msra.mxu0 0.0
    %3849 = vmatprep.subr.mxu0 0.0
    %3850 = vmatpush1.xpose.msra.mxu0 0.0
    %3851 = vmatprep.subr.mxu0 0.0
    %3852 = vmatpush1.xpose.msra.mxu0 0.0
    %3853 = vmatprep.subr.mxu0 0.0
    %3854 = vmatpush1.xpose.msra.mxu0 0.0
    %3855 = vmatprep.subr.mxu0 0.0
    %3856 = vmatpush1.xpose.msra.mxu0 0.0
    %3857 = vmatprep.subr.mxu0 0.0
    %3858 = vmatpush1.xpose.msra.mxu0 0.0
    %3859 = vmatprep.subr.mxu0 0.0
    %3860 = vmatpush1.xpose.msra.mxu0 0.0
    %3861 = vmatprep.subr.mxu0 0.0
    %3862 = vmatpush1.xpose.msra.mxu0 0.0
    %3863 = vmatprep.subr.mxu0 0.0
    %3864 = vmatpush1.xpose.msra.mxu0 0.0
    %3865 = vmatprep.subr.mxu0 0.0
    %3866 = vmatpush1.xpose.msra.mxu0 0.0
    %3867 = vmatprep.subr.mxu0 0.0
    %3868 = vmatpush1.xpose.msra.mxu0 0.0
    %3869 = vmatprep.subr.mxu0 0.0
    %3870 = vmatpush1.xpose.msra.mxu0 0.0
    %3871 = vmatprep.subr.mxu0 0.0
    %3872 = vmatpush1.xpose.msra.mxu0 0.0
    %3873 = vmatprep.subr.mxu0 0.0
    %3874 = vmatpush1.xpose.msra.mxu0 0.0
    %3875 = vmatprep.subr.mxu0 0.0
    %3876 = vmatpush1.xpose.msra.mxu0 0.0
    %3877 = vmatprep.subr.mxu0 0.0
    %3878 = vmatpush1.xpose.msra.mxu0 0.0
    %3879 = vmatprep.subr.mxu0 0.0
    %3880 = vmatpush1.xpose.msra.mxu0 0.0
    %3881 = vmatprep.subr.mxu0 0.0
    %3882 = vmatpush1.xpose.msra.mxu0 0.0
    %3883 = vmatprep.subr.mxu0 0.0
    %3884 = vmatpush1.xpose.msra.mxu0 0.0
    %3885 = vmatprep.mubr.f32.mxu0 0.0
    %3886 = vmatmul.mubr.f32.gmra.mrb[0].mxu0 %v3813
    %v3887 = vpop.f32.mrb[0].mxu0
    %v3888 = vadd.f32 0.0, %v3887
    %v3889 = vpop.f32.mrb[0].mxu0
    %3890 = vmatprep.mubr.f32.mxu0 0.0
    %3891 = vmatmul.mubr.f32.gmra.mrb[0].mxu0 %v3815
    %v3892 = vpop.f32.mrb[0].mxu0
    %v3893 = vadd.f32 0.0, %v3892
    %v3894 = vpop.f32.mrb[0].mxu0
    %3895 = vdwg.mxu0
    %v3896 = vmul.f32 %v3888, 0.35355338
    %v3897 = vmul.f32 %v3893, 0.35355338
    %v3898 = vsel %vm588, %v3896, -inf
    %3899 = vmax.xlane.f32.xlu0 %v3898
    %v3900 = vpop.xlane.xlu0 %3899
    %v3901 = vsel %vm592, %v3897, -inf
    %3902 = vmax.xlane.f32.xlu0 %v3901
    %v3903 = vpop.xlane.xlu0 %3902
    %v3904 = vsub.f32 %v3896, %v3900
    %v3905 = vsub.f32 %v3897, %v3903
    %v3906 = vmul.f32 %v3904, 1.442695
    %v3907 = vpow.pop %v3906
    %v3908 = vmul.f32 %v3905, 1.442695
    %v3909 = vpow.pop %v3908
    %v3910 = vsel %vm588, %v3907, 0.0
    %3911 = vadd.xlane.f32.xlu0 %v3910
    %v3912 = vpop.xlane.xlu0 %3911
    %v3913 = vsel %vm592, %v3909, 0.0
    %3914 = vadd.xlane.f32.xlu0 %v3913
    %v3915 = vpop.xlane.xlu0 %3914
    %v3916 = vrcp.pop %v3912
    %v3917 = vrcp.pop %v3915
    %v3918 = vmul.f32 %v3907, %v3916
    %v3919 = vmul.f32 %v3909, %v3917
    %3920 = vrot.lane.b32.xlu0 %v3393, 48
    %v3921 = vpop.permute.xlu0 %3920
    %3922 = vrot.lane.b32.xlu0 %v3398, 48
    %v3923 = vpop.permute.xlu0 %3922
    %v3926 = vsel %vm588, %v3918, 0
    %v3929 = vsel %vm588, %v3919, 0
    %v3931 = vsel %vm623, %v3923, 0
    %3933 = vmatprep.subr.mxu0 0.0
    %3934 = vmatpush1.msra.mxu0 %v3921
    %3935 = vmatprep.subr.mxu0 0.0
    %3936 = vmatpush1.msra.mxu0 %v3931
    %3937 = vmatprep.subr.mxu0 0.0
    %3938 = vmatpush1.msra.mxu0 0.0
    %3939 = vmatprep.subr.mxu0 0.0
    %3940 = vmatpush1.msra.mxu0 0.0
    %3941 = vmatprep.subr.mxu0 0.0
    %3942 = vmatpush1.msra.mxu0 0.0
    %3943 = vmatprep.subr.mxu0 0.0
    %3944 = vmatpush1.msra.mxu0 0.0
    %3945 = vmatprep.subr.mxu0 0.0
    %3946 = vmatpush1.msra.mxu0 0.0
    %3947 = vmatprep.subr.mxu0 0.0
    %3948 = vmatpush1.msra.mxu0 0.0
    %3949 = vmatprep.subr.mxu0 0.0
    %3950 = vmatpush1.msra.mxu0 0.0
    %3951 = vmatprep.subr.mxu0 0.0
    %3952 = vmatpush1.msra.mxu0 0.0
    %3953 = vmatprep.subr.mxu0 0.0
    %3954 = vmatpush1.msra.mxu0 0.0
    %3955 = vmatprep.subr.mxu0 0.0
    %3956 = vmatpush1.msra.mxu0 0.0
    %3957 = vmatprep.subr.mxu0 0.0
    %3958 = vmatpush1.msra.mxu0 0.0
    %3959 = vmatprep.subr.mxu0 0.0
    %3960 = vmatpush1.msra.mxu0 0.0
    %3961 = vmatprep.subr.mxu0 0.0
    %3962 = vmatpush1.msra.mxu0 0.0
    %3963 = vmatprep.subr.mxu0 0.0
    %3964 = vmatpush1.msra.mxu0 0.0
    %3965 = vmatprep.subr.mxu0 0.0
    %3966 = vmatpush1.msra.mxu0 0.0
    %3967 = vmatprep.subr.mxu0 0.0
    %3968 = vmatpush1.msra.mxu0 0.0
    %3969 = vmatprep.subr.mxu0 0.0
    %3970 = vmatpush1.msra.mxu0 0.0
    %3971 = vmatprep.subr.mxu0 0.0
    %3972 = vmatpush1.msra.mxu0 0.0
    %3973 = vmatprep.subr.mxu0 0.0
    %3974 = vmatpush1.msra.mxu0 0.0
    %3975 = vmatprep.subr.mxu0 0.0
    %3976 = vmatpush1.msra.mxu0 0.0
    %3977 = vmatprep.subr.mxu0 0.0
    %3978 = vmatpush1.msra.mxu0 0.0
    %3979 = vmatprep.subr.mxu0 0.0
    %3980 = vmatpush1.msra.mxu0 0.0
    %3981 = vmatprep.subr.mxu0 0.0
    %3982 = vmatpush1.msra.mxu0 0.0
    %3983 = vmatprep.subr.mxu0 0.0
    %3984 = vmatpush1.msra.mxu0 0.0
    %3985 = vmatprep.subr.mxu0 0.0
    %3986 = vmatpush1.msra.mxu0 0.0
    %3987 = vmatprep.subr.mxu0 0.0
    %3988 = vmatpush1.msra.mxu0 0.0
    %3989 = vmatprep.subr.mxu0 0.0
    %3990 = vmatpush1.msra.mxu0 0.0
    %3991 = vmatprep.subr.mxu0 0.0
    %3992 = vmatpush1.msra.mxu0 0.0
    %3993 = vmatprep.subr.mxu0 0.0
    %3994 = vmatpush1.msra.mxu0 0.0
    %3995 = vmatprep.subr.mxu0 0.0
    %3996 = vmatpush1.msra.mxu0 0.0
    %3997 = vmatprep.mubr.f32.mxu0 0.0
    %3998 = vmatmul.mubr.f32.gmra.mrb[0].mxu0 %v3926
    %v3999 = vpop.f32.mrb[0].mxu0
    %v4000 = vadd.f32 0.0, %v3999
    %v4001 = vpop.f32.mrb[0].mxu0
    %4002 = vmatprep.mubr.f32.mxu0 0.0
    %4003 = vmatmul.mubr.f32.gmra.mrb[0].mxu0 %v3929
    %v4004 = vpop.f32.mrb[0].mxu0
    %v4005 = vadd.f32 0.0, %v4004
    %v4006 = vpop.f32.mrb[0].mxu0
    %4007 = vdwg.mxu0
    %4008 = vrot.lane.b32.xlu0 %v3393, 104
    %v4009 = vpop.permute.xlu0 %4008
    %4010 = vrot.lane.b32.xlu0 %v3398, 104
    %v4011 = vpop.permute.xlu0 %4010
    %4012 = vrot.lane.b32.xlu0 %v3393, 72
    %v4013 = vpop.permute.xlu0 %4012
    %4014 = vrot.lane.b32.xlu0 %v3398, 72
    %v4015 = vpop.permute.xlu0 %4014
    %v4016 = vsel %vm502, %v4009, 0
    %v4018 = vsel %vm502, %v4011, 0
    %v4020 = vsel %vm502, %v4013, 0
    %v4022 = vsel %vm502, %v4015, 0
    %4024 = vmatprep.subr.mxu0 0.0
    %4025 = vmatpush1.xpose.msra.mxu0 %v4020
    %4026 = vmatprep.subr.mxu0 0.0
    %4027 = vmatpush1.xpose.msra.mxu0 %v4022
    %4028 = vmatprep.subr.mxu0 0.0
    %4029 = vmatpush1.xpose.msra.mxu0 0.0
    %4030 = vmatprep.subr.mxu0 0.0
    %4031 = vmatpush1.xpose.msra.mxu0 0.0
    %4032 = vmatprep.subr.mxu0 0.0
    %4033 = vmatpush1.xpose.msra.mxu0 0.0
    %4034 = vmatprep.subr.mxu0 0.0
    %4035 = vmatpush1.xpose.msra.mxu0 0.0
    %4036 = vmatprep.subr.mxu0 0.0
    %4037 = vmatpush1.xpose.msra.mxu0 0.0
    %4038 = vmatprep.subr.mxu0 0.0
    %4039 = vmatpush1.xpose.msra.mxu0 0.0
    %4040 = vmatprep.subr.mxu0 0.0
    %4041 = vmatpush1.xpose.msra.mxu0 0.0
    %4042 = vmatprep.subr.mxu0 0.0
    %4043 = vmatpush1.xpose.msra.mxu0 0.0
    %4044 = vmatprep.subr.mxu0 0.0
    %4045 = vmatpush1.xpose.msra.mxu0 0.0
    %4046 = vmatprep.subr.mxu0 0.0
    %4047 = vmatpush1.xpose.msra.mxu0 0.0
    %4048 = vmatprep.subr.mxu0 0.0
    %4049 = vmatpush1.xpose.msra.mxu0 0.0
    %4050 = vmatprep.subr.mxu0 0.0
    %4051 = vmatpush1.xpose.msra.mxu0 0.0
    %4052 = vmatprep.subr.mxu0 0.0
    %4053 = vmatpush1.xpose.msra.mxu0 0.0
    %4054 = vmatprep.subr.mxu0 0.0
    %4055 = vmatpush1.xpose.msra.mxu0 0.0
    %4056 = vmatprep.subr.mxu0 0.0
    %4057 = vmatpush1.xpose.msra.mxu0 0.0
    %4058 = vmatprep.subr.mxu0 0.0
    %4059 = vmatpush1.xpose.msra.mxu0 0.0
    %4060 = vmatprep.subr.mxu0 0.0
    %4061 = vmatpush1.xpose.msra.mxu0 0.0
    %4062 = vmatprep.subr.mxu0 0.0
    %4063 = vmatpush1.xpose.msra.mxu0 0.0
    %4064 = vmatprep.subr.mxu0 0.0
    %4065 = vmatpush1.xpose.msra.mxu0 0.0
    %4066 = vmatprep.subr.mxu0 0.0
    %4067 = vmatpush1.xpose.msra.mxu0 0.0
    %4068 = vmatprep.subr.mxu0 0.0
    %4069 = vmatpush1.xpose.msra.mxu0 0.0
    %4070 = vmatprep.subr.mxu0 0.0
    %4071 = vmatpush1.xpose.msra.mxu0 0.0
    %4072 = vmatprep.subr.mxu0 0.0
    %4073 = vmatpush1.xpose.msra.mxu0 0.0
    %4074 = vmatprep.subr.mxu0 0.0
    %4075 = vmatpush1.xpose.msra.mxu0 0.0
    %4076 = vmatprep.subr.mxu0 0.0
    %4077 = vmatpush1.xpose.msra.mxu0 0.0
    %4078 = vmatprep.subr.mxu0 0.0
    %4079 = vmatpush1.xpose.msra.mxu0 0.0
    %4080 = vmatprep.subr.mxu0 0.0
    %4081 = vmatpush1.xpose.msra.mxu0 0.0
    %4082 = vmatprep.subr.mxu0 0.0
    %4083 = vmatpush1.xpose.msra.mxu0 0.0
    %4084 = vmatprep.subr.mxu0 0.0
    %4085 = vmatpush1.xpose.msra.mxu0 0.0
    %4086 = vmatprep.subr.mxu0 0.0
    %4087 = vmatpush1.xpose.msra.mxu0 0.0
    %4088 = vmatprep.mubr.f32.mxu0 0.0
    %4089 = vmatmul.mubr.f32.gmra.mrb[0].mxu0 %v4016
    %v4090 = vpop.f32.mrb[0].mxu0
    %v4091 = vadd.f32 0.0, %v4090
    %v4092 = vpop.f32.mrb[0].mxu0
    %4093 = vmatprep.mubr.f32.mxu0 0.0
    %4094 = vmatmul.mubr.f32.gmra.mrb[0].mxu0 %v4018
    %v4095 = vpop.f32.mrb[0].mxu0
    %v4096 = vadd.f32 0.0, %v4095
    %v4097 = vpop.f32.mrb[0].mxu0
    %4098 = vdwg.mxu0
    %v4099 = vmul.f32 %v4091, 0.35355338
    %v4100 = vmul.f32 %v4096, 0.35355338
    %v4101 = vsel %vm588, %v4099, -inf
    %4102 = vmax.xlane.f32.xlu0 %v4101
    %v4103 = vpop.xlane.xlu0 %4102
    %v4104 = vsel %vm592, %v4100, -inf
    %4105 = vmax.xlane.f32.xlu0 %v4104
    %v4106 = vpop.xlane.xlu0 %4105
    %v4107 = vsub.f32 %v4099, %v4103
    %v4108 = vsub.f32 %v4100, %v4106
    %v4109 = vmul.f32 %v4107, 1.442695
    %v4110 = vpow.pop %v4109
    %v4111 = vmul.f32 %v4108, 1.442695
    %v4112 = vpow.pop %v4111
    %v4113 = vsel %vm588, %v4110, 0.0
    %4114 = vadd.xlane.f32.xlu0 %v4113
    %v4115 = vpop.xlane.xlu0 %4114
    %v4116 = vsel %vm592, %v4112, 0.0
    %4117 = vadd.xlane.f32.xlu0 %v4116
    %v4118 = vpop.xlane.xlu0 %4117
    %v4119 = vrcp.pop %v4115
    %v4120 = vrcp.pop %v4118
    %v4121 = vmul.f32 %v4110, %v4119
    %v4122 = vmul.f32 %v4112, %v4120
    %4123 = vrot.lane.b32.xlu0 %v3393, 40
    %v4124 = vpop.permute.xlu0 %4123
    %4125 = vrot.lane.b32.xlu0 %v3398, 40
    %v4126 = vpop.permute.xlu0 %4125
    %v4129 = vsel %vm588, %v4121, 0
    %v4132 = vsel %vm588, %v4122, 0
    %v4134 = vsel %vm623, %v4126, 0
    %4136 = vmatprep.subr.mxu0 0.0
    %4137 = vmatpush1.msra.mxu0 %v4124
    %4138 = vmatprep.subr.mxu0 0.0
    %4139 = vmatpush1.msra.mxu0 %v4134
    %4140 = vmatprep.subr.mxu0 0.0
    %4141 = vmatpush1.msra.mxu0 0.0
    %4142 = vmatprep.subr.mxu0 0.0
    %4143 = vmatpush1.msra.mxu0 0.0
    %4144 = vmatprep.subr.mxu0 0.0
    %4145 = vmatpush1.msra.mxu0 0.0
    %4146 = vmatprep.subr.mxu0 0.0
    %4147 = vmatpush1.msra.mxu0 0.0
    %4148 = vmatprep.subr.mxu0 0.0
    %4149 = vmatpush1.msra.mxu0 0.0
    %4150 = vmatprep.subr.mxu0 0.0
    %4151 = vmatpush1.msra.mxu0 0.0
    %4152 = vmatprep.subr.mxu0 0.0
    %4153 = vmatpush1.msra.mxu0 0.0
    %4154 = vmatprep.subr.mxu0 0.0
    %4155 = vmatpush1.msra.mxu0 0.0
    %4156 = vmatprep.subr.mxu0 0.0
    %4157 = vmatpush1.msra.mxu0 0.0
    %4158 = vmatprep.subr.mxu0 0.0
    %4159 = vmatpush1.msra.mxu0 0.0
    %4160 = vmatprep.subr.mxu0 0.0
    %4161 = vmatpush1.msra.mxu0 0.0
    %4162 = vmatprep.subr.mxu0 0.0
    %4163 = vmatpush1.msra.mxu0 0.0
    %4164 = vmatprep.subr.mxu0 0.0
    %4165 = vmatpush1.msra.mxu0 0.0
    %4166 = vmatprep.subr.mxu0 0.0
    %4167 = vmatpush1.msra.mxu0 0.0
    %4168 = vmatprep.subr.mxu0 0.0
    %4169 = vmatpush1.msra.mxu0 0.0
    %4170 = vmatprep.subr.mxu0 0.0
    %4171 = vmatpush1.msra.mxu0 0.0
    %4172 = vmatprep.subr.mxu0 0.0
    %4173 = vmatpush1.msra.mxu0 0.0
    %4174 = vmatprep.subr.mxu0 0.0
    %4175 = vmatpush1.msra.mxu0 0.0
    %4176 = vmatprep.subr.mxu0 0.0
    %4177 = vmatpush1.msra.mxu0 0.0
    %4178 = vmatprep.subr.mxu0 0.0
    %4179 = vmatpush1.msra.mxu0 0.0
    %4180 = vmatprep.subr.mxu0 0.0
    %4181 = vmatpush1.msra.mxu0 0.0
    %4182 = vmatprep.subr.mxu0 0.0
    %4183 = vmatpush1.msra.mxu0 0.0
    %4184 = vmatprep.subr.mxu0 0.0
    %4185 = vmatpush1.msra.mxu0 0.0
    %4186 = vmatprep.subr.mxu0 0.0
    %4187 = vmatpush1.msra.mxu0 0.0
    %4188 = vmatprep.subr.mxu0 0.0
    %4189 = vmatpush1.msra.mxu0 0.0
    %4190 = vmatprep.subr.mxu0 0.0
    %4191 = vmatpush1.msra.mxu0 0.0
    %4192 = vmatprep.subr.mxu0 0.0
    %4193 = vmatpush1.msra.mxu0 0.0
    %4194 = vmatprep.subr.mxu0 0.0
    %4195 = vmatpush1.msra.mxu0 0.0
    %4196 = vmatprep.subr.mxu0 0.0
    %4197 = vmatpush1.msra.mxu0 0.0
    %4198 = vmatprep.subr.mxu0 0.0
    %4199 = vmatpush1.msra.mxu0 0.0
    %4200 = vmatprep.mubr.f32.mxu0 0.0
    %4201 = vmatmul.mubr.f32.gmra.mrb[0].mxu0 %v4129
    %v4202 = vpop.f32.mrb[0].mxu0
    %v4203 = vadd.f32 0.0, %v4202
    %v4204 = vpop.f32.mrb[0].mxu0
    %4205 = vmatprep.mubr.f32.mxu0 0.0
    %4206 = vmatmul.mubr.f32.gmra.mrb[0].mxu0 %v4132
    %v4207 = vpop.f32.mrb[0].mxu0
    %v4208 = vadd.f32 0.0, %v4207
    %v4209 = vpop.f32.mrb[0].mxu0
    %4210 = vdwg.mxu0
    %4213 = vrot.lane.b32.xlu0 %v3797, 8
    %v4214 = vpop.permute.xlu0 %4213
    %4215 = vrot.lane.b32.xlu0 %v3802, 8
    %v4216 = vpop.permute.xlu0 %4215
    %4221 = vrot.lane.b32.xlu0 %v4000, 16
    %v4222 = vpop.permute.xlu0 %4221
    %4223 = vrot.lane.b32.xlu0 %v4005, 16
    %v4224 = vpop.permute.xlu0 %4223
    %4229 = vrot.lane.b32.xlu0 %v4203, 24
    %v4230 = vpop.permute.xlu0 %4229
    %4231 = vrot.lane.b32.xlu0 %v4208, 24
    %v4232 = vpop.permute.xlu0 %4231
    %v4235 = vsel %vm502, %v3594, %v4214
    %v4236 = vsel %vm502, %v3599, %v4216
    %v4237 = vsel %vm264, %v4235, %v4222
    %v4238 = vsel %vm264, %v4236, %v4224
    %v4239 = vsel %vm1338, %v4237, %v4230
    %v4240 = vsel %vm1338, %v4238, %v4232
    %v4241 = vld [vmem:[%s5] sm:$0xff]
    %v4242 = vld [vmem:[%s5 + $0x8] sm:$0xff]
    %v4243 = vld [vmem:[%s5 + $0x10] sm:$0xff]
    %v4244 = vld [vmem:[%s5 + $0x18] sm:$0xff]
    %v4245 = vld [vmem:[#allocation7] sm:$0x1]
    %v4247 = vlaneseq
    %v4248 = vshrl.u32 %v4247, 7
    %v4249 = vsub.s32 0, %v4248
    %v4250 = vrot.slane %v4245, %v4249
    %v4253 = vsel %vm414, %v4239, 0
    %v4256 = vsel %vm414, %v4240, 0
    %4258 = vmatprep.subr.mxu0 0.0
    %4259 = vmatpush1.msra.mxu0 %v4241
    %4260 = vmatprep.subr.mxu0 0.0
    %4261 = vmatpush1.msra.mxu0 %v4242
    %4262 = vmatprep.subr.mxu0 0.0
    %4263 = vmatpush1.msra.mxu0 %v4243
    %4264 = vmatprep.subr.mxu0 0.0
    %4265 = vmatpush1.msra.mxu0 %v4244
    %4266 = vmatprep.subr.mxu0 0.0
    %4267 = vmatpush1.msra.mxu0 0.0
    %4268 = vmatprep.subr.mxu0 0.0
    %4269 = vmatpush1.msra.mxu0 0.0
    %4270 = vmatprep.subr.mxu0 0.0
    %4271 = vmatpush1.msra.mxu0 0.0
    %4272 = vmatprep.subr.mxu0 0.0
    %4273 = vmatpush1.msra.mxu0 0.0
    %4274 = vmatprep.subr.mxu0 0.0
    %4275 = vmatpush1.msra.mxu0 0.0
    %4276 = vmatprep.subr.mxu0 0.0
    %4277 = vmatpush1.msra.mxu0 0.0
    %4278 = vmatprep.subr.mxu0 0.0
    %4279 = vmatpush1.msra.mxu0 0.0
    %4280 = vmatprep.subr.mxu0 0.0
    %4281 = vmatpush1.msra.mxu0 0.0
    %4282 = vmatprep.subr.mxu0 0.0
    %4283 = vmatpush1.msra.mxu0 0.0
    %4284 = vmatprep.subr.mxu0 0.0
    %4285 = vmatpush1.msra.mxu0 0.0
    %4286 = vmatprep.subr.mxu0 0.0
    %4287 = vmatpush1.msra.mxu0 0.0
    %4288 = vmatprep.subr.mxu0 0.0
    %4289 = vmatpush1.msra.mxu0 0.0
    %4290 = vmatprep.subr.mxu0 0.0
    %4291 = vmatpush1.msra.mxu0 0.0
    %4292 = vmatprep.subr.mxu0 0.0
    %4293 = vmatpush1.msra.mxu0 0.0
    %4294 = vmatprep.subr.mxu0 0.0
    %4295 = vmatpush1.msra.mxu0 0.0
    %4296 = vmatprep.subr.mxu0 0.0
    %4297 = vmatpush1.msra.mxu0 0.0
    %4298 = vmatprep.subr.mxu0 0.0
    %4299 = vmatpush1.msra.mxu0 0.0
    %4300 = vmatprep.subr.mxu0 0.0
    %4301 = vmatpush1.msra.mxu0 0.0
    %4302 = vmatprep.subr.mxu0 0.0
    %4303 = vmatpush1.msra.mxu0 0.0
    %4304 = vmatprep.subr.mxu0 0.0
    %4305 = vmatpush1.msra.mxu0 0.0
    %4306 = vmatprep.subr.mxu0 0.0
    %4307 = vmatpush1.msra.mxu0 0.0
    %4308 = vmatprep.subr.mxu0 0.0
    %4309 = vmatpush1.msra.mxu0 0.0
    %4310 = vmatprep.subr.mxu0 0.0
    %4311 = vmatpush1.msra.mxu0 0.0
    %4312 = vmatprep.subr.mxu0 0.0
    %4313 = vmatpush1.msra.mxu0 0.0
    %4314 = vmatprep.subr.mxu0 0.0
    %4315 = vmatpush1.msra.mxu0 0.0
    %4316 = vmatprep.subr.mxu0 0.0
    %4317 = vmatpush1.msra.mxu0 0.0
    %4318 = vmatprep.subr.mxu0 0.0
    %4319 = vmatpush1.msra.mxu0 0.0
    %4320 = vmatprep.subr.mxu0 0.0
    %4321 = vmatpush1.msra.mxu0 0.0
    %4322 = vmatprep.mubr.f32.mxu0 0.0
    %4323 = vmatmul.mubr.f32.gmra.mrb[0].mxu0 %v4253
    %v4324 = vpop.f32.mrb[0].mxu0
    %v4325 = vadd.f32 %v4250, %v4324
    %v4326 = vpop.f32.mrb[0].mxu0
    %4327 = vmatprep.mubr.f32.mxu0 0.0
    %4328 = vmatmul.mubr.f32.gmra.mrb[0].mxu0 %v4256
    %v4329 = vpop.f32.mrb[0].mxu0
    %v4330 = vadd.f32 %v4250, %v4329
    %v4331 = vpop.f32.mrb[0].mxu0
    %4332 = vdwg.mxu0
    %v4333 = vadd.f32 %v3301, %v4325
    %v4334 = vadd.f32 %v3306, %v4330
    %v4335 = vld [vmem:[#allocation15] sm:$0x1]
    %v4336 = vld [vmem:[#allocation16] sm:$0x1]
    %v4337 = vsel %vm414, %v4333, 0.0
    %4338 = vadd.xlane.f32.xlu0 %v4337
    %v4339 = vpop.xlane.xlu0 %4338
    %v4340 = vsel %vm1440, %v4334, 0.0
    %4341 = vadd.xlane.f32.xlu0 %v4340
    %v4342 = vpop.xlane.xlu0 %4341
    %v4343 = vmul.f32 %v4339, %v1444
    %v4344 = vmul.f32 %v4342, %v1444
    %v4345 = vsub.f32 %v4333, %v4343
    %v4346 = vsub.f32 %v4334, %v4344
    %v4347 = vmul.f32 %v4345, %v4345
    %v4348 = vmul.f32 %v4346, %v4346
    %v4349 = vsel %vm414, %v4347, 0.0
    %4350 = vadd.xlane.f32.xlu0 %v4349
    %v4351 = vpop.xlane.xlu0 %4350
    %v4352 = vsel %vm1440, %v4348, 0.0
    %4353 = vadd.xlane.f32.xlu0 %v4352
    %v4354 = vpop.xlane.xlu0 %4353
    %v4355 = vmul.f32 %v4351, %v1444
    %v4356 = vmul.f32 %v4354, %v1444
    %v4357 = vadd.f32 %v4355, 1e-05
    %v4358 = vadd.f32 %v4356, 1e-05
    %v4359 = vrsqrt.pop %v4357
    %v4360 = vrsqrt.pop %v4358
    %v4361 = vmul.f32 %v4345, %v4359
    %v4362 = vmul.f32 %v4346, %v4360
    %v4364 = vlaneseq
    %v4365 = vshrl.u32 %v4364, 7
    %v4366 = vsub.s32 0, %v4365
    %v4367 = vrot.slane %v4335, %v4366
    %v4369 = vmul.f32 %v4361, %v4367
    %v4370 = vmul.f32 %v4362, %v4367
    %v4372 = vlaneseq
    %v4373 = vshrl.u32 %v4372, 7
    %v4374 = vsub.s32 0, %v4373
    %v4375 = vrot.slane %v4336, %v4374
    %v4377 = vadd.f32 %v4369, %v4375
    %v4378 = vadd.f32 %v4370, %v4375
    %v4379 = vld [vmem:[#allocation9] sm:$0xff]
    %v4380 = vld [vmem:[#allocation9 + $0x8] sm:$0xff]
    %v4381 = vld [vmem:[#allocation9 + $0x10] sm:$0xff]
    %v4382 = vld [vmem:[#allocation9 + $0x18] sm:$0xff]
    %v4383 = vld [vmem:[#allocation10] sm:$0x1]
    %v4385 = vlaneseq
    %v4386 = vshrl.u32 %v4385, 7
    %v4387 = vsub.s32 0, %v4386
    %v4388 = vrot.slane %v4383, %v4387
    %v4391 = vsel %vm414, %v4377, 0
    %v4394 = vsel %vm414, %v4378, 0
    %4396 = vmatprep.subr.mxu0 0.0
    %4397 = vmatpush1.msra.mxu0 %v4379
    %4398 = vmatprep.subr.mxu0 0.0
    %4399 = vmatpush1.msra.mxu0 %v4380
    %4400 = vmatprep.subr.mxu0 0.0
    %4401 = vmatpush1.msra.mxu0 %v4381
    %4402 = vmatprep.subr.mxu0 0.0
    %4403 = vmatpush1.msra.mxu0 %v4382
    %4404 = vmatprep.subr.mxu0 0.0
    %4405 = vmatpush1.msra.mxu0 0.0
    %4406 = vmatprep.subr.mxu0 0.0
    %4407 = vmatpush1.msra.mxu0 0.0
    %4408 = vmatprep.subr.mxu0 0.0
    %4409 = vmatpush1.msra.mxu0 0.0
    %4410 = vmatprep.subr.mxu0 0.0
    %4411 = vmatpush1.msra.mxu0 0.0
    %4412 = vmatprep.subr.mxu0 0.0
    %4413 = vmatpush1.msra.mxu0 0.0
    %4414 = vmatprep.subr.mxu0 0.0
    %4415 = vmatpush1.msra.mxu0 0.0
    %4416 = vmatprep.subr.mxu0 0.0
    %4417 = vmatpush1.msra.mxu0 0.0
    %4418 = vmatprep.subr.mxu0 0.0
    %4419 = vmatpush1.msra.mxu0 0.0
    %4420 = vmatprep.subr.mxu0 0.0
    %4421 = vmatpush1.msra.mxu0 0.0
    %4422 = vmatprep.subr.mxu0 0.0
    %4423 = vmatpush1.msra.mxu0 0.0
    %4424 = vmatprep.subr.mxu0 0.0
    %4425 = vmatpush1.msra.mxu0 0.0
    %4426 = vmatprep.subr.mxu0 0.0
    %4427 = vmatpush1.msra.mxu0 0.0
    %4428 = vmatprep.subr.mxu0 0.0
    %4429 = vmatpush1.msra.mxu0 0.0
    %4430 = vmatprep.subr.mxu0 0.0
    %4431 = vmatpush1.msra.mxu0 0.0
    %4432 = vmatprep.subr.mxu0 0.0
    %4433 = vmatpush1.msra.mxu0 0.0
    %4434 = vmatprep.subr.mxu0 0.0
    %4435 = vmatpush1.msra.mxu0 0.0
    %4436 = vmatprep.subr.mxu0 0.0
    %4437 = vmatpush1.msra.mxu0 0.0
    %4438 = vmatprep.subr.mxu0 0.0
    %4439 = vmatpush1.msra.mxu0 0.0
    %4440 = vmatprep.subr.mxu0 0.0
    %4441 = vmatpush1.msra.mxu0 0.0
    %4442 = vmatprep.subr.mxu0 0.0
    %4443 = vmatpush1.msra.mxu0 0.0
    %4444 = vmatprep.subr.mxu0 0.0
    %4445 = vmatpush1.msra.mxu0 0.0
    %4446 = vmatprep.subr.mxu0 0.0
    %4447 = vmatpush1.msra.mxu0 0.0
    %4448 = vmatprep.subr.mxu0 0.0
    %4449 = vmatpush1.msra.mxu0 0.0
    %4450 = vmatprep.subr.mxu0 0.0
    %4451 = vmatpush1.msra.mxu0 0.0
    %4452 = vmatprep.subr.mxu0 0.0
    %4453 = vmatpush1.msra.mxu0 0.0
    %4454 = vmatprep.subr.mxu0 0.0
    %4455 = vmatpush1.msra.mxu0 0.0
    %4456 = vmatprep.subr.mxu0 0.0
    %4457 = vmatpush1.msra.mxu0 0.0
    %4458 = vmatprep.subr.mxu0 0.0
    %4459 = vmatpush1.msra.mxu0 0.0
    %4460 = vmatprep.mubr.f32.mxu0 0.0
    %4461 = vmatmul.mubr.f32.gmra.mrb[0].mxu0 %v4391
    %v4462 = vpop.f32.mrb[0].mxu0
    %v4463 = vadd.f32 %v4388, %v4462
    %v4464 = vpop.f32.mrb[0].mxu0
    %4465 = vmatprep.mubr.f32.mxu0 0.0
    %4466 = vmatmul.mubr.f32.gmra.mrb[0].mxu0 %v4394
    %v4467 = vpop.f32.mrb[0].mxu0
    %v4468 = vadd.f32 %v4388, %v4467
    %v4469 = vpop.f32.mrb[0].mxu0
    %4470 = vdwg.mxu0
    %v4471 = vmax.f32 %v4463, 0.0
    %v4472 = vmax.f32 %v4468, 0.0
    %v4473 = vld [vmem:[#allocation12] sm:$0xff]
    %v4474 = vld [vmem:[#allocation12 + $0x8] sm:$0xff]
    %v4475 = vld [vmem:[#allocation12 + $0x10] sm:$0xff]
    %v4476 = vld [vmem:[#allocation12 + $0x18] sm:$0xff]
    %v4477 = vld [vmem:[#allocation13] sm:$0x1]
    %v4479 = vlaneseq
    %v4480 = vshrl.u32 %v4479, 7
    %v4481 = vsub.s32 0, %v4480
    %v4482 = vrot.slane %v4477, %v4481
    %v4485 = vsel %vm414, %v4471, 0
    %v4488 = vsel %vm414, %v4472, 0
    %4490 = vmatprep.subr.mxu0 0.0
    %4491 = vmatpush1.msra.mxu0 %v4473
    %4492 = vmatprep.subr.mxu0 0.0
    %4493 = vmatpush1.msra.mxu0 %v4474
    %4494 = vmatprep.subr.mxu0 0.0
    %4495 = vmatpush1.msra.mxu0 %v4475
    %4496 = vmatprep.subr.mxu0 0.0
    %4497 = vmatpush1.msra.mxu0 %v4476
    %4498 = vmatprep.subr.mxu0 0.0
    %4499 = vmatpush1.msra.mxu0 0.0
    %4500 = vmatprep.subr.mxu0 0.0
    %4501 = vmatpush1.msra.mxu0 0.0
    %4502 = vmatprep.subr.mxu0 0.0
    %4503 = vmatpush1.msra.mxu0 0.0
    %4504 = vmatprep.subr.mxu0 0.0
    %4505 = vmatpush1.msra.mxu0 0.0
    %4506 = vmatprep.subr.mxu0 0.0
    %4507 = vmatpush1.msra.mxu0 0.0
    %4508 = vmatprep.subr.mxu0 0.0
    %4509 = vmatpush1.msra.mxu0 0.0
    %4510 = vmatprep.subr.mxu0 0.0
    %4511 = vmatpush1.msra.mxu0 0.0
    %4512 = vmatprep.subr.mxu0 0.0
    %4513 = vmatpush1.msra.mxu0 0.0
    %4514 = vmatprep.subr.mxu0 0.0
    %4515 = vmatpush1.msra.mxu0 0.0
    %4516 = vmatprep.subr.mxu0 0.0
    %4517 = vmatpush1.msra.mxu0 0.0
    %4518 = vmatprep.subr.mxu0 0.0
    %4519 = vmatpush1.msra.mxu0 0.0
    %4520 = vmatprep.subr.mxu0 0.0
    %4521 = vmatpush1.msra.mxu0 0.0
    %4522 = vmatprep.subr.mxu0 0.0
    %4523 = vmatpush1.msra.mxu0 0.0
    %4524 = vmatprep.subr.mxu0 0.0
    %4525 = vmatpush1.msra.mxu0 0.0
    %4526 = vmatprep.subr.mxu0 0.0
    %4527 = vmatpush1.msra.mxu0 0.0
    %4528 = vmatprep.subr.mxu0 0.0
    %4529 = vmatpush1.msra.mxu0 0.0
    %4530 = vmatprep.subr.mxu0 0.0
    %4531 = vmatpush1.msra.mxu0 0.0
    %4532 = vmatprep.subr.mxu0 0.0
    %4533 = vmatpush1.msra.mxu0 0.0
    %4534 = vmatprep.subr.mxu0 0.0
    %4535 = vmatpush1.msra.mxu0 0.0
    %4536 = vmatprep.subr.mxu0 0.0
    %4537 = vmatpush1.msra.mxu0 0.0
    %4538 = vmatprep.subr.mxu0 0.0
    %4539 = vmatpush1.msra.mxu0 0.0
    %4540 = vmatprep.subr.mxu0 0.0
    %4541 = vmatpush1.msra.mxu0 0.0
    %4542 = vmatprep.subr.mxu0 0.0
    %4543 = vmatpush1.msra.mxu0 0.0
    %4544 = vmatprep.subr.mxu0 0.0
    %4545 = vmatpush1.msra.mxu0 0.0
    %4546 = vmatprep.subr.mxu0 0.0
    %4547 = vmatpush1.msra.mxu0 0.0
    %4548 = vmatprep.subr.mxu0 0.0
    %4549 = vmatpush1.msra.mxu0 0.0
    %4550 = vmatprep.subr.mxu0 0.0
    %4551 = vmatpush1.msra.mxu0 0.0
    %4552 = vmatprep.subr.mxu0 0.0
    %4553 = vmatpush1.msra.mxu0 0.0
    %4554 = vmatprep.mubr.f32.mxu0 0.0
    %4555 = vmatmul.mubr.f32.gmra.mrb[0].mxu0 %v4485
    %v4556 = vpop.f32.mrb[0].mxu0
    %v4557 = vadd.f32 %v4482, %v4556
    %v4558 = vpop.f32.mrb[0].mxu0
    %4559 = vmatprep.mubr.f32.mxu0 0.0
    %4560 = vmatmul.mubr.f32.gmra.mrb[0].mxu0 %v4488
    %v4561 = vpop.f32.mrb[0].mxu0
    %v4562 = vadd.f32 %v4482, %v4561
    %v4563 = vpop.f32.mrb[0].mxu0
    %4564 = vdwg.mxu0
    %v4565 = vadd.f32 %v4377, %v4557
    %v4566 = vadd.f32 %v4378, %v4562
    %v4567 = vld [vmem:[#allocation18] sm:$0x1]
    %v4568 = vld [vmem:[#allocation19] sm:$0x1]
    %v4569 = vsel %vm414, %v4565, 0.0
    %4570 = vadd.xlane.f32.xlu0 %v4569
    %v4571 = vpop.xlane.xlu0 %4570
    %v4572 = vsel %vm1440, %v4566, 0.0
    %4573 = vadd.xlane.f32.xlu0 %v4572
    %v4574 = vpop.xlane.xlu0 %4573
    %v4575 = vmul.f32 %v4571, %v1444
    %v4576 = vmul.f32 %v4574, %v1444
    %v4577 = vsub.f32 %v4565, %v4575
    %v4578 = vsub.f32 %v4566, %v4576
    %v4579 = vmul.f32 %v4577, %v4577
    %v4580 = vmul.f32 %v4578, %v4578
    %v4581 = vsel %vm414, %v4579, 0.0
    %4582 = vadd.xlane.f32.xlu0 %v4581
    %v4583 = vpop.xlane.xlu0 %4582
    %v4584 = vsel %vm1440, %v4580, 0.0
    %4585 = vadd.xlane.f32.xlu0 %v4584
    %v4586 = vpop.xlane.xlu0 %4585
    %v4587 = vmul.f32 %v4583, %v1444
    %v4588 = vmul.f32 %v4586, %v1444
    %v4589 = vadd.f32 %v4587, 1e-05
    %v4590 = vadd.f32 %v4588, 1e-05
    %v4591 = vrsqrt.pop %v4589
    %v4592 = vrsqrt.pop %v4590
    %v4593 = vmul.f32 %v4577, %v4591
    %v4594 = vmul.f32 %v4578, %v4592
    %v4596 = vlaneseq
    %v4597 = vshrl.u32 %v4596, 7
    %v4598 = vsub.s32 0, %v4597
    %v4599 = vrot.slane %v4567, %v4598
    %v4601 = vmul.f32 %v4593, %v4599
    %v4602 = vmul.f32 %v4594, %v4599
    %v4604 = vlaneseq
    %v4605 = vshrl.u32 %v4604, 7
    %v4606 = vsub.s32 0, %v4605
    %v4607 = vrot.slane %v4568, %v4606
    %v4609 = vadd.f32 %v4601, %v4607
    %v4610 = vadd.f32 %v4602, %v4607
    %v4611 = vld [vmem:[%s1713] sm:$0xff]
    %v4612 = vld [vmem:[%s1713 + $0x8] sm:$0xff]
    %v4613 = vld [vmem:[%s1713 + $0x10] sm:$0xff]
    %v4614 = vld [vmem:[%s1713 + $0x18] sm:$0xff]
    %v4615 = vld [vmem:[%s1718] sm:$0x1]
    %v4617 = vlaneseq
    %v4618 = vshrl.u32 %v4617, 7
    %v4619 = vsub.s32 0, %v4618
    %v4620 = vrot.slane %v4615, %v4619
    %v4623 = vsel %vm414, %v4609, 0
    %v4626 = vsel %vm414, %v4610, 0
    %4628 = vmatprep.subr.mxu0 0.0
    %4629 = vmatpush1.msra.mxu0 %v4611
    %4630 = vmatprep.subr.mxu0 0.0
    %4631 = vmatpush1.msra.mxu0 %v4612
    %4632 = vmatprep.subr.mxu0 0.0
    %4633 = vmatpush1.msra.mxu0 %v4613
    %4634 = vmatprep.subr.mxu0 0.0
    %4635 = vmatpush1.msra.mxu0 %v4614
    %4636 = vmatprep.subr.mxu0 0.0
    %4637 = vmatpush1.msra.mxu0 0.0
    %4638 = vmatprep.subr.mxu0 0.0
    %4639 = vmatpush1.msra.mxu0 0.0
    %4640 = vmatprep.subr.mxu0 0.0
    %4641 = vmatpush1.msra.mxu0 0.0
    %4642 = vmatprep.subr.mxu0 0.0
    %4643 = vmatpush1.msra.mxu0 0.0
    %4644 = vmatprep.subr.mxu0 0.0
    %4645 = vmatpush1.msra.mxu0 0.0
    %4646 = vmatprep.subr.mxu0 0.0
    %4647 = vmatpush1.msra.mxu0 0.0
    %4648 = vmatprep.subr.mxu0 0.0
    %4649 = vmatpush1.msra.mxu0 0.0
    %4650 = vmatprep.subr.mxu0 0.0
    %4651 = vmatpush1.msra.mxu0 0.0
    %4652 = vmatprep.subr.mxu0 0.0
    %4653 = vmatpush1.msra.mxu0 0.0
    %4654 = vmatprep.subr.mxu0 0.0
    %4655 = vmatpush1.msra.mxu0 0.0
    %4656 = vmatprep.subr.mxu0 0.0
    %4657 = vmatpush1.msra.mxu0 0.0
    %4658 = vmatprep.subr.mxu0 0.0
    %4659 = vmatpush1.msra.mxu0 0.0
    %4660 = vmatprep.subr.mxu0 0.0
    %4661 = vmatpush1.msra.mxu0 0.0
    %4662 = vmatprep.subr.mxu0 0.0
    %4663 = vmatpush1.msra.mxu0 0.0
    %4664 = vmatprep.subr.mxu0 0.0
    %4665 = vmatpush1.msra.mxu0 0.0
    %4666 = vmatprep.subr.mxu0 0.0
    %4667 = vmatpush1.msra.mxu0 0.0
    %4668 = vmatprep.subr.mxu0 0.0
    %4669 = vmatpush1.msra.mxu0 0.0
    %4670 = vmatprep.subr.mxu0 0.0
    %4671 = vmatpush1.msra.mxu0 0.0
    %4672 = vmatprep.subr.mxu0 0.0
    %4673 = vmatpush1.msra.mxu0 0.0
    %4674 = vmatprep.subr.mxu0 0.0
    %4675 = vmatpush1.msra.mxu0 0.0
    %4676 = vmatprep.subr.mxu0 0.0
    %4677 = vmatpush1.msra.mxu0 0.0
    %4678 = vmatprep.subr.mxu0 0.0
    %4679 = vmatpush1.msra.mxu0 0.0
    %4680 = vmatprep.subr.mxu0 0.0
    %4681 = vmatpush1.msra.mxu0 0.0
    %4682 = vmatprep.subr.mxu0 0.0
    %4683 = vmatpush1.msra.mxu0 0.0
    %4684 = vmatprep.subr.mxu0 0.0
    %4685 = vmatpush1.msra.mxu0 0.0
    %4686 = vmatprep.subr.mxu0 0.0
    %4687 = vmatpush1.msra.mxu0 0.0
    %4688 = vmatprep.subr.mxu0 0.0
    %4689 = vmatpush1.msra.mxu0 0.0
    %4690 = vmatprep.subr.mxu0 0.0
    %4691 = vmatpush1.msra.mxu0 0.0
    %4692 = vmatprep.mubr.f32.mxu0 0.0
    %4693 = vmatmul.mubr.f32.gmra.mrb[0].mxu0 %v4623
    %v4694 = vpop.f32.mrb[0].mxu0
    %v4695 = vadd.f32 %v4620, %v4694
    %v4696 = vpop.f32.mrb[0].mxu0
    %4697 = vmatprep.mubr.f32.mxu0 0.0
    %4698 = vmatmul.mubr.f32.gmra.mrb[0].mxu0 %v4626
    %v4699 = vpop.f32.mrb[0].mxu0
    %v4700 = vadd.f32 %v4620, %v4699
    %v4701 = vpop.f32.mrb[0].mxu0
    %4702 = vdwg.mxu0
    %4705 = vrot.lane.b32.xlu0 %v4695, 96
    %v4706 = vpop.permute.xlu0 %4705
    %4707 = vrot.lane.b32.xlu0 %v4700, 96
    %v4708 = vpop.permute.xlu0 %4707
    %v4709 = vsel %vm502, %v4695, 0
    %v4711 = vsel %vm502, %v4700, 0
    %v4713 = vsel %vm502, %v4706, 0
    %v4715 = vsel %vm502, %v4708, 0
    %4717 = vmatprep.subr.mxu0 0.0
    %4718 = vmatpush1.xpose.msra.mxu0 %v4713
    %4719 = vmatprep.subr.mxu0 0.0
    %4720 = vmatpush1.xpose.msra.mxu0 %v4715
    %4721 = vmatprep.subr.mxu0 0.0
    %4722 = vmatpush1.xpose.msra.mxu0 0.0
    %4723 = vmatprep.subr.mxu0 0.0
    %4724 = vmatpush1.xpose.msra.mxu0 0.0
    %4725 = vmatprep.subr.mxu0 0.0
    %4726 = vmatpush1.xpose.msra.mxu0 0.0
    %4727 = vmatprep.subr.mxu0 0.0
    %4728 = vmatpush1.xpose.msra.mxu0 0.0
    %4729 = vmatprep.subr.mxu0 0.0
    %4730 = vmatpush1.xpose.msra.mxu0 0.0
    %4731 = vmatprep.subr.mxu0 0.0
    %4732 = vmatpush1.xpose.msra.mxu0 0.0
    %4733 = vmatprep.subr.mxu0 0.0
    %4734 = vmatpush1.xpose.msra.mxu0 0.0
    %4735 = vmatprep.subr.mxu0 0.0
    %4736 = vmatpush1.xpose.msra.mxu0 0.0
    %4737 = vmatprep.subr.mxu0 0.0
    %4738 = vmatpush1.xpose.msra.mxu0 0.0
    %4739 = vmatprep.subr.mxu0 0.0
    %4740 = vmatpush1.xpose.msra.mxu0 0.0
    %4741 = vmatprep.subr.mxu0 0.0
    %4742 = vmatpush1.xpose.msra.mxu0 0.0
    %4743 = vmatprep.subr.mxu0 0.0
    %4744 = vmatpush1.xpose.msra.mxu0 0.0
    %4745 = vmatprep.subr.mxu0 0.0
    %4746 = vmatpush1.xpose.msra.mxu0 0.0
    %4747 = vmatprep.subr.mxu0 0.0
    %4748 = vmatpush1.xpose.msra.mxu0 0.0
    %4749 = vmatprep.subr.mxu0 0.0
    %4750 = vmatpush1.xpose.msra.mxu0 0.0
    %4751 = vmatprep.subr.mxu0 0.0
    %4752 = vmatpush1.xpose.msra.mxu0 0.0
    %4753 = vmatprep.subr.mxu0 0.0
    %4754 = vmatpush1.xpose.msra.mxu0 0.0
    %4755 = vmatprep.subr.mxu0 0.0
    %4756 = vmatpush1.xpose.msra.mxu0 0.0
    %4757 = vmatprep.subr.mxu0 0.0
    %4758 = vmatpush1.xpose.msra.mxu0 0.0
    %4759 = vmatprep.subr.mxu0 0.0
    %4760 = vmatpush1.xpose.msra.mxu0 0.0
    %4761 = vmatprep.subr.mxu0 0.0
    %4762 = vmatpush1.xpose.msra.mxu0 0.0
    %4763 = vmatprep.subr.mxu0 0.0
    %4764 = vmatpush1.xpose.msra.mxu0 0.0
    %4765 = vmatprep.subr.mxu0 0.0
    %4766 = vmatpush1.xpose.msra.mxu0 0.0
    %4767 = vmatprep.subr.mxu0 0.0
    %4768 = vmatpush1.xpose.msra.mxu0 0.0
    %4769 = vmatprep.subr.mxu0 0.0
    %4770 = vmatpush1.xpose.msra.mxu0 0.0
    %4771 = vmatprep.subr.mxu0 0.0
    %4772 = vmatpush1.xpose.msra.mxu0 0.0
    %4773 = vmatprep.subr.mxu0 0.0
    %4774 = vmatpush1.xpose.msra.mxu0 0.0
    %4775 = vmatprep.subr.mxu0 0.0
    %4776 = vmatpush1.xpose.msra.mxu0 0.0
    %4777 = vmatprep.subr.mxu0 0.0
    %4778 = vmatpush1.xpose.msra.mxu0 0.0
    %4779 = vmatprep.subr.mxu0 0.0
    %4780 = vmatpush1.xpose.msra.mxu0 0.0
    %4781 = vmatprep.mubr.f32.mxu0 0.0
    %4782 = vmatmul.mubr.f32.gmra.mrb[0].mxu0 %v4709
    %v4783 = vpop.f32.mrb[0].mxu0
    %v4784 = vadd.f32 0.0, %v4783
    %v4785 = vpop.f32.mrb[0].mxu0
    %4786 = vmatprep.mubr.f32.mxu0 0.0
    %4787 = vmatmul.mubr.f32.gmra.mrb[0].mxu0 %v4711
    %v4788 = vpop.f32.mrb[0].mxu0
    %v4789 = vadd.f32 0.0, %v4788
    %v4790 = vpop.f32.mrb[0].mxu0
    %4791 = vdwg.mxu0
    %v4792 = vmul.f32 %v4784, 0.35355338
    %v4793 = vmul.f32 %v4789, 0.35355338
    %v4794 = vsel %vm588, %v4792, -inf
    %4795 = vmax.xlane.f32.xlu0 %v4794
    %v4796 = vpop.xlane.xlu0 %4795
    %v4797 = vsel %vm592, %v4793, -inf
    %4798 = vmax.xlane.f32.xlu0 %v4797
    %v4799 = vpop.xlane.xlu0 %4798
    %v4800 = vsub.f32 %v4792, %v4796
    %v4801 = vsub.f32 %v4793, %v4799
    %v4802 = vmul.f32 %v4800, 1.442695
    %v4803 = vpow.pop %v4802
    %v4804 = vmul.f32 %v4801, 1.442695
    %v4805 = vpow.pop %v4804
    %v4806 = vsel %vm588, %v4803, 0.0
    %4807 = vadd.xlane.f32.xlu0 %v4806
    %v4808 = vpop.xlane.xlu0 %4807
    %v4809 = vsel %vm592, %v4805, 0.0
    %4810 = vadd.xlane.f32.xlu0 %v4809
    %v4811 = vpop.xlane.xlu0 %4810
    %v4812 = vrcp.pop %v4808
    %v4813 = vrcp.pop %v4811
    %v4814 = vmul.f32 %v4803, %v4812
    %v4815 = vmul.f32 %v4805, %v4813
    %4816 = vrot.lane.b32.xlu0 %v4695, 64
    %v4817 = vpop.permute.xlu0 %4816
    %4818 = vrot.lane.b32.xlu0 %v4700, 64
    %v4819 = vpop.permute.xlu0 %4818
    %v4822 = vsel %vm588, %v4814, 0
    %v4825 = vsel %vm588, %v4815, 0
    %v4827 = vsel %vm623, %v4819, 0
    %4829 = vmatprep.subr.mxu0 0.0
    %4830 = vmatpush1.msra.mxu0 %v4817
    %4831 = vmatprep.subr.mxu0 0.0
    %4832 = vmatpush1.msra.mxu0 %v4827
    %4833 = vmatprep.subr.mxu0 0.0
    %4834 = vmatpush1.msra.mxu0 0.0
    %4835 = vmatprep.subr.mxu0 0.0
    %4836 = vmatpush1.msra.mxu0 0.0
    %4837 = vmatprep.subr.mxu0 0.0
    %4838 = vmatpush1.msra.mxu0 0.0
    %4839 = vmatprep.subr.mxu0 0.0
    %4840 = vmatpush1.msra.mxu0 0.0
    %4841 = vmatprep.subr.mxu0 0.0
    %4842 = vmatpush1.msra.mxu0 0.0
    %4843 = vmatprep.subr.mxu0 0.0
    %4844 = vmatpush1.msra.mxu0 0.0
    %4845 = vmatprep.subr.mxu0 0.0
    %4846 = vmatpush1.msra.mxu0 0.0
    %4847 = vmatprep.subr.mxu0 0.0
    %4848 = vmatpush1.msra.mxu0 0.0
    %4849 = vmatprep.subr.mxu0 0.0
    %4850 = vmatpush1.msra.mxu0 0.0
    %4851 = vmatprep.subr.mxu0 0.0
    %4852 = vmatpush1.msra.mxu0 0.0
    %4853 = vmatprep.subr.mxu0 0.0
    %4854 = vmatpush1.msra.mxu0 0.0
    %4855 = vmatprep.subr.mxu0 0.0
    %4856 = vmatpush1.msra.mxu0 0.0
    %4857 = vmatprep.subr.mxu0 0.0
    %4858 = vmatpush1.msra.mxu0 0.0
    %4859 = vmatprep.subr.mxu0 0.0
    %4860 = vmatpush1.msra.mxu0 0.0
    %4861 = vmatprep.subr.mxu0 0.0
    %4862 = vmatpush1.msra.mxu0 0.0
    %4863 = vmatprep.subr.mxu0 0.0
    %4864 = vmatpush1.msra.mxu0 0.0
    %4865 = vmatprep.subr.mxu0 0.0
    %4866 = vmatpush1.msra.mxu0 0.0
    %4867 = vmatprep.subr.mxu0 0.0
    %4868 = vmatpush1.msra.mxu0 0.0
    %4869 = vmatprep.subr.mxu0 0.0
    %4870 = vmatpush1.msra.mxu0 0.0
    %4871 = vmatprep.subr.mxu0 0.0
    %4872 = vmatpush1.msra.mxu0 0.0
    %4873 = vmatprep.subr.mxu0 0.0
    %4874 = vmatpush1.msra.mxu0 0.0
    %4875 = vmatprep.subr.mxu0 0.0
    %4876 = vmatpush1.msra.mxu0 0.0
    %4877 = vmatprep.subr.mxu0 0.0
    %4878 = vmatpush1.msra.mxu0 0.0
    %4879 = vmatprep.subr.mxu0 0.0
    %4880 = vmatpush1.msra.mxu0 0.0
    %4881 = vmatprep.subr.mxu0 0.0
    %4882 = vmatpush1.msra.mxu0 0.0
    %4883 = vmatprep.subr.mxu0 0.0
    %4884 = vmatpush1.msra.mxu0 0.0
    %4885 = vmatprep.subr.mxu0 0.0
    %4886 = vmatpush1.msra.mxu0 0.0
    %4887 = vmatprep.subr.mxu0 0.0
    %4888 = vmatpush1.msra.mxu0 0.0
    %4889 = vmatprep.subr.mxu0 0.0
    %4890 = vmatpush1.msra.mxu0 0.0
    %4891 = vmatprep.subr.mxu0 0.0
    %4892 = vmatpush1.msra.mxu0 0.0
    %4893 = vmatprep.mubr.f32.mxu0 0.0
    %4894 = vmatmul.mubr.f32.gmra.mrb[0].mxu0 %v4822
    %v4895 = vpop.f32.mrb[0].mxu0
    %v4896 = vadd.f32 0.0, %v4895
    %v4897 = vpop.f32.mrb[0].mxu0
    %4898 = vmatprep.mubr.f32.mxu0 0.0
    %4899 = vmatmul.mubr.f32.gmra.mrb[0].mxu0 %v4825
    %v4900 = vpop.f32.mrb[0].mxu0
    %v4901 = vadd.f32 0.0, %v4900
    %v4902 = vpop.f32.mrb[0].mxu0
    %4903 = vdwg.mxu0
    %4904 = vrot.lane.b32.xlu0 %v4695, 120
    %v4905 = vpop.permute.xlu0 %4904
    %4906 = vrot.lane.b32.xlu0 %v4700, 120
    %v4907 = vpop.permute.xlu0 %4906
    %4908 = vrot.lane.b32.xlu0 %v4695, 88
    %v4909 = vpop.permute.xlu0 %4908
    %4910 = vrot.lane.b32.xlu0 %v4700, 88
    %v4911 = vpop.permute.xlu0 %4910
    %v4912 = vsel %vm502, %v4905, 0
    %v4914 = vsel %vm502, %v4907, 0
    %v4916 = vsel %vm502, %v4909, 0
    %v4918 = vsel %vm502, %v4911, 0
    %4920 = vmatprep.subr.mxu0 0.0
    %4921 = vmatpush1.xpose.msra.mxu0 %v4916
    %4922 = vmatprep.subr.mxu0 0.0
    %4923 = vmatpush1.xpose.msra.mxu0 %v4918
    %4924 = vmatprep.subr.mxu0 0.0
    %4925 = vmatpush1.xpose.msra.mxu0 0.0
    %4926 = vmatprep.subr.mxu0 0.0
    %4927 = vmatpush1.xpose.msra.mxu0 0.0
    %4928 = vmatprep.subr.mxu0 0.0
    %4929 = vmatpush1.xpose.msra.mxu0 0.0
    %4930 = vmatprep.subr.mxu0 0.0
    %4931 = vmatpush1.xpose.msra.mxu0 0.0
    %4932 = vmatprep.subr.mxu0 0.0
    %4933 = vmatpush1.xpose.msra.mxu0 0.0
    %4934 = vmatprep.subr.mxu0 0.0
    %4935 = vmatpush1.xpose.msra.mxu0 0.0
    %4936 = vmatprep.subr.mxu0 0.0
    %4937 = vmatpush1.xpose.msra.mxu0 0.0
    %4938 = vmatprep.subr.mxu0 0.0
    %4939 = vmatpush1.xpose.msra.mxu0 0.0
    %4940 = vmatprep.subr.mxu0 0.0
    %4941 = vmatpush1.xpose.msra.mxu0 0.0
    %4942 = vmatprep.subr.mxu0 0.0
    %4943 = vmatpush1.xpose.msra.mxu0 0.0
    %4944 = vmatprep.subr.mxu0 0.0
    %4945 = vmatpush1.xpose.msra.mxu0 0.0
    %4946 = vmatprep.subr.mxu0 0.0
    %4947 = vmatpush1.xpose.msra.mxu0 0.0
    %4948 = vmatprep.subr.mxu0 0.0
    %4949 = vmatpush1.xpose.msra.mxu0 0.0
    %4950 = vmatprep.subr.mxu0 0.0
    %4951 = vmatpush1.xpose.msra.mxu0 0.0
    %4952 = vmatprep.subr.mxu0 0.0
    %4953 = vmatpush1.xpose.msra.mxu0 0.0
    %4954 = vmatprep.subr.mxu0 0.0
    %4955 = vmatpush1.xpose.msra.mxu0 0.0
    %4956 = vmatprep.subr.mxu0 0.0
    %4957 = vmatpush1.xpose.msra.mxu0 0.0
    %4958 = vmatprep.subr.mxu0 0.0
    %4959 = vmatpush1.xpose.msra.mxu0 0.0
    %4960 = vmatprep.subr.mxu0 0.0
    %4961 = vmatpush1.xpose.msra.mxu0 0.0
    %4962 = vmatprep.subr.mxu0 0.0
    %4963 = vmatpush1.xpose.msra.mxu0 0.0
    %4964 = vmatprep.subr.mxu0 0.0
    %4965 = vmatpush1.xpose.msra.mxu0 0.0
    %4966 = vmatprep.subr.mxu0 0.0
    %4967 = vmatpush1.xpose.msra.mxu0 0.0
    %4968 = vmatprep.subr.mxu0 0.0
    %4969 = vmatpush1.xpose.msra.mxu0 0.0
    %4970 = vmatprep.subr.mxu0 0.0
    %4971 = vmatpush1.xpose.msra.mxu0 0.0
    %4972 = vmatprep.subr.mxu0 0.0
    %4973 = vmatpush1.xpose.msra.mxu0 0.0
    %4974 = vmatprep.subr.mxu0 0.0
    %4975 = vmatpush1.xpose.msra.mxu0 0.0
    %4976 = vmatprep.subr.mxu0 0.0
    %4977 = vmatpush1.xpose.msra.mxu0 0.0
    %4978 = vmatprep.subr.mxu0 0.0
    %4979 = vmatpush1.xpose.msra.mxu0 0.0
    %4980 = vmatprep.subr.mxu0 0.0
    %4981 = vmatpush1.xpose.msra.mxu0 0.0
    %4982 = vmatprep.subr.mxu0 0.0
    %4983 = vmatpush1.xpose.msra.mxu0 0.0
    %4984 = vmatprep.mubr.f32.mxu0 0.0
    %4985 = vmatmul.mubr.f32.gmra.mrb[0].mxu0 %v4912
    %v4986 = vpop.f32.mrb[0].mxu0
    %v4987 = vadd.f32 0.0, %v4986
    %v4988 = vpop.f32.mrb[0].mxu0
    %4989 = vmatprep.mubr.f32.mxu0 0.0
    %4990 = vmatmul.mubr.f32.gmra.mrb[0].mxu0 %v4914
    %v4991 = vpop.f32.mrb[0].mxu0
    %v4992 = vadd.f32 0.0, %v4991
    %v4993 = vpop.f32.mrb[0].mxu0
    %4994 = vdwg.mxu0
    %v4995 = vmul.f32 %v4987, 0.35355338
    %v4996 = vmul.f32 %v4992, 0.35355338
    %v4997 = vsel %vm588, %v4995, -inf
    %4998 = vmax.xlane.f32.xlu0 %v4997
    %v4999 = vpop.xlane.xlu0 %4998
    %v5000 = vsel %vm592, %v4996, -inf
    %5001 = vmax.xlane.f32.xlu0 %v5000
    %v5002 = vpop.xlane.xlu0 %5001
    %v5003 = vsub.f32 %v4995, %v4999
    %v5004 = vsub.f32 %v4996, %v5002
    %v5005 = vmul.f32 %v5003, 1.442695
    %v5006 = vpow.pop %v5005
    %v5007 = vmul.f32 %v5004, 1.442695
    %v5008 = vpow.pop %v5007
    %v5009 = vsel %vm588, %v5006, 0.0
    %5010 = vadd.xlane.f32.xlu0 %v5009
    %v5011 = vpop.xlane.xlu0 %5010
    %v5012 = vsel %vm592, %v5008, 0.0
    %5013 = vadd.xlane.f32.xlu0 %v5012
    %v5014 = vpop.xlane.xlu0 %5013
    %v5015 = vrcp.pop %v5011
    %v5016 = vrcp.pop %v5014
    %v5017 = vmul.f32 %v5006, %v5015
    %v5018 = vmul.f32 %v5008, %v5016
    %5019 = vrot.lane.b32.xlu0 %v4695, 56
    %v5020 = vpop.permute.xlu0 %5019
    %5021 = vrot.lane.b32.xlu0 %v4700, 56
    %v5022 = vpop.permute.xlu0 %5021
    %v5025 = vsel %vm588, %v5017, 0
    %v5028 = vsel %vm588, %v5018, 0
    %v5030 = vsel %vm623, %v5022, 0
    %5032 = vmatprep.subr.mxu0 0.0
    %5033 = vmatpush1.msra.mxu0 %v5020
    %5034 = vmatprep.subr.mxu0 0.0
    %5035 = vmatpush1.msra.mxu0 %v5030
    %5036 = vmatprep.subr.mxu0 0.0
    %5037 = vmatpush1.msra.mxu0 0.0
    %5038 = vmatprep.subr.mxu0 0.0
    %5039 = vmatpush1.msra.mxu0 0.0
    %5040 = vmatprep.subr.mxu0 0.0
    %5041 = vmatpush1.msra.mxu0 0.0
    %5042 = vmatprep.subr.mxu0 0.0
    %5043 = vmatpush1.msra.mxu0 0.0
    %5044 = vmatprep.subr.mxu0 0.0
    %5045 = vmatpush1.msra.mxu0 0.0
    %5046 = vmatprep.subr.mxu0 0.0
    %5047 = vmatpush1.msra.mxu0 0.0
    %5048 = vmatprep.subr.mxu0 0.0
    %5049 = vmatpush1.msra.mxu0 0.0
    %5050 = vmatprep.subr.mxu0 0.0
    %5051 = vmatpush1.msra.mxu0 0.0
    %5052 = vmatprep.subr.mxu0 0.0
    %5053 = vmatpush1.msra.mxu0 0.0
    %5054 = vmatprep.subr.mxu0 0.0
    %5055 = vmatpush1.msra.mxu0 0.0
    %5056 = vmatprep.subr.mxu0 0.0
    %5057 = vmatpush1.msra.mxu0 0.0
    %5058 = vmatprep.subr.mxu0 0.0
    %5059 = vmatpush1.msra.mxu0 0.0
    %5060 = vmatprep.subr.mxu0 0.0
    %5061 = vmatpush1.msra.mxu0 0.0
    %5062 = vmatprep.subr.mxu0 0.0
    %5063 = vmatpush1.msra.mxu0 0.0
    %5064 = vmatprep.subr.mxu0 0.0
    %5065 = vmatpush1.msra.mxu0 0.0
    %5066 = vmatprep.subr.mxu0 0.0
    %5067 = vmatpush1.msra.mxu0 0.0
    %5068 = vmatprep.subr.mxu0 0.0
    %5069 = vmatpush1.msra.mxu0 0.0
    %5070 = vmatprep.subr.mxu0 0.0
    %5071 = vmatpush1.msra.mxu0 0.0
    %5072 = vmatprep.subr.mxu0 0.0
    %5073 = vmatpush1.msra.mxu0 0.0
    %5074 = vmatprep.subr.mxu0 0.0
    %5075 = vmatpush1.msra.mxu0 0.0
    %5076 = vmatprep.subr.mxu0 0.0
    %5077 = vmatpush1.msra.mxu0 0.0
    %5078 = vmatprep.subr.mxu0 0.0
    %5079 = vmatpush1.msra.mxu0 0.0
    %5080 = vmatprep.subr.mxu0 0.0
    %5081 = vmatpush1.msra.mxu0 0.0
    %5082 = vmatprep.subr.mxu0 0.0
    %5083 = vmatpush1.msra.mxu0 0.0
    %5084 = vmatprep.subr.mxu0 0.0
    %5085 = vmatpush1.msra.mxu0 0.0
    %5086 = vmatprep.subr.mxu0 0.0
    %5087 = vmatpush1.msra.mxu0 0.0
    %5088 = vmatprep.subr.mxu0 0.0
    %5089 = vmatpush1.msra.mxu0 0.0
    %5090 = vmatprep.subr.mxu0 0.0
    %5091 = vmatpush1.msra.mxu0 0.0
    %5092 = vmatprep.subr.mxu0 0.0
    %5093 = vmatpush1.msra.mxu0 0.0
    %5094 = vmatprep.subr.mxu0 0.0
    %5095 = vmatpush1.msra.mxu0 0.0
    %5096 = vmatprep.mubr.f32.mxu0 0.0
    %5097 = vmatmul.mubr.f32.gmra.mrb[0].mxu0 %v5025
    %v5098 = vpop.f32.mrb[0].mxu0
    %v5099 = vadd.f32 0.0, %v5098
    %v5100 = vpop.f32.mrb[0].mxu0
    %5101 = vmatprep.mubr.f32.mxu0 0.0
    %5102 = vmatmul.mubr.f32.gmra.mrb[0].mxu0 %v5028
    %v5103 = vpop.f32.mrb[0].mxu0
    %v5104 = vadd.f32 0.0, %v5103
    %v5105 = vpop.f32.mrb[0].mxu0
    %5106 = vdwg.mxu0
    %5107 = vrot.lane.b32.xlu0 %v4695, 112
    %v5108 = vpop.permute.xlu0 %5107
    %5109 = vrot.lane.b32.xlu0 %v4700, 112
    %v5110 = vpop.permute.xlu0 %5109
    %5111 = vrot.lane.b32.xlu0 %v4695, 80
    %v5112 = vpop.permute.xlu0 %5111
    %5113 = vrot.lane.b32.xlu0 %v4700, 80
    %v5114 = vpop.permute.xlu0 %5113
    %v5115 = vsel %vm502, %v5108, 0
    %v5117 = vsel %vm502, %v5110, 0
    %v5119 = vsel %vm502, %v5112, 0
    %v5121 = vsel %vm502, %v5114, 0
    %5123 = vmatprep.subr.mxu0 0.0
    %5124 = vmatpush1.xpose.msra.mxu0 %v5119
    %5125 = vmatprep.subr.mxu0 0.0
    %5126 = vmatpush1.xpose.msra.mxu0 %v5121
    %5127 = vmatprep.subr.mxu0 0.0
    %5128 = vmatpush1.xpose.msra.mxu0 0.0
    %5129 = vmatprep.subr.mxu0 0.0
    %5130 = vmatpush1.xpose.msra.mxu0 0.0
    %5131 = vmatprep.subr.mxu0 0.0
    %5132 = vmatpush1.xpose.msra.mxu0 0.0
    %5133 = vmatprep.subr.mxu0 0.0
    %5134 = vmatpush1.xpose.msra.mxu0 0.0
    %5135 = vmatprep.subr.mxu0 0.0
    %5136 = vmatpush1.xpose.msra.mxu0 0.0
    %5137 = vmatprep.subr.mxu0 0.0
    %5138 = vmatpush1.xpose.msra.mxu0 0.0
    %5139 = vmatprep.subr.mxu0 0.0
    %5140 = vmatpush1.xpose.msra.mxu0 0.0
    %5141 = vmatprep.subr.mxu0 0.0
    %5142 = vmatpush1.xpose.msra.mxu0 0.0
    %5143 = vmatprep.subr.mxu0 0.0
    %5144 = vmatpush1.xpose.msra.mxu0 0.0
    %5145 = vmatprep.subr.mxu0 0.0
    %5146 = vmatpush1.xpose.msra.mxu0 0.0
    %5147 = vmatprep.subr.mxu0 0.0
    %5148 = vmatpush1.xpose.msra.mxu0 0.0
    %5149 = vmatprep.subr.mxu0 0.0
    %5150 = vmatpush1.xpose.msra.mxu0 0.0
    %5151 = vmatprep.subr.mxu0 0.0
    %5152 = vmatpush1.xpose.msra.mxu0 0.0
    %5153 = vmatprep.subr.mxu0 0.0
    %5154 = vmatpush1.xpose.msra.mxu0 0.0
    %5155 = vmatprep.subr.mxu0 0.0
    %5156 = vmatpush1.xpose.msra.mxu0 0.0
    %5157 = vmatprep.subr.mxu0 0.0
    %5158 = vmatpush1.xpose.msra.mxu0 0.0
    %5159 = vmatprep.subr.mxu0 0.0
    %5160 = vmatpush1.xpose.msra.mxu0 0.0
    %5161 = vmatprep.subr.mxu0 0.0
    %5162 = vmatpush1.xpose.msra.mxu0 0.0
    %5163 = vmatprep.subr.mxu0 0.0
    %5164 = vmatpush1.xpose.msra.mxu0 0.0
    %5165 = vmatprep.subr.mxu0 0.0
    %5166 = vmatpush1.xpose.msra.mxu0 0.0
    %5167 = vmatprep.subr.mxu0 0.0
    %5168 = vmatpush1.xpose.msra.mxu0 0.0
    %5169 = vmatprep.subr.mxu0 0.0
    %5170 = vmatpush1.xpose.msra.mxu0 0.0
    %5171 = vmatprep.subr.mxu0 0.0
    %5172 = vmatpush1.xpose.msra.mxu0 0.0
    %5173 = vmatprep.subr.mxu0 0.0
    %5174 = vmatpush1.xpose.msra.mxu0 0.0
    %5175 = vmatprep.subr.mxu0 0.0
    %5176 = vmatpush1.xpose.msra.mxu0 0.0
    %5177 = vmatprep.subr.mxu0 0.0
    %5178 = vmatpush1.xpose.msra.mxu0 0.0
    %5179 = vmatprep.subr.mxu0 0.0
    %5180 = vmatpush1.xpose.msra.mxu0 0.0
    %5181 = vmatprep.subr.mxu0 0.0
    %5182 = vmatpush1.xpose.msra.mxu0 0.0
    %5183 = vmatprep.subr.mxu0 0.0
    %5184 = vmatpush1.xpose.msra.mxu0 0.0
    %5185 = vmatprep.subr.mxu0 0.0
    %5186 = vmatpush1.xpose.msra.mxu0 0.0
    %5187 = vmatprep.mubr.f32.mxu0 0.0
    %5188 = vmatmul.mubr.f32.gmra.mrb[0].mxu0 %v5115
    %v5189 = vpop.f32.mrb[0].mxu0
    %v5190 = vadd.f32 0.0, %v5189
    %v5191 = vpop.f32.mrb[0].mxu0
    %5192 = vmatprep.mubr.f32.mxu0 0.0
    %5193 = vmatmul.mubr.f32.gmra.mrb[0].mxu0 %v5117
    %v5194 = vpop.f32.mrb[0].mxu0
    %v5195 = vadd.f32 0.0, %v5194
    %v5196 = vpop.f32.mrb[0].mxu0
    %5197 = vdwg.mxu0
    %v5198 = vmul.f32 %v5190, 0.35355338
    %v5199 = vmul.f32 %v5195, 0.35355338
    %v5200 = vsel %vm588, %v5198, -inf
    %5201 = vmax.xlane.f32.xlu0 %v5200
    %v5202 = vpop.xlane.xlu0 %5201
    %v5203 = vsel %vm592, %v5199, -inf
    %5204 = vmax.xlane.f32.xlu0 %v5203
    %v5205 = vpop.xlane.xlu0 %5204
    %v5206 = vsub.f32 %v5198, %v5202
    %v5207 = vsub.f32 %v5199, %v5205
    %v5208 = vmul.f32 %v5206, 1.442695
    %v5209 = vpow.pop %v5208
    %v5210 = vmul.f32 %v5207, 1.442695
    %v5211 = vpow.pop %v5210
    %v5212 = vsel %vm588, %v5209, 0.0
    %5213 = vadd.xlane.f32.xlu0 %v5212
    %v5214 = vpop.xlane.xlu0 %5213
    %v5215 = vsel %vm592, %v5211, 0.0
    %5216 = vadd.xlane.f32.xlu0 %v5215
    %v5217 = vpop.xlane.xlu0 %5216
    %v5218 = vrcp.pop %v5214
    %v5219 = vrcp.pop %v5217
    %v5220 = vmul.f32 %v5209, %v5218
    %v5221 = vmul.f32 %v5211, %v5219
    %5222 = vrot.lane.b32.xlu0 %v4695, 48
    %v5223 = vpop.permute.xlu0 %5222
    %5224 = vrot.lane.b32.xlu0 %v4700, 48
    %v5225 = vpop.permute.xlu0 %5224
    %v5228 = vsel %vm588, %v5220, 0
    %v5231 = vsel %vm588, %v5221, 0
    %v5233 = vsel %vm623, %v5225, 0
    %5235 = vmatprep.subr.mxu0 0.0
    %5236 = vmatpush1.msra.mxu0 %v5223
    %5237 = vmatprep.subr.mxu0 0.0
    %5238 = vmatpush1.msra.mxu0 %v5233
    %5239 = vmatprep.subr.mxu0 0.0
    %5240 = vmatpush1.msra.mxu0 0.0
    %5241 = vmatprep.subr.mxu0 0.0
    %5242 = vmatpush1.msra.mxu0 0.0
    %5243 = vmatprep.subr.mxu0 0.0
    %5244 = vmatpush1.msra.mxu0 0.0
    %5245 = vmatprep.subr.mxu0 0.0
    %5246 = vmatpush1.msra.mxu0 0.0
    %5247 = vmatprep.subr.mxu0 0.0
    %5248 = vmatpush1.msra.mxu0 0.0
    %5249 = vmatprep.subr.mxu0 0.0
    %5250 = vmatpush1.msra.mxu0 0.0
    %5251 = vmatprep.subr.mxu0 0.0
    %5252 = vmatpush1.msra.mxu0 0.0
    %5253 = vmatprep.subr.mxu0 0.0
    %5254 = vmatpush1.msra.mxu0 0.0
    %5255 = vmatprep.subr.mxu0 0.0
    %5256 = vmatpush1.msra.mxu0 0.0
    %5257 = vmatprep.subr.mxu0 0.0
    %5258 = vmatpush1.msra.mxu0 0.0
    %5259 = vmatprep.subr.mxu0 0.0
    %5260 = vmatpush1.msra.mxu0 0.0
    %5261 = vmatprep.subr.mxu0 0.0
    %5262 = vmatpush1.msra.mxu0 0.0
    %5263 = vmatprep.subr.mxu0 0.0
    %5264 = vmatpush1.msra.mxu0 0.0
    %5265 = vmatprep.subr.mxu0 0.0
    %5266 = vmatpush1.msra.mxu0 0.0
    %5267 = vmatprep.subr.mxu0 0.0
    %5268 = vmatpush1.msra.mxu0 0.0
    %5269 = vmatprep.subr.mxu0 0.0
    %5270 = vmatpush1.msra.mxu0 0.0
    %5271 = vmatprep.subr.mxu0 0.0
    %5272 = vmatpush1.msra.mxu0 0.0
    %5273 = vmatprep.subr.mxu0 0.0
    %5274 = vmatpush1.msra.mxu0 0.0
    %5275 = vmatprep.subr.mxu0 0.0
    %5276 = vmatpush1.msra.mxu0 0.0
    %5277 = vmatprep.subr.mxu0 0.0
    %5278 = vmatpush1.msra.mxu0 0.0
    %5279 = vmatprep.subr.mxu0 0.0
    %5280 = vmatpush1.msra.mxu0 0.0
    %5281 = vmatprep.subr.mxu0 0.0
    %5282 = vmatpush1.msra.mxu0 0.0
    %5283 = vmatprep.subr.mxu0 0.0
    %5284 = vmatpush1.msra.mxu0 0.0
    %5285 = vmatprep.subr.mxu0 0.0
    %5286 = vmatpush1.msra.mxu0 0.0
    %5287 = vmatprep.subr.mxu0 0.0
    %5288 = vmatpush1.msra.mxu0 0.0
    %5289 = vmatprep.subr.mxu0 0.0
    %5290 = vmatpush1.msra.mxu0 0.0
    %5291 = vmatprep.subr.mxu0 0.0
    %5292 = vmatpush1.msra.mxu0 0.0
    %5293 = vmatprep.subr.mxu0 0.0
    %5294 = vmatpush1.msra.mxu0 0.0
    %5295 = vmatprep.subr.mxu0 0.0
    %5296 = vmatpush1.msra.mxu0 0.0
    %5297 = vmatprep.subr.mxu0 0.0
    %5298 = vmatpush1.msra.mxu0 0.0
    %5299 = vmatprep.mubr.f32.mxu0 0.0
    %5300 = vmatmul.mubr.f32.gmra.mrb[0].mxu0 %v5228
    %v5301 = vpop.f32.mrb[0].mxu0
    %v5302 = vadd.f32 0.0, %v5301
    %v5303 = vpop.f32.mrb[0].mxu0
    %5304 = vmatprep.mubr.f32.mxu0 0.0
    %5305 = vmatmul.mubr.f32.gmra.mrb[0].mxu0 %v5231
    %v5306 = vpop.f32.mrb[0].mxu0
    %v5307 = vadd.f32 0.0, %v5306
    %v5308 = vpop.f32.mrb[0].mxu0
    %5309 = vdwg.mxu0
    %5310 = vrot.lane.b32.xlu0 %v4695, 104
    %v5311 = vpop.permute.xlu0 %5310
    %5312 = vrot.lane.b32.xlu0 %v4700, 104
    %v5313 = vpop.permute.xlu0 %5312
    %5314 = vrot.lane.b32.xlu0 %v4695, 72
    %v5315 = vpop.permute.xlu0 %5314
    %5316 = vrot.lane.b32.xlu0 %v4700, 72
    %v5317 = vpop.permute.xlu0 %5316
    %v5318 = vsel %vm502, %v5311, 0
    %v5320 = vsel %vm502, %v5313, 0
    %v5322 = vsel %vm502, %v5315, 0
    %v5324 = vsel %vm502, %v5317, 0
    %5326 = vmatprep.subr.mxu0 0.0
    %5327 = vmatpush1.xpose.msra.mxu0 %v5322
    %5328 = vmatprep.subr.mxu0 0.0
    %5329 = vmatpush1.xpose.msra.mxu0 %v5324
    %5330 = vmatprep.subr.mxu0 0.0
    %5331 = vmatpush1.xpose.msra.mxu0 0.0
    %5332 = vmatprep.subr.mxu0 0.0
    %5333 = vmatpush1.xpose.msra.mxu0 0.0
    %5334 = vmatprep.subr.mxu0 0.0
    %5335 = vmatpush1.xpose.msra.mxu0 0.0
    %5336 = vmatprep.subr.mxu0 0.0
    %5337 = vmatpush1.xpose.msra.mxu0 0.0
    %5338 = vmatprep.subr.mxu0 0.0
    %5339 = vmatpush1.xpose.msra.mxu0 0.0
    %5340 = vmatprep.subr.mxu0 0.0
    %5341 = vmatpush1.xpose.msra.mxu0 0.0
    %5342 = vmatprep.subr.mxu0 0.0
    %5343 = vmatpush1.xpose.msra.mxu0 0.0
    %5344 = vmatprep.subr.mxu0 0.0
    %5345 = vmatpush1.xpose.msra.mxu0 0.0
    %5346 = vmatprep.subr.mxu0 0.0
    %5347 = vmatpush1.xpose.msra.mxu0 0.0
    %5348 = vmatprep.subr.mxu0 0.0
    %5349 = vmatpush1.xpose.msra.mxu0 0.0
    %5350 = vmatprep.subr.mxu0 0.0
    %5351 = vmatpush1.xpose.msra.mxu0 0.0
    %5352 = vmatprep.subr.mxu0 0.0
    %5353 = vmatpush1.xpose.msra.mxu0 0.0
    %5354 = vmatprep.subr.mxu0 0.0
    %5355 = vmatpush1.xpose.msra.mxu0 0.0
    %5356 = vmatprep.subr.mxu0 0.0
    %5357 = vmatpush1.xpose.msra.mxu0 0.0
    %5358 = vmatprep.subr.mxu0 0.0
    %5359 = vmatpush1.xpose.msra.mxu0 0.0
    %5360 = vmatprep.subr.mxu0 0.0
    %5361 = vmatpush1.xpose.msra.mxu0 0.0
    %5362 = vmatprep.subr.mxu0 0.0
    %5363 = vmatpush1.xpose.msra.mxu0 0.0
    %5364 = vmatprep.subr.mxu0 0.0
    %5365 = vmatpush1.xpose.msra.mxu0 0.0
    %5366 = vmatprep.subr.mxu0 0.0
    %5367 = vmatpush1.xpose.msra.mxu0 0.0
    %5368 = vmatprep.subr.mxu0 0.0
    %5369 = vmatpush1.xpose.msra.mxu0 0.0
    %5370 = vmatprep.subr.mxu0 0.0
    %5371 = vmatpush1.xpose.msra.mxu0 0.0
    %5372 = vmatprep.subr.mxu0 0.0
    %5373 = vmatpush1.xpose.msra.mxu0 0.0
    %5374 = vmatprep.subr.mxu0 0.0
    %5375 = vmatpush1.xpose.msra.mxu0 0.0
    %5376 = vmatprep.subr.mxu0 0.0
    %5377 = vmatpush1.xpose.msra.mxu0 0.0
    %5378 = vmatprep.subr.mxu0 0.0
    %5379 = vmatpush1.xpose.msra.mxu0 0.0
    %5380 = vmatprep.subr.mxu0 0.0
    %5381 = vmatpush1.xpose.msra.mxu0 0.0
    %5382 = vmatprep.subr.mxu0 0.0
    %5383 = vmatpush1.xpose.msra.mxu0 0.0
    %5384 = vmatprep.subr.mxu0 0.0
    %5385 = vmatpush1.xpose.msra.mxu0 0.0
    %5386 = vmatprep.subr.mxu0 0.0
    %5387 = vmatpush1.xpose.msra.mxu0 0.0
    %5388 = vmatprep.subr.mxu0 0.0
    %5389 = vmatpush1.xpose.msra.mxu0 0.0
    %5390 = vmatprep.mubr.f32.mxu0 0.0
    %5391 = vmatmul.mubr.f32.gmra.mrb[0].mxu0 %v5318
    %v5392 = vpop.f32.mrb[0].mxu0
    %v5393 = vadd.f32 0.0, %v5392
    %v5394 = vpop.f32.mrb[0].mxu0
    %5395 = vmatprep.mubr.f32.mxu0 0.0
    %5396 = vmatmul.mubr.f32.gmra.mrb[0].mxu0 %v5320
    %v5397 = vpop.f32.mrb[0].mxu0
    %v5398 = vadd.f32 0.0, %v5397
    %v5399 = vpop.f32.mrb[0].mxu0
    %5400 = vdwg.mxu0
    %v5401 = vmul.f32 %v5393, 0.35355338
    %v5402 = vmul.f32 %v5398, 0.35355338
    %v5403 = vsel %vm588, %v5401, -inf
    %5404 = vmax.xlane.f32.xlu0 %v5403
    %v5405 = vpop.xlane.xlu0 %5404
    %v5406 = vsel %vm592, %v5402, -inf
    %5407 = vmax.xlane.f32.xlu0 %v5406
    %v5408 = vpop.xlane.xlu0 %5407
    %v5409 = vsub.f32 %v5401, %v5405
    %v5410 = vsub.f32 %v5402, %v5408
    %v5411 = vmul.f32 %v5409, 1.442695
    %v5412 = vpow.pop %v5411
    %v5413 = vmul.f32 %v5410, 1.442695
    %v5414 = vpow.pop %v5413
    %v5415 = vsel %vm588, %v5412, 0.0
    %5416 = vadd.xlane.f32.xlu0 %v5415
    %v5417 = vpop.xlane.xlu0 %5416
    %v5418 = vsel %vm592, %v5414, 0.0
    %5419 = vadd.xlane.f32.xlu0 %v5418
    %v5420 = vpop.xlane.xlu0 %5419
    %v5421 = vrcp.pop %v5417
    %v5422 = vrcp.pop %v5420
    %v5423 = vmul.f32 %v5412, %v5421
    %v5424 = vmul.f32 %v5414, %v5422
    %5425 = vrot.lane.b32.xlu0 %v4695, 40
    %v5426 = vpop.permute.xlu0 %5425
    %5427 = vrot.lane.b32.xlu0 %v4700, 40
    %v5428 = vpop.permute.xlu0 %5427
    %v5431 = vsel %vm588, %v5423, 0
    %v5434 = vsel %vm588, %v5424, 0
    %v5436 = vsel %vm623, %v5428, 0
    %5438 = vmatprep.subr.mxu0 0.0
    %5439 = vmatpush1.msra.mxu0 %v5426
    %5440 = vmatprep.subr.mxu0 0.0
    %5441 = vmatpush1.msra.mxu0 %v5436
    %5442 = vmatprep.subr.mxu0 0.0
    %5443 = vmatpush1.msra.mxu0 0.0
    %5444 = vmatprep.subr.mxu0 0.0
    %5445 = vmatpush1.msra.mxu0 0.0
    %5446 = vmatprep.subr.mxu0 0.0
    %5447 = vmatpush1.msra.mxu0 0.0
    %5448 = vmatprep.subr.mxu0 0.0
    %5449 = vmatpush1.msra.mxu0 0.0
    %5450 = vmatprep.subr.mxu0 0.0
    %5451 = vmatpush1.msra.mxu0 0.0
    %5452 = vmatprep.subr.mxu0 0.0
    %5453 = vmatpush1.msra.mxu0 0.0
    %5454 = vmatprep.subr.mxu0 0.0
    %5455 = vmatpush1.msra.mxu0 0.0
    %5456 = vmatprep.subr.mxu0 0.0
    %5457 = vmatpush1.msra.mxu0 0.0
    %5458 = vmatprep.subr.mxu0 0.0
    %5459 = vmatpush1.msra.mxu0 0.0
    %5460 = vmatprep.subr.mxu0 0.0
    %5461 = vmatpush1.msra.mxu0 0.0
    %5462 = vmatprep.subr.mxu0 0.0
    %5463 = vmatpush1.msra.mxu0 0.0
    %5464 = vmatprep.subr.mxu0 0.0
    %5465 = vmatpush1.msra.mxu0 0.0
    %5466 = vmatprep.subr.mxu0 0.0
    %5467 = vmatpush1.msra.mxu0 0.0
    %5468 = vmatprep.subr.mxu0 0.0
    %5469 = vmatpush1.msra.mxu0 0.0
    %5470 = vmatprep.subr.mxu0 0.0
    %5471 = vmatpush1.msra.mxu0 0.0
    %5472 = vmatprep.subr.mxu0 0.0
    %5473 = vmatpush1.msra.mxu0 0.0
    %5474 = vmatprep.subr.mxu0 0.0
    %5475 = vmatpush1.msra.mxu0 0.0
    %5476 = vmatprep.subr.mxu0 0.0
    %5477 = vmatpush1.msra.mxu0 0.0
    %5478 = vmatprep.subr.mxu0 0.0
    %5479 = vmatpush1.msra.mxu0 0.0
    %5480 = vmatprep.subr.mxu0 0.0
    %5481 = vmatpush1.msra.mxu0 0.0
    %5482 = vmatprep.subr.mxu0 0.0
    %5483 = vmatpush1.msra.mxu0 0.0
    %5484 = vmatprep.subr.mxu0 0.0
    %5485 = vmatpush1.msra.mxu0 0.0
    %5486 = vmatprep.subr.mxu0 0.0
    %5487 = vmatpush1.msra.mxu0 0.0
    %5488 = vmatprep.subr.mxu0 0.0
    %5489 = vmatpush1.msra.mxu0 0.0
    %5490 = vmatprep.subr.mxu0 0.0
    %5491 = vmatpush1.msra.mxu0 0.0
    %5492 = vmatprep.subr.mxu0 0.0
    %5493 = vmatpush1.msra.mxu0 0.0
    %5494 = vmatprep.subr.mxu0 0.0
    %5495 = vmatpush1.msra.mxu0 0.0
    %5496 = vmatprep.subr.mxu0 0.0
    %5497 = vmatpush1.msra.mxu0 0.0
    %5498 = vmatprep.subr.mxu0 0.0
    %5499 = vmatpush1.msra.mxu0 0.0
    %5500 = vmatprep.subr.mxu0 0.0
    %5501 = vmatpush1.msra.mxu0 0.0
    %5502 = vmatprep.mubr.f32.mxu0 0.0
    %5503 = vmatmul.mubr.f32.gmra.mrb[0].mxu0 %v5431
    %v5504 = vpop.f32.mrb[0].mxu0
    %v5505 = vadd.f32 0.0, %v5504
    %v5506 = vpop.f32.mrb[0].mxu0
    %5507 = vmatprep.mubr.f32.mxu0 0.0
    %5508 = vmatmul.mubr.f32.gmra.mrb[0].mxu0 %v5434
    %v5509 = vpop.f32.mrb[0].mxu0
    %v5510 = vadd.f32 0.0, %v5509
    %v5511 = vpop.f32.mrb[0].mxu0
    %5512 = vdwg.mxu0
    %5515 = vrot.lane.b32.xlu0 %v5099, 8
    %v5516 = vpop.permute.xlu0 %5515
    %5517 = vrot.lane.b32.xlu0 %v5104, 8
    %v5518 = vpop.permute.xlu0 %5517
    %5523 = vrot.lane.b32.xlu0 %v5302, 16
    %v5524 = vpop.permute.xlu0 %5523
    %5525 = vrot.lane.b32.xlu0 %v5307, 16
    %v5526 = vpop.permute.xlu0 %5525
    %5531 = vrot.lane.b32.xlu0 %v5505, 24
    %v5532 = vpop.permute.xlu0 %5531
    %5533 = vrot.lane.b32.xlu0 %v5510, 24
    %v5534 = vpop.permute.xlu0 %5533
    %v5537 = vsel %vm502, %v4896, %v5516
    %v5538 = vsel %vm502, %v4901, %v5518
    %v5539 = vsel %vm264, %v5537, %v5524
    %v5540 = vsel %vm264, %v5538, %v5526
    %v5541 = vsel %vm1338, %v5539, %v5532
    %v5542 = vsel %vm1338, %v5540, %v5534
    %v5543 = vld [vmem:[%s2647] sm:$0xff]
    %v5544 = vld [vmem:[%s2647 + $0x8] sm:$0xff]
    %v5545 = vld [vmem:[%s2647 + $0x10] sm:$0xff]
    %v5546 = vld [vmem:[%s2647 + $0x18] sm:$0xff]
    %v5547 = vld [vmem:[%s2652] sm:$0x1]
    %v5549 = vlaneseq
    %v5550 = vshrl.u32 %v5549, 7
    %v5551 = vsub.s32 0, %v5550
    %v5552 = vrot.slane %v5547, %v5551
    %v5555 = vsel %vm414, %v5541, 0
    %v5558 = vsel %vm414, %v5542, 0
    %5560 = vmatprep.subr.mxu0 0.0
    %5561 = vmatpush1.msra.mxu0 %v5543
    %5562 = vmatprep.subr.mxu0 0.0
    %5563 = vmatpush1.msra.mxu0 %v5544
    %5564 = vmatprep.subr.mxu0 0.0
    %5565 = vmatpush1.msra.mxu0 %v5545
    %5566 = vmatprep.subr.mxu0 0.0
    %5567 = vmatpush1.msra.mxu0 %v5546
    %5568 = vmatprep.subr.mxu0 0.0
    %5569 = vmatpush1.msra.mxu0 0.0
    %5570 = vmatprep.subr.mxu0 0.0
    %5571 = vmatpush1.msra.mxu0 0.0
    %5572 = vmatprep.subr.mxu0 0.0
    %5573 = vmatpush1.msra.mxu0 0.0
    %5574 = vmatprep.subr.mxu0 0.0
    %5575 = vmatpush1.msra.mxu0 0.0
    %5576 = vmatprep.subr.mxu0 0.0
    %5577 = vmatpush1.msra.mxu0 0.0
    %5578 = vmatprep.subr.mxu0 0.0
    %5579 = vmatpush1.msra.mxu0 0.0
    %5580 = vmatprep.subr.mxu0 0.0
    %5581 = vmatpush1.msra.mxu0 0.0
    %5582 = vmatprep.subr.mxu0 0.0
    %5583 = vmatpush1.msra.mxu0 0.0
    %5584 = vmatprep.subr.mxu0 0.0
    %5585 = vmatpush1.msra.mxu0 0.0
    %5586 = vmatprep.subr.mxu0 0.0
    %5587 = vmatpush1.msra.mxu0 0.0
    %5588 = vmatprep.subr.mxu0 0.0
    %5589 = vmatpush1.msra.mxu0 0.0
    %5590 = vmatprep.subr.mxu0 0.0
    %5591 = vmatpush1.msra.mxu0 0.0
    %5592 = vmatprep.subr.mxu0 0.0
    %5593 = vmatpush1.msra.mxu0 0.0
    %5594 = vmatprep.subr.mxu0 0.0
    %5595 = vmatpush1.msra.mxu0 0.0
    %5596 = vmatprep.subr.mxu0 0.0
    %5597 = vmatpush1.msra.mxu0 0.0
    %5598 = vmatprep.subr.mxu0 0.0
    %5599 = vmatpush1.msra.mxu0 0.0
    %5600 = vmatprep.subr.mxu0 0.0
    %5601 = vmatpush1.msra.mxu0 0.0
    %5602 = vmatprep.subr.mxu0 0.0
    %5603 = vmatpush1.msra.mxu0 0.0
    %5604 = vmatprep.subr.mxu0 0.0
    %5605 = vmatpush1.msra.mxu0 0.0
    %5606 = vmatprep.subr.mxu0 0.0
    %5607 = vmatpush1.msra.mxu0 0.0
    %5608 = vmatprep.subr.mxu0 0.0
    %5609 = vmatpush1.msra.mxu0 0.0
    %5610 = vmatprep.subr.mxu0 0.0
    %5611 = vmatpush1.msra.mxu0 0.0
    %5612 = vmatprep.subr.mxu0 0.0
    %5613 = vmatpush1.msra.mxu0 0.0
    %5614 = vmatprep.subr.mxu0 0.0
    %5615 = vmatpush1.msra.mxu0 0.0
    %5616 = vmatprep.subr.mxu0 0.0
    %5617 = vmatpush1.msra.mxu0 0.0
    %5618 = vmatprep.subr.mxu0 0.0
    %5619 = vmatpush1.msra.mxu0 0.0
    %5620 = vmatprep.subr.mxu0 0.0
    %5621 = vmatpush1.msra.mxu0 0.0
    %5622 = vmatprep.subr.mxu0 0.0
    %5623 = vmatpush1.msra.mxu0 0.0
    %5624 = vmatprep.mubr.f32.mxu0 0.0
    %5625 = vmatmul.mubr.f32.gmra.mrb[0].mxu0 %v5555
    %v5626 = vpop.f32.mrb[0].mxu0
    %v5627 = vadd.f32 %v5552, %v5626
    %v5628 = vpop.f32.mrb[0].mxu0
    %5629 = vmatprep.mubr.f32.mxu0 0.0
    %5630 = vmatmul.mubr.f32.gmra.mrb[0].mxu0 %v5558
    %v5631 = vpop.f32.mrb[0].mxu0
    %v5632 = vadd.f32 %v5552, %v5631
    %v5633 = vpop.f32.mrb[0].mxu0
    %5634 = vdwg.mxu0
    %v5635 = vadd.f32 %v4609, %v5627
    %v5636 = vadd.f32 %v4610, %v5632
    %v5637 = vld [vmem:[%s2743] sm:$0x1]
    %v5638 = vld [vmem:[%s2745] sm:$0x1]
    %v5639 = vsel %vm414, %v5635, 0.0
    %5640 = vadd.xlane.f32.xlu0 %v5639
    %v5641 = vpop.xlane.xlu0 %5640
    %v5642 = vsel %vm1440, %v5636, 0.0
    %5643 = vadd.xlane.f32.xlu0 %v5642
    %v5644 = vpop.xlane.xlu0 %5643
    %v5645 = vmul.f32 %v5641, %v1444
    %v5646 = vmul.f32 %v5644, %v1444
    %v5647 = vsub.f32 %v5635, %v5645
    %v5648 = vsub.f32 %v5636, %v5646
    %v5649 = vmul.f32 %v5647, %v5647
    %v5650 = vmul.f32 %v5648, %v5648
    %v5651 = vsel %vm414, %v5649, 0.0
    %5652 = vadd.xlane.f32.xlu0 %v5651
    %v5653 = vpop.xlane.xlu0 %5652
    %v5654 = vsel %vm1440, %v5650, 0.0
    %5655 = vadd.xlane.f32.xlu0 %v5654
    %v5656 = vpop.xlane.xlu0 %5655
    %v5657 = vmul.f32 %v5653, %v1444
    %v5658 = vmul.f32 %v5656, %v1444
    %v5659 = vadd.f32 %v5657, 1e-05
    %v5660 = vadd.f32 %v5658, 1e-05
    %v5661 = vrsqrt.pop %v5659
    %v5662 = vrsqrt.pop %v5660
    %v5663 = vmul.f32 %v5647, %v5661
    %v5664 = vmul.f32 %v5648, %v5662
    %v5666 = vlaneseq
    %v5667 = vshrl.u32 %v5666, 7
    %v5668 = vsub.s32 0, %v5667
    %v5669 = vrot.slane %v5637, %v5668
    %v5671 = vmul.f32 %v5663, %v5669
    %v5672 = vmul.f32 %v5664, %v5669
    %v5674 = vlaneseq
    %v5675 = vshrl.u32 %v5674, 7
    %v5676 = vsub.s32 0, %v5675
    %v5677 = vrot.slane %v5638, %v5676
    %v5679 = vadd.f32 %v5671, %v5677
    %v5680 = vadd.f32 %v5672, %v5677
    %v5681 = vld [vmem:[%s2789] sm:$0xff]
    %v5682 = vld [vmem:[%s2789 + $0x8] sm:$0xff]
    %v5683 = vld [vmem:[%s2789 + $0x10] sm:$0xff]
    %v5684 = vld [vmem:[%s2789 + $0x18] sm:$0xff]
    %v5685 = vld [vmem:[%s2794] sm:$0x1]
    %v5687 = vlaneseq
    %v5688 = vshrl.u32 %v5687, 7
    %v5689 = vsub.s32 0, %v5688
    %v5690 = vrot.slane %v5685, %v5689
    %v5693 = vsel %vm414, %v5679, 0
    %v5696 = vsel %vm414, %v5680, 0
    %5698 = vmatprep.subr.mxu0 0.0
    %5699 = vmatpush1.msra.mxu0 %v5681
    %5700 = vmatprep.subr.mxu0 0.0
    %5701 = vmatpush1.msra.mxu0 %v5682
    %5702 = vmatprep.subr.mxu0 0.0
    %5703 = vmatpush1.msra.mxu0 %v5683
    %5704 = vmatprep.subr.mxu0 0.0
    %5705 = vmatpush1.msra.mxu0 %v5684
    %5706 = vmatprep.subr.mxu0 0.0
    %5707 = vmatpush1.msra.mxu0 0.0
    %5708 = vmatprep.subr.mxu0 0.0
    %5709 = vmatpush1.msra.mxu0 0.0
    %5710 = vmatprep.subr.mxu0 0.0
    %5711 = vmatpush1.msra.mxu0 0.0
    %5712 = vmatprep.subr.mxu0 0.0
    %5713 = vmatpush1.msra.mxu0 0.0
    %5714 = vmatprep.subr.mxu0 0.0
    %5715 = vmatpush1.msra.mxu0 0.0
    %5716 = vmatprep.subr.mxu0 0.0
    %5717 = vmatpush1.msra.mxu0 0.0
    %5718 = vmatprep.subr.mxu0 0.0
    %5719 = vmatpush1.msra.mxu0 0.0
    %5720 = vmatprep.subr.mxu0 0.0
    %5721 = vmatpush1.msra.mxu0 0.0
    %5722 = vmatprep.subr.mxu0 0.0
    %5723 = vmatpush1.msra.mxu0 0.0
    %5724 = vmatprep.subr.mxu0 0.0
    %5725 = vmatpush1.msra.mxu0 0.0
    %5726 = vmatprep.subr.mxu0 0.0
    %5727 = vmatpush1.msra.mxu0 0.0
    %5728 = vmatprep.subr.mxu0 0.0
    %5729 = vmatpush1.msra.mxu0 0.0
    %5730 = vmatprep.subr.mxu0 0.0
    %5731 = vmatpush1.msra.mxu0 0.0
    %5732 = vmatprep.subr.mxu0 0.0
    %5733 = vmatpush1.msra.mxu0 0.0
    %5734 = vmatprep.subr.mxu0 0.0
    %5735 = vmatpush1.msra.mxu0 0.0
    %5736 = vmatprep.subr.mxu0 0.0
    %5737 = vmatpush1.msra.mxu0 0.0
    %5738 = vmatprep.subr.mxu0 0.0
    %5739 = vmatpush1.msra.mxu0 0.0
    %5740 = vmatprep.subr.mxu0 0.0
    %5741 = vmatpush1.msra.mxu0 0.0
    %5742 = vmatprep.subr.mxu0 0.0
    %5743 = vmatpush1.msra.mxu0 0.0
    %5744 = vmatprep.subr.mxu0 0.0
    %5745 = vmatpush1.msra.mxu0 0.0
    %5746 = vmatprep.subr.mxu0 0.0
    %5747 = vmatpush1.msra.mxu0 0.0
    %5748 = vmatprep.subr.mxu0 0.0
    %5749 = vmatpush1.msra.mxu0 0.0
    %5750 = vmatprep.subr.mxu0 0.0
    %5751 = vmatpush1.msra.mxu0 0.0
    %5752 = vmatprep.subr.mxu0 0.0
    %5753 = vmatpush1.msra.mxu0 0.0
    %5754 = vmatprep.subr.mxu0 0.0
    %5755 = vmatpush1.msra.mxu0 0.0
    %5756 = vmatprep.subr.mxu0 0.0
    %5757 = vmatpush1.msra.mxu0 0.0
    %5758 = vmatprep.subr.mxu0 0.0
    %5759 = vmatpush1.msra.mxu0 0.0
    %5760 = vmatprep.subr.mxu0 0.0
    %5761 = vmatpush1.msra.mxu0 0.0
    %5762 = vmatprep.mubr.f32.mxu0 0.0
    %5763 = vmatmul.mubr.f32.gmra.mrb[0].mxu0 %v5693
    %v5764 = vpop.f32.mrb[0].mxu0
    %v5765 = vadd.f32 %v5690, %v5764
    %v5766 = vpop.f32.mrb[0].mxu0
    %5767 = vmatprep.mubr.f32.mxu0 0.0
    %5768 = vmatmul.mubr.f32.gmra.mrb[0].mxu0 %v5696
    %v5769 = vpop.f32.mrb[0].mxu0
    %v5770 = vadd.f32 %v5690, %v5769
    %v5771 = vpop.f32.mrb[0].mxu0
    %5772 = vdwg.mxu0
    %v5773 = vmax.f32 %v5765, 0.0
    %v5774 = vmax.f32 %v5770, 0.0
    %v5775 = vld [vmem:[%s2885] sm:$0xff]
    %v5776 = vld [vmem:[%s2885 + $0x8] sm:$0xff]
    %v5777 = vld [vmem:[%s2885 + $0x10] sm:$0xff]
    %v5778 = vld [vmem:[%s2885 + $0x18] sm:$0xff]
    %v5779 = vld [vmem:[%s2890] sm:$0x1]
    %v5781 = vlaneseq
    %v5782 = vshrl.u32 %v5781, 7
    %v5783 = vsub.s32 0, %v5782
    %v5784 = vrot.slane %v5779, %v5783
    %v5787 = vsel %vm414, %v5773, 0
    %v5790 = vsel %vm414, %v5774, 0
    %5792 = vmatprep.subr.mxu0 0.0
    %5793 = vmatpush1.msra.mxu0 %v5775
    %5794 = vmatprep.subr.mxu0 0.0
    %5795 = vmatpush1.msra.mxu0 %v5776
    %5796 = vmatprep.subr.mxu0 0.0
    %5797 = vmatpush1.msra.mxu0 %v5777
    %5798 = vmatprep.subr.mxu0 0.0
    %5799 = vmatpush1.msra.mxu0 %v5778
    %5800 = vmatprep.subr.mxu0 0.0
    %5801 = vmatpush1.msra.mxu0 0.0
    %5802 = vmatprep.subr.mxu0 0.0
    %5803 = vmatpush1.msra.mxu0 0.0
    %5804 = vmatprep.subr.mxu0 0.0
    %5805 = vmatpush1.msra.mxu0 0.0
    %5806 = vmatprep.subr.mxu0 0.0
    %5807 = vmatpush1.msra.mxu0 0.0
    %5808 = vmatprep.subr.mxu0 0.0
    %5809 = vmatpush1.msra.mxu0 0.0
    %5810 = vmatprep.subr.mxu0 0.0
    %5811 = vmatpush1.msra.mxu0 0.0
    %5812 = vmatprep.subr.mxu0 0.0
    %5813 = vmatpush1.msra.mxu0 0.0
    %5814 = vmatprep.subr.mxu0 0.0
    %5815 = vmatpush1.msra.mxu0 0.0
    %5816 = vmatprep.subr.mxu0 0.0
    %5817 = vmatpush1.msra.mxu0 0.0
    %5818 = vmatprep.subr.mxu0 0.0
    %5819 = vmatpush1.msra.mxu0 0.0
    %5820 = vmatprep.subr.mxu0 0.0
    %5821 = vmatpush1.msra.mxu0 0.0
    %5822 = vmatprep.subr.mxu0 0.0
    %5823 = vmatpush1.msra.mxu0 0.0
    %5824 = vmatprep.subr.mxu0 0.0
    %5825 = vmatpush1.msra.mxu0 0.0
    %5826 = vmatprep.subr.mxu0 0.0
    %5827 = vmatpush1.msra.mxu0 0.0
    %5828 = vmatprep.subr.mxu0 0.0
    %5829 = vmatpush1.msra.mxu0 0.0
    %5830 = vmatprep.subr.mxu0 0.0
    %5831 = vmatpush1.msra.mxu0 0.0
    %5832 = vmatprep.subr.mxu0 0.0
    %5833 = vmatpush1.msra.mxu0 0.0
    %5834 = vmatprep.subr.mxu0 0.0
    %5835 = vmatpush1.msra.mxu0 0.0
    %5836 = vmatprep.subr.mxu0 0.0
    %5837 = vmatpush1.msra.mxu0 0.0
    %5838 = vmatprep.subr.mxu0 0.0
    %5839 = vmatpush1.msra.mxu0 0.0
    %5840 = vmatprep.subr.mxu0 0.0
    %5841 = vmatpush1.msra.mxu0 0.0
    %5842 = vmatprep.subr.mxu0 0.0
    %5843 = vmatpush1.msra.mxu0 0.0
    %5844 = vmatprep.subr.mxu0 0.0
    %5845 = vmatpush1.msra.mxu0 0.0
    %5846 = vmatprep.subr.mxu0 0.0
    %5847 = vmatpush1.msra.mxu0 0.0
    %5848 = vmatprep.subr.mxu0 0.0
    %5849 = vmatpush1.msra.mxu0 0.0
    %5850 = vmatprep.subr.mxu0 0.0
    %5851 = vmatpush1.msra.mxu0 0.0
    %5852 = vmatprep.subr.mxu0 0.0
    %5853 = vmatpush1.msra.mxu0 0.0
    %5854 = vmatprep.subr.mxu0 0.0
    %5855 = vmatpush1.msra.mxu0 0.0
    %5856 = vmatprep.mubr.f32.mxu0 0.0
    %5857 = vmatmul.mubr.f32.gmra.mrb[0].mxu0 %v5787
    %v5858 = vpop.f32.mrb[0].mxu0
    %v5859 = vadd.f32 %v5784, %v5858
    %v5860 = vpop.f32.mrb[0].mxu0
    %5861 = vmatprep.mubr.f32.mxu0 0.0
    %5862 = vmatmul.mubr.f32.gmra.mrb[0].mxu0 %v5790
    %v5863 = vpop.f32.mrb[0].mxu0
    %v5864 = vadd.f32 %v5784, %v5863
    %v5865 = vpop.f32.mrb[0].mxu0
    %5866 = vdwg.mxu0
    %v5867 = vadd.f32 %v5679, %v5859
    %v5868 = vadd.f32 %v5680, %v5864
    %v5869 = vld [vmem:[%s2981] sm:$0x1]
    %v5870 = vld [vmem:[%s2983] sm:$0x1]
    %v5871 = vsel %vm414, %v5867, 0.0
    %5872 = vadd.xlane.f32.xlu0 %v5871
    %v5873 = vpop.xlane.xlu0 %5872
    %v5874 = vsel %vm1440, %v5868, 0.0
    %5875 = vadd.xlane.f32.xlu0 %v5874
    %v5876 = vpop.xlane.xlu0 %5875
    %v5877 = vmul.f32 %v5873, %v1444
    %v5878 = vmul.f32 %v5876, %v1444
    %v5879 = vsub.f32 %v5867, %v5877
    %v5880 = vsub.f32 %v5868, %v5878
    %v5881 = vmul.f32 %v5879, %v5879
    %v5882 = vmul.f32 %v5880, %v5880
    %v5883 = vsel %vm414, %v5881, 0.0
    %5884 = vadd.xlane.f32.xlu0 %v5883
    %v5885 = vpop.xlane.xlu0 %5884
    %v5886 = vsel %vm1440, %v5882, 0.0
    %5887 = vadd.xlane.f32.xlu0 %v5886
    %v5888 = vpop.xlane.xlu0 %5887
    %v5889 = vmul.f32 %v5885, %v1444
    %v5890 = vmul.f32 %v5888, %v1444
    %v5891 = vadd.f32 %v5889, 1e-05
    %v5892 = vadd.f32 %v5890, 1e-05
    %v5893 = vrsqrt.pop %v5891
    %v5894 = vrsqrt.pop %v5892
    %v5895 = vmul.f32 %v5879, %v5893
    %v5896 = vmul.f32 %v5880, %v5894
    %v5898 = vlaneseq
    %v5899 = vshrl.u32 %v5898, 7
    %v5900 = vsub.s32 0, %v5899
    %v5901 = vrot.slane %v5869, %v5900
    %v5903 = vmul.f32 %v5895, %v5901
    %v5904 = vmul.f32 %v5896, %v5901
    %v5906 = vlaneseq
    %v5907 = vshrl.u32 %v5906, 7
    %v5908 = vsub.s32 0, %v5907
    %v5909 = vrot.slane %v5870, %v5908
    %v5911 = vadd.f32 %v5903, %v5909
    %v5912 = vadd.f32 %v5904, %v5909
    %v5913 = vld [vmem:[#allocation21] sm:$0x1]
    %v5914 = vld [vmem:[#allocation22] sm:$0x1]
    %v5915 = vsel %vm414, %v5911, 0.0
    %5916 = vadd.xlane.f32.xlu0 %v5915
    %v5917 = vpop.xlane.xlu0 %5916
    %v5918 = vsel %vm1440, %v5912, 0.0
    %5919 = vadd.xlane.f32.xlu0 %v5918
    %v5920 = vpop.xlane.xlu0 %5919
    %v5921 = vmul.f32 %v5917, %v1444
    %v5922 = vmul.f32 %v5920, %v1444
    %v5923 = vsub.f32 %v5911, %v5921
    %v5924 = vsub.f32 %v5912, %v5922
    %v5925 = vmul.f32 %v5923, %v5923
    %v5926 = vmul.f32 %v5924, %v5924
    %v5927 = vsel %vm414, %v5925, 0.0
    %5928 = vadd.xlane.f32.xlu0 %v5927
    %v5929 = vpop.xlane.xlu0 %5928
    %v5930 = vsel %vm1440, %v5926, 0.0
    %5931 = vadd.xlane.f32.xlu0 %v5930
    %v5932 = vpop.xlane.xlu0 %5931
    %v5933 = vmul.f32 %v5929, %v1444
    %v5934 = vmul.f32 %v5932, %v1444
    %v5935 = vadd.f32 %v5933, 1e-05
    %v5936 = vadd.f32 %v5934, 1e-05
    %v5937 = vrsqrt.pop %v5935
    %v5938 = vrsqrt.pop %v5936
    %v5939 = vmul.f32 %v5923, %v5937
    %v5940 = vmul.f32 %v5924, %v5938
    %v5942 = vlaneseq
    %v5943 = vshrl.u32 %v5942, 7
    %v5944 = vsub.s32 0, %v5943
    %v5945 = vrot.slane %v5913, %v5944
    %v5947 = vmul.f32 %v5939, %v5945
    %v5948 = vmul.f32 %v5940, %v5945
    %v5950 = vlaneseq
    %v5951 = vshrl.u32 %v5950, 7
    %v5952 = vsub.s32 0, %v5951
    %v5953 = vrot.slane %v5914, %v5952
    %v5955 = vadd.f32 %v5947, %v5953
    %v5956 = vadd.f32 %v5948, %v5953
    %v5957 = vld [vmem:[%s17] sm:$0xff]
    %v5958 = vld [vmem:[%s17 + $0x8] sm:$0xff]
    %v5959 = vld [vmem:[%s17 + $0x10] sm:$0xff]
    %v5960 = vld [vmem:[%s17 + $0x18] sm:$0xff]
    %v5961 = vld [vmem:[#allocation24] sm:$0x1]
    %v5963 = vlaneseq
    %v5964 = vshrl.u32 %v5963, 7
    %v5965 = vsub.s32 0, %v5964
    %v5966 = vrot.slane %v5961, %v5965
    %v5969 = vsel %vm414, %v5955, 0
    %v5972 = vsel %vm414, %v5956, 0
    %5974 = vmatprep.subr.mxu0 0.0
    %5975 = vmatpush1.msra.mxu0 %v5957
    %5976 = vmatprep.subr.mxu0 0.0
    %5977 = vmatpush1.msra.mxu0 %v5958
    %5978 = vmatprep.subr.mxu0 0.0
    %5979 = vmatpush1.msra.mxu0 %v5959
    %5980 = vmatprep.subr.mxu0 0.0
    %5981 = vmatpush1.msra.mxu0 %v5960
    %5982 = vmatprep.subr.mxu0 0.0
    %5983 = vmatpush1.msra.mxu0 0.0
    %5984 = vmatprep.subr.mxu0 0.0
    %5985 = vmatpush1.msra.mxu0 0.0
    %5986 = vmatprep.subr.mxu0 0.0
    %5987 = vmatpush1.msra.mxu0 0.0
    %5988 = vmatprep.subr.mxu0 0.0
    %5989 = vmatpush1.msra.mxu0 0.0
    %5990 = vmatprep.subr.mxu0 0.0
    %5991 = vmatpush1.msra.mxu0 0.0
    %5992 = vmatprep.subr.mxu0 0.0
    %5993 = vmatpush1.msra.mxu0 0.0
    %5994 = vmatprep.subr.mxu0 0.0
    %5995 = vmatpush1.msra.mxu0 0.0
    %5996 = vmatprep.subr.mxu0 0.0
    %5997 = vmatpush1.msra.mxu0 0.0
    %5998 = vmatprep.subr.mxu0 0.0
    %5999 = vmatpush1.msra.mxu0 0.0
    %6000 = vmatprep.subr.mxu0 0.0
    %6001 = vmatpush1.msra.mxu0 0.0
    %6002 = vmatprep.subr.mxu0 0.0
    %6003 = vmatpush1.msra.mxu0 0.0
    %6004 = vmatprep.subr.mxu0 0.0
    %6005 = vmatpush1.msra.mxu0 0.0
    %6006 = vmatprep.subr.mxu0 0.0
    %6007 = vmatpush1.msra.mxu0 0.0
    %6008 = vmatprep.subr.mxu0 0.0
    %6009 = vmatpush1.msra.mxu0 0.0
    %6010 = vmatprep.subr.mxu0 0.0
    %6011 = vmatpush1.msra.mxu0 0.0
    %6012 = vmatprep.subr.mxu0 0.0
    %6013 = vmatpush1.msra.mxu0 0.0
    %6014 = vmatprep.subr.mxu0 0.0
    %6015 = vmatpush1.msra.mxu0 0.0
    %6016 = vmatprep.subr.mxu0 0.0
    %6017 = vmatpush1.msra.mxu0 0.0
    %6018 = vmatprep.subr.mxu0 0.0
    %6019 = vmatpush1.msra.mxu0 0.0
    %6020 = vmatprep.subr.mxu0 0.0
    %6021 = vmatpush1.msra.mxu0 0.0
    %6022 = vmatprep.subr.mxu0 0.0
    %6023 = vmatpush1.msra.mxu0 0.0
    %6024 = vmatprep.subr.mxu0 0.0
    %6025 = vmatpush1.msra.mxu0 0.0
    %6026 = vmatprep.subr.mxu0 0.0
    %6027 = vmatpush1.msra.mxu0 0.0
    %6028 = vmatprep.subr.mxu0 0.0
    %6029 = vmatpush1.msra.mxu0 0.0
    %6030 = vmatprep.subr.mxu0 0.0
    %6031 = vmatpush1.msra.mxu0 0.0
    %6032 = vmatprep.subr.mxu0 0.0
    %6033 = vmatpush1.msra.mxu0 0.0
    %6034 = vmatprep.subr.mxu0 0.0
    %6035 = vmatpush1.msra.mxu0 0.0
    %6036 = vmatprep.subr.mxu0 0.0
    %6037 = vmatpush1.msra.mxu0 0.0
    %6038 = vmatprep.mubr.f32.mxu0 0.0
    %6039 = vmatmul.mubr.f32.gmra.mrb[0].mxu0 %v5969
    %v6040 = vpop.f32.mrb[0].mxu0
    %v6041 = vadd.f32 %v5966, %v6040
    %v6042 = vpop.f32.mrb[0].mxu0
    %6043 = vmatprep.mubr.f32.mxu0 0.0
    %6044 = vmatmul.mubr.f32.gmra.mrb[0].mxu0 %v5972
    %v6045 = vpop.f32.mrb[0].mxu0
    %v6046 = vadd.f32 %v5966, %v6045
    %v6047 = vpop.f32.mrb[0].mxu0
    %6048 = vdwg.mxu0
    %v6049 = vmul.f32 %v6041, %v3201
    %v6050 = vmul.f32 %v6046, %v3208
    %v6051 = vadd.f32 %v6049, %v3179
    %v6052 = vadd.f32 %v6050, %v3180
    %s6053 = scalar_lea.vmem %s19, 16
    %6054 = vst.msk [vmem:[%s6053] sm:$0xff] %vm502, %v6051
    %6055 = vst.msk [vmem:[%s6053 + $0x8] sm:$0xf] %vm3168, %v6052
    // Predicated region
    $region138: #{forward.1} parent=1 // pred_check
      _
    $region139: #{forward.1} parent=1 // pred_check_branch
      %6057 = sbr.rel (0) target = $region141
    $region140: #{forward.1} parent=1 // pred_region
      _
    $region141: #{forward.1} parent=1 // pred_fallthru
      _
    // Predicated region
    $region142: #{forward.1} parent=1 // pred_check
      _
    $region143: #{forward.1} parent=1 // pred_check_branch
      %6059 = sbr.rel (0) target = $region145
    $region144: #{forward.1} parent=1 // pred_region
      _
    $region145: #{forward.1} parent=1 // pred_fallthru
      _
    %6060 = vsyncpa [#allocation3], 1
    %6061 = vsyncpa [#allocation5], 1
    %6062 = vsyncpa [#allocation8], 1
    %6063 = vsyncpa [#allocation11], 1
    %6064 = vsyncpa [#allocation14], 1
    %6065 = vsyncpa [#allocation17], 1
    %6066 = vsyncpa [#allocation20], 1
    %6067 = vsyncpa [#allocation23], 1

</llo_original>
